<compile_context>
chip_gen: v7x
topology: tpu7x:2x2x1
jax: 0.10.0
libtpu: 0.0.40
codegen_flags: <defaults>
</compile_context>

<pallas_src>
import math
import functools

import jax
import jax.numpy as jnp
import numpy as np
from jax.experimental import pallas as pl
from jax.experimental.pallas import tpu as pltpu


# ----------------------------------------------------------------------------
# helpers
# ----------------------------------------------------------------------------
def _layernorm_te(v, gamma, beta, eps):
    """LayerNorm over the last TWO dims (T, E) jointly, per batch element.

    v: (Bb, T, E) f32; gamma/beta: (T, E) f32.
    """
    mu = jnp.mean(jnp.mean(v, axis=2, keepdims=True), axis=1, keepdims=True)
    d = v - mu
    var = jnp.mean(jnp.mean(d * d, axis=2, keepdims=True), axis=1, keepdims=True)
    return d * jax.lax.rsqrt(var + eps) * gamma[None] + beta[None]


# ----------------------------------------------------------------------------
# Pallas kernel: one batch block (Bb batch elements) per grid step
# ----------------------------------------------------------------------------
def _transformer_block_kernel(
    inp_ref,      # (Bb, L_in, E) f32  -- module inputs (seq_len + ABS rows)
    emb_ref,      # (mem_len, E)  f32  -- memory embedding table
    wq_ref,       # (H, E, D) bf16     -- per-head q projection
    wk_ref,       # (H, E, D) bf16
    wv_ref,       # (H, E, D) bf16
    bq_ref,       # (H, 1, D) f32
    bk_ref,       # (H, 1, D) f32
    bv_ref,       # (H, 1, D) f32
    wo_ref,       # (H, D, E) bf16     -- per-head slice of out_proj.weight.T
    bo_ref,       # (1, E) f32
    w1_ref,       # (E, F) bf16
    b1_ref,       # (1, F) f32
    w2_ref,       # (F, E) bf16
    b2_ref,       # (1, E) f32
    g1_ref,       # (T, E) f32  layernorm1 weight
    be1_ref,      # (T, E) f32  layernorm1 bias
    g2_ref,       # (T, E) f32  layernorm2 weight
    be2_ref,      # (T, E) f32  layernorm2 bias
    o_ref,        # (Bb, L_in, E) f32  -- only the returned rows are stored
    *,
    num_heads,
    mem_len,
    eps,
):
    Bb, L_in, E = inp_ref.shape
    T = L_in + mem_len
    H = num_heads
    D = E // H
    scale = jnp.float32(1.0 / math.sqrt(D))
    inv_sqrt2 = jnp.float32(1.0 / math.sqrt(2.0))

    # ---- assemble x = cat(inputs, memory) inside the kernel ------------------
    x_in = inp_ref[...]                                              # (Bb,L_in,E) f32
    mem = jnp.broadcast_to(emb_ref[...][None], (Bb, mem_len, E))     # (Bb,mem,E)
    x = jnp.concatenate([x_in, mem], axis=1)                         # (Bb, T, E)
    x2 = x.reshape(Bb * T, E)
    xb = x2.astype(jnp.bfloat16)                                     # MXU operand

    # ---- multi-head self attention (heads pre-split in the wrapper) ----------
    # attn = sum_h softmax(q_h k_h^T / sqrt(D)) v_h @ Wo_h   (+ biases)
    attn2 = jnp.zeros((Bb * T, E), jnp.float32)
    for h in range(H):                                               # static, small H
        qh = jnp.dot(xb, wq_ref[h], preferred_element_type=jnp.float32) + bq_ref[h]
        kh = jnp.dot(xb, wk_ref[h], preferred_element_type=jnp.float32) + bk_ref[h]
        vh = jnp.dot(xb, wv_ref[h], preferred_element_type=jnp.float32) + bv_ref[h]

        qh3 = (qh * scale).reshape(Bb, T, D)
        kh3 = kh.reshape(Bb, T, D)
        vh3 = vh.reshape(Bb, T, D)

        s = jnp.einsum("bqd,bkd->bqk",
                       qh3.astype(jnp.bfloat16), kh3.astype(jnp.bfloat16),
                       preferred_element_type=jnp.float32)           # (Bb, T, T)
        s = s - jnp.max(s, axis=-1, keepdims=True)
        p = jnp.exp(s)
        p = p * pl.reciprocal(jnp.sum(p, axis=-1, keepdims=True), approx=True)

        ctx = jnp.einsum("bqk,bkd->bqd",
                         p.astype(jnp.bfloat16), vh3.astype(jnp.bfloat16),
                         preferred_element_type=jnp.float32)         # (Bb, T, D)

        attn2 = attn2 + jnp.dot(ctx.reshape(Bb * T, D).astype(jnp.bfloat16),
                                wo_ref[h],
                                preferred_element_type=jnp.float32)
    attn = (attn2 + bo_ref[0]).reshape(Bb, T, E)

    # dropout1: identity (eval)

    # ---- LayerNorm over (T, E) jointly, per batch element ---------------------
    res1 = x + attn
    out1 = _layernorm_te(res1, g1_ref[...], be1_ref[...], eps)       # (Bb, T, E)

    # ---- FFN: Linear -> GELU(exact, matches nn.GELU default) -> Linear --------
    out1_2 = out1.reshape(Bb * T, E)
    h1 = jnp.dot(out1_2.astype(jnp.bfloat16), w1_ref[...],
                 preferred_element_type=jnp.float32) + b1_ref[0]     # (Bb*T, F)
    h1 = 0.5 * h1 * (1.0 + jax.lax.erf(h1 * inv_sqrt2))
    ffn2 = jnp.dot(h1.astype(jnp.bfloat16), w2_ref[...],
                   preferred_element_type=jnp.float32) + b2_ref[0]   # (Bb*T, E)

    # dropout2: identity (eval)

    # ---- second LayerNorm over (T, E) -----------------------------------------
    res2 = out1 + ffn2.reshape(Bb, T, E)
    out2 = _layernorm_te(res2, g2_ref[...], be2_ref[...], eps)

    # only the module's returned rows are written back (out[:, :seq_len+ABS, :])
    o_ref[...] = out2[:, :L_in, :].astype(o_ref.dtype)


# ----------------------------------------------------------------------------
# Wrapper: host-side weight re-packing + pallas_call
# ----------------------------------------------------------------------------
def transformer_block(inputs, params, *, num_heads, seq_len, mem_len, abs_flag,
                      eps=1e-6, max_batch_block=8):
    B, L_in, E = inputs.shape
    assert L_in == seq_len + abs_flag
    assert mem_len > 0
    T = L_in + mem_len
    F = params["w1_T"].shape[1]
    H = num_heads
    D = E // H

    # batch block: largest divisor of B that is <= max_batch_block
    Bb = 1
    for c in range(1, min(B, max_batch_block) + 1):
        if B % c == 0:
            Bb = c
    grid = (B // Bb,)

    # --- host-side re-packing (free): split attention weights per head,
    #     cast matmul weights to bf16 (f32 accumulation inside the kernel) ----
    w_in_T = params["w_in_T"]                       # (E, 3E) = in_proj_weight.T
    b_in = params["b_in"]                           # (3E,)

    def head_w(w2d):                                # (E, E) -> (H, E, D)
        return w2d.reshape(E, H, D).transpose(1, 0, 2)

    def head_b(b1d):                                # (E,) -> (H, 1, D)
        return b1d.reshape(H, 1, D)

    wq = head_w(w_in_T[:, :E]).astype(jnp.bfloat16)
    wk = head_w(w_in_T[:, E:2 * E]).astype(jnp.bfloat16)
    wv = head_w(w_in_T[:, 2 * E:]).astype(jnp.bfloat16)
    bq = head_b(b_in[:E]).astype(jnp.float32)
    bk = head_b(b_in[E:2 * E]).astype(jnp.float32)
    bv = head_b(b_in[2 * E:]).astype(jnp.float32)
    wo = params["w_o_T"].reshape(H, D, E).astype(jnp.bfloat16)   # per-head rows
    bo = params["b_o"].reshape(1, E).astype(jnp.float32)
    w1 = params["w1_T"].astype(jnp.bfloat16)
    b1 = params["b1"].reshape(1, F).astype(jnp.float32)
    w2 = params["w2_T"].astype(jnp.bfloat16)
    b2 = params["b2"].reshape(1, E).astype(jnp.float32)

    def full(shape):
        return pl.BlockSpec(shape, lambda b: (0,) * len(shape))

    kernel = functools.partial(
        _transformer_block_kernel, num_heads=H, mem_len=mem_len, eps=eps)

    out = pl.pallas_call(
        kernel,
        out_shape=jax.ShapeDtypeStruct((B, L_in, E), jnp.float32),
        grid=grid,
        in_specs=[
            pl.BlockSpec((Bb, L_in, E), lambda b: (b, 0, 0)),   # inputs
            full((mem_len, E)),                                 # memory embedding
            full((H, E, D)), full((H, E, D)), full((H, E, D)),  # wq, wk, wv
            full((H, 1, D)), full((H, 1, D)), full((H, 1, D)),  # bq, bk, bv
            full((H, D, E)), full((1, E)),                      # wo, bo
            full((E, F)), full((1, F)),                         # w1, b1
            full((F, E)), full((1, E)),                         # w2, b2
            full((T, E)), full((T, E)),                         # gamma1, beta1
            full((T, E)), full((T, E)),                         # gamma2, beta2
        ],
        out_specs=pl.BlockSpec((Bb, L_in, E), lambda b: (b, 0, 0)),
        compiler_params=pltpu.CompilerParams(
            dimension_semantics=("parallel",)),
    )(
        inputs.astype(jnp.float32), params["emb"].astype(jnp.float32),
        wq, wk, wv, bq, bk, bv, wo, bo, w1, b1, w2, b2,
        params["g1"], params["be1"], params["g2"], params["be2"],
    )
    return out


# ----------------------------------------------------------------------------
# Pure-JAX reference (faithful f32 re-implementation of the PyTorch module)
# ----------------------------------------------------------------------------
def ref_forward(inputs, p, *, num_heads, seq_len, mem_len, abs_flag, eps=1e-6):
    B, _, E = inputs.shape
    mem = jnp.broadcast_to(p["emb"][None], (B, mem_len, E))
    x = jnp.concatenate([inputs, mem], axis=1).astype(jnp.float32)
    T = x.shape[1]
    D = E // num_heads

    qkv = x @ p["w_in_T"] + p["b_in"]
    q, k, v = qkv[..., :E], qkv[..., E:2 * E], qkv[..., 2 * E:]
    split = lambda a: a.reshape(B, T, num_heads, D).transpose(0, 2, 1, 3)
    qh, kh, vh = split(q), split(k), split(v)
    s = jnp.einsum("bhqd,bhkd->bhqk", qh, kh) / math.sqrt(D)
    pr = jax.nn.softmax(s, axis=-1)
    ctx = jnp.einsum("bhqk,bhkd->bhqd", pr, vh).transpose(0, 2, 1, 3).reshape(B, T, E)
    attn = ctx @ p["w_o_T"] + p["b_o"]

    res1 = x + attn
    mu = res1.mean(axis=(1, 2), keepdims=True)
    var = res1.var(axis=(1, 2), keepdims=True)
    out1 = (res1 - mu) / jnp.sqrt(var + eps) * p["g1"] + p["be1"]

    h = out1 @ p["w1_T"] + p["b1"]
    h = 0.5 * h * (1.0 + jax.lax.erf(h / math.sqrt(2.0)))
    ffn = h @ p["w2_T"] + p["b2"]

    res2 = out1 + ffn
    mu2 = res2.mean(axis=(1, 2), keepdims=True)
    var2 = res2.var(axis=(1, 2), keepdims=True)
    out2 = (res2 - mu2) / jnp.sqrt(var2 + eps) * p["g2"] + p["be2"]
    return out2[:, :seq_len + abs_flag, :]


# ----------------------------------------------------------------------------
# Deterministic parameter init + demo
# ----------------------------------------------------------------------------
def init_params(key, *, embed_dim, ff_dim, seq_len, mem_len, abs_flag):
    E, F = embed_dim, ff_dim
    T = seq_len + mem_len + abs_flag
    ks = jax.random.split(key, 10)
    n = lambda k, s, sc: (sc * jax.random.normal(k, s)).astype(jnp.float32)
    return {
        "w_in_T": n(ks[0], (E, 3 * E), 0.05),      # in_proj_weight.T
        "b_in":   n(ks[1], (3 * E,), 0.01),
        "w_o_T":  n(ks[2], (E, E), 0.05),          # out_proj.weight.T
        "b_o":    n(ks[3], (E,), 0.01),
        "w1_T":   n(ks[4], (E, F), 0.05),
        "b1":     n(ks[5], (F,), 0.01),
        "w2_T":   n(ks[6], (F, E), 0.05),
        "b2":     n(ks[7], (E,), 0.01),
        "g1":  jnp.ones((T, E), jnp.float32),      # LayerNorm([T, E]) weights
        "be1": jnp.zeros((T, E), jnp.float32),
        "g2":  jnp.ones((T, E), jnp.float32),
        "be2": jnp.zeros((T, E), jnp.float32),
        "emb":    n(ks[8], (mem_len, E), 0.1),     # nn.Embedding(mem_len, E)
    }


if __name__ == "__main__":
    # Small shapes consistent with the module.
    B, E, H, F = 2, 32, 4, 64
    SEQ, MEM, ABS = 8, 8, 1           # total attended length T = 17
    L_in = SEQ + ABS                  # module's input sequence length

    key = jax.random.PRNGKey(0)
    k_x, k_p = jax.random.split(key)
    params = init_params(k_p, embed_dim=E, ff_dim=F, seq_len=SEQ,
                         mem_len=MEM, abs_flag=ABS)
    inputs = jax.random.normal(k_x, (B, L_in, E), dtype=jnp.float32)

    out = transformer_block(inputs, params, num_heads=H, seq_len=SEQ,
                            mem_len=MEM, abs_flag=ABS)
    out = jax.block_until_ready(out)

    ref = ref_forward(inputs, params, num_heads=H, seq_len=SEQ,
                      mem_len=MEM, abs_flag=ABS)
    ref = jax.block_until_ready(ref)

    assert out.shape == (B, SEQ + ABS, E), out.shape
    assert np.all(np.isfinite(np.asarray(out)))
    np.testing.assert_allclose(np.asarray(out), np.asarray(ref),
                               rtol=2e-2, atol=2e-2)
    print("KERNEL_OK")
</pallas_src>

<mosaic_0001>
module attributes {stable_mosaic.version = 11 : i64} {
  func.func @_transformer_block_kernel(%arg0: i32, %arg1: memref<2x9x32xf32, #tpu.memory_space<vmem>>, %arg2: memref<8x32xf32, #tpu.memory_space<vmem>>, %arg3: memref<4x32x8xbf16, #tpu.memory_space<vmem>>, %arg4: memref<4x32x8xbf16, #tpu.memory_space<vmem>>, %arg5: memref<4x32x8xbf16, #tpu.memory_space<vmem>>, %arg6: memref<4x1x8xf32, #tpu.memory_space<vmem>>, %arg7: memref<4x1x8xf32, #tpu.memory_space<vmem>>, %arg8: memref<4x1x8xf32, #tpu.memory_space<vmem>>, %arg9: memref<4x8x32xbf16, #tpu.memory_space<vmem>>, %arg10: memref<1x32xf32, #tpu.memory_space<vmem>>, %arg11: memref<32x64xbf16, #tpu.memory_space<vmem>>, %arg12: memref<1x64xf32, #tpu.memory_space<vmem>>, %arg13: memref<64x32xbf16, #tpu.memory_space<vmem>>, %arg14: memref<1x32xf32, #tpu.memory_space<vmem>>, %arg15: memref<17x32xf32, #tpu.memory_space<vmem>>, %arg16: memref<17x32xf32, #tpu.memory_space<vmem>>, %arg17: memref<17x32xf32, #tpu.memory_space<vmem>>, %arg18: memref<17x32xf32, #tpu.memory_space<vmem>>, %arg19: memref<2x9x32xf32, #tpu.memory_space<vmem>>) attributes {dimension_semantics = [#tpu.dimension_semantics<parallel>], iteration_bounds = array<i64: 1>, scalar_prefetch = 0 : i64, scratch_operands = 0 : i64, tpu.core_type = #tpu.core_type<tc>, window_params = [{transform_indices = @transform_0, window_bounds = array<i64: 2, 9, 32>}, {pipeline_mode = #tpu.pipeline_mode<synchronous>, transform_indices = @transform_1, window_bounds = array<i64: 8, 32>}, {pipeline_mode = #tpu.pipeline_mode<synchronous>, transform_indices = @transform_2, window_bounds = array<i64: 4, 32, 8>}, {pipeline_mode = #tpu.pipeline_mode<synchronous>, transform_indices = @transform_3, window_bounds = array<i64: 4, 32, 8>}, {pipeline_mode = #tpu.pipeline_mode<synchronous>, transform_indices = @transform_4, window_bounds = array<i64: 4, 32, 8>}, {pipeline_mode = #tpu.pipeline_mode<synchronous>, transform_indices = @transform_5, window_bounds = array<i64: 4, 1, 8>}, {pipeline_mode = #tpu.pipeline_mode<synchronous>, transform_indices = @transform_6, window_bounds = array<i64: 4, 1, 8>}, {pipeline_mode = #tpu.pipeline_mode<synchronous>, transform_indices = @transform_7, window_bounds = array<i64: 4, 1, 8>}, {pipeline_mode = #tpu.pipeline_mode<synchronous>, transform_indices = @transform_8, window_bounds = array<i64: 4, 8, 32>}, {pipeline_mode = #tpu.pipeline_mode<synchronous>, transform_indices = @transform_9, window_bounds = array<i64: 1, 32>}, {pipeline_mode = #tpu.pipeline_mode<synchronous>, transform_indices = @transform_10, window_bounds = array<i64: 32, 64>}, {pipeline_mode = #tpu.pipeline_mode<synchronous>, transform_indices = @transform_11, window_bounds = array<i64: 1, 64>}, {pipeline_mode = #tpu.pipeline_mode<synchronous>, transform_indices = @transform_12, window_bounds = array<i64: 64, 32>}, {pipeline_mode = #tpu.pipeline_mode<synchronous>, transform_indices = @transform_13, window_bounds = array<i64: 1, 32>}, {pipeline_mode = #tpu.pipeline_mode<synchronous>, transform_indices = @transform_14, window_bounds = array<i64: 17, 32>}, {pipeline_mode = #tpu.pipeline_mode<synchronous>, transform_indices = @transform_15, window_bounds = array<i64: 17, 32>}, {pipeline_mode = #tpu.pipeline_mode<synchronous>, transform_indices = @transform_16, window_bounds = array<i64: 17, 32>}, {pipeline_mode = #tpu.pipeline_mode<synchronous>, transform_indices = @transform_17, window_bounds = array<i64: 17, 32>}, {transform_indices = @transform_18, window_bounds = array<i64: 2, 9, 32>}]} {
    %c0 = arith.constant 0 : index
    %c0_0 = arith.constant 0 : index
    %c0_1 = arith.constant 0 : index
    %0 = vector.load %arg1[%c0, %c0_0, %c0_1] : memref<2x9x32xf32, #tpu.memory_space<vmem>>, vector<2x9x32xf32>
    %c0_2 = arith.constant 0 : index
    %c0_3 = arith.constant 0 : index
    %1 = vector.load %arg2[%c0_2, %c0_3] : memref<8x32xf32, #tpu.memory_space<vmem>>, vector<8x32xf32>
    %2 = vector.shape_cast %1 : vector<8x32xf32> to vector<1x8x32xf32>
    %3 = vector.shape_cast %2 : vector<1x8x32xf32> to vector<1x8x32xf32>
    %4 = vector.broadcast %3 : vector<1x8x32xf32> to vector<2x8x32xf32>
    %5 = tpu.concatenate %0, %4 in 1 : vector<2x9x32xf32>, vector<2x8x32xf32> -> vector<2x17x32xf32>
    %6 = vector.shape_cast %5 : vector<2x17x32xf32> to vector<34x32xf32>
    %7 = arith.truncf %6 : vector<34x32xf32> to vector<34x32xbf16>
    %cst = arith.constant 0.000000e+00 : f32
    %8 = vector.broadcast %cst : f32 to vector<34x32xf32>
    %c0_4 = arith.constant 0 : index
    %c0_5 = arith.constant 0 : index
    %c0_6 = arith.constant 0 : index
    %9 = vector.load %arg3[%c0_4, %c0_5, %c0_6] : memref<4x32x8xbf16, #tpu.memory_space<vmem>>, vector<1x32x8xbf16>
    %10 = vector.shape_cast %9 : vector<1x32x8xbf16> to vector<32x8xbf16>
    %cst_7 = arith.constant dense<0.000000e+00> : vector<34x8xf32>
    %11 = tpu.matmul %7, %10, %cst_7 {dimension_numbers = #tpu.dot_dimension_numbers<[1], [0], [0], [1], [0, 0, 1, 1], [], []>} : vector<34x32xbf16>, vector<32x8xbf16>, vector<34x8xf32> -> vector<34x8xf32>
    %c0_8 = arith.constant 0 : index
    %c0_9 = arith.constant 0 : index
    %c0_10 = arith.constant 0 : index
    %12 = vector.load %arg6[%c0_8, %c0_9, %c0_10] : memref<4x1x8xf32, #tpu.memory_space<vmem>>, vector<1x1x8xf32>
    %13 = vector.shape_cast %12 : vector<1x1x8xf32> to vector<1x8xf32>
    %14 = vector.broadcast %13 : vector<1x8xf32> to vector<34x8xf32>
    %15 = arith.addf %11, %14 : vector<34x8xf32>
    %c0_11 = arith.constant 0 : index
    %c0_12 = arith.constant 0 : index
    %c0_13 = arith.constant 0 : index
    %16 = vector.load %arg4[%c0_11, %c0_12, %c0_13] : memref<4x32x8xbf16, #tpu.memory_space<vmem>>, vector<1x32x8xbf16>
    %17 = vector.shape_cast %16 : vector<1x32x8xbf16> to vector<32x8xbf16>
    %cst_14 = arith.constant dense<0.000000e+00> : vector<34x8xf32>
    %18 = tpu.matmul %7, %17, %cst_14 {dimension_numbers = #tpu.dot_dimension_numbers<[1], [0], [0], [1], [0, 0, 1, 1], [], []>} : vector<34x32xbf16>, vector<32x8xbf16>, vector<34x8xf32> -> vector<34x8xf32>
    %c0_15 = arith.constant 0 : index
    %c0_16 = arith.constant 0 : index
    %c0_17 = arith.constant 0 : index
    %19 = vector.load %arg7[%c0_15, %c0_16, %c0_17] : memref<4x1x8xf32, #tpu.memory_space<vmem>>, vector<1x1x8xf32>
    %20 = vector.shape_cast %19 : vector<1x1x8xf32> to vector<1x8xf32>
    %21 = vector.broadcast %20 : vector<1x8xf32> to vector<34x8xf32>
    %22 = arith.addf %18, %21 : vector<34x8xf32>
    %c0_18 = arith.constant 0 : index
    %c0_19 = arith.constant 0 : index
    %c0_20 = arith.constant 0 : index
    %23 = vector.load %arg5[%c0_18, %c0_19, %c0_20] : memref<4x32x8xbf16, #tpu.memory_space<vmem>>, vector<1x32x8xbf16>
    %24 = vector.shape_cast %23 : vector<1x32x8xbf16> to vector<32x8xbf16>
    %cst_21 = arith.constant dense<0.000000e+00> : vector<34x8xf32>
    %25 = tpu.matmul %7, %24, %cst_21 {dimension_numbers = #tpu.dot_dimension_numbers<[1], [0], [0], [1], [0, 0, 1, 1], [], []>} : vector<34x32xbf16>, vector<32x8xbf16>, vector<34x8xf32> -> vector<34x8xf32>
    %c0_22 = arith.constant 0 : index
    %c0_23 = arith.constant 0 : index
    %c0_24 = arith.constant 0 : index
    %26 = vector.load %arg8[%c0_22, %c0_23, %c0_24] : memref<4x1x8xf32, #tpu.memory_space<vmem>>, vector<1x1x8xf32>
    %27 = vector.shape_cast %26 : vector<1x1x8xf32> to vector<1x8xf32>
    %28 = vector.broadcast %27 : vector<1x8xf32> to vector<34x8xf32>
    %29 = arith.addf %25, %28 : vector<34x8xf32>
    %cst_25 = arith.constant 0.353553385 : f32
    %30 = vector.broadcast %cst_25 : f32 to vector<34x8xf32>
    %31 = arith.mulf %15, %30 : vector<34x8xf32>
    %32 = vector.shape_cast %31 : vector<34x8xf32> to vector<2x17x8xf32>
    %33 = vector.shape_cast %22 : vector<34x8xf32> to vector<2x17x8xf32>
    %34 = vector.shape_cast %29 : vector<34x8xf32> to vector<2x17x8xf32>
    %35 = arith.truncf %32 : vector<2x17x8xf32> to vector<2x17x8xbf16>
    %36 = arith.truncf %33 : vector<2x17x8xf32> to vector<2x17x8xbf16>
    "tpu.trace_start"() <{level = 10 : i32, message = "bqd,bkd->bqk"}> : () -> ()
    %cst_26 = arith.constant dense<0.000000e+00> : vector<2x17x17xf32>
    %37 = tpu.matmul %35, %36, %cst_26 {dimension_numbers = #tpu.dot_dimension_numbers<[2], [2], [1], [1], [0, 0, 0, 1, 1, 1], [0], [0]>} : vector<2x17x8xbf16>, vector<2x17x8xbf16>, vector<2x17x17xf32> -> vector<2x17x17xf32>
    "tpu.trace_stop"() : () -> ()
    %cst_27 = arith.constant dense<0xFF800000> : vector<2x17xf32>
    %38 = vector.multi_reduction <maximumf>, %37, %cst_27 [2] : vector<2x17x17xf32> to vector<2x17xf32>
    %39 = vector.shape_cast %38 : vector<2x17xf32> to vector<2x17x1xf32>
    %40 = vector.broadcast %39 : vector<2x17x1xf32> to vector<2x17x17xf32>
    %41 = arith.subf %37, %40 : vector<2x17x17xf32>
    %42 = math.exp %41 : vector<2x17x17xf32>
    %cst_28 = arith.constant dense<0.000000e+00> : vector<2x17xf32>
    %43 = vector.multi_reduction <add>, %42, %cst_28 [2] : vector<2x17x17xf32> to vector<2x17xf32>
    %44 = vector.shape_cast %43 : vector<2x17xf32> to vector<2x17x1xf32>
    %45 = tpu.reciprocal %44 {approx = true} : vector<2x17x1xf32> -> vector<2x17x1xf32>
    %46 = vector.broadcast %45 : vector<2x17x1xf32> to vector<2x17x17xf32>
    %47 = arith.mulf %42, %46 : vector<2x17x17xf32>
    %48 = arith.truncf %47 : vector<2x17x17xf32> to vector<2x17x17xbf16>
    %49 = arith.truncf %34 : vector<2x17x8xf32> to vector<2x17x8xbf16>
    "tpu.trace_start"() <{level = 10 : i32, message = "bqk,bkd->bqd"}> : () -> ()
    %cst_29 = arith.constant dense<0.000000e+00> : vector<2x17x8xf32>
    %50 = tpu.matmul %48, %49, %cst_29 {dimension_numbers = #tpu.dot_dimension_numbers<[2], [1], [1], [2], [0, 0, 0, 1, 1, 2], [0], [0]>} : vector<2x17x17xbf16>, vector<2x17x8xbf16>, vector<2x17x8xf32> -> vector<2x17x8xf32>
    "tpu.trace_stop"() : () -> ()
    %51 = vector.shape_cast %50 : vector<2x17x8xf32> to vector<34x8xf32>
    %52 = arith.truncf %51 : vector<34x8xf32> to vector<34x8xbf16>
    %c0_30 = arith.constant 0 : index
    %c0_31 = arith.constant 0 : index
    %c0_32 = arith.constant 0 : index
    %53 = vector.load %arg9[%c0_30, %c0_31, %c0_32] : memref<4x8x32xbf16, #tpu.memory_space<vmem>>, vector<1x8x32xbf16>
    %54 = vector.shape_cast %53 : vector<1x8x32xbf16> to vector<8x32xbf16>
    %cst_33 = arith.constant dense<0.000000e+00> : vector<34x32xf32>
    %55 = tpu.matmul %52, %54, %cst_33 {dimension_numbers = #tpu.dot_dimension_numbers<[1], [0], [0], [1], [0, 0, 1, 1], [], []>} : vector<34x8xbf16>, vector<8x32xbf16>, vector<34x32xf32> -> vector<34x32xf32>
    %56 = arith.addf %8, %55 : vector<34x32xf32>
    %c1 = arith.constant 1 : index
    %c0_34 = arith.constant 0 : index
    %c0_35 = arith.constant 0 : index
    %57 = vector.load %arg3[%c1, %c0_34, %c0_35] : memref<4x32x8xbf16, #tpu.memory_space<vmem>>, vector<1x32x8xbf16>
    %58 = vector.shape_cast %57 : vector<1x32x8xbf16> to vector<32x8xbf16>
    %cst_36 = arith.constant dense<0.000000e+00> : vector<34x8xf32>
    %59 = tpu.matmul %7, %58, %cst_36 {dimension_numbers = #tpu.dot_dimension_numbers<[1], [0], [0], [1], [0, 0, 1, 1], [], []>} : vector<34x32xbf16>, vector<32x8xbf16>, vector<34x8xf32> -> vector<34x8xf32>
    %c1_37 = arith.constant 1 : index
    %c0_38 = arith.constant 0 : index
    %c0_39 = arith.constant 0 : index
    %60 = vector.load %arg6[%c1_37, %c0_38, %c0_39] : memref<4x1x8xf32, #tpu.memory_space<vmem>>, vector<1x1x8xf32>
    %61 = vector.shape_cast %60 : vector<1x1x8xf32> to vector<1x8xf32>
    %62 = vector.broadcast %61 : vector<1x8xf32> to vector<34x8xf32>
    %63 = arith.addf %59, %62 : vector<34x8xf32>
    %c1_40 = arith.constant 1 : index
    %c0_41 = arith.constant 0 : index
    %c0_42 = arith.constant 0 : index
    %64 = vector.load %arg4[%c1_40, %c0_41, %c0_42] : memref<4x32x8xbf16, #tpu.memory_space<vmem>>, vector<1x32x8xbf16>
    %65 = vector.shape_cast %64 : vector<1x32x8xbf16> to vector<32x8xbf16>
    %cst_43 = arith.constant dense<0.000000e+00> : vector<34x8xf32>
    %66 = tpu.matmul %7, %65, %cst_43 {dimension_numbers = #tpu.dot_dimension_numbers<[1], [0], [0], [1], [0, 0, 1, 1], [], []>} : vector<34x32xbf16>, vector<32x8xbf16>, vector<34x8xf32> -> vector<34x8xf32>
    %c1_44 = arith.constant 1 : index
    %c0_45 = arith.constant 0 : index
    %c0_46 = arith.constant 0 : index
    %67 = vector.load %arg7[%c1_44, %c0_45, %c0_46] : memref<4x1x8xf32, #tpu.memory_space<vmem>>, vector<1x1x8xf32>
    %68 = vector.shape_cast %67 : vector<1x1x8xf32> to vector<1x8xf32>
    %69 = vector.broadcast %68 : vector<1x8xf32> to vector<34x8xf32>
    %70 = arith.addf %66, %69 : vector<34x8xf32>
    %c1_47 = arith.constant 1 : index
    %c0_48 = arith.constant 0 : index
    %c0_49 = arith.constant 0 : index
    %71 = vector.load %arg5[%c1_47, %c0_48, %c0_49] : memref<4x32x8xbf16, #tpu.memory_space<vmem>>, vector<1x32x8xbf16>
    %72 = vector.shape_cast %71 : vector<1x32x8xbf16> to vector<32x8xbf16>
    %cst_50 = arith.constant dense<0.000000e+00> : vector<34x8xf32>
    %73 = tpu.matmul %7, %72, %cst_50 {dimension_numbers = #tpu.dot_dimension_numbers<[1], [0], [0], [1], [0, 0, 1, 1], [], []>} : vector<34x32xbf16>, vector<32x8xbf16>, vector<34x8xf32> -> vector<34x8xf32>
    %c1_51 = arith.constant 1 : index
    %c0_52 = arith.constant 0 : index
    %c0_53 = arith.constant 0 : index
    %74 = vector.load %arg8[%c1_51, %c0_52, %c0_53] : memref<4x1x8xf32, #tpu.memory_space<vmem>>, vector<1x1x8xf32>
    %75 = vector.shape_cast %74 : vector<1x1x8xf32> to vector<1x8xf32>
    %76 = vector.broadcast %75 : vector<1x8xf32> to vector<34x8xf32>
    %77 = arith.addf %73, %76 : vector<34x8xf32>
    %cst_54 = arith.constant 0.353553385 : f32
    %78 = vector.broadcast %cst_54 : f32 to vector<34x8xf32>
    %79 = arith.mulf %63, %78 : vector<34x8xf32>
    %80 = vector.shape_cast %79 : vector<34x8xf32> to vector<2x17x8xf32>
    %81 = vector.shape_cast %70 : vector<34x8xf32> to vector<2x17x8xf32>
    %82 = vector.shape_cast %77 : vector<34x8xf32> to vector<2x17x8xf32>
    %83 = arith.truncf %80 : vector<2x17x8xf32> to vector<2x17x8xbf16>
    %84 = arith.truncf %81 : vector<2x17x8xf32> to vector<2x17x8xbf16>
    "tpu.trace_start"() <{level = 10 : i32, message = "bqd,bkd->bqk"}> : () -> ()
    %cst_55 = arith.constant dense<0.000000e+00> : vector<2x17x17xf32>
    %85 = tpu.matmul %83, %84, %cst_55 {dimension_numbers = #tpu.dot_dimension_numbers<[2], [2], [1], [1], [0, 0, 0, 1, 1, 1], [0], [0]>} : vector<2x17x8xbf16>, vector<2x17x8xbf16>, vector<2x17x17xf32> -> vector<2x17x17xf32>
    "tpu.trace_stop"() : () -> ()
    %cst_56 = arith.constant dense<0xFF800000> : vector<2x17xf32>
    %86 = vector.multi_reduction <maximumf>, %85, %cst_56 [2] : vector<2x17x17xf32> to vector<2x17xf32>
    %87 = vector.shape_cast %86 : vector<2x17xf32> to vector<2x17x1xf32>
    %88 = vector.broadcast %87 : vector<2x17x1xf32> to vector<2x17x17xf32>
    %89 = arith.subf %85, %88 : vector<2x17x17xf32>
    %90 = math.exp %89 : vector<2x17x17xf32>
    %cst_57 = arith.constant dense<0.000000e+00> : vector<2x17xf32>
    %91 = vector.multi_reduction <add>, %90, %cst_57 [2] : vector<2x17x17xf32> to vector<2x17xf32>
    %92 = vector.shape_cast %91 : vector<2x17xf32> to vector<2x17x1xf32>
    %93 = tpu.reciprocal %92 {approx = true} : vector<2x17x1xf32> -> vector<2x17x1xf32>
    %94 = vector.broadcast %93 : vector<2x17x1xf32> to vector<2x17x17xf32>
    %95 = arith.mulf %90, %94 : vector<2x17x17xf32>
    %96 = arith.truncf %95 : vector<2x17x17xf32> to vector<2x17x17xbf16>
    %97 = arith.truncf %82 : vector<2x17x8xf32> to vector<2x17x8xbf16>
    "tpu.trace_start"() <{level = 10 : i32, message = "bqk,bkd->bqd"}> : () -> ()
    %cst_58 = arith.constant dense<0.000000e+00> : vector<2x17x8xf32>
    %98 = tpu.matmul %96, %97, %cst_58 {dimension_numbers = #tpu.dot_dimension_numbers<[2], [1], [1], [2], [0, 0, 0, 1, 1, 2], [0], [0]>} : vector<2x17x17xbf16>, vector<2x17x8xbf16>, vector<2x17x8xf32> -> vector<2x17x8xf32>
    "tpu.trace_stop"() : () -> ()
    %99 = vector.shape_cast %98 : vector<2x17x8xf32> to vector<34x8xf32>
    %100 = arith.truncf %99 : vector<34x8xf32> to vector<34x8xbf16>
    %c1_59 = arith.constant 1 : index
    %c0_60 = arith.constant 0 : index
    %c0_61 = arith.constant 0 : index
    %101 = vector.load %arg9[%c1_59, %c0_60, %c0_61] : memref<4x8x32xbf16, #tpu.memory_space<vmem>>, vector<1x8x32xbf16>
    %102 = vector.shape_cast %101 : vector<1x8x32xbf16> to vector<8x32xbf16>
    %cst_62 = arith.constant dense<0.000000e+00> : vector<34x32xf32>
    %103 = tpu.matmul %100, %102, %cst_62 {dimension_numbers = #tpu.dot_dimension_numbers<[1], [0], [0], [1], [0, 0, 1, 1], [], []>} : vector<34x8xbf16>, vector<8x32xbf16>, vector<34x32xf32> -> vector<34x32xf32>
    %104 = arith.addf %56, %103 : vector<34x32xf32>
    %c2 = arith.constant 2 : index
    %c0_63 = arith.constant 0 : index
    %c0_64 = arith.constant 0 : index
    %105 = vector.load %arg3[%c2, %c0_63, %c0_64] : memref<4x32x8xbf16, #tpu.memory_space<vmem>>, vector<1x32x8xbf16>
    %106 = vector.shape_cast %105 : vector<1x32x8xbf16> to vector<32x8xbf16>
    %cst_65 = arith.constant dense<0.000000e+00> : vector<34x8xf32>
    %107 = tpu.matmul %7, %106, %cst_65 {dimension_numbers = #tpu.dot_dimension_numbers<[1], [0], [0], [1], [0, 0, 1, 1], [], []>} : vector<34x32xbf16>, vector<32x8xbf16>, vector<34x8xf32> -> vector<34x8xf32>
    %c2_66 = arith.constant 2 : index
    %c0_67 = arith.constant 0 : index
    %c0_68 = arith.constant 0 : index
    %108 = vector.load %arg6[%c2_66, %c0_67, %c0_68] : memref<4x1x8xf32, #tpu.memory_space<vmem>>, vector<1x1x8xf32>
    %109 = vector.shape_cast %108 : vector<1x1x8xf32> to vector<1x8xf32>
    %110 = vector.broadcast %109 : vector<1x8xf32> to vector<34x8xf32>
    %111 = arith.addf %107, %110 : vector<34x8xf32>
    %c2_69 = arith.constant 2 : index
    %c0_70 = arith.constant 0 : index
    %c0_71 = arith.constant 0 : index
    %112 = vector.load %arg4[%c2_69, %c0_70, %c0_71] : memref<4x32x8xbf16, #tpu.memory_space<vmem>>, vector<1x32x8xbf16>
    %113 = vector.shape_cast %112 : vector<1x32x8xbf16> to vector<32x8xbf16>
    %cst_72 = arith.constant dense<0.000000e+00> : vector<34x8xf32>
    %114 = tpu.matmul %7, %113, %cst_72 {dimension_numbers = #tpu.dot_dimension_numbers<[1], [0], [0], [1], [0, 0, 1, 1], [], []>} : vector<34x32xbf16>, vector<32x8xbf16>, vector<34x8xf32> -> vector<34x8xf32>
    %c2_73 = arith.constant 2 : index
    %c0_74 = arith.constant 0 : index
    %c0_75 = arith.constant 0 : index
    %115 = vector.load %arg7[%c2_73, %c0_74, %c0_75] : memref<4x1x8xf32, #tpu.memory_space<vmem>>, vector<1x1x8xf32>
    %116 = vector.shape_cast %115 : vector<1x1x8xf32> to vector<1x8xf32>
    %117 = vector.broadcast %116 : vector<1x8xf32> to vector<34x8xf32>
    %118 = arith.addf %114, %117 : vector<34x8xf32>
    %c2_76 = arith.constant 2 : index
    %c0_77 = arith.constant 0 : index
    %c0_78 = arith.constant 0 : index
    %119 = vector.load %arg5[%c2_76, %c0_77, %c0_78] : memref<4x32x8xbf16, #tpu.memory_space<vmem>>, vector<1x32x8xbf16>
    %120 = vector.shape_cast %119 : vector<1x32x8xbf16> to vector<32x8xbf16>
    %cst_79 = arith.constant dense<0.000000e+00> : vector<34x8xf32>
    %121 = tpu.matmul %7, %120, %cst_79 {dimension_numbers = #tpu.dot_dimension_numbers<[1], [0], [0], [1], [0, 0, 1, 1], [], []>} : vector<34x32xbf16>, vector<32x8xbf16>, vector<34x8xf32> -> vector<34x8xf32>
    %c2_80 = arith.constant 2 : index
    %c0_81 = arith.constant 0 : index
    %c0_82 = arith.constant 0 : index
    %122 = vector.load %arg8[%c2_80, %c0_81, %c0_82] : memref<4x1x8xf32, #tpu.memory_space<vmem>>, vector<1x1x8xf32>
    %123 = vector.shape_cast %122 : vector<1x1x8xf32> to vector<1x8xf32>
    %124 = vector.broadcast %123 : vector<1x8xf32> to vector<34x8xf32>
    %125 = arith.addf %121, %124 : vector<34x8xf32>
    %cst_83 = arith.constant 0.353553385 : f32
    %126 = vector.broadcast %cst_83 : f32 to vector<34x8xf32>
    %127 = arith.mulf %111, %126 : vector<34x8xf32>
    %128 = vector.shape_cast %127 : vector<34x8xf32> to vector<2x17x8xf32>
    %129 = vector.shape_cast %118 : vector<34x8xf32> to vector<2x17x8xf32>
    %130 = vector.shape_cast %125 : vector<34x8xf32> to vector<2x17x8xf32>
    %131 = arith.truncf %128 : vector<2x17x8xf32> to vector<2x17x8xbf16>
    %132 = arith.truncf %129 : vector<2x17x8xf32> to vector<2x17x8xbf16>
    "tpu.trace_start"() <{level = 10 : i32, message = "bqd,bkd->bqk"}> : () -> ()
    %cst_84 = arith.constant dense<0.000000e+00> : vector<2x17x17xf32>
    %133 = tpu.matmul %131, %132, %cst_84 {dimension_numbers = #tpu.dot_dimension_numbers<[2], [2], [1], [1], [0, 0, 0, 1, 1, 1], [0], [0]>} : vector<2x17x8xbf16>, vector<2x17x8xbf16>, vector<2x17x17xf32> -> vector<2x17x17xf32>
    "tpu.trace_stop"() : () -> ()
    %cst_85 = arith.constant dense<0xFF800000> : vector<2x17xf32>
    %134 = vector.multi_reduction <maximumf>, %133, %cst_85 [2] : vector<2x17x17xf32> to vector<2x17xf32>
    %135 = vector.shape_cast %134 : vector<2x17xf32> to vector<2x17x1xf32>
    %136 = vector.broadcast %135 : vector<2x17x1xf32> to vector<2x17x17xf32>
    %137 = arith.subf %133, %136 : vector<2x17x17xf32>
    %138 = math.exp %137 : vector<2x17x17xf32>
    %cst_86 = arith.constant dense<0.000000e+00> : vector<2x17xf32>
    %139 = vector.multi_reduction <add>, %138, %cst_86 [2] : vector<2x17x17xf32> to vector<2x17xf32>
    %140 = vector.shape_cast %139 : vector<2x17xf32> to vector<2x17x1xf32>
    %141 = tpu.reciprocal %140 {approx = true} : vector<2x17x1xf32> -> vector<2x17x1xf32>
    %142 = vector.broadcast %141 : vector<2x17x1xf32> to vector<2x17x17xf32>
    %143 = arith.mulf %138, %142 : vector<2x17x17xf32>
    %144 = arith.truncf %143 : vector<2x17x17xf32> to vector<2x17x17xbf16>
    %145 = arith.truncf %130 : vector<2x17x8xf32> to vector<2x17x8xbf16>
    "tpu.trace_start"() <{level = 10 : i32, message = "bqk,bkd->bqd"}> : () -> ()
    %cst_87 = arith.constant dense<0.000000e+00> : vector<2x17x8xf32>
    %146 = tpu.matmul %144, %145, %cst_87 {dimension_numbers = #tpu.dot_dimension_numbers<[2], [1], [1], [2], [0, 0, 0, 1, 1, 2], [0], [0]>} : vector<2x17x17xbf16>, vector<2x17x8xbf16>, vector<2x17x8xf32> -> vector<2x17x8xf32>
    "tpu.trace_stop"() : () -> ()
    %147 = vector.shape_cast %146 : vector<2x17x8xf32> to vector<34x8xf32>
    %148 = arith.truncf %147 : vector<34x8xf32> to vector<34x8xbf16>
    %c2_88 = arith.constant 2 : index
    %c0_89 = arith.constant 0 : index
    %c0_90 = arith.constant 0 : index
    %149 = vector.load %arg9[%c2_88, %c0_89, %c0_90] : memref<4x8x32xbf16, #tpu.memory_space<vmem>>, vector<1x8x32xbf16>
    %150 = vector.shape_cast %149 : vector<1x8x32xbf16> to vector<8x32xbf16>
    %cst_91 = arith.constant dense<0.000000e+00> : vector<34x32xf32>
    %151 = tpu.matmul %148, %150, %cst_91 {dimension_numbers = #tpu.dot_dimension_numbers<[1], [0], [0], [1], [0, 0, 1, 1], [], []>} : vector<34x8xbf16>, vector<8x32xbf16>, vector<34x32xf32> -> vector<34x32xf32>
    %152 = arith.addf %104, %151 : vector<34x32xf32>
    %c3 = arith.constant 3 : index
    %c0_92 = arith.constant 0 : index
    %c0_93 = arith.constant 0 : index
    %153 = vector.load %arg3[%c3, %c0_92, %c0_93] : memref<4x32x8xbf16, #tpu.memory_space<vmem>>, vector<1x32x8xbf16>
    %154 = vector.shape_cast %153 : vector<1x32x8xbf16> to vector<32x8xbf16>
    %cst_94 = arith.constant dense<0.000000e+00> : vector<34x8xf32>
    %155 = tpu.matmul %7, %154, %cst_94 {dimension_numbers = #tpu.dot_dimension_numbers<[1], [0], [0], [1], [0, 0, 1, 1], [], []>} : vector<34x32xbf16>, vector<32x8xbf16>, vector<34x8xf32> -> vector<34x8xf32>
    %c3_95 = arith.constant 3 : index
    %c0_96 = arith.constant 0 : index
    %c0_97 = arith.constant 0 : index
    %156 = vector.load %arg6[%c3_95, %c0_96, %c0_97] : memref<4x1x8xf32, #tpu.memory_space<vmem>>, vector<1x1x8xf32>
    %157 = vector.shape_cast %156 : vector<1x1x8xf32> to vector<1x8xf32>
    %158 = vector.broadcast %157 : vector<1x8xf32> to vector<34x8xf32>
    %159 = arith.addf %155, %158 : vector<34x8xf32>
    %c3_98 = arith.constant 3 : index
    %c0_99 = arith.constant 0 : index
    %c0_100 = arith.constant 0 : index
    %160 = vector.load %arg4[%c3_98, %c0_99, %c0_100] : memref<4x32x8xbf16, #tpu.memory_space<vmem>>, vector<1x32x8xbf16>
    %161 = vector.shape_cast %160 : vector<1x32x8xbf16> to vector<32x8xbf16>
    %cst_101 = arith.constant dense<0.000000e+00> : vector<34x8xf32>
    %162 = tpu.matmul %7, %161, %cst_101 {dimension_numbers = #tpu.dot_dimension_numbers<[1], [0], [0], [1], [0, 0, 1, 1], [], []>} : vector<34x32xbf16>, vector<32x8xbf16>, vector<34x8xf32> -> vector<34x8xf32>
    %c3_102 = arith.constant 3 : index
    %c0_103 = arith.constant 0 : index
    %c0_104 = arith.constant 0 : index
    %163 = vector.load %arg7[%c3_102, %c0_103, %c0_104] : memref<4x1x8xf32, #tpu.memory_space<vmem>>, vector<1x1x8xf32>
    %164 = vector.shape_cast %163 : vector<1x1x8xf32> to vector<1x8xf32>
    %165 = vector.broadcast %164 : vector<1x8xf32> to vector<34x8xf32>
    %166 = arith.addf %162, %165 : vector<34x8xf32>
    %c3_105 = arith.constant 3 : index
    %c0_106 = arith.constant 0 : index
    %c0_107 = arith.constant 0 : index
    %167 = vector.load %arg5[%c3_105, %c0_106, %c0_107] : memref<4x32x8xbf16, #tpu.memory_space<vmem>>, vector<1x32x8xbf16>
    %168 = vector.shape_cast %167 : vector<1x32x8xbf16> to vector<32x8xbf16>
    %cst_108 = arith.constant dense<0.000000e+00> : vector<34x8xf32>
    %169 = tpu.matmul %7, %168, %cst_108 {dimension_numbers = #tpu.dot_dimension_numbers<[1], [0], [0], [1], [0, 0, 1, 1], [], []>} : vector<34x32xbf16>, vector<32x8xbf16>, vector<34x8xf32> -> vector<34x8xf32>
    %c3_109 = arith.constant 3 : index
    %c0_110 = arith.constant 0 : index
    %c0_111 = arith.constant 0 : index
    %170 = vector.load %arg8[%c3_109, %c0_110, %c0_111] : memref<4x1x8xf32, #tpu.memory_space<vmem>>, vector<1x1x8xf32>
    %171 = vector.shape_cast %170 : vector<1x1x8xf32> to vector<1x8xf32>
    %172 = vector.broadcast %171 : vector<1x8xf32> to vector<34x8xf32>
    %173 = arith.addf %169, %172 : vector<34x8xf32>
    %cst_112 = arith.constant 0.353553385 : f32
    %174 = vector.broadcast %cst_112 : f32 to vector<34x8xf32>
    %175 = arith.mulf %159, %174 : vector<34x8xf32>
    %176 = vector.shape_cast %175 : vector<34x8xf32> to vector<2x17x8xf32>
    %177 = vector.shape_cast %166 : vector<34x8xf32> to vector<2x17x8xf32>
    %178 = vector.shape_cast %173 : vector<34x8xf32> to vector<2x17x8xf32>
    %179 = arith.truncf %176 : vector<2x17x8xf32> to vector<2x17x8xbf16>
    %180 = arith.truncf %177 : vector<2x17x8xf32> to vector<2x17x8xbf16>
    "tpu.trace_start"() <{level = 10 : i32, message = "bqd,bkd->bqk"}> : () -> ()
    %cst_113 = arith.constant dense<0.000000e+00> : vector<2x17x17xf32>
    %181 = tpu.matmul %179, %180, %cst_113 {dimension_numbers = #tpu.dot_dimension_numbers<[2], [2], [1], [1], [0, 0, 0, 1, 1, 1], [0], [0]>} : vector<2x17x8xbf16>, vector<2x17x8xbf16>, vector<2x17x17xf32> -> vector<2x17x17xf32>
    "tpu.trace_stop"() : () -> ()
    %cst_114 = arith.constant dense<0xFF800000> : vector<2x17xf32>
    %182 = vector.multi_reduction <maximumf>, %181, %cst_114 [2] : vector<2x17x17xf32> to vector<2x17xf32>
    %183 = vector.shape_cast %182 : vector<2x17xf32> to vector<2x17x1xf32>
    %184 = vector.broadcast %183 : vector<2x17x1xf32> to vector<2x17x17xf32>
    %185 = arith.subf %181, %184 : vector<2x17x17xf32>
    %186 = math.exp %185 : vector<2x17x17xf32>
    %cst_115 = arith.constant dense<0.000000e+00> : vector<2x17xf32>
    %187 = vector.multi_reduction <add>, %186, %cst_115 [2] : vector<2x17x17xf32> to vector<2x17xf32>
    %188 = vector.shape_cast %187 : vector<2x17xf32> to vector<2x17x1xf32>
    %189 = tpu.reciprocal %188 {approx = true} : vector<2x17x1xf32> -> vector<2x17x1xf32>
    %190 = vector.broadcast %189 : vector<2x17x1xf32> to vector<2x17x17xf32>
    %191 = arith.mulf %186, %190 : vector<2x17x17xf32>
    %192 = arith.truncf %191 : vector<2x17x17xf32> to vector<2x17x17xbf16>
    %193 = arith.truncf %178 : vector<2x17x8xf32> to vector<2x17x8xbf16>
    "tpu.trace_start"() <{level = 10 : i32, message = "bqk,bkd->bqd"}> : () -> ()
    %cst_116 = arith.constant dense<0.000000e+00> : vector<2x17x8xf32>
    %194 = tpu.matmul %192, %193, %cst_116 {dimension_numbers = #tpu.dot_dimension_numbers<[2], [1], [1], [2], [0, 0, 0, 1, 1, 2], [0], [0]>} : vector<2x17x17xbf16>, vector<2x17x8xbf16>, vector<2x17x8xf32> -> vector<2x17x8xf32>
    "tpu.trace_stop"() : () -> ()
    %195 = vector.shape_cast %194 : vector<2x17x8xf32> to vector<34x8xf32>
    %196 = arith.truncf %195 : vector<34x8xf32> to vector<34x8xbf16>
    %c3_117 = arith.constant 3 : index
    %c0_118 = arith.constant 0 : index
    %c0_119 = arith.constant 0 : index
    %197 = vector.load %arg9[%c3_117, %c0_118, %c0_119] : memref<4x8x32xbf16, #tpu.memory_space<vmem>>, vector<1x8x32xbf16>
    %198 = vector.shape_cast %197 : vector<1x8x32xbf16> to vector<8x32xbf16>
    %cst_120 = arith.constant dense<0.000000e+00> : vector<34x32xf32>
    %199 = tpu.matmul %196, %198, %cst_120 {dimension_numbers = #tpu.dot_dimension_numbers<[1], [0], [0], [1], [0, 0, 1, 1], [], []>} : vector<34x8xbf16>, vector<8x32xbf16>, vector<34x32xf32> -> vector<34x32xf32>
    %200 = arith.addf %152, %199 : vector<34x32xf32>
    %c0_121 = arith.constant 0 : index
    %c0_122 = arith.constant 0 : index
    %201 = vector.load %arg10[%c0_121, %c0_122] : memref<1x32xf32, #tpu.memory_space<vmem>>, vector<1x32xf32>
    %202 = vector.shape_cast %201 : vector<1x32xf32> to vector<32xf32>
    %203 = vector.shape_cast %202 : vector<32xf32> to vector<1x32xf32>
    %204 = vector.broadcast %203 : vector<1x32xf32> to vector<34x32xf32>
    %205 = arith.addf %200, %204 : vector<34x32xf32>
    %206 = vector.shape_cast %205 : vector<34x32xf32> to vector<2x17x32xf32>
    %207 = arith.addf %5, %206 : vector<2x17x32xf32>
    %c0_123 = arith.constant 0 : index
    %c0_124 = arith.constant 0 : index
    %208 = vector.load %arg15[%c0_123, %c0_124] : memref<17x32xf32, #tpu.memory_space<vmem>>, vector<17x32xf32>
    %c0_125 = arith.constant 0 : index
    %c0_126 = arith.constant 0 : index
    %209 = vector.load %arg16[%c0_125, %c0_126] : memref<17x32xf32, #tpu.memory_space<vmem>>, vector<17x32xf32>
    %cst_127 = arith.constant dense<0.000000e+00> : vector<2x17xf32>
    %210 = vector.multi_reduction <add>, %207, %cst_127 [2] : vector<2x17x32xf32> to vector<2x17xf32>
    %211 = vector.shape_cast %210 : vector<2x17xf32> to vector<2x17x1xf32>
    %cst_128 = arith.constant 3.200000e+01 : f32
    %212 = vector.broadcast %cst_128 : f32 to vector<2x17x1xf32>
    %213 = arith.divf %211, %212 : vector<2x17x1xf32>
    %cst_129 = arith.constant dense<0.000000e+00> : vector<2x1xf32>
    %214 = vector.multi_reduction <add>, %213, %cst_129 [1] : vector<2x17x1xf32> to vector<2x1xf32>
    %215 = vector.shape_cast %214 : vector<2x1xf32> to vector<2x1x1xf32>
    %cst_130 = arith.constant 1.700000e+01 : f32
    %216 = vector.broadcast %cst_130 : f32 to vector<2x1x1xf32>
    %217 = arith.divf %215, %216 : vector<2x1x1xf32>
    %218 = vector.broadcast %217 : vector<2x1x1xf32> to vector<2x17x32xf32>
    %219 = arith.subf %207, %218 : vector<2x17x32xf32>
    %220 = arith.mulf %219, %219 : vector<2x17x32xf32>
    %cst_131 = arith.constant dense<0.000000e+00> : vector<2x17xf32>
    %221 = vector.multi_reduction <add>, %220, %cst_131 [2] : vector<2x17x32xf32> to vector<2x17xf32>
    %222 = vector.shape_cast %221 : vector<2x17xf32> to vector<2x17x1xf32>
    %cst_132 = arith.constant 3.200000e+01 : f32
    %223 = vector.broadcast %cst_132 : f32 to vector<2x17x1xf32>
    %224 = arith.divf %222, %223 : vector<2x17x1xf32>
    %cst_133 = arith.constant dense<0.000000e+00> : vector<2x1xf32>
    %225 = vector.multi_reduction <add>, %224, %cst_133 [1] : vector<2x17x1xf32> to vector<2x1xf32>
    %226 = vector.shape_cast %225 : vector<2x1xf32> to vector<2x1x1xf32>
    %cst_134 = arith.constant 1.700000e+01 : f32
    %227 = vector.broadcast %cst_134 : f32 to vector<2x1x1xf32>
    %228 = arith.divf %226, %227 : vector<2x1x1xf32>
    %cst_135 = arith.constant 9.99999997E-7 : f32
    %229 = vector.broadcast %cst_135 : f32 to vector<2x1x1xf32>
    %230 = arith.addf %228, %229 : vector<2x1x1xf32>
    %231 = math.rsqrt %230 : vector<2x1x1xf32>
    %232 = vector.broadcast %231 : vector<2x1x1xf32> to vector<2x17x32xf32>
    %233 = arith.mulf %219, %232 : vector<2x17x32xf32>
    %234 = vector.shape_cast %208 : vector<17x32xf32> to vector<1x17x32xf32>
    %235 = vector.broadcast %234 : vector<1x17x32xf32> to vector<2x17x32xf32>
    %236 = arith.mulf %233, %235 : vector<2x17x32xf32>
    %237 = vector.shape_cast %209 : vector<17x32xf32> to vector<1x17x32xf32>
    %238 = vector.broadcast %237 : vector<1x17x32xf32> to vector<2x17x32xf32>
    %239 = arith.addf %236, %238 : vector<2x17x32xf32>
    %240 = vector.shape_cast %239 : vector<2x17x32xf32> to vector<34x32xf32>
    %241 = arith.truncf %240 : vector<34x32xf32> to vector<34x32xbf16>
    %c0_136 = arith.constant 0 : index
    %c0_137 = arith.constant 0 : index
    %242 = vector.load %arg11[%c0_136, %c0_137] : memref<32x64xbf16, #tpu.memory_space<vmem>>, vector<32x64xbf16>
    %cst_138 = arith.constant dense<0.000000e+00> : vector<34x64xf32>
    %243 = tpu.matmul %241, %242, %cst_138 {dimension_numbers = #tpu.dot_dimension_numbers<[1], [0], [0], [1], [0, 0, 1, 1], [], []>} : vector<34x32xbf16>, vector<32x64xbf16>, vector<34x64xf32> -> vector<34x64xf32>
    %c0_139 = arith.constant 0 : index
    %c0_140 = arith.constant 0 : index
    %244 = vector.load %arg12[%c0_139, %c0_140] : memref<1x64xf32, #tpu.memory_space<vmem>>, vector<1x64xf32>
    %245 = vector.shape_cast %244 : vector<1x64xf32> to vector<64xf32>
    %246 = vector.shape_cast %245 : vector<64xf32> to vector<1x64xf32>
    %247 = vector.broadcast %246 : vector<1x64xf32> to vector<34x64xf32>
    %248 = arith.addf %243, %247 : vector<34x64xf32>
    %cst_141 = arith.constant 5.000000e-01 : f32
    %249 = vector.broadcast %cst_141 : f32 to vector<34x64xf32>
    %250 = arith.mulf %249, %248 : vector<34x64xf32>
    %cst_142 = arith.constant 0.707106769 : f32
    %251 = vector.broadcast %cst_142 : f32 to vector<34x64xf32>
    %252 = arith.mulf %248, %251 : vector<34x64xf32>
    %253 = math.erf %252 : vector<34x64xf32>
    %cst_143 = arith.constant 1.000000e+00 : f32
    %254 = vector.broadcast %cst_143 : f32 to vector<34x64xf32>
    %255 = arith.addf %254, %253 : vector<34x64xf32>
    %256 = arith.mulf %250, %255 : vector<34x64xf32>
    %257 = arith.truncf %256 : vector<34x64xf32> to vector<34x64xbf16>
    %c0_144 = arith.constant 0 : index
    %c0_145 = arith.constant 0 : index
    %258 = vector.load %arg13[%c0_144, %c0_145] : memref<64x32xbf16, #tpu.memory_space<vmem>>, vector<64x32xbf16>
    %cst_146 = arith.constant dense<0.000000e+00> : vector<34x32xf32>
    %259 = tpu.matmul %257, %258, %cst_146 {dimension_numbers = #tpu.dot_dimension_numbers<[1], [0], [0], [1], [0, 0, 1, 1], [], []>} : vector<34x64xbf16>, vector<64x32xbf16>, vector<34x32xf32> -> vector<34x32xf32>
    %c0_147 = arith.constant 0 : index
    %c0_148 = arith.constant 0 : index
    %260 = vector.load %arg14[%c0_147, %c0_148] : memref<1x32xf32, #tpu.memory_space<vmem>>, vector<1x32xf32>
    %261 = vector.shape_cast %260 : vector<1x32xf32> to vector<32xf32>
    %262 = vector.shape_cast %261 : vector<32xf32> to vector<1x32xf32>
    %263 = vector.broadcast %262 : vector<1x32xf32> to vector<34x32xf32>
    %264 = arith.addf %259, %263 : vector<34x32xf32>
    %265 = vector.shape_cast %264 : vector<34x32xf32> to vector<2x17x32xf32>
    %266 = arith.addf %239, %265 : vector<2x17x32xf32>
    %c0_149 = arith.constant 0 : index
    %c0_150 = arith.constant 0 : index
    %267 = vector.load %arg17[%c0_149, %c0_150] : memref<17x32xf32, #tpu.memory_space<vmem>>, vector<17x32xf32>
    %c0_151 = arith.constant 0 : index
    %c0_152 = arith.constant 0 : index
    %268 = vector.load %arg18[%c0_151, %c0_152] : memref<17x32xf32, #tpu.memory_space<vmem>>, vector<17x32xf32>
    %cst_153 = arith.constant dense<0.000000e+00> : vector<2x17xf32>
    %269 = vector.multi_reduction <add>, %266, %cst_153 [2] : vector<2x17x32xf32> to vector<2x17xf32>
    %270 = vector.shape_cast %269 : vector<2x17xf32> to vector<2x17x1xf32>
    %cst_154 = arith.constant 3.200000e+01 : f32
    %271 = vector.broadcast %cst_154 : f32 to vector<2x17x1xf32>
    %272 = arith.divf %270, %271 : vector<2x17x1xf32>
    %cst_155 = arith.constant dense<0.000000e+00> : vector<2x1xf32>
    %273 = vector.multi_reduction <add>, %272, %cst_155 [1] : vector<2x17x1xf32> to vector<2x1xf32>
    %274 = vector.shape_cast %273 : vector<2x1xf32> to vector<2x1x1xf32>
    %cst_156 = arith.constant 1.700000e+01 : f32
    %275 = vector.broadcast %cst_156 : f32 to vector<2x1x1xf32>
    %276 = arith.divf %274, %275 : vector<2x1x1xf32>
    %277 = vector.broadcast %276 : vector<2x1x1xf32> to vector<2x17x32xf32>
    %278 = arith.subf %266, %277 : vector<2x17x32xf32>
    %279 = arith.mulf %278, %278 : vector<2x17x32xf32>
    %cst_157 = arith.constant dense<0.000000e+00> : vector<2x17xf32>
    %280 = vector.multi_reduction <add>, %279, %cst_157 [2] : vector<2x17x32xf32> to vector<2x17xf32>
    %281 = vector.shape_cast %280 : vector<2x17xf32> to vector<2x17x1xf32>
    %cst_158 = arith.constant 3.200000e+01 : f32
    %282 = vector.broadcast %cst_158 : f32 to vector<2x17x1xf32>
    %283 = arith.divf %281, %282 : vector<2x17x1xf32>
    %cst_159 = arith.constant dense<0.000000e+00> : vector<2x1xf32>
    %284 = vector.multi_reduction <add>, %283, %cst_159 [1] : vector<2x17x1xf32> to vector<2x1xf32>
    %285 = vector.shape_cast %284 : vector<2x1xf32> to vector<2x1x1xf32>
    %cst_160 = arith.constant 1.700000e+01 : f32
    %286 = vector.broadcast %cst_160 : f32 to vector<2x1x1xf32>
    %287 = arith.divf %285, %286 : vector<2x1x1xf32>
    %cst_161 = arith.constant 9.99999997E-7 : f32
    %288 = vector.broadcast %cst_161 : f32 to vector<2x1x1xf32>
    %289 = arith.addf %287, %288 : vector<2x1x1xf32>
    %290 = math.rsqrt %289 : vector<2x1x1xf32>
    %291 = vector.broadcast %290 : vector<2x1x1xf32> to vector<2x17x32xf32>
    %292 = arith.mulf %278, %291 : vector<2x17x32xf32>
    %293 = vector.shape_cast %267 : vector<17x32xf32> to vector<1x17x32xf32>
    %294 = vector.broadcast %293 : vector<1x17x32xf32> to vector<2x17x32xf32>
    %295 = arith.mulf %292, %294 : vector<2x17x32xf32>
    %296 = vector.shape_cast %268 : vector<17x32xf32> to vector<1x17x32xf32>
    %297 = vector.broadcast %296 : vector<1x17x32xf32> to vector<2x17x32xf32>
    %298 = arith.addf %295, %297 : vector<2x17x32xf32>
    %299 = vector.extract_strided_slice %298 {offsets = [0, 0, 0], sizes = [2, 9, 32], strides = [1, 1, 1]} : vector<2x17x32xf32> to vector<2x9x32xf32>
    %c0_162 = arith.constant 0 : index
    %c0_163 = arith.constant 0 : index
    %c0_164 = arith.constant 0 : index
    %300 = vector.load %arg19[%c0_162, %c0_163, %c0_164] : memref<2x9x32xf32, #tpu.memory_space<vmem>>, vector<2x9x32xf32>
    tpu.vector_store %arg19[%c0_162, %c0_163, %c0_164], %299 {strides = array<i32>} : memref<2x9x32xf32, #tpu.memory_space<vmem>>, vector<2x9x32xf32>,
    return
  }
  func.func @transform_0(%arg0: i32) -> (i32, i32, i32) {
    %c0_i32 = arith.constant 0 : i32
    %c0_i32_0 = arith.constant 0 : i32
    %c0_i32_1 = arith.constant 0 : i32
    return %arg0, %c0_i32, %c0_i32_0 : i32, i32, i32
  }
  func.func @transform_1(%arg0: i32) -> (i32, i32) {
    %c0_i32 = arith.constant 0 : i32
    %c0_i32_0 = arith.constant 0 : i32
    %c0_i32_1 = arith.constant 0 : i32
    return %c0_i32, %c0_i32_0 : i32, i32
  }
  func.func @transform_2(%arg0: i32) -> (i32, i32, i32) {
    %c0_i32 = arith.constant 0 : i32
    %c0_i32_0 = arith.constant 0 : i32
    %c0_i32_1 = arith.constant 0 : i32
    %c0_i32_2 = arith.constant 0 : i32
    return %c0_i32, %c0_i32_0, %c0_i32_1 : i32, i32, i32
  }
  func.func @transform_3(%arg0: i32) -> (i32, i32, i32) {
    %c0_i32 = arith.constant 0 : i32
    %c0_i32_0 = arith.constant 0 : i32
    %c0_i32_1 = arith.constant 0 : i32
    %c0_i32_2 = arith.constant 0 : i32
    return %c0_i32, %c0_i32_0, %c0_i32_1 : i32, i32, i32
  }
  func.func @transform_4(%arg0: i32) -> (i32, i32, i32) {
    %c0_i32 = arith.constant 0 : i32
    %c0_i32_0 = arith.constant 0 : i32
    %c0_i32_1 = arith.constant 0 : i32
    %c0_i32_2 = arith.constant 0 : i32
    return %c0_i32, %c0_i32_0, %c0_i32_1 : i32, i32, i32
  }
  func.func @transform_5(%arg0: i32) -> (i32, i32, i32) {
    %c0_i32 = arith.constant 0 : i32
    %c0_i32_0 = arith.constant 0 : i32
    %c0_i32_1 = arith.constant 0 : i32
    %c0_i32_2 = arith.constant 0 : i32
    return %c0_i32, %c0_i32_0, %c0_i32_1 : i32, i32, i32
  }
  func.func @transform_6(%arg0: i32) -> (i32, i32, i32) {
    %c0_i32 = arith.constant 0 : i32
    %c0_i32_0 = arith.constant 0 : i32
    %c0_i32_1 = arith.constant 0 : i32
    %c0_i32_2 = arith.constant 0 : i32
    return %c0_i32, %c0_i32_0, %c0_i32_1 : i32, i32, i32
  }
  func.func @transform_7(%arg0: i32) -> (i32, i32, i32) {
    %c0_i32 = arith.constant 0 : i32
    %c0_i32_0 = arith.constant 0 : i32
    %c0_i32_1 = arith.constant 0 : i32
    %c0_i32_2 = arith.constant 0 : i32
    return %c0_i32, %c0_i32_0, %c0_i32_1 : i32, i32, i32
  }
  func.func @transform_8(%arg0: i32) -> (i32, i32, i32) {
    %c0_i32 = arith.constant 0 : i32
    %c0_i32_0 = arith.constant 0 : i32
    %c0_i32_1 = arith.constant 0 : i32
    %c0_i32_2 = arith.constant 0 : i32
    return %c0_i32, %c0_i32_0, %c0_i32_1 : i32, i32, i32
  }
  func.func @transform_9(%arg0: i32) -> (i32, i32) {
    %c0_i32 = arith.constant 0 : i32
    %c0_i32_0 = arith.constant 0 : i32
    %c0_i32_1 = arith.constant 0 : i32
    return %c0_i32, %c0_i32_0 : i32, i32
  }
  func.func @transform_10(%arg0: i32) -> (i32, i32) {
    %c0_i32 = arith.constant 0 : i32
    %c0_i32_0 = arith.constant 0 : i32
    %c0_i32_1 = arith.constant 0 : i32
    return %c0_i32, %c0_i32_0 : i32, i32
  }
  func.func @transform_11(%arg0: i32) -> (i32, i32) {
    %c0_i32 = arith.constant 0 : i32
    %c0_i32_0 = arith.constant 0 : i32
    %c0_i32_1 = arith.constant 0 : i32
    return %c0_i32, %c0_i32_0 : i32, i32
  }
  func.func @transform_12(%arg0: i32) -> (i32, i32) {
    %c0_i32 = arith.constant 0 : i32
    %c0_i32_0 = arith.constant 0 : i32
    %c0_i32_1 = arith.constant 0 : i32
    return %c0_i32, %c0_i32_0 : i32, i32
  }
  func.func @transform_13(%arg0: i32) -> (i32, i32) {
    %c0_i32 = arith.constant 0 : i32
    %c0_i32_0 = arith.constant 0 : i32
    %c0_i32_1 = arith.constant 0 : i32
    return %c0_i32, %c0_i32_0 : i32, i32
  }
  func.func @transform_14(%arg0: i32) -> (i32, i32) {
    %c0_i32 = arith.constant 0 : i32
    %c0_i32_0 = arith.constant 0 : i32
    %c0_i32_1 = arith.constant 0 : i32
    return %c0_i32, %c0_i32_0 : i32, i32
  }
  func.func @transform_15(%arg0: i32) -> (i32, i32) {
    %c0_i32 = arith.constant 0 : i32
    %c0_i32_0 = arith.constant 0 : i32
    %c0_i32_1 = arith.constant 0 : i32
    return %c0_i32, %c0_i32_0 : i32, i32
  }
  func.func @transform_16(%arg0: i32) -> (i32, i32) {
    %c0_i32 = arith.constant 0 : i32
    %c0_i32_0 = arith.constant 0 : i32
    %c0_i32_1 = arith.constant 0 : i32
    return %c0_i32, %c0_i32_0 : i32, i32
  }
  func.func @transform_17(%arg0: i32) -> (i32, i32) {
    %c0_i32 = arith.constant 0 : i32
    %c0_i32_0 = arith.constant 0 : i32
    %c0_i32_1 = arith.constant 0 : i32
    return %c0_i32, %c0_i32_0 : i32, i32
  }
  func.func @transform_18(%arg0: i32) -> (i32, i32, i32) {
    %c0_i32 = arith.constant 0 : i32
    %c0_i32_0 = arith.constant 0 : i32
    %c0_i32_1 = arith.constant 0 : i32
    return %arg0, %c0_i32, %c0_i32_0 : i32, i32, i32
  }
}

</mosaic_0001>

<llo_original>
// kernel: tpu_custom_call.1
$region0: #{tpu_custom_call.1}
  #allocation0 [shape = 'u32[]', space=smem, size = 0x4, offset = 0x4, fixed_abs, tag = 'smem constant byte address 0x4 - core index']
  #allocation1 [shape = 'u32[144,128]{1,0:T(1,128)}', space=vmem, size = 0x12000, scoped, tag = 'internal scratch']
  %s0 = inlined_call_operand.vmem [shape: f32[2,9,32], index: 0, kind: input, shape index: {}]
  %s1 = inlined_call_operand.vmem [shape: f32[8,32], index: 1, kind: input, shape index: {}]
  %s2 = inlined_call_operand.vmem [shape: bf16[4,32,8], index: 2, kind: input, shape index: {}]
  %s3 = inlined_call_operand.vmem [shape: bf16[4,32,8], index: 3, kind: input, shape index: {}]
  %s4 = inlined_call_operand.vmem [shape: bf16[4,32,8], index: 4, kind: input, shape index: {}]
  %s5 = inlined_call_operand.vmem [shape: f32[4,1,8], index: 5, kind: input, shape index: {}]
  %s6 = inlined_call_operand.vmem [shape: f32[4,1,8], index: 6, kind: input, shape index: {}]
  %s7 = inlined_call_operand.vmem [shape: f32[4,1,8], index: 7, kind: input, shape index: {}]
  %s8 = inlined_call_operand.vmem [shape: bf16[4,8,32], index: 8, kind: input, shape index: {}]
  %s9 = inlined_call_operand.vmem [shape: f32[1,32], index: 9, kind: input, shape index: {}]
  %s10 = inlined_call_operand.vmem [shape: bf16[32,64], index: 10, kind: input, shape index: {}]
  %s11 = inlined_call_operand.vmem [shape: f32[1,64], index: 11, kind: input, shape index: {}]
  %s12 = inlined_call_operand.vmem [shape: bf16[64,32], index: 12, kind: input, shape index: {}]
  %s13 = inlined_call_operand.vmem [shape: f32[1,32], index: 13, kind: input, shape index: {}]
  %s14 = inlined_call_operand.vmem [shape: f32[17,32], index: 14, kind: input, shape index: {}]
  %s15 = inlined_call_operand.vmem [shape: f32[17,32], index: 15, kind: input, shape index: {}]
  %s16 = inlined_call_operand.vmem [shape: f32[17,32], index: 16, kind: input, shape index: {}]
  %s17 = inlined_call_operand.vmem [shape: f32[17,32], index: 17, kind: input, shape index: {}]
  %s18 = inlined_call_operand.vmem [shape: f32[2,9,32], index: 18, kind: output, shape index: {}]
  %s19 = sld [smem:[#allocation0]]
  $region82: #{tpu_custom_call.1} parent=0
    _
  %s21 = ssub.s32 1, %s19
  %s22 = scalar_select 0, %s21, %s19
  // Predicated region
  $region2: #{tpu_custom_call.1} parent=0 // pred_check
    _
  $region3: #{tpu_custom_call.1} parent=0 // pred_check_branch
    %24 = sbr.rel (0) target = $region5
  $region4: #{tpu_custom_call.1} parent=0 // pred_region
    _
  $region5: #{tpu_custom_call.1} parent=0 // pred_fallthru
    _
  // Predicated region
  $region6: #{tpu_custom_call.1} parent=0 // pred_check
    _
  $region7: #{tpu_custom_call.1} parent=0 // pred_check_branch
    %26 = sbr.rel (0) target = $region9
  $region8: #{tpu_custom_call.1} parent=0 // pred_region
    _
  $region9: #{tpu_custom_call.1} parent=0 // pred_fallthru
    _
  // Predicated region
  $region10: #{tpu_custom_call.1} parent=0 // pred_check
    _
  $region11: #{tpu_custom_call.1} parent=0 // pred_check_branch
    %28 = sbr.rel (0) target = $region13
  $region12: #{tpu_custom_call.1} parent=0 // pred_region
    _
  $region13: #{tpu_custom_call.1} parent=0 // pred_fallthru
    _
  // Predicated region
  $region14: #{tpu_custom_call.1} parent=0 // pred_check
    _
  $region15: #{tpu_custom_call.1} parent=0 // pred_check_branch
    %30 = sbr.rel (0) target = $region17
  $region16: #{tpu_custom_call.1} parent=0 // pred_region
    _
  $region17: #{tpu_custom_call.1} parent=0 // pred_fallthru
    _
  // Predicated region
  $region18: #{tpu_custom_call.1} parent=0 // pred_check
    _
  $region19: #{tpu_custom_call.1} parent=0 // pred_check_branch
    %32 = sbr.rel (0) target = $region21
  $region20: #{tpu_custom_call.1} parent=0 // pred_region
    _
  $region21: #{tpu_custom_call.1} parent=0 // pred_fallthru
    _
  // Predicated region
  $region22: #{tpu_custom_call.1} parent=0 // pred_check
    _
  $region23: #{tpu_custom_call.1} parent=0 // pred_check_branch
    %34 = sbr.rel (0) target = $region25
  $region24: #{tpu_custom_call.1} parent=0 // pred_region
    _
  $region25: #{tpu_custom_call.1} parent=0 // pred_fallthru
    _
  // Predicated region
  $region26: #{tpu_custom_call.1} parent=0 // pred_check
    _
  $region27: #{tpu_custom_call.1} parent=0 // pred_check_branch
    %36 = sbr.rel (0) target = $region29
  $region28: #{tpu_custom_call.1} parent=0 // pred_region
    _
  $region29: #{tpu_custom_call.1} parent=0 // pred_fallthru
    _
  // Predicated region
  $region30: #{tpu_custom_call.1} parent=0 // pred_check
    _
  $region31: #{tpu_custom_call.1} parent=0 // pred_check_branch
    %38 = sbr.rel (0) target = $region33
  $region32: #{tpu_custom_call.1} parent=0 // pred_region
    _
  $region33: #{tpu_custom_call.1} parent=0 // pred_fallthru
    _
  // Predicated region
  $region34: #{tpu_custom_call.1} parent=0 // pred_check
    _
  $region35: #{tpu_custom_call.1} parent=0 // pred_check_branch
    %40 = sbr.rel (0) target = $region37
  $region36: #{tpu_custom_call.1} parent=0 // pred_region
    _
  $region37: #{tpu_custom_call.1} parent=0 // pred_fallthru
    _
  // Predicated region
  $region38: #{tpu_custom_call.1} parent=0 // pred_check
    _
  $region39: #{tpu_custom_call.1} parent=0 // pred_check_branch
    %42 = sbr.rel (0) target = $region41
  $region40: #{tpu_custom_call.1} parent=0 // pred_region
    _
  $region41: #{tpu_custom_call.1} parent=0 // pred_fallthru
    _
  // Predicated region
  $region42: #{tpu_custom_call.1} parent=0 // pred_check
    _
  $region43: #{tpu_custom_call.1} parent=0 // pred_check_branch
    %44 = sbr.rel (0) target = $region45
  $region44: #{tpu_custom_call.1} parent=0 // pred_region
    _
  $region45: #{tpu_custom_call.1} parent=0 // pred_fallthru
    _
  // Predicated region
  $region46: #{tpu_custom_call.1} parent=0 // pred_check
    _
  $region47: #{tpu_custom_call.1} parent=0 // pred_check_branch
    %46 = sbr.rel (0) target = $region49
  $region48: #{tpu_custom_call.1} parent=0 // pred_region
    _
  $region49: #{tpu_custom_call.1} parent=0 // pred_fallthru
    _
  // Predicated region
  $region50: #{tpu_custom_call.1} parent=0 // pred_check
    _
  $region51: #{tpu_custom_call.1} parent=0 // pred_check_branch
    %48 = sbr.rel (0) target = $region53
  $region52: #{tpu_custom_call.1} parent=0 // pred_region
    _
  $region53: #{tpu_custom_call.1} parent=0 // pred_fallthru
    _
  // Predicated region
  $region54: #{tpu_custom_call.1} parent=0 // pred_check
    _
  $region55: #{tpu_custom_call.1} parent=0 // pred_check_branch
    %50 = sbr.rel (0) target = $region57
  $region56: #{tpu_custom_call.1} parent=0 // pred_region
    _
  $region57: #{tpu_custom_call.1} parent=0 // pred_fallthru
    _
  // Predicated region
  $region58: #{tpu_custom_call.1} parent=0 // pred_check
    _
  $region59: #{tpu_custom_call.1} parent=0 // pred_check_branch
    %52 = sbr.rel (0) target = $region61
  $region60: #{tpu_custom_call.1} parent=0 // pred_region
    _
  $region61: #{tpu_custom_call.1} parent=0 // pred_fallthru
    _
  // Predicated region
  $region62: #{tpu_custom_call.1} parent=0 // pred_check
    _
  $region63: #{tpu_custom_call.1} parent=0 // pred_check_branch
    %54 = sbr.rel (0) target = $region65
  $region64: #{tpu_custom_call.1} parent=0 // pred_region
    _
  $region65: #{tpu_custom_call.1} parent=0 // pred_fallthru
    _
  // Predicated region
  $region66: #{tpu_custom_call.1} parent=0 // pred_check
    _
  $region67: #{tpu_custom_call.1} parent=0 // pred_check_branch
    %56 = sbr.rel (0) target = $region69
  $region68: #{tpu_custom_call.1} parent=0 // pred_region
    _
  $region69: #{tpu_custom_call.1} parent=0 // pred_fallthru
    _
  // Predicated region
  $region70: #{tpu_custom_call.1} parent=0 // pred_check
    _
  $region71: #{tpu_custom_call.1} parent=0 // pred_check_branch
    %58 = sbr.rel (0) target = $region73
  $region72: #{tpu_custom_call.1} parent=0 // pred_region
    _
  $region73: #{tpu_custom_call.1} parent=0 // pred_fallthru
    _
  %v60 = vld [vmem:[%s0] sm:$0xff]
  %v61 = vld [vmem:[%s0 + $0x8] sm:$0x1]
  %v62 = vld [vmem:[%s0 + $0x10] sm:$0xff]
  %v63 = vld [vmem:[%s0 + $0x18] sm:$0x1]
  %v64 = vld [vmem:[%s1] sm:$0xff]
  %v66 = vrot.slane %v64, 7
  %vm68 = vcmask 1040384
  %v69 = vsel %vm68, %v61, %v66
  %v70 = vsel %vm68, %v63, %v66
  %v75 = vcombine.high %v60, %v60
  %v77 = vunpack.c.l.s4 1966171168
  %v78 = vunpack.c.0.s8 %v77
  %v79 = vlaneseq
  %v80 = vshrl.u32 %v79, 7
  %v81 = vsub.s32 %v78, %v80
  %v82 = vrot.slane %v60, %v81
  %v84 = vunpack.c.l.s4 1966171168
  %v85 = vunpack.c.0.s8 %v84
  %v86 = vlaneseq
  %v87 = vshrl.u32 %v86, 7
  %v88 = vsub.s32 %v85, %v87
  %v89 = vrot.slane %v75, %v88
  %v90 = vcombine.high %v82, %v82
  %v91 = vcombine.high %v89, %v89
  %v93 = vunpack.c.l.s4 1966171168
  %v94 = vunpack.c.0.s8 %v93
  %v95 = vlaneseq
  %v96 = vshrl.u32 %v95, 7
  %v97 = vsub.s32 %v94, %v96
  %v98 = vrot.slane %v82, %v97
  %v100 = vunpack.c.l.s4 1966171168
  %v101 = vunpack.c.0.s8 %v100
  %v102 = vlaneseq
  %v103 = vshrl.u32 %v102, 7
  %v104 = vsub.s32 %v101, %v103
  %v105 = vrot.slane %v89, %v104
  %v107 = vunpack.c.l.s4 1966171168
  %v108 = vunpack.c.0.s8 %v107
  %v109 = vlaneseq
  %v110 = vshrl.u32 %v109, 7
  %v111 = vsub.s32 %v108, %v110
  %v112 = vrot.slane %v90, %v111
  %v114 = vunpack.c.l.s4 1966171168
  %v115 = vunpack.c.0.s8 %v114
  %v116 = vlaneseq
  %v117 = vshrl.u32 %v116, 7
  %v118 = vsub.s32 %v115, %v117
  %v119 = vrot.slane %v91, %v118
  %v120 = vcombine.high %v98, %v98
  %v121 = vcombine.high %v105, %v105
  %v122 = vcombine.high %v112, %v112
  %v123 = vcombine.high %v119, %v119
  %v124 = vcombine.high %v69, %v69
  %v126 = vunpack.c.l.s4 1966171168
  %v127 = vunpack.c.0.s8 %v126
  %v128 = vlaneseq
  %v129 = vshrl.u32 %v128, 7
  %v130 = vsub.s32 %v127, %v129
  %v131 = vrot.slane %v69, %v130
  %v133 = vunpack.c.l.s4 1966171168
  %v134 = vunpack.c.0.s8 %v133
  %v135 = vlaneseq
  %v136 = vshrl.u32 %v135, 7
  %v137 = vsub.s32 %v134, %v136
  %v138 = vrot.slane %v124, %v137
  %v139 = vcombine.high %v131, %v131
  %v140 = vcombine.high %v138, %v138
  %v142 = vunpack.c.l.s4 1966171168
  %v143 = vunpack.c.0.s8 %v142
  %v144 = vlaneseq
  %v145 = vshrl.u32 %v144, 7
  %v146 = vsub.s32 %v143, %v145
  %v147 = vrot.slane %v131, %v146
  %v149 = vunpack.c.l.s4 1966171168
  %v150 = vunpack.c.0.s8 %v149
  %v151 = vlaneseq
  %v152 = vshrl.u32 %v151, 7
  %v153 = vsub.s32 %v150, %v152
  %v154 = vrot.slane %v138, %v153
  %v156 = vunpack.c.l.s4 1966171168
  %v157 = vunpack.c.0.s8 %v156
  %v158 = vlaneseq
  %v159 = vshrl.u32 %v158, 7
  %v160 = vsub.s32 %v157, %v159
  %v161 = vrot.slane %v139, %v160
  %v163 = vunpack.c.l.s4 1966171168
  %v164 = vunpack.c.0.s8 %v163
  %v165 = vlaneseq
  %v166 = vshrl.u32 %v165, 7
  %v167 = vsub.s32 %v164, %v166
  %v168 = vrot.slane %v140, %v167
  %v169 = vcombine.high %v147, %v147
  %v170 = vcombine.high %v154, %v154
  %v171 = vcombine.high %v161, %v161
  %v172 = vcombine.high %v168, %v168
  %v174 = vunpack.c.l.s4 1966171168
  %v175 = vunpack.c.0.s8 %v174
  %v176 = vlaneseq
  %v177 = vshrl.u32 %v176, 7
  %v178 = vsub.s32 %v175, %v177
  %v179 = vrot.slane %v66, %v178
  %v181 = vunpack.c.l.s4 1966171168
  %v182 = vunpack.c.0.s8 %v181
  %v183 = vlaneseq
  %v184 = vshrl.u32 %v183, 7
  %v185 = vsub.s32 %v182, %v184
  %v186 = vrot.slane %v179, %v185
  %v187 = vcombine.high %v62, %v62
  %v189 = vunpack.c.l.s4 1966171168
  %v190 = vunpack.c.0.s8 %v189
  %v191 = vlaneseq
  %v192 = vshrl.u32 %v191, 7
  %v193 = vsub.s32 %v190, %v192
  %v194 = vrot.slane %v62, %v193
  %v196 = vunpack.c.l.s4 1966171168
  %v197 = vunpack.c.0.s8 %v196
  %v198 = vlaneseq
  %v199 = vshrl.u32 %v198, 7
  %v200 = vsub.s32 %v197, %v199
  %v201 = vrot.slane %v187, %v200
  %v202 = vcombine.high %v194, %v194
  %v203 = vcombine.high %v201, %v201
  %v205 = vunpack.c.l.s4 1966171168
  %v206 = vunpack.c.0.s8 %v205
  %v207 = vlaneseq
  %v208 = vshrl.u32 %v207, 7
  %v209 = vsub.s32 %v206, %v208
  %v210 = vrot.slane %v194, %v209
  %v212 = vunpack.c.l.s4 1966171168
  %v213 = vunpack.c.0.s8 %v212
  %v214 = vlaneseq
  %v215 = vshrl.u32 %v214, 7
  %v216 = vsub.s32 %v213, %v215
  %v217 = vrot.slane %v201, %v216
  %v219 = vunpack.c.l.s4 1966171168
  %v220 = vunpack.c.0.s8 %v219
  %v221 = vlaneseq
  %v222 = vshrl.u32 %v221, 7
  %v223 = vsub.s32 %v220, %v222
  %v224 = vrot.slane %v202, %v223
  %v226 = vunpack.c.l.s4 1966171168
  %v227 = vunpack.c.0.s8 %v226
  %v228 = vlaneseq
  %v229 = vshrl.u32 %v228, 7
  %v230 = vsub.s32 %v227, %v229
  %v231 = vrot.slane %v203, %v230
  %v232 = vcombine.high %v210, %v210
  %v233 = vcombine.high %v217, %v217
  %v234 = vcombine.high %v224, %v224
  %v235 = vcombine.high %v231, %v231
  %v236 = vcombine.high %v70, %v70
  %v238 = vunpack.c.l.s4 1966171168
  %v239 = vunpack.c.0.s8 %v238
  %v240 = vlaneseq
  %v241 = vshrl.u32 %v240, 7
  %v242 = vsub.s32 %v239, %v241
  %v243 = vrot.slane %v70, %v242
  %v245 = vunpack.c.l.s4 1966171168
  %v246 = vunpack.c.0.s8 %v245
  %v247 = vlaneseq
  %v248 = vshrl.u32 %v247, 7
  %v249 = vsub.s32 %v246, %v248
  %v250 = vrot.slane %v236, %v249
  %v251 = vcombine.high %v243, %v243
  %v252 = vcombine.high %v250, %v250
  %v254 = vunpack.c.l.s4 1966171168
  %v255 = vunpack.c.0.s8 %v254
  %v256 = vlaneseq
  %v257 = vshrl.u32 %v256, 7
  %v258 = vsub.s32 %v255, %v257
  %v259 = vrot.slane %v243, %v258
  %v261 = vunpack.c.l.s4 1966171168
  %v262 = vunpack.c.0.s8 %v261
  %v263 = vlaneseq
  %v264 = vshrl.u32 %v263, 7
  %v265 = vsub.s32 %v262, %v264
  %v266 = vrot.slane %v250, %v265
  %v268 = vunpack.c.l.s4 1966171168
  %v269 = vunpack.c.0.s8 %v268
  %v270 = vlaneseq
  %v271 = vshrl.u32 %v270, 7
  %v272 = vsub.s32 %v269, %v271
  %v273 = vrot.slane %v251, %v272
  %v275 = vunpack.c.l.s4 1966171168
  %v276 = vunpack.c.0.s8 %v275
  %v277 = vlaneseq
  %v278 = vshrl.u32 %v277, 7
  %v279 = vsub.s32 %v276, %v278
  %v280 = vrot.slane %v252, %v279
  %v281 = vcombine.high %v259, %v259
  %v282 = vcombine.high %v266, %v266
  %v283 = vcombine.high %v273, %v273
  %v284 = vcombine.high %v280, %v280
  %v285 = vcombine.low %v98, %v112
  %v286 = vcombine.low %v120, %v122
  %v287 = vcombine.low %v105, %v119
  %v288 = vcombine.low %v121, %v123
  %v290 = vunpack.c.l.s4 1966171168
  %v291 = vunpack.c.0.s8 %v290
  %v292 = vlaneseq
  %v293 = vshrl.u32 %v292, 7
  %v294 = vsub.s32 %v291, %v293
  %v295 = vrot.slane %v285, %v294
  %v297 = vunpack.c.l.s4 1966171168
  %v298 = vunpack.c.0.s8 %v297
  %v299 = vlaneseq
  %v300 = vshrl.u32 %v299, 7
  %v301 = vsub.s32 %v298, %v300
  %v302 = vrot.slane %v286, %v301
  %v304 = vunpack.c.l.s4 1966171168
  %v305 = vunpack.c.0.s8 %v304
  %v306 = vlaneseq
  %v307 = vshrl.u32 %v306, 7
  %v308 = vsub.s32 %v305, %v307
  %v309 = vrot.slane %v287, %v308
  %v311 = vunpack.c.l.s4 1966171168
  %v312 = vunpack.c.0.s8 %v311
  %v313 = vlaneseq
  %v314 = vshrl.u32 %v313, 7
  %v315 = vsub.s32 %v312, %v314
  %v316 = vrot.slane %v288, %v315
  %v317 = vcombine.low %v295, %v302
  %v318 = vcombine.low %v309, %v316
  %v320 = vunpack.c.l.s4 1966171168
  %v321 = vunpack.c.0.s8 %v320
  %v322 = vlaneseq
  %v323 = vshrl.u32 %v322, 7
  %v324 = vsub.s32 %v321, %v323
  %v325 = vrot.slane %v317, %v324
  %v327 = vunpack.c.l.s4 1966171168
  %v328 = vunpack.c.0.s8 %v327
  %v329 = vlaneseq
  %v330 = vshrl.u32 %v329, 7
  %v331 = vsub.s32 %v328, %v330
  %v332 = vrot.slane %v318, %v331
  %v333 = vcombine.low %v325, %v332
  %v334 = vcombine.low %v147, %v161
  %v335 = vcombine.low %v169, %v171
  %v336 = vcombine.low %v154, %v168
  %v337 = vcombine.low %v170, %v172
  %v339 = vunpack.c.l.s4 1966171168
  %v340 = vunpack.c.0.s8 %v339
  %v341 = vlaneseq
  %v342 = vshrl.u32 %v341, 7
  %v343 = vsub.s32 %v340, %v342
  %v344 = vrot.slane %v334, %v343
  %v346 = vunpack.c.l.s4 1966171168
  %v347 = vunpack.c.0.s8 %v346
  %v348 = vlaneseq
  %v349 = vshrl.u32 %v348, 7
  %v350 = vsub.s32 %v347, %v349
  %v351 = vrot.slane %v335, %v350
  %v353 = vunpack.c.l.s4 1966171168
  %v354 = vunpack.c.0.s8 %v353
  %v355 = vlaneseq
  %v356 = vshrl.u32 %v355, 7
  %v357 = vsub.s32 %v354, %v356
  %v358 = vrot.slane %v336, %v357
  %v360 = vunpack.c.l.s4 1966171168
  %v361 = vunpack.c.0.s8 %v360
  %v362 = vlaneseq
  %v363 = vshrl.u32 %v362, 7
  %v364 = vsub.s32 %v361, %v363
  %v365 = vrot.slane %v337, %v364
  %v366 = vcombine.low %v344, %v351
  %v367 = vcombine.low %v358, %v365
  %v369 = vunpack.c.l.s4 1966171168
  %v370 = vunpack.c.0.s8 %v369
  %v371 = vlaneseq
  %v372 = vshrl.u32 %v371, 7
  %v373 = vsub.s32 %v370, %v372
  %v374 = vrot.slane %v366, %v373
  %v376 = vunpack.c.l.s4 1966171168
  %v377 = vunpack.c.0.s8 %v376
  %v378 = vlaneseq
  %v379 = vshrl.u32 %v378, 7
  %v380 = vsub.s32 %v377, %v379
  %v381 = vrot.slane %v367, %v380
  %v382 = vcombine.low %v374, %v381
  %v383 = vcombine.low %v186, %v210
  %v384 = vcombine.low %v224, %v232
  %v385 = vcombine.low %v234, %v217
  %v386 = vcombine.low %v231, %v233
  %v388 = vunpack.c.l.s4 1966171168
  %v389 = vunpack.c.0.s8 %v388
  %v390 = vlaneseq
  %v391 = vshrl.u32 %v390, 7
  %v392 = vsub.s32 %v389, %v391
  %v393 = vrot.slane %v383, %v392
  %v395 = vunpack.c.l.s4 1966171168
  %v396 = vunpack.c.0.s8 %v395
  %v397 = vlaneseq
  %v398 = vshrl.u32 %v397, 7
  %v399 = vsub.s32 %v396, %v398
  %v400 = vrot.slane %v384, %v399
  %v402 = vunpack.c.l.s4 1966171168
  %v403 = vunpack.c.0.s8 %v402
  %v404 = vlaneseq
  %v405 = vshrl.u32 %v404, 7
  %v406 = vsub.s32 %v403, %v405
  %v407 = vrot.slane %v385, %v406
  %v409 = vunpack.c.l.s4 1966171168
  %v410 = vunpack.c.0.s8 %v409
  %v411 = vlaneseq
  %v412 = vshrl.u32 %v411, 7
  %v413 = vsub.s32 %v410, %v412
  %v414 = vrot.slane %v386, %v413
  %v415 = vcombine.low %v393, %v400
  %v416 = vcombine.low %v407, %v414
  %v418 = vunpack.c.l.s4 1966171168
  %v419 = vunpack.c.0.s8 %v418
  %v420 = vlaneseq
  %v421 = vshrl.u32 %v420, 7
  %v422 = vsub.s32 %v419, %v421
  %v423 = vrot.slane %v415, %v422
  %v425 = vunpack.c.l.s4 1966171168
  %v426 = vunpack.c.0.s8 %v425
  %v427 = vlaneseq
  %v428 = vshrl.u32 %v427, 7
  %v429 = vsub.s32 %v426, %v428
  %v430 = vrot.slane %v416, %v429
  %v431 = vcombine.low %v423, %v430
  %v432 = vcombine.low %v235, %v259
  %v433 = vcombine.low %v273, %v281
  %v434 = vcombine.low %v283, %v266
  %v435 = vcombine.low %v280, %v282
  %v437 = vunpack.c.l.s4 1966171168
  %v438 = vunpack.c.0.s8 %v437
  %v439 = vlaneseq
  %v440 = vshrl.u32 %v439, 7
  %v441 = vsub.s32 %v438, %v440
  %v442 = vrot.slane %v432, %v441
  %v444 = vunpack.c.l.s4 1966171168
  %v445 = vunpack.c.0.s8 %v444
  %v446 = vlaneseq
  %v447 = vshrl.u32 %v446, 7
  %v448 = vsub.s32 %v445, %v447
  %v449 = vrot.slane %v433, %v448
  %v451 = vunpack.c.l.s4 1966171168
  %v452 = vunpack.c.0.s8 %v451
  %v453 = vlaneseq
  %v454 = vshrl.u32 %v453, 7
  %v455 = vsub.s32 %v452, %v454
  %v456 = vrot.slane %v434, %v455
  %v458 = vunpack.c.l.s4 1966171168
  %v459 = vunpack.c.0.s8 %v458
  %v460 = vlaneseq
  %v461 = vshrl.u32 %v460, 7
  %v462 = vsub.s32 %v459, %v461
  %v463 = vrot.slane %v435, %v462
  %v464 = vcombine.low %v442, %v449
  %v465 = vcombine.low %v456, %v463
  %v467 = vunpack.c.l.s4 1966171168
  %v468 = vunpack.c.0.s8 %v467
  %v469 = vlaneseq
  %v470 = vshrl.u32 %v469, 7
  %v471 = vsub.s32 %v468, %v470
  %v472 = vrot.slane %v464, %v471
  %v474 = vunpack.c.l.s4 1966171168
  %v475 = vunpack.c.0.s8 %v474
  %v476 = vlaneseq
  %v477 = vshrl.u32 %v476, 7
  %v478 = vsub.s32 %v475, %v477
  %v479 = vrot.slane %v465, %v478
  %v480 = vcombine.low %v472, %v479
  %v481 = vcombine.low %v284, %v186
  %v483 = vunpack.c.l.s4 1966171168
  %v484 = vunpack.c.0.s8 %v483
  %v485 = vlaneseq
  %v486 = vshrl.u32 %v485, 7
  %v487 = vsub.s32 %v484, %v486
  %v488 = vrot.slane %v481, %v487
  %v490 = vunpack.c.l.s4 1966171168
  %v491 = vunpack.c.0.s8 %v490
  %v492 = vlaneseq
  %v493 = vshrl.u32 %v492, 7
  %v494 = vsub.s32 %v491, %v493
  %v495 = vrot.slane %v488, %v494
  %v501 = vpack.c.bf16 %v382, %v333
  %v502 = vpack.c.bf16 %v480, %v431
  %v503 = vpack.c.bf16 %v495, %v495
  %v504 = vld [vmem:[%s2] sm:$0xf]
  %v505 = vld [vmem:[%s2 + $0x4] sm:$0xf]
  %v506 = vld [vmem:[%s2 + $0x8] sm:$0xf]
  %v507 = vld [vmem:[%s2 + $0xc] sm:$0xf]
  %v508 = vld [vmem:[%s5] sm:$0x1]
  %v510 = vlaneseq
  %v511 = vshrl.u32 %v510, 7
  %v512 = vsub.s32 0, %v511
  %v513 = vrot.slane %v508, %v512
  %v519 = vunpack.c.l.b16 %v504
  %v520 = vunpack.c.l.b16 %v505
  %v521 = vunpack.c.l.b16 %v506
  %v522 = vunpack.c.l.b16 %v507
  %v523 = vpack.c.b16 %v520, %v519
  %v524 = vpack.c.b16 %v522, %v521
  %vm527 = vcmask 261120
  %v529 = vsel %vm527, %v501, 0
  %v532 = vsel %vm527, %v502, 0
  %v535 = vsel %vm527, %v503, 0
  %537 = vmatprep.subr.bf16.mxu0 0
  %538 = vmatpush1.bf16.msra.mxu0 %v523
  %539 = vmatprep.subr.bf16.mxu0 0
  %540 = vmatpush1.bf16.msra.mxu0 %v524
  %541 = vmatprep.subr.bf16.mxu0 0
  %542 = vmatpush1.bf16.msra.mxu0 0
  %543 = vmatprep.subr.bf16.mxu0 0
  %544 = vmatpush1.bf16.msra.mxu0 0
  %545 = vmatprep.subr.bf16.mxu0 0
  %546 = vmatpush1.bf16.msra.mxu0 0
  %547 = vmatprep.subr.bf16.mxu0 0
  %548 = vmatpush1.bf16.msra.mxu0 0
  %549 = vmatprep.subr.bf16.mxu0 0
  %550 = vmatpush1.bf16.msra.mxu0 0
  %551 = vmatprep.subr.bf16.mxu0 0
  %552 = vmatpush1.bf16.msra.mxu0 0
  %553 = vmatprep.subr.bf16.mxu0 0
  %554 = vmatpush1.bf16.msra.mxu0 0
  %555 = vmatprep.subr.bf16.mxu0 0
  %556 = vmatpush1.bf16.msra.mxu0 0
  %557 = vmatprep.subr.bf16.mxu0 0
  %558 = vmatpush1.bf16.msra.mxu0 0
  %559 = vmatprep.subr.bf16.mxu0 0
  %560 = vmatpush1.bf16.msra.mxu0 0
  %561 = vmatprep.subr.bf16.mxu0 0
  %562 = vmatpush1.bf16.msra.mxu0 0
  %563 = vmatprep.subr.bf16.mxu0 0
  %564 = vmatpush1.bf16.msra.mxu0 0
  %565 = vmatprep.subr.bf16.mxu0 0
  %566 = vmatpush1.bf16.msra.mxu0 0
  %567 = vmatprep.subr.bf16.mxu0 0
  %568 = vmatpush1.bf16.msra.mxu0 0
  %569 = vmatprep.mubr.bf16.mxu0 0
  %570 = vmatmul.mubr.bf16.gmra.mrb[0].mxu0 %v529
  %v571 = vpop.f32.mrb[0].mxu0
  %v572 = vadd.f32 %v513, %v571
  %v573 = vpop.f32.mrb[0].mxu0
  %v574 = vpop.f32.mrb[0].mxu0
  %v575 = vadd.f32 %v513, %v574
  %v576 = vpop.f32.mrb[0].mxu0
  %577 = vmatprep.mubr.bf16.mxu0 0
  %578 = vmatmul.mubr.bf16.gmra.mrb[0].mxu0 %v532
  %v579 = vpop.f32.mrb[0].mxu0
  %v580 = vadd.f32 %v513, %v579
  %v581 = vpop.f32.mrb[0].mxu0
  %v582 = vpop.f32.mrb[0].mxu0
  %v583 = vadd.f32 %v513, %v582
  %v584 = vpop.f32.mrb[0].mxu0
  %585 = vmatprep.mubr.bf16.mxu0 0
  %586 = vmatmul.mubr.bf16.gmra.mrb[0].mxu0 %v535
  %v587 = vpop.f32.mrb[0].mxu0
  %v588 = vadd.f32 %v513, %v587
  %v589 = vpop.f32.mrb[0].mxu0
  %v590 = vpop.f32.mrb[0].mxu0
  %v591 = vpop.f32.mrb[0].mxu0
  %592 = vdwg.mxu0
  %v593 = vld [vmem:[%s3] sm:$0xf]
  %v594 = vld [vmem:[%s3 + $0x4] sm:$0xf]
  %v595 = vld [vmem:[%s3 + $0x8] sm:$0xf]
  %v596 = vld [vmem:[%s3 + $0xc] sm:$0xf]
  %v597 = vld [vmem:[%s6] sm:$0x1]
  %v599 = vlaneseq
  %v600 = vshrl.u32 %v599, 7
  %v601 = vsub.s32 0, %v600
  %v602 = vrot.slane %v597, %v601
  %v608 = vunpack.c.l.b16 %v593
  %v609 = vunpack.c.l.b16 %v594
  %v610 = vunpack.c.l.b16 %v595
  %v611 = vunpack.c.l.b16 %v596
  %v612 = vpack.c.b16 %v609, %v608
  %v613 = vpack.c.b16 %v611, %v610
  %616 = vmatprep.subr.bf16.mxu0 0
  %617 = vmatpush1.bf16.msra.mxu0 %v612
  %618 = vmatprep.subr.bf16.mxu0 0
  %619 = vmatpush1.bf16.msra.mxu0 %v613
  %620 = vmatprep.subr.bf16.mxu0 0
  %621 = vmatpush1.bf16.msra.mxu0 0
  %622 = vmatprep.subr.bf16.mxu0 0
  %623 = vmatpush1.bf16.msra.mxu0 0
  %624 = vmatprep.subr.bf16.mxu0 0
  %625 = vmatpush1.bf16.msra.mxu0 0
  %626 = vmatprep.subr.bf16.mxu0 0
  %627 = vmatpush1.bf16.msra.mxu0 0
  %628 = vmatprep.subr.bf16.mxu0 0
  %629 = vmatpush1.bf16.msra.mxu0 0
  %630 = vmatprep.subr.bf16.mxu0 0
  %631 = vmatpush1.bf16.msra.mxu0 0
  %632 = vmatprep.subr.bf16.mxu0 0
  %633 = vmatpush1.bf16.msra.mxu0 0
  %634 = vmatprep.subr.bf16.mxu0 0
  %635 = vmatpush1.bf16.msra.mxu0 0
  %636 = vmatprep.subr.bf16.mxu0 0
  %637 = vmatpush1.bf16.msra.mxu0 0
  %638 = vmatprep.subr.bf16.mxu0 0
  %639 = vmatpush1.bf16.msra.mxu0 0
  %640 = vmatprep.subr.bf16.mxu0 0
  %641 = vmatpush1.bf16.msra.mxu0 0
  %642 = vmatprep.subr.bf16.mxu0 0
  %643 = vmatpush1.bf16.msra.mxu0 0
  %644 = vmatprep.subr.bf16.mxu0 0
  %645 = vmatpush1.bf16.msra.mxu0 0
  %646 = vmatprep.subr.bf16.mxu0 0
  %647 = vmatpush1.bf16.msra.mxu0 0
  %648 = vmatprep.mubr.bf16.mxu0 0
  %649 = vmatmul.mubr.bf16.gmra.mrb[0].mxu0 %v529
  %v650 = vpop.f32.mrb[0].mxu0
  %v651 = vadd.f32 %v602, %v650
  %v652 = vpop.f32.mrb[0].mxu0
  %v653 = vpop.f32.mrb[0].mxu0
  %v654 = vadd.f32 %v602, %v653
  %v655 = vpop.f32.mrb[0].mxu0
  %656 = vmatprep.mubr.bf16.mxu0 0
  %657 = vmatmul.mubr.bf16.gmra.mrb[0].mxu0 %v532
  %v658 = vpop.f32.mrb[0].mxu0
  %v659 = vadd.f32 %v602, %v658
  %v660 = vpop.f32.mrb[0].mxu0
  %v661 = vpop.f32.mrb[0].mxu0
  %v662 = vadd.f32 %v602, %v661
  %v663 = vpop.f32.mrb[0].mxu0
  %664 = vmatprep.mubr.bf16.mxu0 0
  %665 = vmatmul.mubr.bf16.gmra.mrb[0].mxu0 %v535
  %v666 = vpop.f32.mrb[0].mxu0
  %v667 = vadd.f32 %v602, %v666
  %v668 = vpop.f32.mrb[0].mxu0
  %v669 = vpop.f32.mrb[0].mxu0
  %v670 = vpop.f32.mrb[0].mxu0
  %671 = vdwg.mxu0
  %v672 = vld [vmem:[%s4] sm:$0xf]
  %v673 = vld [vmem:[%s4 + $0x4] sm:$0xf]
  %v674 = vld [vmem:[%s4 + $0x8] sm:$0xf]
  %v675 = vld [vmem:[%s4 + $0xc] sm:$0xf]
  %v676 = vld [vmem:[%s7] sm:$0x1]
  %v678 = vlaneseq
  %v679 = vshrl.u32 %v678, 7
  %v680 = vsub.s32 0, %v679
  %v681 = vrot.slane %v676, %v680
  %v687 = vunpack.c.l.b16 %v672
  %v688 = vunpack.c.l.b16 %v673
  %v689 = vunpack.c.l.b16 %v674
  %v690 = vunpack.c.l.b16 %v675
  %v691 = vpack.c.b16 %v688, %v687
  %v692 = vpack.c.b16 %v690, %v689
  %695 = vmatprep.subr.bf16.mxu0 0
  %696 = vmatpush1.bf16.msra.mxu0 %v691
  %697 = vmatprep.subr.bf16.mxu0 0
  %698 = vmatpush1.bf16.msra.mxu0 %v692
  %699 = vmatprep.subr.bf16.mxu0 0
  %700 = vmatpush1.bf16.msra.mxu0 0
  %701 = vmatprep.subr.bf16.mxu0 0
  %702 = vmatpush1.bf16.msra.mxu0 0
  %703 = vmatprep.subr.bf16.mxu0 0
  %704 = vmatpush1.bf16.msra.mxu0 0
  %705 = vmatprep.subr.bf16.mxu0 0
  %706 = vmatpush1.bf16.msra.mxu0 0
  %707 = vmatprep.subr.bf16.mxu0 0
  %708 = vmatpush1.bf16.msra.mxu0 0
  %709 = vmatprep.subr.bf16.mxu0 0
  %710 = vmatpush1.bf16.msra.mxu0 0
  %711 = vmatprep.subr.bf16.mxu0 0
  %712 = vmatpush1.bf16.msra.mxu0 0
  %713 = vmatprep.subr.bf16.mxu0 0
  %714 = vmatpush1.bf16.msra.mxu0 0
  %715 = vmatprep.subr.bf16.mxu0 0
  %716 = vmatpush1.bf16.msra.mxu0 0
  %717 = vmatprep.subr.bf16.mxu0 0
  %718 = vmatpush1.bf16.msra.mxu0 0
  %719 = vmatprep.subr.bf16.mxu0 0
  %720 = vmatpush1.bf16.msra.mxu0 0
  %721 = vmatprep.subr.bf16.mxu0 0
  %722 = vmatpush1.bf16.msra.mxu0 0
  %723 = vmatprep.subr.bf16.mxu0 0
  %724 = vmatpush1.bf16.msra.mxu0 0
  %725 = vmatprep.subr.bf16.mxu0 0
  %726 = vmatpush1.bf16.msra.mxu0 0
  %727 = vmatprep.mubr.bf16.mxu0 0
  %728 = vmatmul.mubr.bf16.gmra.mrb[0].mxu0 %v529
  %v729 = vpop.f32.mrb[0].mxu0
  %v730 = vadd.f32 %v681, %v729
  %v731 = vpop.f32.mrb[0].mxu0
  %v732 = vpop.f32.mrb[0].mxu0
  %v733 = vadd.f32 %v681, %v732
  %v734 = vpop.f32.mrb[0].mxu0
  %735 = vmatprep.mubr.bf16.mxu0 0
  %736 = vmatmul.mubr.bf16.gmra.mrb[0].mxu0 %v532
  %v737 = vpop.f32.mrb[0].mxu0
  %v738 = vadd.f32 %v681, %v737
  %v739 = vpop.f32.mrb[0].mxu0
  %v740 = vpop.f32.mrb[0].mxu0
  %v741 = vadd.f32 %v681, %v740
  %v742 = vpop.f32.mrb[0].mxu0
  %743 = vmatprep.mubr.bf16.mxu0 0
  %744 = vmatmul.mubr.bf16.gmra.mrb[0].mxu0 %v535
  %v745 = vpop.f32.mrb[0].mxu0
  %v746 = vadd.f32 %v681, %v745
  %v747 = vpop.f32.mrb[0].mxu0
  %v748 = vpop.f32.mrb[0].mxu0
  %v749 = vpop.f32.mrb[0].mxu0
  %750 = vdwg.mxu0
  %v751 = vmul.f32 %v572, 0.35355338
  %v752 = vmul.f32 %v575, 0.35355338
  %v753 = vmul.f32 %v580, 0.35355338
  %v754 = vmul.f32 %v583, 0.35355338
  %v755 = vmul.f32 %v588, 0.35355338
  %v761 = vcombine.high %v751, %v751
  %v763 = vunpack.c.l.s4 1966171168
  %v764 = vunpack.c.0.s8 %v763
  %v765 = vlaneseq
  %v766 = vshrl.u32 %v765, 7
  %v767 = vsub.s32 %v764, %v766
  %v768 = vrot.slane %v751, %v767
  %v770 = vunpack.c.l.s4 1966171168
  %v771 = vunpack.c.0.s8 %v770
  %v772 = vlaneseq
  %v773 = vshrl.u32 %v772, 7
  %v774 = vsub.s32 %v771, %v773
  %v775 = vrot.slane %v761, %v774
  %v776 = vcombine.high %v768, %v768
  %v777 = vcombine.high %v775, %v775
  %v779 = vunpack.c.l.s4 1966171168
  %v780 = vunpack.c.0.s8 %v779
  %v781 = vlaneseq
  %v782 = vshrl.u32 %v781, 7
  %v783 = vsub.s32 %v780, %v782
  %v784 = vrot.slane %v768, %v783
  %v786 = vunpack.c.l.s4 1966171168
  %v787 = vunpack.c.0.s8 %v786
  %v788 = vlaneseq
  %v789 = vshrl.u32 %v788, 7
  %v790 = vsub.s32 %v787, %v789
  %v791 = vrot.slane %v775, %v790
  %v793 = vunpack.c.l.s4 1966171168
  %v794 = vunpack.c.0.s8 %v793
  %v795 = vlaneseq
  %v796 = vshrl.u32 %v795, 7
  %v797 = vsub.s32 %v794, %v796
  %v798 = vrot.slane %v776, %v797
  %v800 = vunpack.c.l.s4 1966171168
  %v801 = vunpack.c.0.s8 %v800
  %v802 = vlaneseq
  %v803 = vshrl.u32 %v802, 7
  %v804 = vsub.s32 %v801, %v803
  %v805 = vrot.slane %v777, %v804
  %v806 = vcombine.high %v784, %v784
  %v807 = vcombine.high %v791, %v791
  %v808 = vcombine.high %v798, %v798
  %v809 = vcombine.high %v805, %v805
  %v810 = vcombine.high %v752, %v752
  %v812 = vunpack.c.l.s4 1966171168
  %v813 = vunpack.c.0.s8 %v812
  %v814 = vlaneseq
  %v815 = vshrl.u32 %v814, 7
  %v816 = vsub.s32 %v813, %v815
  %v817 = vrot.slane %v752, %v816
  %v819 = vunpack.c.l.s4 1966171168
  %v820 = vunpack.c.0.s8 %v819
  %v821 = vlaneseq
  %v822 = vshrl.u32 %v821, 7
  %v823 = vsub.s32 %v820, %v822
  %v824 = vrot.slane %v810, %v823
  %v825 = vcombine.high %v817, %v817
  %v826 = vcombine.high %v824, %v824
  %v828 = vunpack.c.l.s4 1966171168
  %v829 = vunpack.c.0.s8 %v828
  %v830 = vlaneseq
  %v831 = vshrl.u32 %v830, 7
  %v832 = vsub.s32 %v829, %v831
  %v833 = vrot.slane %v817, %v832
  %v835 = vunpack.c.l.s4 1966171168
  %v836 = vunpack.c.0.s8 %v835
  %v837 = vlaneseq
  %v838 = vshrl.u32 %v837, 7
  %v839 = vsub.s32 %v836, %v838
  %v840 = vrot.slane %v824, %v839
  %v842 = vunpack.c.l.s4 1966171168
  %v843 = vunpack.c.0.s8 %v842
  %v844 = vlaneseq
  %v845 = vshrl.u32 %v844, 7
  %v846 = vsub.s32 %v843, %v845
  %v847 = vrot.slane %v825, %v846
  %v849 = vunpack.c.l.s4 1966171168
  %v850 = vunpack.c.0.s8 %v849
  %v851 = vlaneseq
  %v852 = vshrl.u32 %v851, 7
  %v853 = vsub.s32 %v850, %v852
  %v854 = vrot.slane %v826, %v853
  %v855 = vcombine.high %v833, %v833
  %v856 = vcombine.high %v840, %v840
  %v857 = vcombine.high %v847, %v847
  %v858 = vcombine.high %v854, %v854
  %v859 = vcombine.high %v753, %v753
  %v861 = vunpack.c.l.s4 1966171168
  %v862 = vunpack.c.0.s8 %v861
  %v863 = vlaneseq
  %v864 = vshrl.u32 %v863, 7
  %v865 = vsub.s32 %v862, %v864
  %v866 = vrot.slane %v753, %v865
  %v868 = vunpack.c.l.s4 1966171168
  %v869 = vunpack.c.0.s8 %v868
  %v870 = vlaneseq
  %v871 = vshrl.u32 %v870, 7
  %v872 = vsub.s32 %v869, %v871
  %v873 = vrot.slane %v859, %v872
  %v874 = vcombine.high %v866, %v866
  %v875 = vcombine.high %v873, %v873
  %v877 = vunpack.c.l.s4 1966171168
  %v878 = vunpack.c.0.s8 %v877
  %v879 = vlaneseq
  %v880 = vshrl.u32 %v879, 7
  %v881 = vsub.s32 %v878, %v880
  %v882 = vrot.slane %v866, %v881
  %v884 = vunpack.c.l.s4 1966171168
  %v885 = vunpack.c.0.s8 %v884
  %v886 = vlaneseq
  %v887 = vshrl.u32 %v886, 7
  %v888 = vsub.s32 %v885, %v887
  %v889 = vrot.slane %v873, %v888
  %v891 = vunpack.c.l.s4 1966171168
  %v892 = vunpack.c.0.s8 %v891
  %v893 = vlaneseq
  %v894 = vshrl.u32 %v893, 7
  %v895 = vsub.s32 %v892, %v894
  %v896 = vrot.slane %v874, %v895
  %v898 = vunpack.c.l.s4 1966171168
  %v899 = vunpack.c.0.s8 %v898
  %v900 = vlaneseq
  %v901 = vshrl.u32 %v900, 7
  %v902 = vsub.s32 %v899, %v901
  %v903 = vrot.slane %v875, %v902
  %v904 = vcombine.high %v882, %v882
  %v905 = vcombine.high %v889, %v889
  %v906 = vcombine.high %v896, %v896
  %v907 = vcombine.high %v903, %v903
  %v908 = vcombine.high %v754, %v754
  %v910 = vunpack.c.l.s4 1966171168
  %v911 = vunpack.c.0.s8 %v910
  %v912 = vlaneseq
  %v913 = vshrl.u32 %v912, 7
  %v914 = vsub.s32 %v911, %v913
  %v915 = vrot.slane %v754, %v914
  %v917 = vunpack.c.l.s4 1966171168
  %v918 = vunpack.c.0.s8 %v917
  %v919 = vlaneseq
  %v920 = vshrl.u32 %v919, 7
  %v921 = vsub.s32 %v918, %v920
  %v922 = vrot.slane %v908, %v921
  %v923 = vcombine.high %v915, %v915
  %v924 = vcombine.high %v922, %v922
  %v926 = vunpack.c.l.s4 1966171168
  %v927 = vunpack.c.0.s8 %v926
  %v928 = vlaneseq
  %v929 = vshrl.u32 %v928, 7
  %v930 = vsub.s32 %v927, %v929
  %v931 = vrot.slane %v915, %v930
  %v933 = vunpack.c.l.s4 1966171168
  %v934 = vunpack.c.0.s8 %v933
  %v935 = vlaneseq
  %v936 = vshrl.u32 %v935, 7
  %v937 = vsub.s32 %v934, %v936
  %v938 = vrot.slane %v922, %v937
  %v940 = vunpack.c.l.s4 1966171168
  %v941 = vunpack.c.0.s8 %v940
  %v942 = vlaneseq
  %v943 = vshrl.u32 %v942, 7
  %v944 = vsub.s32 %v941, %v943
  %v945 = vrot.slane %v923, %v944
  %v947 = vunpack.c.l.s4 1966171168
  %v948 = vunpack.c.0.s8 %v947
  %v949 = vlaneseq
  %v950 = vshrl.u32 %v949, 7
  %v951 = vsub.s32 %v948, %v950
  %v952 = vrot.slane %v924, %v951
  %v953 = vcombine.high %v931, %v931
  %v954 = vcombine.high %v938, %v938
  %v955 = vcombine.high %v945, %v945
  %v956 = vcombine.high %v952, %v952
  %v958 = vunpack.c.l.s4 1966171168
  %v959 = vunpack.c.0.s8 %v958
  %v960 = vlaneseq
  %v961 = vshrl.u32 %v960, 7
  %v962 = vsub.s32 %v959, %v961
  %v963 = vrot.slane %v755, %v962
  %v964 = vcombine.high %v963, %v963
  %v966 = vunpack.c.l.s4 1966171168
  %v967 = vunpack.c.0.s8 %v966
  %v968 = vlaneseq
  %v969 = vshrl.u32 %v968, 7
  %v970 = vsub.s32 %v967, %v969
  %v971 = vrot.slane %v963, %v970
  %v973 = vunpack.c.l.s4 1966171168
  %v974 = vunpack.c.0.s8 %v973
  %v975 = vlaneseq
  %v976 = vshrl.u32 %v975, 7
  %v977 = vsub.s32 %v974, %v976
  %v978 = vrot.slane %v964, %v977
  %v984 = vcombine.high %v651, %v651
  %v986 = vunpack.c.l.s4 1966171168
  %v987 = vunpack.c.0.s8 %v986
  %v988 = vlaneseq
  %v989 = vshrl.u32 %v988, 7
  %v990 = vsub.s32 %v987, %v989
  %v991 = vrot.slane %v651, %v990
  %v993 = vunpack.c.l.s4 1966171168
  %v994 = vunpack.c.0.s8 %v993
  %v995 = vlaneseq
  %v996 = vshrl.u32 %v995, 7
  %v997 = vsub.s32 %v994, %v996
  %v998 = vrot.slane %v984, %v997
  %v999 = vcombine.high %v991, %v991
  %v1000 = vcombine.high %v998, %v998
  %v1002 = vunpack.c.l.s4 1966171168
  %v1003 = vunpack.c.0.s8 %v1002
  %v1004 = vlaneseq
  %v1005 = vshrl.u32 %v1004, 7
  %v1006 = vsub.s32 %v1003, %v1005
  %v1007 = vrot.slane %v991, %v1006
  %v1009 = vunpack.c.l.s4 1966171168
  %v1010 = vunpack.c.0.s8 %v1009
  %v1011 = vlaneseq
  %v1012 = vshrl.u32 %v1011, 7
  %v1013 = vsub.s32 %v1010, %v1012
  %v1014 = vrot.slane %v998, %v1013
  %v1016 = vunpack.c.l.s4 1966171168
  %v1017 = vunpack.c.0.s8 %v1016
  %v1018 = vlaneseq
  %v1019 = vshrl.u32 %v1018, 7
  %v1020 = vsub.s32 %v1017, %v1019
  %v1021 = vrot.slane %v999, %v1020
  %v1023 = vunpack.c.l.s4 1966171168
  %v1024 = vunpack.c.0.s8 %v1023
  %v1025 = vlaneseq
  %v1026 = vshrl.u32 %v1025, 7
  %v1027 = vsub.s32 %v1024, %v1026
  %v1028 = vrot.slane %v1000, %v1027
  %v1029 = vcombine.high %v1007, %v1007
  %v1030 = vcombine.high %v1014, %v1014
  %v1031 = vcombine.high %v1021, %v1021
  %v1032 = vcombine.high %v1028, %v1028
  %v1033 = vcombine.high %v654, %v654
  %v1035 = vunpack.c.l.s4 1966171168
  %v1036 = vunpack.c.0.s8 %v1035
  %v1037 = vlaneseq
  %v1038 = vshrl.u32 %v1037, 7
  %v1039 = vsub.s32 %v1036, %v1038
  %v1040 = vrot.slane %v654, %v1039
  %v1042 = vunpack.c.l.s4 1966171168
  %v1043 = vunpack.c.0.s8 %v1042
  %v1044 = vlaneseq
  %v1045 = vshrl.u32 %v1044, 7
  %v1046 = vsub.s32 %v1043, %v1045
  %v1047 = vrot.slane %v1033, %v1046
  %v1048 = vcombine.high %v1040, %v1040
  %v1049 = vcombine.high %v1047, %v1047
  %v1051 = vunpack.c.l.s4 1966171168
  %v1052 = vunpack.c.0.s8 %v1051
  %v1053 = vlaneseq
  %v1054 = vshrl.u32 %v1053, 7
  %v1055 = vsub.s32 %v1052, %v1054
  %v1056 = vrot.slane %v1040, %v1055
  %v1058 = vunpack.c.l.s4 1966171168
  %v1059 = vunpack.c.0.s8 %v1058
  %v1060 = vlaneseq
  %v1061 = vshrl.u32 %v1060, 7
  %v1062 = vsub.s32 %v1059, %v1061
  %v1063 = vrot.slane %v1047, %v1062
  %v1065 = vunpack.c.l.s4 1966171168
  %v1066 = vunpack.c.0.s8 %v1065
  %v1067 = vlaneseq
  %v1068 = vshrl.u32 %v1067, 7
  %v1069 = vsub.s32 %v1066, %v1068
  %v1070 = vrot.slane %v1048, %v1069
  %v1072 = vunpack.c.l.s4 1966171168
  %v1073 = vunpack.c.0.s8 %v1072
  %v1074 = vlaneseq
  %v1075 = vshrl.u32 %v1074, 7
  %v1076 = vsub.s32 %v1073, %v1075
  %v1077 = vrot.slane %v1049, %v1076
  %v1078 = vcombine.high %v1056, %v1056
  %v1079 = vcombine.high %v1063, %v1063
  %v1080 = vcombine.high %v1070, %v1070
  %v1081 = vcombine.high %v1077, %v1077
  %v1082 = vcombine.high %v659, %v659
  %v1084 = vunpack.c.l.s4 1966171168
  %v1085 = vunpack.c.0.s8 %v1084
  %v1086 = vlaneseq
  %v1087 = vshrl.u32 %v1086, 7
  %v1088 = vsub.s32 %v1085, %v1087
  %v1089 = vrot.slane %v659, %v1088
  %v1091 = vunpack.c.l.s4 1966171168
  %v1092 = vunpack.c.0.s8 %v1091
  %v1093 = vlaneseq
  %v1094 = vshrl.u32 %v1093, 7
  %v1095 = vsub.s32 %v1092, %v1094
  %v1096 = vrot.slane %v1082, %v1095
  %v1097 = vcombine.high %v1089, %v1089
  %v1098 = vcombine.high %v1096, %v1096
  %v1100 = vunpack.c.l.s4 1966171168
  %v1101 = vunpack.c.0.s8 %v1100
  %v1102 = vlaneseq
  %v1103 = vshrl.u32 %v1102, 7
  %v1104 = vsub.s32 %v1101, %v1103
  %v1105 = vrot.slane %v1089, %v1104
  %v1107 = vunpack.c.l.s4 1966171168
  %v1108 = vunpack.c.0.s8 %v1107
  %v1109 = vlaneseq
  %v1110 = vshrl.u32 %v1109, 7
  %v1111 = vsub.s32 %v1108, %v1110
  %v1112 = vrot.slane %v1096, %v1111
  %v1114 = vunpack.c.l.s4 1966171168
  %v1115 = vunpack.c.0.s8 %v1114
  %v1116 = vlaneseq
  %v1117 = vshrl.u32 %v1116, 7
  %v1118 = vsub.s32 %v1115, %v1117
  %v1119 = vrot.slane %v1097, %v1118
  %v1121 = vunpack.c.l.s4 1966171168
  %v1122 = vunpack.c.0.s8 %v1121
  %v1123 = vlaneseq
  %v1124 = vshrl.u32 %v1123, 7
  %v1125 = vsub.s32 %v1122, %v1124
  %v1126 = vrot.slane %v1098, %v1125
  %v1127 = vcombine.high %v1105, %v1105
  %v1128 = vcombine.high %v1112, %v1112
  %v1129 = vcombine.high %v1119, %v1119
  %v1130 = vcombine.high %v1126, %v1126
  %v1131 = vcombine.high %v662, %v662
  %v1133 = vunpack.c.l.s4 1966171168
  %v1134 = vunpack.c.0.s8 %v1133
  %v1135 = vlaneseq
  %v1136 = vshrl.u32 %v1135, 7
  %v1137 = vsub.s32 %v1134, %v1136
  %v1138 = vrot.slane %v662, %v1137
  %v1140 = vunpack.c.l.s4 1966171168
  %v1141 = vunpack.c.0.s8 %v1140
  %v1142 = vlaneseq
  %v1143 = vshrl.u32 %v1142, 7
  %v1144 = vsub.s32 %v1141, %v1143
  %v1145 = vrot.slane %v1131, %v1144
  %v1146 = vcombine.high %v1138, %v1138
  %v1147 = vcombine.high %v1145, %v1145
  %v1149 = vunpack.c.l.s4 1966171168
  %v1150 = vunpack.c.0.s8 %v1149
  %v1151 = vlaneseq
  %v1152 = vshrl.u32 %v1151, 7
  %v1153 = vsub.s32 %v1150, %v1152
  %v1154 = vrot.slane %v1138, %v1153
  %v1156 = vunpack.c.l.s4 1966171168
  %v1157 = vunpack.c.0.s8 %v1156
  %v1158 = vlaneseq
  %v1159 = vshrl.u32 %v1158, 7
  %v1160 = vsub.s32 %v1157, %v1159
  %v1161 = vrot.slane %v1145, %v1160
  %v1163 = vunpack.c.l.s4 1966171168
  %v1164 = vunpack.c.0.s8 %v1163
  %v1165 = vlaneseq
  %v1166 = vshrl.u32 %v1165, 7
  %v1167 = vsub.s32 %v1164, %v1166
  %v1168 = vrot.slane %v1146, %v1167
  %v1170 = vunpack.c.l.s4 1966171168
  %v1171 = vunpack.c.0.s8 %v1170
  %v1172 = vlaneseq
  %v1173 = vshrl.u32 %v1172, 7
  %v1174 = vsub.s32 %v1171, %v1173
  %v1175 = vrot.slane %v1147, %v1174
  %v1176 = vcombine.high %v1154, %v1154
  %v1177 = vcombine.high %v1161, %v1161
  %v1178 = vcombine.high %v1168, %v1168
  %v1179 = vcombine.high %v1175, %v1175
  %v1181 = vunpack.c.l.s4 1966171168
  %v1182 = vunpack.c.0.s8 %v1181
  %v1183 = vlaneseq
  %v1184 = vshrl.u32 %v1183, 7
  %v1185 = vsub.s32 %v1182, %v1184
  %v1186 = vrot.slane %v667, %v1185
  %v1187 = vcombine.high %v1186, %v1186
  %v1189 = vunpack.c.l.s4 1966171168
  %v1190 = vunpack.c.0.s8 %v1189
  %v1191 = vlaneseq
  %v1192 = vshrl.u32 %v1191, 7
  %v1193 = vsub.s32 %v1190, %v1192
  %v1194 = vrot.slane %v1186, %v1193
  %v1196 = vunpack.c.l.s4 1966171168
  %v1197 = vunpack.c.0.s8 %v1196
  %v1198 = vlaneseq
  %v1199 = vshrl.u32 %v1198, 7
  %v1200 = vsub.s32 %v1197, %v1199
  %v1201 = vrot.slane %v1187, %v1200
  %v1207 = vcombine.high %v730, %v730
  %v1209 = vunpack.c.l.s4 1966171168
  %v1210 = vunpack.c.0.s8 %v1209
  %v1211 = vlaneseq
  %v1212 = vshrl.u32 %v1211, 7
  %v1213 = vsub.s32 %v1210, %v1212
  %v1214 = vrot.slane %v730, %v1213
  %v1216 = vunpack.c.l.s4 1966171168
  %v1217 = vunpack.c.0.s8 %v1216
  %v1218 = vlaneseq
  %v1219 = vshrl.u32 %v1218, 7
  %v1220 = vsub.s32 %v1217, %v1219
  %v1221 = vrot.slane %v1207, %v1220
  %v1222 = vcombine.high %v1214, %v1214
  %v1223 = vcombine.high %v1221, %v1221
  %v1225 = vunpack.c.l.s4 1966171168
  %v1226 = vunpack.c.0.s8 %v1225
  %v1227 = vlaneseq
  %v1228 = vshrl.u32 %v1227, 7
  %v1229 = vsub.s32 %v1226, %v1228
  %v1230 = vrot.slane %v1214, %v1229
  %v1232 = vunpack.c.l.s4 1966171168
  %v1233 = vunpack.c.0.s8 %v1232
  %v1234 = vlaneseq
  %v1235 = vshrl.u32 %v1234, 7
  %v1236 = vsub.s32 %v1233, %v1235
  %v1237 = vrot.slane %v1221, %v1236
  %v1239 = vunpack.c.l.s4 1966171168
  %v1240 = vunpack.c.0.s8 %v1239
  %v1241 = vlaneseq
  %v1242 = vshrl.u32 %v1241, 7
  %v1243 = vsub.s32 %v1240, %v1242
  %v1244 = vrot.slane %v1222, %v1243
  %v1246 = vunpack.c.l.s4 1966171168
  %v1247 = vunpack.c.0.s8 %v1246
  %v1248 = vlaneseq
  %v1249 = vshrl.u32 %v1248, 7
  %v1250 = vsub.s32 %v1247, %v1249
  %v1251 = vrot.slane %v1223, %v1250
  %v1252 = vcombine.high %v1230, %v1230
  %v1253 = vcombine.high %v1237, %v1237
  %v1254 = vcombine.high %v1244, %v1244
  %v1255 = vcombine.high %v1251, %v1251
  %v1256 = vcombine.high %v733, %v733
  %v1258 = vunpack.c.l.s4 1966171168
  %v1259 = vunpack.c.0.s8 %v1258
  %v1260 = vlaneseq
  %v1261 = vshrl.u32 %v1260, 7
  %v1262 = vsub.s32 %v1259, %v1261
  %v1263 = vrot.slane %v733, %v1262
  %v1265 = vunpack.c.l.s4 1966171168
  %v1266 = vunpack.c.0.s8 %v1265
  %v1267 = vlaneseq
  %v1268 = vshrl.u32 %v1267, 7
  %v1269 = vsub.s32 %v1266, %v1268
  %v1270 = vrot.slane %v1256, %v1269
  %v1271 = vcombine.high %v1263, %v1263
  %v1272 = vcombine.high %v1270, %v1270
  %v1274 = vunpack.c.l.s4 1966171168
  %v1275 = vunpack.c.0.s8 %v1274
  %v1276 = vlaneseq
  %v1277 = vshrl.u32 %v1276, 7
  %v1278 = vsub.s32 %v1275, %v1277
  %v1279 = vrot.slane %v1263, %v1278
  %v1281 = vunpack.c.l.s4 1966171168
  %v1282 = vunpack.c.0.s8 %v1281
  %v1283 = vlaneseq
  %v1284 = vshrl.u32 %v1283, 7
  %v1285 = vsub.s32 %v1282, %v1284
  %v1286 = vrot.slane %v1270, %v1285
  %v1288 = vunpack.c.l.s4 1966171168
  %v1289 = vunpack.c.0.s8 %v1288
  %v1290 = vlaneseq
  %v1291 = vshrl.u32 %v1290, 7
  %v1292 = vsub.s32 %v1289, %v1291
  %v1293 = vrot.slane %v1271, %v1292
  %v1295 = vunpack.c.l.s4 1966171168
  %v1296 = vunpack.c.0.s8 %v1295
  %v1297 = vlaneseq
  %v1298 = vshrl.u32 %v1297, 7
  %v1299 = vsub.s32 %v1296, %v1298
  %v1300 = vrot.slane %v1272, %v1299
  %v1301 = vcombine.high %v1279, %v1279
  %v1302 = vcombine.high %v1286, %v1286
  %v1303 = vcombine.high %v1293, %v1293
  %v1304 = vcombine.high %v1300, %v1300
  %v1305 = vcombine.high %v738, %v738
  %v1307 = vunpack.c.l.s4 1966171168
  %v1308 = vunpack.c.0.s8 %v1307
  %v1309 = vlaneseq
  %v1310 = vshrl.u32 %v1309, 7
  %v1311 = vsub.s32 %v1308, %v1310
  %v1312 = vrot.slane %v738, %v1311
  %v1314 = vunpack.c.l.s4 1966171168
  %v1315 = vunpack.c.0.s8 %v1314
  %v1316 = vlaneseq
  %v1317 = vshrl.u32 %v1316, 7
  %v1318 = vsub.s32 %v1315, %v1317
  %v1319 = vrot.slane %v1305, %v1318
  %v1320 = vcombine.high %v1312, %v1312
  %v1321 = vcombine.high %v1319, %v1319
  %v1323 = vunpack.c.l.s4 1966171168
  %v1324 = vunpack.c.0.s8 %v1323
  %v1325 = vlaneseq
  %v1326 = vshrl.u32 %v1325, 7
  %v1327 = vsub.s32 %v1324, %v1326
  %v1328 = vrot.slane %v1312, %v1327
  %v1330 = vunpack.c.l.s4 1966171168
  %v1331 = vunpack.c.0.s8 %v1330
  %v1332 = vlaneseq
  %v1333 = vshrl.u32 %v1332, 7
  %v1334 = vsub.s32 %v1331, %v1333
  %v1335 = vrot.slane %v1319, %v1334
  %v1337 = vunpack.c.l.s4 1966171168
  %v1338 = vunpack.c.0.s8 %v1337
  %v1339 = vlaneseq
  %v1340 = vshrl.u32 %v1339, 7
  %v1341 = vsub.s32 %v1338, %v1340
  %v1342 = vrot.slane %v1320, %v1341
  %v1344 = vunpack.c.l.s4 1966171168
  %v1345 = vunpack.c.0.s8 %v1344
  %v1346 = vlaneseq
  %v1347 = vshrl.u32 %v1346, 7
  %v1348 = vsub.s32 %v1345, %v1347
  %v1349 = vrot.slane %v1321, %v1348
  %v1350 = vcombine.high %v1328, %v1328
  %v1351 = vcombine.high %v1335, %v1335
  %v1352 = vcombine.high %v1342, %v1342
  %v1353 = vcombine.high %v1349, %v1349
  %v1354 = vcombine.high %v741, %v741
  %v1356 = vunpack.c.l.s4 1966171168
  %v1357 = vunpack.c.0.s8 %v1356
  %v1358 = vlaneseq
  %v1359 = vshrl.u32 %v1358, 7
  %v1360 = vsub.s32 %v1357, %v1359
  %v1361 = vrot.slane %v741, %v1360
  %v1363 = vunpack.c.l.s4 1966171168
  %v1364 = vunpack.c.0.s8 %v1363
  %v1365 = vlaneseq
  %v1366 = vshrl.u32 %v1365, 7
  %v1367 = vsub.s32 %v1364, %v1366
  %v1368 = vrot.slane %v1354, %v1367
  %v1369 = vcombine.high %v1361, %v1361
  %v1370 = vcombine.high %v1368, %v1368
  %v1372 = vunpack.c.l.s4 1966171168
  %v1373 = vunpack.c.0.s8 %v1372
  %v1374 = vlaneseq
  %v1375 = vshrl.u32 %v1374, 7
  %v1376 = vsub.s32 %v1373, %v1375
  %v1377 = vrot.slane %v1361, %v1376
  %v1379 = vunpack.c.l.s4 1966171168
  %v1380 = vunpack.c.0.s8 %v1379
  %v1381 = vlaneseq
  %v1382 = vshrl.u32 %v1381, 7
  %v1383 = vsub.s32 %v1380, %v1382
  %v1384 = vrot.slane %v1368, %v1383
  %v1386 = vunpack.c.l.s4 1966171168
  %v1387 = vunpack.c.0.s8 %v1386
  %v1388 = vlaneseq
  %v1389 = vshrl.u32 %v1388, 7
  %v1390 = vsub.s32 %v1387, %v1389
  %v1391 = vrot.slane %v1369, %v1390
  %v1393 = vunpack.c.l.s4 1966171168
  %v1394 = vunpack.c.0.s8 %v1393
  %v1395 = vlaneseq
  %v1396 = vshrl.u32 %v1395, 7
  %v1397 = vsub.s32 %v1394, %v1396
  %v1398 = vrot.slane %v1370, %v1397
  %v1399 = vcombine.high %v1377, %v1377
  %v1400 = vcombine.high %v1384, %v1384
  %v1401 = vcombine.high %v1391, %v1391
  %v1402 = vcombine.high %v1398, %v1398
  %v1404 = vunpack.c.l.s4 1966171168
  %v1405 = vunpack.c.0.s8 %v1404
  %v1406 = vlaneseq
  %v1407 = vshrl.u32 %v1406, 7
  %v1408 = vsub.s32 %v1405, %v1407
  %v1409 = vrot.slane %v746, %v1408
  %v1410 = vcombine.high %v1409, %v1409
  %v1412 = vunpack.c.l.s4 1966171168
  %v1413 = vunpack.c.0.s8 %v1412
  %v1414 = vlaneseq
  %v1415 = vshrl.u32 %v1414, 7
  %v1416 = vsub.s32 %v1413, %v1415
  %v1417 = vrot.slane %v1409, %v1416
  %v1419 = vunpack.c.l.s4 1966171168
  %v1420 = vunpack.c.0.s8 %v1419
  %v1421 = vlaneseq
  %v1422 = vshrl.u32 %v1421, 7
  %v1423 = vsub.s32 %v1420, %v1422
  %v1424 = vrot.slane %v1410, %v1423
  %v1425 = vcombine.low %v784, %v798
  %v1426 = vcombine.low %v806, %v808
  %v1427 = vcombine.low %v791, %v805
  %v1428 = vcombine.low %v807, %v809
  %v1430 = vunpack.c.l.s4 1966171168
  %v1431 = vunpack.c.0.s8 %v1430
  %v1432 = vlaneseq
  %v1433 = vshrl.u32 %v1432, 7
  %v1434 = vsub.s32 %v1431, %v1433
  %v1435 = vrot.slane %v1425, %v1434
  %v1437 = vunpack.c.l.s4 1966171168
  %v1438 = vunpack.c.0.s8 %v1437
  %v1439 = vlaneseq
  %v1440 = vshrl.u32 %v1439, 7
  %v1441 = vsub.s32 %v1438, %v1440
  %v1442 = vrot.slane %v1426, %v1441
  %v1444 = vunpack.c.l.s4 1966171168
  %v1445 = vunpack.c.0.s8 %v1444
  %v1446 = vlaneseq
  %v1447 = vshrl.u32 %v1446, 7
  %v1448 = vsub.s32 %v1445, %v1447
  %v1449 = vrot.slane %v1427, %v1448
  %v1451 = vunpack.c.l.s4 1966171168
  %v1452 = vunpack.c.0.s8 %v1451
  %v1453 = vlaneseq
  %v1454 = vshrl.u32 %v1453, 7
  %v1455 = vsub.s32 %v1452, %v1454
  %v1456 = vrot.slane %v1428, %v1455
  %v1457 = vcombine.low %v1435, %v1442
  %v1458 = vcombine.low %v1449, %v1456
  %v1460 = vunpack.c.l.s4 1966171168
  %v1461 = vunpack.c.0.s8 %v1460
  %v1462 = vlaneseq
  %v1463 = vshrl.u32 %v1462, 7
  %v1464 = vsub.s32 %v1461, %v1463
  %v1465 = vrot.slane %v1457, %v1464
  %v1467 = vunpack.c.l.s4 1966171168
  %v1468 = vunpack.c.0.s8 %v1467
  %v1469 = vlaneseq
  %v1470 = vshrl.u32 %v1469, 7
  %v1471 = vsub.s32 %v1468, %v1470
  %v1472 = vrot.slane %v1458, %v1471
  %v1473 = vcombine.low %v1465, %v1472
  %v1474 = vcombine.low %v833, %v847
  %v1475 = vcombine.low %v855, %v857
  %v1476 = vcombine.low %v840, %v854
  %v1477 = vcombine.low %v856, %v858
  %v1479 = vunpack.c.l.s4 1966171168
  %v1480 = vunpack.c.0.s8 %v1479
  %v1481 = vlaneseq
  %v1482 = vshrl.u32 %v1481, 7
  %v1483 = vsub.s32 %v1480, %v1482
  %v1484 = vrot.slane %v1474, %v1483
  %v1486 = vunpack.c.l.s4 1966171168
  %v1487 = vunpack.c.0.s8 %v1486
  %v1488 = vlaneseq
  %v1489 = vshrl.u32 %v1488, 7
  %v1490 = vsub.s32 %v1487, %v1489
  %v1491 = vrot.slane %v1475, %v1490
  %v1493 = vunpack.c.l.s4 1966171168
  %v1494 = vunpack.c.0.s8 %v1493
  %v1495 = vlaneseq
  %v1496 = vshrl.u32 %v1495, 7
  %v1497 = vsub.s32 %v1494, %v1496
  %v1498 = vrot.slane %v1476, %v1497
  %v1500 = vunpack.c.l.s4 1966171168
  %v1501 = vunpack.c.0.s8 %v1500
  %v1502 = vlaneseq
  %v1503 = vshrl.u32 %v1502, 7
  %v1504 = vsub.s32 %v1501, %v1503
  %v1505 = vrot.slane %v1477, %v1504
  %v1506 = vcombine.low %v1484, %v1491
  %v1507 = vcombine.low %v1498, %v1505
  %v1509 = vunpack.c.l.s4 1966171168
  %v1510 = vunpack.c.0.s8 %v1509
  %v1511 = vlaneseq
  %v1512 = vshrl.u32 %v1511, 7
  %v1513 = vsub.s32 %v1510, %v1512
  %v1514 = vrot.slane %v1506, %v1513
  %v1516 = vunpack.c.l.s4 1966171168
  %v1517 = vunpack.c.0.s8 %v1516
  %v1518 = vlaneseq
  %v1519 = vshrl.u32 %v1518, 7
  %v1520 = vsub.s32 %v1517, %v1519
  %v1521 = vrot.slane %v1507, %v1520
  %v1522 = vcombine.low %v1514, %v1521
  %v1524 = vunpack.c.l.s4 1966171168
  %v1525 = vunpack.c.0.s8 %v1524
  %v1526 = vlaneseq
  %v1527 = vshrl.u32 %v1526, 7
  %v1528 = vsub.s32 %v1525, %v1527
  %v1529 = vrot.slane %v882, %v1528
  %v1531 = vunpack.c.l.s4 1966171168
  %v1532 = vunpack.c.0.s8 %v1531
  %v1533 = vlaneseq
  %v1534 = vshrl.u32 %v1533, 7
  %v1535 = vsub.s32 %v1532, %v1534
  %v1536 = vrot.slane %v1529, %v1535
  %v1537 = vcombine.low %v896, %v904
  %v1538 = vcombine.low %v906, %v889
  %v1539 = vcombine.low %v903, %v905
  %v1540 = vcombine.low %v907, %v931
  %v1542 = vunpack.c.l.s4 1966171168
  %v1543 = vunpack.c.0.s8 %v1542
  %v1544 = vlaneseq
  %v1545 = vshrl.u32 %v1544, 7
  %v1546 = vsub.s32 %v1543, %v1545
  %v1547 = vrot.slane %v1537, %v1546
  %v1549 = vunpack.c.l.s4 1966171168
  %v1550 = vunpack.c.0.s8 %v1549
  %v1551 = vlaneseq
  %v1552 = vshrl.u32 %v1551, 7
  %v1553 = vsub.s32 %v1550, %v1552
  %v1554 = vrot.slane %v1538, %v1553
  %v1556 = vunpack.c.l.s4 1966171168
  %v1557 = vunpack.c.0.s8 %v1556
  %v1558 = vlaneseq
  %v1559 = vshrl.u32 %v1558, 7
  %v1560 = vsub.s32 %v1557, %v1559
  %v1561 = vrot.slane %v1539, %v1560
  %v1563 = vunpack.c.l.s4 1966171168
  %v1564 = vunpack.c.0.s8 %v1563
  %v1565 = vlaneseq
  %v1566 = vshrl.u32 %v1565, 7
  %v1567 = vsub.s32 %v1564, %v1566
  %v1568 = vrot.slane %v1540, %v1567
  %v1569 = vcombine.low %v1547, %v1554
  %v1570 = vcombine.low %v1561, %v1568
  %v1572 = vunpack.c.l.s4 1966171168
  %v1573 = vunpack.c.0.s8 %v1572
  %v1574 = vlaneseq
  %v1575 = vshrl.u32 %v1574, 7
  %v1576 = vsub.s32 %v1573, %v1575
  %v1577 = vrot.slane %v1569, %v1576
  %v1579 = vunpack.c.l.s4 1966171168
  %v1580 = vunpack.c.0.s8 %v1579
  %v1581 = vlaneseq
  %v1582 = vshrl.u32 %v1581, 7
  %v1583 = vsub.s32 %v1580, %v1582
  %v1584 = vrot.slane %v1570, %v1583
  %v1585 = vcombine.low %v1577, %v1584
  %v1586 = vcombine.low %v945, %v953
  %v1587 = vcombine.low %v955, %v938
  %v1588 = vcombine.low %v952, %v954
  %v1589 = vcombine.low %v956, %v971
  %v1591 = vunpack.c.l.s4 1966171168
  %v1592 = vunpack.c.0.s8 %v1591
  %v1593 = vlaneseq
  %v1594 = vshrl.u32 %v1593, 7
  %v1595 = vsub.s32 %v1592, %v1594
  %v1596 = vrot.slane %v1586, %v1595
  %v1598 = vunpack.c.l.s4 1966171168
  %v1599 = vunpack.c.0.s8 %v1598
  %v1600 = vlaneseq
  %v1601 = vshrl.u32 %v1600, 7
  %v1602 = vsub.s32 %v1599, %v1601
  %v1603 = vrot.slane %v1587, %v1602
  %v1605 = vunpack.c.l.s4 1966171168
  %v1606 = vunpack.c.0.s8 %v1605
  %v1607 = vlaneseq
  %v1608 = vshrl.u32 %v1607, 7
  %v1609 = vsub.s32 %v1606, %v1608
  %v1610 = vrot.slane %v1588, %v1609
  %v1612 = vunpack.c.l.s4 1966171168
  %v1613 = vunpack.c.0.s8 %v1612
  %v1614 = vlaneseq
  %v1615 = vshrl.u32 %v1614, 7
  %v1616 = vsub.s32 %v1613, %v1615
  %v1617 = vrot.slane %v1589, %v1616
  %v1618 = vcombine.low %v1596, %v1603
  %v1619 = vcombine.low %v1610, %v1617
  %v1621 = vunpack.c.l.s4 1966171168
  %v1622 = vunpack.c.0.s8 %v1621
  %v1623 = vlaneseq
  %v1624 = vshrl.u32 %v1623, 7
  %v1625 = vsub.s32 %v1622, %v1624
  %v1626 = vrot.slane %v1618, %v1625
  %v1628 = vunpack.c.l.s4 1966171168
  %v1629 = vunpack.c.0.s8 %v1628
  %v1630 = vlaneseq
  %v1631 = vshrl.u32 %v1630, 7
  %v1632 = vsub.s32 %v1629, %v1631
  %v1633 = vrot.slane %v1619, %v1632
  %v1634 = vcombine.low %v1626, %v1633
  %v1636 = vunpack.c.l.s4 1966171168
  %v1637 = vunpack.c.0.s8 %v1636
  %v1638 = vlaneseq
  %v1639 = vshrl.u32 %v1638, 7
  %v1640 = vsub.s32 %v1637, %v1639
  %v1641 = vrot.slane %v978, %v1640
  %v1643 = vunpack.c.l.s4 1966171168
  %v1644 = vunpack.c.0.s8 %v1643
  %v1645 = vlaneseq
  %v1646 = vshrl.u32 %v1645, 7
  %v1647 = vsub.s32 %v1644, %v1646
  %v1648 = vrot.slane %v1641, %v1647
  %v1655 = vpack.c.bf16 %v1522, %v1473
  %v1656 = vpack.c.bf16 %v1536, %v1536
  %v1657 = vpack.c.bf16 %v1634, %v1585
  %v1658 = vpack.c.bf16 %v1648, %v1648
  %v1659 = vcombine.low %v1007, %v1021
  %v1660 = vcombine.low %v1029, %v1031
  %v1661 = vcombine.low %v1014, %v1028
  %v1662 = vcombine.low %v1030, %v1032
  %v1664 = vunpack.c.l.s4 1966171168
  %v1665 = vunpack.c.0.s8 %v1664
  %v1666 = vlaneseq
  %v1667 = vshrl.u32 %v1666, 7
  %v1668 = vsub.s32 %v1665, %v1667
  %v1669 = vrot.slane %v1659, %v1668
  %v1671 = vunpack.c.l.s4 1966171168
  %v1672 = vunpack.c.0.s8 %v1671
  %v1673 = vlaneseq
  %v1674 = vshrl.u32 %v1673, 7
  %v1675 = vsub.s32 %v1672, %v1674
  %v1676 = vrot.slane %v1660, %v1675
  %v1678 = vunpack.c.l.s4 1966171168
  %v1679 = vunpack.c.0.s8 %v1678
  %v1680 = vlaneseq
  %v1681 = vshrl.u32 %v1680, 7
  %v1682 = vsub.s32 %v1679, %v1681
  %v1683 = vrot.slane %v1661, %v1682
  %v1685 = vunpack.c.l.s4 1966171168
  %v1686 = vunpack.c.0.s8 %v1685
  %v1687 = vlaneseq
  %v1688 = vshrl.u32 %v1687, 7
  %v1689 = vsub.s32 %v1686, %v1688
  %v1690 = vrot.slane %v1662, %v1689
  %v1691 = vcombine.low %v1669, %v1676
  %v1692 = vcombine.low %v1683, %v1690
  %v1694 = vunpack.c.l.s4 1966171168
  %v1695 = vunpack.c.0.s8 %v1694
  %v1696 = vlaneseq
  %v1697 = vshrl.u32 %v1696, 7
  %v1698 = vsub.s32 %v1695, %v1697
  %v1699 = vrot.slane %v1691, %v1698
  %v1701 = vunpack.c.l.s4 1966171168
  %v1702 = vunpack.c.0.s8 %v1701
  %v1703 = vlaneseq
  %v1704 = vshrl.u32 %v1703, 7
  %v1705 = vsub.s32 %v1702, %v1704
  %v1706 = vrot.slane %v1692, %v1705
  %v1707 = vcombine.low %v1699, %v1706
  %v1708 = vcombine.low %v1056, %v1070
  %v1709 = vcombine.low %v1078, %v1080
  %v1710 = vcombine.low %v1063, %v1077
  %v1711 = vcombine.low %v1079, %v1081
  %v1713 = vunpack.c.l.s4 1966171168
  %v1714 = vunpack.c.0.s8 %v1713
  %v1715 = vlaneseq
  %v1716 = vshrl.u32 %v1715, 7
  %v1717 = vsub.s32 %v1714, %v1716
  %v1718 = vrot.slane %v1708, %v1717
  %v1720 = vunpack.c.l.s4 1966171168
  %v1721 = vunpack.c.0.s8 %v1720
  %v1722 = vlaneseq
  %v1723 = vshrl.u32 %v1722, 7
  %v1724 = vsub.s32 %v1721, %v1723
  %v1725 = vrot.slane %v1709, %v1724
  %v1727 = vunpack.c.l.s4 1966171168
  %v1728 = vunpack.c.0.s8 %v1727
  %v1729 = vlaneseq
  %v1730 = vshrl.u32 %v1729, 7
  %v1731 = vsub.s32 %v1728, %v1730
  %v1732 = vrot.slane %v1710, %v1731
  %v1734 = vunpack.c.l.s4 1966171168
  %v1735 = vunpack.c.0.s8 %v1734
  %v1736 = vlaneseq
  %v1737 = vshrl.u32 %v1736, 7
  %v1738 = vsub.s32 %v1735, %v1737
  %v1739 = vrot.slane %v1711, %v1738
  %v1740 = vcombine.low %v1718, %v1725
  %v1741 = vcombine.low %v1732, %v1739
  %v1743 = vunpack.c.l.s4 1966171168
  %v1744 = vunpack.c.0.s8 %v1743
  %v1745 = vlaneseq
  %v1746 = vshrl.u32 %v1745, 7
  %v1747 = vsub.s32 %v1744, %v1746
  %v1748 = vrot.slane %v1740, %v1747
  %v1750 = vunpack.c.l.s4 1966171168
  %v1751 = vunpack.c.0.s8 %v1750
  %v1752 = vlaneseq
  %v1753 = vshrl.u32 %v1752, 7
  %v1754 = vsub.s32 %v1751, %v1753
  %v1755 = vrot.slane %v1741, %v1754
  %v1756 = vcombine.low %v1748, %v1755
  %v1758 = vunpack.c.l.s4 1966171168
  %v1759 = vunpack.c.0.s8 %v1758
  %v1760 = vlaneseq
  %v1761 = vshrl.u32 %v1760, 7
  %v1762 = vsub.s32 %v1759, %v1761
  %v1763 = vrot.slane %v1105, %v1762
  %v1765 = vunpack.c.l.s4 1966171168
  %v1766 = vunpack.c.0.s8 %v1765
  %v1767 = vlaneseq
  %v1768 = vshrl.u32 %v1767, 7
  %v1769 = vsub.s32 %v1766, %v1768
  %v1770 = vrot.slane %v1763, %v1769
  %v1771 = vcombine.low %v1119, %v1127
  %v1772 = vcombine.low %v1129, %v1112
  %v1773 = vcombine.low %v1126, %v1128
  %v1774 = vcombine.low %v1130, %v1154
  %v1776 = vunpack.c.l.s4 1966171168
  %v1777 = vunpack.c.0.s8 %v1776
  %v1778 = vlaneseq
  %v1779 = vshrl.u32 %v1778, 7
  %v1780 = vsub.s32 %v1777, %v1779
  %v1781 = vrot.slane %v1771, %v1780
  %v1783 = vunpack.c.l.s4 1966171168
  %v1784 = vunpack.c.0.s8 %v1783
  %v1785 = vlaneseq
  %v1786 = vshrl.u32 %v1785, 7
  %v1787 = vsub.s32 %v1784, %v1786
  %v1788 = vrot.slane %v1772, %v1787
  %v1790 = vunpack.c.l.s4 1966171168
  %v1791 = vunpack.c.0.s8 %v1790
  %v1792 = vlaneseq
  %v1793 = vshrl.u32 %v1792, 7
  %v1794 = vsub.s32 %v1791, %v1793
  %v1795 = vrot.slane %v1773, %v1794
  %v1797 = vunpack.c.l.s4 1966171168
  %v1798 = vunpack.c.0.s8 %v1797
  %v1799 = vlaneseq
  %v1800 = vshrl.u32 %v1799, 7
  %v1801 = vsub.s32 %v1798, %v1800
  %v1802 = vrot.slane %v1774, %v1801
  %v1803 = vcombine.low %v1781, %v1788
  %v1804 = vcombine.low %v1795, %v1802
  %v1806 = vunpack.c.l.s4 1966171168
  %v1807 = vunpack.c.0.s8 %v1806
  %v1808 = vlaneseq
  %v1809 = vshrl.u32 %v1808, 7
  %v1810 = vsub.s32 %v1807, %v1809
  %v1811 = vrot.slane %v1803, %v1810
  %v1813 = vunpack.c.l.s4 1966171168
  %v1814 = vunpack.c.0.s8 %v1813
  %v1815 = vlaneseq
  %v1816 = vshrl.u32 %v1815, 7
  %v1817 = vsub.s32 %v1814, %v1816
  %v1818 = vrot.slane %v1804, %v1817
  %v1819 = vcombine.low %v1811, %v1818
  %v1820 = vcombine.low %v1168, %v1176
  %v1821 = vcombine.low %v1178, %v1161
  %v1822 = vcombine.low %v1175, %v1177
  %v1823 = vcombine.low %v1179, %v1194
  %v1825 = vunpack.c.l.s4 1966171168
  %v1826 = vunpack.c.0.s8 %v1825
  %v1827 = vlaneseq
  %v1828 = vshrl.u32 %v1827, 7
  %v1829 = vsub.s32 %v1826, %v1828
  %v1830 = vrot.slane %v1820, %v1829
  %v1832 = vunpack.c.l.s4 1966171168
  %v1833 = vunpack.c.0.s8 %v1832
  %v1834 = vlaneseq
  %v1835 = vshrl.u32 %v1834, 7
  %v1836 = vsub.s32 %v1833, %v1835
  %v1837 = vrot.slane %v1821, %v1836
  %v1839 = vunpack.c.l.s4 1966171168
  %v1840 = vunpack.c.0.s8 %v1839
  %v1841 = vlaneseq
  %v1842 = vshrl.u32 %v1841, 7
  %v1843 = vsub.s32 %v1840, %v1842
  %v1844 = vrot.slane %v1822, %v1843
  %v1846 = vunpack.c.l.s4 1966171168
  %v1847 = vunpack.c.0.s8 %v1846
  %v1848 = vlaneseq
  %v1849 = vshrl.u32 %v1848, 7
  %v1850 = vsub.s32 %v1847, %v1849
  %v1851 = vrot.slane %v1823, %v1850
  %v1852 = vcombine.low %v1830, %v1837
  %v1853 = vcombine.low %v1844, %v1851
  %v1855 = vunpack.c.l.s4 1966171168
  %v1856 = vunpack.c.0.s8 %v1855
  %v1857 = vlaneseq
  %v1858 = vshrl.u32 %v1857, 7
  %v1859 = vsub.s32 %v1856, %v1858
  %v1860 = vrot.slane %v1852, %v1859
  %v1862 = vunpack.c.l.s4 1966171168
  %v1863 = vunpack.c.0.s8 %v1862
  %v1864 = vlaneseq
  %v1865 = vshrl.u32 %v1864, 7
  %v1866 = vsub.s32 %v1863, %v1865
  %v1867 = vrot.slane %v1853, %v1866
  %v1868 = vcombine.low %v1860, %v1867
  %v1870 = vunpack.c.l.s4 1966171168
  %v1871 = vunpack.c.0.s8 %v1870
  %v1872 = vlaneseq
  %v1873 = vshrl.u32 %v1872, 7
  %v1874 = vsub.s32 %v1871, %v1873
  %v1875 = vrot.slane %v1201, %v1874
  %v1877 = vunpack.c.l.s4 1966171168
  %v1878 = vunpack.c.0.s8 %v1877
  %v1879 = vlaneseq
  %v1880 = vshrl.u32 %v1879, 7
  %v1881 = vsub.s32 %v1878, %v1880
  %v1882 = vrot.slane %v1875, %v1881
  %v1889 = vpack.c.bf16 %v1756, %v1707
  %v1890 = vpack.c.bf16 %v1770, %v1770
  %v1891 = vpack.c.bf16 %v1868, %v1819
  %v1892 = vpack.c.bf16 %v1882, %v1882
  %vm1893 = vcmask 64512
  %v1895 = vsel %vm1893, %v1655, 0
  %v1898 = vsel %vm1893, %v1656, 0
  %v1901 = vsel %vm1893, %v1889, 0
  %v1904 = vsel %vm1893, %v1890, 0
  %1906 = vmatprep.subr.bf16.mxu0 0
  %1907 = vmatpush1.bf16.xpose.msra.mxu0 %v1901
  %1908 = vmatprep.subr.bf16.mxu0 0
  %1909 = vmatpush1.bf16.xpose.msra.mxu0 %v1904
  %1910 = vmatprep.subr.bf16.mxu0 0
  %1911 = vmatpush1.bf16.xpose.msra.mxu0 0
  %1912 = vmatprep.subr.bf16.mxu0 0
  %1913 = vmatpush1.bf16.xpose.msra.mxu0 0
  %1914 = vmatprep.subr.bf16.mxu0 0
  %1915 = vmatpush1.bf16.xpose.msra.mxu0 0
  %1916 = vmatprep.subr.bf16.mxu0 0
  %1917 = vmatpush1.bf16.xpose.msra.mxu0 0
  %1918 = vmatprep.subr.bf16.mxu0 0
  %1919 = vmatpush1.bf16.xpose.msra.mxu0 0
  %1920 = vmatprep.subr.bf16.mxu0 0
  %1921 = vmatpush1.bf16.xpose.msra.mxu0 0
  %1922 = vmatprep.subr.bf16.mxu0 0
  %1923 = vmatpush1.bf16.xpose.msra.mxu0 0
  %1924 = vmatprep.subr.bf16.mxu0 0
  %1925 = vmatpush1.bf16.xpose.msra.mxu0 0
  %1926 = vmatprep.subr.bf16.mxu0 0
  %1927 = vmatpush1.bf16.xpose.msra.mxu0 0
  %1928 = vmatprep.subr.bf16.mxu0 0
  %1929 = vmatpush1.bf16.xpose.msra.mxu0 0
  %1930 = vmatprep.subr.bf16.mxu0 0
  %1931 = vmatpush1.bf16.xpose.msra.mxu0 0
  %1932 = vmatprep.subr.bf16.mxu0 0
  %1933 = vmatpush1.bf16.xpose.msra.mxu0 0
  %1934 = vmatprep.subr.bf16.mxu0 0
  %1935 = vmatpush1.bf16.xpose.msra.mxu0 0
  %1936 = vmatprep.subr.bf16.mxu0 0
  %1937 = vmatpush1.bf16.xpose.msra.mxu0 0
  %1938 = vmatprep.mubr.bf16.mxu0 0
  %1939 = vmatmul.mubr.bf16.gmra.mrb[0].mxu0 %v1895
  %v1940 = vpop.f32.mrb[0].mxu0
  %v1941 = vadd.f32 0.0, %v1940
  %v1942 = vpop.f32.mrb[0].mxu0
  %v1943 = vpop.f32.mrb[0].mxu0
  %v1944 = vadd.f32 0.0, %v1943
  %v1945 = vpop.f32.mrb[0].mxu0
  %1946 = vmatprep.mubr.bf16.mxu0 0
  %1947 = vmatmul.mubr.bf16.gmra.mrb[0].mxu0 %v1898
  %v1948 = vpop.f32.mrb[0].mxu0
  %v1949 = vadd.f32 0.0, %v1948
  %v1950 = vpop.f32.mrb[0].mxu0
  %v1951 = vpop.f32.mrb[0].mxu0
  %v1952 = vpop.f32.mrb[0].mxu0
  %1953 = vdwg.mxu0
  %v1955 = vsel %vm1893, %v1657, 0
  %v1958 = vsel %vm1893, %v1658, 0
  %v1961 = vsel %vm1893, %v1891, 0
  %v1964 = vsel %vm1893, %v1892, 0
  %1966 = vmatprep.subr.bf16.mxu0 0
  %1967 = vmatpush1.bf16.xpose.msra.mxu0 %v1961
  %1968 = vmatprep.subr.bf16.mxu0 0
  %1969 = vmatpush1.bf16.xpose.msra.mxu0 %v1964
  %1970 = vmatprep.subr.bf16.mxu0 0
  %1971 = vmatpush1.bf16.xpose.msra.mxu0 0
  %1972 = vmatprep.subr.bf16.mxu0 0
  %1973 = vmatpush1.bf16.xpose.msra.mxu0 0
  %1974 = vmatprep.subr.bf16.mxu0 0
  %1975 = vmatpush1.bf16.xpose.msra.mxu0 0
  %1976 = vmatprep.subr.bf16.mxu0 0
  %1977 = vmatpush1.bf16.xpose.msra.mxu0 0
  %1978 = vmatprep.subr.bf16.mxu0 0
  %1979 = vmatpush1.bf16.xpose.msra.mxu0 0
  %1980 = vmatprep.subr.bf16.mxu0 0
  %1981 = vmatpush1.bf16.xpose.msra.mxu0 0
  %1982 = vmatprep.subr.bf16.mxu0 0
  %1983 = vmatpush1.bf16.xpose.msra.mxu0 0
  %1984 = vmatprep.subr.bf16.mxu0 0
  %1985 = vmatpush1.bf16.xpose.msra.mxu0 0
  %1986 = vmatprep.subr.bf16.mxu0 0
  %1987 = vmatpush1.bf16.xpose.msra.mxu0 0
  %1988 = vmatprep.subr.bf16.mxu0 0
  %1989 = vmatpush1.bf16.xpose.msra.mxu0 0
  %1990 = vmatprep.subr.bf16.mxu0 0
  %1991 = vmatpush1.bf16.xpose.msra.mxu0 0
  %1992 = vmatprep.subr.bf16.mxu0 0
  %1993 = vmatpush1.bf16.xpose.msra.mxu0 0
  %1994 = vmatprep.subr.bf16.mxu0 0
  %1995 = vmatpush1.bf16.xpose.msra.mxu0 0
  %1996 = vmatprep.subr.bf16.mxu0 0
  %1997 = vmatpush1.bf16.xpose.msra.mxu0 0
  %1998 = vmatprep.mubr.bf16.mxu0 0
  %1999 = vmatmul.mubr.bf16.gmra.mrb[0].mxu0 %v1955
  %v2000 = vpop.f32.mrb[0].mxu0
  %v2001 = vadd.f32 0.0, %v2000
  %v2002 = vpop.f32.mrb[0].mxu0
  %v2003 = vpop.f32.mrb[0].mxu0
  %v2004 = vadd.f32 0.0, %v2003
  %v2005 = vpop.f32.mrb[0].mxu0
  %2006 = vmatprep.mubr.bf16.mxu0 0
  %2007 = vmatmul.mubr.bf16.gmra.mrb[0].mxu0 %v1958
  %v2008 = vpop.f32.mrb[0].mxu0
  %v2009 = vadd.f32 0.0, %v2008
  %v2010 = vpop.f32.mrb[0].mxu0
  %v2011 = vpop.f32.mrb[0].mxu0
  %v2012 = vpop.f32.mrb[0].mxu0
  %2013 = vdwg.mxu0
  %vm2014 = vcmask 138240
  %v2015 = vsel %vm2014, %v1941, -inf
  %2016 = vmax.xlane.f32.xlu0 %v2015
  %v2017 = vpop.xlane.xlu0 %2016
  %v2018 = vsel %vm2014, %v1944, -inf
  %2019 = vmax.xlane.f32.xlu0 %v2018
  %v2020 = vpop.xlane.xlu0 %2019
  %vm2021 = vcmask 131072
  %v2022 = vsel %vm2021, %v1949, -inf
  %2023 = vmax.xlane.f32.xlu0 %v2022
  %v2024 = vpop.xlane.xlu0 %2023
  %v2025 = vsel %vm2014, %v2001, -inf
  %2026 = vmax.xlane.f32.xlu0 %v2025
  %v2027 = vpop.xlane.xlu0 %2026
  %v2028 = vsel %vm2014, %v2004, -inf
  %2029 = vmax.xlane.f32.xlu0 %v2028
  %v2030 = vpop.xlane.xlu0 %2029
  %v2031 = vsel %vm2021, %v2009, -inf
  %2032 = vmax.xlane.f32.xlu0 %v2031
  %v2033 = vpop.xlane.xlu0 %2032
  %v2034 = vsub.f32 %v1941, %v2017
  %v2035 = vsub.f32 %v1944, %v2020
  %v2036 = vsub.f32 %v1949, %v2024
  %v2037 = vsub.f32 %v2001, %v2027
  %v2038 = vsub.f32 %v2004, %v2030
  %v2039 = vsub.f32 %v2009, %v2033
  %v2040 = vmul.f32 %v2034, 1.442695
  %v2041 = vpow.pop %v2040
  %v2042 = vmul.f32 %v2035, 1.442695
  %v2043 = vpow.pop %v2042
  %v2044 = vmul.f32 %v2036, 1.442695
  %v2045 = vpow.pop %v2044
  %v2046 = vmul.f32 %v2037, 1.442695
  %v2047 = vpow.pop %v2046
  %v2048 = vmul.f32 %v2038, 1.442695
  %v2049 = vpow.pop %v2048
  %v2050 = vmul.f32 %v2039, 1.442695
  %v2051 = vpow.pop %v2050
  %v2052 = vsel %vm2014, %v2041, 0.0
  %2053 = vadd.xlane.f32.xlu0 %v2052
  %v2054 = vpop.xlane.xlu0 %2053
  %v2055 = vsel %vm2014, %v2043, 0.0
  %2056 = vadd.xlane.f32.xlu0 %v2055
  %v2057 = vpop.xlane.xlu0 %2056
  %v2058 = vsel %vm2021, %v2045, 0.0
  %2059 = vadd.xlane.f32.xlu0 %v2058
  %v2060 = vpop.xlane.xlu0 %2059
  %v2061 = vsel %vm2014, %v2047, 0.0
  %2062 = vadd.xlane.f32.xlu0 %v2061
  %v2063 = vpop.xlane.xlu0 %2062
  %v2064 = vsel %vm2014, %v2049, 0.0
  %2065 = vadd.xlane.f32.xlu0 %v2064
  %v2066 = vpop.xlane.xlu0 %2065
  %v2067 = vsel %vm2021, %v2051, 0.0
  %2068 = vadd.xlane.f32.xlu0 %v2067
  %v2069 = vpop.xlane.xlu0 %2068
  %v2070 = vrcp.pop %v2054
  %v2071 = vrcp.pop %v2057
  %v2072 = vrcp.pop %v2060
  %v2073 = vrcp.pop %v2063
  %v2074 = vrcp.pop %v2066
  %v2075 = vrcp.pop %v2069
  %v2076 = vmul.f32 %v2041, %v2070
  %v2077 = vmul.f32 %v2043, %v2071
  %v2078 = vmul.f32 %v2045, %v2072
  %v2079 = vmul.f32 %v2047, %v2073
  %v2080 = vmul.f32 %v2049, %v2074
  %v2081 = vmul.f32 %v2051, %v2075
  %v2082 = vpack.c.bf16 %v2077, %v2076
  %v2083 = vpack.c.bf16 %v2078, %v2078
  %v2084 = vpack.c.bf16 %v2080, %v2079
  %v2085 = vpack.c.bf16 %v2081, %v2081
  %v2086 = vcombine.low %v1230, %v1244
  %v2087 = vcombine.low %v1252, %v1254
  %v2088 = vcombine.low %v1237, %v1251
  %v2089 = vcombine.low %v1253, %v1255
  %v2091 = vunpack.c.l.s4 1966171168
  %v2092 = vunpack.c.0.s8 %v2091
  %v2093 = vlaneseq
  %v2094 = vshrl.u32 %v2093, 7
  %v2095 = vsub.s32 %v2092, %v2094
  %v2096 = vrot.slane %v2086, %v2095
  %v2098 = vunpack.c.l.s4 1966171168
  %v2099 = vunpack.c.0.s8 %v2098
  %v2100 = vlaneseq
  %v2101 = vshrl.u32 %v2100, 7
  %v2102 = vsub.s32 %v2099, %v2101
  %v2103 = vrot.slane %v2087, %v2102
  %v2105 = vunpack.c.l.s4 1966171168
  %v2106 = vunpack.c.0.s8 %v2105
  %v2107 = vlaneseq
  %v2108 = vshrl.u32 %v2107, 7
  %v2109 = vsub.s32 %v2106, %v2108
  %v2110 = vrot.slane %v2088, %v2109
  %v2112 = vunpack.c.l.s4 1966171168
  %v2113 = vunpack.c.0.s8 %v2112
  %v2114 = vlaneseq
  %v2115 = vshrl.u32 %v2114, 7
  %v2116 = vsub.s32 %v2113, %v2115
  %v2117 = vrot.slane %v2089, %v2116
  %v2118 = vcombine.low %v2096, %v2103
  %v2119 = vcombine.low %v2110, %v2117
  %v2121 = vunpack.c.l.s4 1966171168
  %v2122 = vunpack.c.0.s8 %v2121
  %v2123 = vlaneseq
  %v2124 = vshrl.u32 %v2123, 7
  %v2125 = vsub.s32 %v2122, %v2124
  %v2126 = vrot.slane %v2118, %v2125
  %v2128 = vunpack.c.l.s4 1966171168
  %v2129 = vunpack.c.0.s8 %v2128
  %v2130 = vlaneseq
  %v2131 = vshrl.u32 %v2130, 7
  %v2132 = vsub.s32 %v2129, %v2131
  %v2133 = vrot.slane %v2119, %v2132
  %v2134 = vcombine.low %v2126, %v2133
  %v2135 = vcombine.low %v1279, %v1293
  %v2136 = vcombine.low %v1301, %v1303
  %v2137 = vcombine.low %v1286, %v1300
  %v2138 = vcombine.low %v1302, %v1304
  %v2140 = vunpack.c.l.s4 1966171168
  %v2141 = vunpack.c.0.s8 %v2140
  %v2142 = vlaneseq
  %v2143 = vshrl.u32 %v2142, 7
  %v2144 = vsub.s32 %v2141, %v2143
  %v2145 = vrot.slane %v2135, %v2144
  %v2147 = vunpack.c.l.s4 1966171168
  %v2148 = vunpack.c.0.s8 %v2147
  %v2149 = vlaneseq
  %v2150 = vshrl.u32 %v2149, 7
  %v2151 = vsub.s32 %v2148, %v2150
  %v2152 = vrot.slane %v2136, %v2151
  %v2154 = vunpack.c.l.s4 1966171168
  %v2155 = vunpack.c.0.s8 %v2154
  %v2156 = vlaneseq
  %v2157 = vshrl.u32 %v2156, 7
  %v2158 = vsub.s32 %v2155, %v2157
  %v2159 = vrot.slane %v2137, %v2158
  %v2161 = vunpack.c.l.s4 1966171168
  %v2162 = vunpack.c.0.s8 %v2161
  %v2163 = vlaneseq
  %v2164 = vshrl.u32 %v2163, 7
  %v2165 = vsub.s32 %v2162, %v2164
  %v2166 = vrot.slane %v2138, %v2165
  %v2167 = vcombine.low %v2145, %v2152
  %v2168 = vcombine.low %v2159, %v2166
  %v2170 = vunpack.c.l.s4 1966171168
  %v2171 = vunpack.c.0.s8 %v2170
  %v2172 = vlaneseq
  %v2173 = vshrl.u32 %v2172, 7
  %v2174 = vsub.s32 %v2171, %v2173
  %v2175 = vrot.slane %v2167, %v2174
  %v2177 = vunpack.c.l.s4 1966171168
  %v2178 = vunpack.c.0.s8 %v2177
  %v2179 = vlaneseq
  %v2180 = vshrl.u32 %v2179, 7
  %v2181 = vsub.s32 %v2178, %v2180
  %v2182 = vrot.slane %v2168, %v2181
  %v2183 = vcombine.low %v2175, %v2182
  %v2185 = vunpack.c.l.s4 1966171168
  %v2186 = vunpack.c.0.s8 %v2185
  %v2187 = vlaneseq
  %v2188 = vshrl.u32 %v2187, 7
  %v2189 = vsub.s32 %v2186, %v2188
  %v2190 = vrot.slane %v1328, %v2189
  %v2192 = vunpack.c.l.s4 1966171168
  %v2193 = vunpack.c.0.s8 %v2192
  %v2194 = vlaneseq
  %v2195 = vshrl.u32 %v2194, 7
  %v2196 = vsub.s32 %v2193, %v2195
  %v2197 = vrot.slane %v2190, %v2196
  %v2198 = vcombine.low %v1342, %v1350
  %v2199 = vcombine.low %v1352, %v1335
  %v2200 = vcombine.low %v1349, %v1351
  %v2201 = vcombine.low %v1353, %v1377
  %v2203 = vunpack.c.l.s4 1966171168
  %v2204 = vunpack.c.0.s8 %v2203
  %v2205 = vlaneseq
  %v2206 = vshrl.u32 %v2205, 7
  %v2207 = vsub.s32 %v2204, %v2206
  %v2208 = vrot.slane %v2198, %v2207
  %v2210 = vunpack.c.l.s4 1966171168
  %v2211 = vunpack.c.0.s8 %v2210
  %v2212 = vlaneseq
  %v2213 = vshrl.u32 %v2212, 7
  %v2214 = vsub.s32 %v2211, %v2213
  %v2215 = vrot.slane %v2199, %v2214
  %v2217 = vunpack.c.l.s4 1966171168
  %v2218 = vunpack.c.0.s8 %v2217
  %v2219 = vlaneseq
  %v2220 = vshrl.u32 %v2219, 7
  %v2221 = vsub.s32 %v2218, %v2220
  %v2222 = vrot.slane %v2200, %v2221
  %v2224 = vunpack.c.l.s4 1966171168
  %v2225 = vunpack.c.0.s8 %v2224
  %v2226 = vlaneseq
  %v2227 = vshrl.u32 %v2226, 7
  %v2228 = vsub.s32 %v2225, %v2227
  %v2229 = vrot.slane %v2201, %v2228
  %v2230 = vcombine.low %v2208, %v2215
  %v2231 = vcombine.low %v2222, %v2229
  %v2233 = vunpack.c.l.s4 1966171168
  %v2234 = vunpack.c.0.s8 %v2233
  %v2235 = vlaneseq
  %v2236 = vshrl.u32 %v2235, 7
  %v2237 = vsub.s32 %v2234, %v2236
  %v2238 = vrot.slane %v2230, %v2237
  %v2240 = vunpack.c.l.s4 1966171168
  %v2241 = vunpack.c.0.s8 %v2240
  %v2242 = vlaneseq
  %v2243 = vshrl.u32 %v2242, 7
  %v2244 = vsub.s32 %v2241, %v2243
  %v2245 = vrot.slane %v2231, %v2244
  %v2246 = vcombine.low %v2238, %v2245
  %v2247 = vcombine.low %v1391, %v1399
  %v2248 = vcombine.low %v1401, %v1384
  %v2249 = vcombine.low %v1398, %v1400
  %v2250 = vcombine.low %v1402, %v1417
  %v2252 = vunpack.c.l.s4 1966171168
  %v2253 = vunpack.c.0.s8 %v2252
  %v2254 = vlaneseq
  %v2255 = vshrl.u32 %v2254, 7
  %v2256 = vsub.s32 %v2253, %v2255
  %v2257 = vrot.slane %v2247, %v2256
  %v2259 = vunpack.c.l.s4 1966171168
  %v2260 = vunpack.c.0.s8 %v2259
  %v2261 = vlaneseq
  %v2262 = vshrl.u32 %v2261, 7
  %v2263 = vsub.s32 %v2260, %v2262
  %v2264 = vrot.slane %v2248, %v2263
  %v2266 = vunpack.c.l.s4 1966171168
  %v2267 = vunpack.c.0.s8 %v2266
  %v2268 = vlaneseq
  %v2269 = vshrl.u32 %v2268, 7
  %v2270 = vsub.s32 %v2267, %v2269
  %v2271 = vrot.slane %v2249, %v2270
  %v2273 = vunpack.c.l.s4 1966171168
  %v2274 = vunpack.c.0.s8 %v2273
  %v2275 = vlaneseq
  %v2276 = vshrl.u32 %v2275, 7
  %v2277 = vsub.s32 %v2274, %v2276
  %v2278 = vrot.slane %v2250, %v2277
  %v2279 = vcombine.low %v2257, %v2264
  %v2280 = vcombine.low %v2271, %v2278
  %v2282 = vunpack.c.l.s4 1966171168
  %v2283 = vunpack.c.0.s8 %v2282
  %v2284 = vlaneseq
  %v2285 = vshrl.u32 %v2284, 7
  %v2286 = vsub.s32 %v2283, %v2285
  %v2287 = vrot.slane %v2279, %v2286
  %v2289 = vunpack.c.l.s4 1966171168
  %v2290 = vunpack.c.0.s8 %v2289
  %v2291 = vlaneseq
  %v2292 = vshrl.u32 %v2291, 7
  %v2293 = vsub.s32 %v2290, %v2292
  %v2294 = vrot.slane %v2280, %v2293
  %v2295 = vcombine.low %v2287, %v2294
  %v2297 = vunpack.c.l.s4 1966171168
  %v2298 = vunpack.c.0.s8 %v2297
  %v2299 = vlaneseq
  %v2300 = vshrl.u32 %v2299, 7
  %v2301 = vsub.s32 %v2298, %v2300
  %v2302 = vrot.slane %v1424, %v2301
  %v2304 = vunpack.c.l.s4 1966171168
  %v2305 = vunpack.c.0.s8 %v2304
  %v2306 = vlaneseq
  %v2307 = vshrl.u32 %v2306, 7
  %v2308 = vsub.s32 %v2305, %v2307
  %v2309 = vrot.slane %v2302, %v2308
  %v2316 = vpack.c.bf16 %v2183, %v2134
  %v2317 = vpack.c.bf16 %v2197, %v2197
  %v2318 = vpack.c.bf16 %v2295, %v2246
  %v2319 = vpack.c.bf16 %v2309, %v2309
  %v2321 = vsel %vm2014, %v2082, 0
  %v2324 = vsel %vm2014, %v2083, 0
  %v2326 = vsel 0, 4294967295, 65535
  %v2327 = vsel %vm68, %v2326, 0
  %v2329 = vand.u32 %v2317, %v2327
  %2331 = vmatprep.subr.bf16.mxu0 0
  %2332 = vmatpush1.bf16.msra.mxu0 %v2316
  %2333 = vmatprep.subr.bf16.mxu0 0
  %2334 = vmatpush1.bf16.msra.mxu0 %v2329
  %2335 = vmatprep.subr.bf16.mxu0 0
  %2336 = vmatpush1.bf16.msra.mxu0 0
  %2337 = vmatprep.subr.bf16.mxu0 0
  %2338 = vmatpush1.bf16.msra.mxu0 0
  %2339 = vmatprep.subr.bf16.mxu0 0
  %2340 = vmatpush1.bf16.msra.mxu0 0
  %2341 = vmatprep.subr.bf16.mxu0 0
  %2342 = vmatpush1.bf16.msra.mxu0 0
  %2343 = vmatprep.subr.bf16.mxu0 0
  %2344 = vmatpush1.bf16.msra.mxu0 0
  %2345 = vmatprep.subr.bf16.mxu0 0
  %2346 = vmatpush1.bf16.msra.mxu0 0
  %2347 = vmatprep.subr.bf16.mxu0 0
  %2348 = vmatpush1.bf16.msra.mxu0 0
  %2349 = vmatprep.subr.bf16.mxu0 0
  %2350 = vmatpush1.bf16.msra.mxu0 0
  %2351 = vmatprep.subr.bf16.mxu0 0
  %2352 = vmatpush1.bf16.msra.mxu0 0
  %2353 = vmatprep.subr.bf16.mxu0 0
  %2354 = vmatpush1.bf16.msra.mxu0 0
  %2355 = vmatprep.subr.bf16.mxu0 0
  %2356 = vmatpush1.bf16.msra.mxu0 0
  %2357 = vmatprep.subr.bf16.mxu0 0
  %2358 = vmatpush1.bf16.msra.mxu0 0
  %2359 = vmatprep.subr.bf16.mxu0 0
  %2360 = vmatpush1.bf16.msra.mxu0 0
  %2361 = vmatprep.subr.bf16.mxu0 0
  %2362 = vmatpush1.bf16.msra.mxu0 0
  %2363 = vmatprep.mubr.bf16.mxu0 0
  %2364 = vmatmul.mubr.bf16.gmra.mrb[0].mxu0 %v2321
  %v2365 = vpop.f32.mrb[0].mxu0
  %v2366 = vadd.f32 0.0, %v2365
  %v2367 = vpop.f32.mrb[0].mxu0
  %v2368 = vpop.f32.mrb[0].mxu0
  %v2369 = vadd.f32 0.0, %v2368
  %v2370 = vpop.f32.mrb[0].mxu0
  %2371 = vmatprep.mubr.bf16.mxu0 0
  %2372 = vmatmul.mubr.bf16.gmra.mrb[0].mxu0 %v2324
  %v2373 = vpop.f32.mrb[0].mxu0
  %v2374 = vadd.f32 0.0, %v2373
  %v2375 = vpop.f32.mrb[0].mxu0
  %v2376 = vpop.f32.mrb[0].mxu0
  %v2377 = vpop.f32.mrb[0].mxu0
  %2378 = vdwg.mxu0
  %v2380 = vsel %vm2014, %v2084, 0
  %v2383 = vsel %vm2014, %v2085, 0
  %v2386 = vand.u32 %v2319, %v2327
  %2388 = vmatprep.subr.bf16.mxu0 0
  %2389 = vmatpush1.bf16.msra.mxu0 %v2318
  %2390 = vmatprep.subr.bf16.mxu0 0
  %2391 = vmatpush1.bf16.msra.mxu0 %v2386
  %2392 = vmatprep.subr.bf16.mxu0 0
  %2393 = vmatpush1.bf16.msra.mxu0 0
  %2394 = vmatprep.subr.bf16.mxu0 0
  %2395 = vmatpush1.bf16.msra.mxu0 0
  %2396 = vmatprep.subr.bf16.mxu0 0
  %2397 = vmatpush1.bf16.msra.mxu0 0
  %2398 = vmatprep.subr.bf16.mxu0 0
  %2399 = vmatpush1.bf16.msra.mxu0 0
  %2400 = vmatprep.subr.bf16.mxu0 0
  %2401 = vmatpush1.bf16.msra.mxu0 0
  %2402 = vmatprep.subr.bf16.mxu0 0
  %2403 = vmatpush1.bf16.msra.mxu0 0
  %2404 = vmatprep.subr.bf16.mxu0 0
  %2405 = vmatpush1.bf16.msra.mxu0 0
  %2406 = vmatprep.subr.bf16.mxu0 0
  %2407 = vmatpush1.bf16.msra.mxu0 0
  %2408 = vmatprep.subr.bf16.mxu0 0
  %2409 = vmatpush1.bf16.msra.mxu0 0
  %2410 = vmatprep.subr.bf16.mxu0 0
  %2411 = vmatpush1.bf16.msra.mxu0 0
  %2412 = vmatprep.subr.bf16.mxu0 0
  %2413 = vmatpush1.bf16.msra.mxu0 0
  %2414 = vmatprep.subr.bf16.mxu0 0
  %2415 = vmatpush1.bf16.msra.mxu0 0
  %2416 = vmatprep.subr.bf16.mxu0 0
  %2417 = vmatpush1.bf16.msra.mxu0 0
  %2418 = vmatprep.subr.bf16.mxu0 0
  %2419 = vmatpush1.bf16.msra.mxu0 0
  %2420 = vmatprep.mubr.bf16.mxu0 0
  %2421 = vmatmul.mubr.bf16.gmra.mrb[0].mxu0 %v2380
  %v2422 = vpop.f32.mrb[0].mxu0
  %v2423 = vadd.f32 0.0, %v2422
  %v2424 = vpop.f32.mrb[0].mxu0
  %v2425 = vpop.f32.mrb[0].mxu0
  %v2426 = vadd.f32 0.0, %v2425
  %v2427 = vpop.f32.mrb[0].mxu0
  %2428 = vmatprep.mubr.bf16.mxu0 0
  %2429 = vmatmul.mubr.bf16.gmra.mrb[0].mxu0 %v2383
  %v2430 = vpop.f32.mrb[0].mxu0
  %v2431 = vadd.f32 0.0, %v2430
  %v2432 = vpop.f32.mrb[0].mxu0
  %v2433 = vpop.f32.mrb[0].mxu0
  %v2434 = vpop.f32.mrb[0].mxu0
  %2435 = vdwg.mxu0
  %v2442 = vcombine.high %v2366, %v2366
  %v2444 = vunpack.c.l.s4 1966171168
  %v2445 = vunpack.c.0.s8 %v2444
  %v2446 = vlaneseq
  %v2447 = vshrl.u32 %v2446, 7
  %v2448 = vsub.s32 %v2445, %v2447
  %v2449 = vrot.slane %v2366, %v2448
  %v2451 = vunpack.c.l.s4 1966171168
  %v2452 = vunpack.c.0.s8 %v2451
  %v2453 = vlaneseq
  %v2454 = vshrl.u32 %v2453, 7
  %v2455 = vsub.s32 %v2452, %v2454
  %v2456 = vrot.slane %v2442, %v2455
  %v2457 = vcombine.high %v2449, %v2449
  %v2458 = vcombine.high %v2456, %v2456
  %v2460 = vunpack.c.l.s4 1966171168
  %v2461 = vunpack.c.0.s8 %v2460
  %v2462 = vlaneseq
  %v2463 = vshrl.u32 %v2462, 7
  %v2464 = vsub.s32 %v2461, %v2463
  %v2465 = vrot.slane %v2449, %v2464
  %v2467 = vunpack.c.l.s4 1966171168
  %v2468 = vunpack.c.0.s8 %v2467
  %v2469 = vlaneseq
  %v2470 = vshrl.u32 %v2469, 7
  %v2471 = vsub.s32 %v2468, %v2470
  %v2472 = vrot.slane %v2456, %v2471
  %v2474 = vunpack.c.l.s4 1966171168
  %v2475 = vunpack.c.0.s8 %v2474
  %v2476 = vlaneseq
  %v2477 = vshrl.u32 %v2476, 7
  %v2478 = vsub.s32 %v2475, %v2477
  %v2479 = vrot.slane %v2457, %v2478
  %v2481 = vunpack.c.l.s4 1966171168
  %v2482 = vunpack.c.0.s8 %v2481
  %v2483 = vlaneseq
  %v2484 = vshrl.u32 %v2483, 7
  %v2485 = vsub.s32 %v2482, %v2484
  %v2486 = vrot.slane %v2458, %v2485
  %v2487 = vcombine.high %v2465, %v2465
  %v2488 = vcombine.high %v2472, %v2472
  %v2489 = vcombine.high %v2479, %v2479
  %v2490 = vcombine.high %v2486, %v2486
  %v2491 = vcombine.high %v2369, %v2369
  %v2493 = vunpack.c.l.s4 1966171168
  %v2494 = vunpack.c.0.s8 %v2493
  %v2495 = vlaneseq
  %v2496 = vshrl.u32 %v2495, 7
  %v2497 = vsub.s32 %v2494, %v2496
  %v2498 = vrot.slane %v2369, %v2497
  %v2500 = vunpack.c.l.s4 1966171168
  %v2501 = vunpack.c.0.s8 %v2500
  %v2502 = vlaneseq
  %v2503 = vshrl.u32 %v2502, 7
  %v2504 = vsub.s32 %v2501, %v2503
  %v2505 = vrot.slane %v2491, %v2504
  %v2506 = vcombine.high %v2498, %v2498
  %v2507 = vcombine.high %v2505, %v2505
  %v2509 = vunpack.c.l.s4 1966171168
  %v2510 = vunpack.c.0.s8 %v2509
  %v2511 = vlaneseq
  %v2512 = vshrl.u32 %v2511, 7
  %v2513 = vsub.s32 %v2510, %v2512
  %v2514 = vrot.slane %v2498, %v2513
  %v2516 = vunpack.c.l.s4 1966171168
  %v2517 = vunpack.c.0.s8 %v2516
  %v2518 = vlaneseq
  %v2519 = vshrl.u32 %v2518, 7
  %v2520 = vsub.s32 %v2517, %v2519
  %v2521 = vrot.slane %v2505, %v2520
  %v2523 = vunpack.c.l.s4 1966171168
  %v2524 = vunpack.c.0.s8 %v2523
  %v2525 = vlaneseq
  %v2526 = vshrl.u32 %v2525, 7
  %v2527 = vsub.s32 %v2524, %v2526
  %v2528 = vrot.slane %v2506, %v2527
  %v2530 = vunpack.c.l.s4 1966171168
  %v2531 = vunpack.c.0.s8 %v2530
  %v2532 = vlaneseq
  %v2533 = vshrl.u32 %v2532, 7
  %v2534 = vsub.s32 %v2531, %v2533
  %v2535 = vrot.slane %v2507, %v2534
  %v2536 = vcombine.high %v2514, %v2514
  %v2537 = vcombine.high %v2521, %v2521
  %v2538 = vcombine.high %v2528, %v2528
  %v2539 = vcombine.high %v2535, %v2535
  %v2541 = vunpack.c.l.s4 1966171168
  %v2542 = vunpack.c.0.s8 %v2541
  %v2543 = vlaneseq
  %v2544 = vshrl.u32 %v2543, 7
  %v2545 = vsub.s32 %v2542, %v2544
  %v2546 = vrot.slane %v2374, %v2545
  %v2548 = vunpack.c.l.s4 1966171168
  %v2549 = vunpack.c.0.s8 %v2548
  %v2550 = vlaneseq
  %v2551 = vshrl.u32 %v2550, 7
  %v2552 = vsub.s32 %v2549, %v2551
  %v2553 = vrot.slane %v2546, %v2552
  %v2554 = vcombine.high %v2423, %v2423
  %v2556 = vunpack.c.l.s4 1966171168
  %v2557 = vunpack.c.0.s8 %v2556
  %v2558 = vlaneseq
  %v2559 = vshrl.u32 %v2558, 7
  %v2560 = vsub.s32 %v2557, %v2559
  %v2561 = vrot.slane %v2423, %v2560
  %v2563 = vunpack.c.l.s4 1966171168
  %v2564 = vunpack.c.0.s8 %v2563
  %v2565 = vlaneseq
  %v2566 = vshrl.u32 %v2565, 7
  %v2567 = vsub.s32 %v2564, %v2566
  %v2568 = vrot.slane %v2554, %v2567
  %v2569 = vcombine.high %v2561, %v2561
  %v2570 = vcombine.high %v2568, %v2568
  %v2572 = vunpack.c.l.s4 1966171168
  %v2573 = vunpack.c.0.s8 %v2572
  %v2574 = vlaneseq
  %v2575 = vshrl.u32 %v2574, 7
  %v2576 = vsub.s32 %v2573, %v2575
  %v2577 = vrot.slane %v2561, %v2576
  %v2579 = vunpack.c.l.s4 1966171168
  %v2580 = vunpack.c.0.s8 %v2579
  %v2581 = vlaneseq
  %v2582 = vshrl.u32 %v2581, 7
  %v2583 = vsub.s32 %v2580, %v2582
  %v2584 = vrot.slane %v2568, %v2583
  %v2586 = vunpack.c.l.s4 1966171168
  %v2587 = vunpack.c.0.s8 %v2586
  %v2588 = vlaneseq
  %v2589 = vshrl.u32 %v2588, 7
  %v2590 = vsub.s32 %v2587, %v2589
  %v2591 = vrot.slane %v2569, %v2590
  %v2593 = vunpack.c.l.s4 1966171168
  %v2594 = vunpack.c.0.s8 %v2593
  %v2595 = vlaneseq
  %v2596 = vshrl.u32 %v2595, 7
  %v2597 = vsub.s32 %v2594, %v2596
  %v2598 = vrot.slane %v2570, %v2597
  %v2599 = vcombine.high %v2577, %v2577
  %v2600 = vcombine.high %v2584, %v2584
  %v2601 = vcombine.high %v2591, %v2591
  %v2602 = vcombine.high %v2598, %v2598
  %v2603 = vcombine.high %v2426, %v2426
  %v2605 = vunpack.c.l.s4 1966171168
  %v2606 = vunpack.c.0.s8 %v2605
  %v2607 = vlaneseq
  %v2608 = vshrl.u32 %v2607, 7
  %v2609 = vsub.s32 %v2606, %v2608
  %v2610 = vrot.slane %v2426, %v2609
  %v2612 = vunpack.c.l.s4 1966171168
  %v2613 = vunpack.c.0.s8 %v2612
  %v2614 = vlaneseq
  %v2615 = vshrl.u32 %v2614, 7
  %v2616 = vsub.s32 %v2613, %v2615
  %v2617 = vrot.slane %v2603, %v2616
  %v2618 = vcombine.high %v2610, %v2610
  %v2619 = vcombine.high %v2617, %v2617
  %v2621 = vunpack.c.l.s4 1966171168
  %v2622 = vunpack.c.0.s8 %v2621
  %v2623 = vlaneseq
  %v2624 = vshrl.u32 %v2623, 7
  %v2625 = vsub.s32 %v2622, %v2624
  %v2626 = vrot.slane %v2610, %v2625
  %v2628 = vunpack.c.l.s4 1966171168
  %v2629 = vunpack.c.0.s8 %v2628
  %v2630 = vlaneseq
  %v2631 = vshrl.u32 %v2630, 7
  %v2632 = vsub.s32 %v2629, %v2631
  %v2633 = vrot.slane %v2617, %v2632
  %v2635 = vunpack.c.l.s4 1966171168
  %v2636 = vunpack.c.0.s8 %v2635
  %v2637 = vlaneseq
  %v2638 = vshrl.u32 %v2637, 7
  %v2639 = vsub.s32 %v2636, %v2638
  %v2640 = vrot.slane %v2618, %v2639
  %v2642 = vunpack.c.l.s4 1966171168
  %v2643 = vunpack.c.0.s8 %v2642
  %v2644 = vlaneseq
  %v2645 = vshrl.u32 %v2644, 7
  %v2646 = vsub.s32 %v2643, %v2645
  %v2647 = vrot.slane %v2619, %v2646
  %v2648 = vcombine.high %v2626, %v2626
  %v2649 = vcombine.high %v2633, %v2633
  %v2650 = vcombine.high %v2640, %v2640
  %v2651 = vcombine.high %v2647, %v2647
  %v2653 = vunpack.c.l.s4 1966171168
  %v2654 = vunpack.c.0.s8 %v2653
  %v2655 = vlaneseq
  %v2656 = vshrl.u32 %v2655, 7
  %v2657 = vsub.s32 %v2654, %v2656
  %v2658 = vrot.slane %v2431, %v2657
  %v2660 = vunpack.c.l.s4 1966171168
  %v2661 = vunpack.c.0.s8 %v2660
  %v2662 = vlaneseq
  %v2663 = vshrl.u32 %v2662, 7
  %v2664 = vsub.s32 %v2661, %v2663
  %v2665 = vrot.slane %v2658, %v2664
  %v2666 = vcombine.low %v2465, %v2479
  %v2667 = vcombine.low %v2487, %v2489
  %v2668 = vcombine.low %v2472, %v2486
  %v2669 = vcombine.low %v2488, %v2490
  %v2671 = vunpack.c.l.s4 1966171168
  %v2672 = vunpack.c.0.s8 %v2671
  %v2673 = vlaneseq
  %v2674 = vshrl.u32 %v2673, 7
  %v2675 = vsub.s32 %v2672, %v2674
  %v2676 = vrot.slane %v2666, %v2675
  %v2678 = vunpack.c.l.s4 1966171168
  %v2679 = vunpack.c.0.s8 %v2678
  %v2680 = vlaneseq
  %v2681 = vshrl.u32 %v2680, 7
  %v2682 = vsub.s32 %v2679, %v2681
  %v2683 = vrot.slane %v2667, %v2682
  %v2685 = vunpack.c.l.s4 1966171168
  %v2686 = vunpack.c.0.s8 %v2685
  %v2687 = vlaneseq
  %v2688 = vshrl.u32 %v2687, 7
  %v2689 = vsub.s32 %v2686, %v2688
  %v2690 = vrot.slane %v2668, %v2689
  %v2692 = vunpack.c.l.s4 1966171168
  %v2693 = vunpack.c.0.s8 %v2692
  %v2694 = vlaneseq
  %v2695 = vshrl.u32 %v2694, 7
  %v2696 = vsub.s32 %v2693, %v2695
  %v2697 = vrot.slane %v2669, %v2696
  %v2698 = vcombine.low %v2676, %v2683
  %v2699 = vcombine.low %v2690, %v2697
  %v2701 = vunpack.c.l.s4 1966171168
  %v2702 = vunpack.c.0.s8 %v2701
  %v2703 = vlaneseq
  %v2704 = vshrl.u32 %v2703, 7
  %v2705 = vsub.s32 %v2702, %v2704
  %v2706 = vrot.slane %v2698, %v2705
  %v2708 = vunpack.c.l.s4 1966171168
  %v2709 = vunpack.c.0.s8 %v2708
  %v2710 = vlaneseq
  %v2711 = vshrl.u32 %v2710, 7
  %v2712 = vsub.s32 %v2709, %v2711
  %v2713 = vrot.slane %v2699, %v2712
  %v2714 = vcombine.low %v2706, %v2713
  %v2715 = vcombine.low %v2514, %v2528
  %v2716 = vcombine.low %v2536, %v2538
  %v2717 = vcombine.low %v2521, %v2535
  %v2718 = vcombine.low %v2537, %v2539
  %v2720 = vunpack.c.l.s4 1966171168
  %v2721 = vunpack.c.0.s8 %v2720
  %v2722 = vlaneseq
  %v2723 = vshrl.u32 %v2722, 7
  %v2724 = vsub.s32 %v2721, %v2723
  %v2725 = vrot.slane %v2715, %v2724
  %v2727 = vunpack.c.l.s4 1966171168
  %v2728 = vunpack.c.0.s8 %v2727
  %v2729 = vlaneseq
  %v2730 = vshrl.u32 %v2729, 7
  %v2731 = vsub.s32 %v2728, %v2730
  %v2732 = vrot.slane %v2716, %v2731
  %v2734 = vunpack.c.l.s4 1966171168
  %v2735 = vunpack.c.0.s8 %v2734
  %v2736 = vlaneseq
  %v2737 = vshrl.u32 %v2736, 7
  %v2738 = vsub.s32 %v2735, %v2737
  %v2739 = vrot.slane %v2717, %v2738
  %v2741 = vunpack.c.l.s4 1966171168
  %v2742 = vunpack.c.0.s8 %v2741
  %v2743 = vlaneseq
  %v2744 = vshrl.u32 %v2743, 7
  %v2745 = vsub.s32 %v2742, %v2744
  %v2746 = vrot.slane %v2718, %v2745
  %v2747 = vcombine.low %v2725, %v2732
  %v2748 = vcombine.low %v2739, %v2746
  %v2750 = vunpack.c.l.s4 1966171168
  %v2751 = vunpack.c.0.s8 %v2750
  %v2752 = vlaneseq
  %v2753 = vshrl.u32 %v2752, 7
  %v2754 = vsub.s32 %v2751, %v2753
  %v2755 = vrot.slane %v2747, %v2754
  %v2757 = vunpack.c.l.s4 1966171168
  %v2758 = vunpack.c.0.s8 %v2757
  %v2759 = vlaneseq
  %v2760 = vshrl.u32 %v2759, 7
  %v2761 = vsub.s32 %v2758, %v2760
  %v2762 = vrot.slane %v2748, %v2761
  %v2763 = vcombine.low %v2755, %v2762
  %v2764 = vcombine.low %v2553, %v2577
  %v2765 = vcombine.low %v2591, %v2599
  %v2766 = vcombine.low %v2601, %v2584
  %v2767 = vcombine.low %v2598, %v2600
  %v2769 = vunpack.c.l.s4 1966171168
  %v2770 = vunpack.c.0.s8 %v2769
  %v2771 = vlaneseq
  %v2772 = vshrl.u32 %v2771, 7
  %v2773 = vsub.s32 %v2770, %v2772
  %v2774 = vrot.slane %v2764, %v2773
  %v2776 = vunpack.c.l.s4 1966171168
  %v2777 = vunpack.c.0.s8 %v2776
  %v2778 = vlaneseq
  %v2779 = vshrl.u32 %v2778, 7
  %v2780 = vsub.s32 %v2777, %v2779
  %v2781 = vrot.slane %v2765, %v2780
  %v2783 = vunpack.c.l.s4 1966171168
  %v2784 = vunpack.c.0.s8 %v2783
  %v2785 = vlaneseq
  %v2786 = vshrl.u32 %v2785, 7
  %v2787 = vsub.s32 %v2784, %v2786
  %v2788 = vrot.slane %v2766, %v2787
  %v2790 = vunpack.c.l.s4 1966171168
  %v2791 = vunpack.c.0.s8 %v2790
  %v2792 = vlaneseq
  %v2793 = vshrl.u32 %v2792, 7
  %v2794 = vsub.s32 %v2791, %v2793
  %v2795 = vrot.slane %v2767, %v2794
  %v2796 = vcombine.low %v2774, %v2781
  %v2797 = vcombine.low %v2788, %v2795
  %v2799 = vunpack.c.l.s4 1966171168
  %v2800 = vunpack.c.0.s8 %v2799
  %v2801 = vlaneseq
  %v2802 = vshrl.u32 %v2801, 7
  %v2803 = vsub.s32 %v2800, %v2802
  %v2804 = vrot.slane %v2796, %v2803
  %v2806 = vunpack.c.l.s4 1966171168
  %v2807 = vunpack.c.0.s8 %v2806
  %v2808 = vlaneseq
  %v2809 = vshrl.u32 %v2808, 7
  %v2810 = vsub.s32 %v2807, %v2809
  %v2811 = vrot.slane %v2797, %v2810
  %v2812 = vcombine.low %v2804, %v2811
  %v2813 = vcombine.low %v2602, %v2626
  %v2814 = vcombine.low %v2640, %v2648
  %v2815 = vcombine.low %v2650, %v2633
  %v2816 = vcombine.low %v2647, %v2649
  %v2818 = vunpack.c.l.s4 1966171168
  %v2819 = vunpack.c.0.s8 %v2818
  %v2820 = vlaneseq
  %v2821 = vshrl.u32 %v2820, 7
  %v2822 = vsub.s32 %v2819, %v2821
  %v2823 = vrot.slane %v2813, %v2822
  %v2825 = vunpack.c.l.s4 1966171168
  %v2826 = vunpack.c.0.s8 %v2825
  %v2827 = vlaneseq
  %v2828 = vshrl.u32 %v2827, 7
  %v2829 = vsub.s32 %v2826, %v2828
  %v2830 = vrot.slane %v2814, %v2829
  %v2832 = vunpack.c.l.s4 1966171168
  %v2833 = vunpack.c.0.s8 %v2832
  %v2834 = vlaneseq
  %v2835 = vshrl.u32 %v2834, 7
  %v2836 = vsub.s32 %v2833, %v2835
  %v2837 = vrot.slane %v2815, %v2836
  %v2839 = vunpack.c.l.s4 1966171168
  %v2840 = vunpack.c.0.s8 %v2839
  %v2841 = vlaneseq
  %v2842 = vshrl.u32 %v2841, 7
  %v2843 = vsub.s32 %v2840, %v2842
  %v2844 = vrot.slane %v2816, %v2843
  %v2845 = vcombine.low %v2823, %v2830
  %v2846 = vcombine.low %v2837, %v2844
  %v2848 = vunpack.c.l.s4 1966171168
  %v2849 = vunpack.c.0.s8 %v2848
  %v2850 = vlaneseq
  %v2851 = vshrl.u32 %v2850, 7
  %v2852 = vsub.s32 %v2849, %v2851
  %v2853 = vrot.slane %v2845, %v2852
  %v2855 = vunpack.c.l.s4 1966171168
  %v2856 = vunpack.c.0.s8 %v2855
  %v2857 = vlaneseq
  %v2858 = vshrl.u32 %v2857, 7
  %v2859 = vsub.s32 %v2856, %v2858
  %v2860 = vrot.slane %v2846, %v2859
  %v2861 = vcombine.low %v2853, %v2860
  %v2862 = vcombine.low %v2651, %v2665
  %v2864 = vunpack.c.l.s4 1966171168
  %v2865 = vunpack.c.0.s8 %v2864
  %v2866 = vlaneseq
  %v2867 = vshrl.u32 %v2866, 7
  %v2868 = vsub.s32 %v2865, %v2867
  %v2869 = vrot.slane %v2862, %v2868
  %v2871 = vunpack.c.l.s4 1966171168
  %v2872 = vunpack.c.0.s8 %v2871
  %v2873 = vlaneseq
  %v2874 = vshrl.u32 %v2873, 7
  %v2875 = vsub.s32 %v2872, %v2874
  %v2876 = vrot.slane %v2869, %v2875
  %v2882 = vpack.c.bf16 %v2763, %v2714
  %v2883 = vpack.c.bf16 %v2861, %v2812
  %v2884 = vpack.c.bf16 %v2876, %v2876
  %v2885 = vld [vmem:[%s8] sm:$0xf]
  %s2886 = scalar_lea.vmem %s2, 16
  %v2887 = vld [vmem:[%s2886] sm:$0xf]
  %v2888 = vld [vmem:[%s2886 + $0x4] sm:$0xf]
  %v2889 = vld [vmem:[%s2886 + $0x8] sm:$0xf]
  %v2890 = vld [vmem:[%s2886 + $0xc] sm:$0xf]
  %s2891 = scalar_lea.vmem %s5, 1
  %v2892 = vld [vmem:[%s2891] sm:$0x1]
  %v2894 = vlaneseq
  %v2895 = vshrl.u32 %v2894, 7
  %v2896 = vsub.s32 0, %v2895
  %v2897 = vrot.slane %v2892, %v2896
  %v2903 = vunpack.c.l.b16 %v2887
  %v2904 = vunpack.c.l.b16 %v2888
  %v2905 = vunpack.c.l.b16 %v2889
  %v2906 = vunpack.c.l.b16 %v2890
  %v2907 = vpack.c.b16 %v2904, %v2903
  %v2908 = vpack.c.b16 %v2906, %v2905
  %2911 = vmatprep.subr.bf16.mxu0 0
  %2912 = vmatpush1.bf16.msra.mxu0 %v2907
  %2913 = vmatprep.subr.bf16.mxu0 0
  %2914 = vmatpush1.bf16.msra.mxu0 %v2908
  %2915 = vmatprep.subr.bf16.mxu0 0
  %2916 = vmatpush1.bf16.msra.mxu0 0
  %2917 = vmatprep.subr.bf16.mxu0 0
  %2918 = vmatpush1.bf16.msra.mxu0 0
  %2919 = vmatprep.subr.bf16.mxu0 0
  %2920 = vmatpush1.bf16.msra.mxu0 0
  %2921 = vmatprep.subr.bf16.mxu0 0
  %2922 = vmatpush1.bf16.msra.mxu0 0
  %2923 = vmatprep.subr.bf16.mxu0 0
  %2924 = vmatpush1.bf16.msra.mxu0 0
  %2925 = vmatprep.subr.bf16.mxu0 0
  %2926 = vmatpush1.bf16.msra.mxu0 0
  %2927 = vmatprep.subr.bf16.mxu0 0
  %2928 = vmatpush1.bf16.msra.mxu0 0
  %2929 = vmatprep.subr.bf16.mxu0 0
  %2930 = vmatpush1.bf16.msra.mxu0 0
  %2931 = vmatprep.subr.bf16.mxu0 0
  %2932 = vmatpush1.bf16.msra.mxu0 0
  %2933 = vmatprep.subr.bf16.mxu0 0
  %2934 = vmatpush1.bf16.msra.mxu0 0
  %2935 = vmatprep.subr.bf16.mxu0 0
  %2936 = vmatpush1.bf16.msra.mxu0 0
  %2937 = vmatprep.subr.bf16.mxu0 0
  %2938 = vmatpush1.bf16.msra.mxu0 0
  %2939 = vmatprep.subr.bf16.mxu0 0
  %2940 = vmatpush1.bf16.msra.mxu0 0
  %2941 = vmatprep.subr.bf16.mxu0 0
  %2942 = vmatpush1.bf16.msra.mxu0 0
  %2943 = vmatprep.mubr.bf16.mxu0 0
  %2944 = vmatmul.mubr.bf16.gmra.mrb[0].mxu0 %v529
  %v2945 = vpop.f32.mrb[0].mxu0
  %v2946 = vadd.f32 %v2897, %v2945
  %v2947 = vpop.f32.mrb[0].mxu0
  %v2948 = vpop.f32.mrb[0].mxu0
  %v2949 = vadd.f32 %v2897, %v2948
  %v2950 = vpop.f32.mrb[0].mxu0
  %2951 = vmatprep.mubr.bf16.mxu0 0
  %2952 = vmatmul.mubr.bf16.gmra.mrb[0].mxu0 %v532
  %v2953 = vpop.f32.mrb[0].mxu0
  %v2954 = vadd.f32 %v2897, %v2953
  %v2955 = vpop.f32.mrb[0].mxu0
  %v2956 = vpop.f32.mrb[0].mxu0
  %v2957 = vadd.f32 %v2897, %v2956
  %v2958 = vpop.f32.mrb[0].mxu0
  %2959 = vmatprep.mubr.bf16.mxu0 0
  %2960 = vmatmul.mubr.bf16.gmra.mrb[0].mxu0 %v535
  %v2961 = vpop.f32.mrb[0].mxu0
  %v2962 = vadd.f32 %v2897, %v2961
  %v2963 = vpop.f32.mrb[0].mxu0
  %v2964 = vpop.f32.mrb[0].mxu0
  %v2965 = vpop.f32.mrb[0].mxu0
  %2966 = vdwg.mxu0
  %s2967 = scalar_lea.vmem %s3, 16
  %v2968 = vld [vmem:[%s2967] sm:$0xf]
  %v2969 = vld [vmem:[%s2967 + $0x4] sm:$0xf]
  %v2970 = vld [vmem:[%s2967 + $0x8] sm:$0xf]
  %v2971 = vld [vmem:[%s2967 + $0xc] sm:$0xf]
  %s2972 = scalar_lea.vmem %s6, 1
  %v2973 = vld [vmem:[%s2972] sm:$0x1]
  %v2975 = vlaneseq
  %v2976 = vshrl.u32 %v2975, 7
  %v2977 = vsub.s32 0, %v2976
  %v2978 = vrot.slane %v2973, %v2977
  %v2984 = vunpack.c.l.b16 %v2968
  %v2985 = vunpack.c.l.b16 %v2969
  %v2986 = vunpack.c.l.b16 %v2970
  %v2987 = vunpack.c.l.b16 %v2971
  %v2988 = vpack.c.b16 %v2985, %v2984
  %v2989 = vpack.c.b16 %v2987, %v2986
  %2992 = vmatprep.subr.bf16.mxu0 0
  %2993 = vmatpush1.bf16.msra.mxu0 %v2988
  %2994 = vmatprep.subr.bf16.mxu0 0
  %2995 = vmatpush1.bf16.msra.mxu0 %v2989
  %2996 = vmatprep.subr.bf16.mxu0 0
  %2997 = vmatpush1.bf16.msra.mxu0 0
  %2998 = vmatprep.subr.bf16.mxu0 0
  %2999 = vmatpush1.bf16.msra.mxu0 0
  %3000 = vmatprep.subr.bf16.mxu0 0
  %3001 = vmatpush1.bf16.msra.mxu0 0
  %3002 = vmatprep.subr.bf16.mxu0 0
  %3003 = vmatpush1.bf16.msra.mxu0 0
  %3004 = vmatprep.subr.bf16.mxu0 0
  %3005 = vmatpush1.bf16.msra.mxu0 0
  %3006 = vmatprep.subr.bf16.mxu0 0
  %3007 = vmatpush1.bf16.msra.mxu0 0
  %3008 = vmatprep.subr.bf16.mxu0 0
  %3009 = vmatpush1.bf16.msra.mxu0 0
  %3010 = vmatprep.subr.bf16.mxu0 0
  %3011 = vmatpush1.bf16.msra.mxu0 0
  %3012 = vmatprep.subr.bf16.mxu0 0
  %3013 = vmatpush1.bf16.msra.mxu0 0
  %3014 = vmatprep.subr.bf16.mxu0 0
  %3015 = vmatpush1.bf16.msra.mxu0 0
  %3016 = vmatprep.subr.bf16.mxu0 0
  %3017 = vmatpush1.bf16.msra.mxu0 0
  %3018 = vmatprep.subr.bf16.mxu0 0
  %3019 = vmatpush1.bf16.msra.mxu0 0
  %3020 = vmatprep.subr.bf16.mxu0 0
  %3021 = vmatpush1.bf16.msra.mxu0 0
  %3022 = vmatprep.subr.bf16.mxu0 0
  %3023 = vmatpush1.bf16.msra.mxu0 0
  %3024 = vmatprep.mubr.bf16.mxu0 0
  %3025 = vmatmul.mubr.bf16.gmra.mrb[0].mxu0 %v529
  %v3026 = vpop.f32.mrb[0].mxu0
  %v3027 = vadd.f32 %v2978, %v3026
  %v3028 = vpop.f32.mrb[0].mxu0
  %v3029 = vpop.f32.mrb[0].mxu0
  %v3030 = vadd.f32 %v2978, %v3029
  %v3031 = vpop.f32.mrb[0].mxu0
  %3032 = vmatprep.mubr.bf16.mxu0 0
  %3033 = vmatmul.mubr.bf16.gmra.mrb[0].mxu0 %v532
  %v3034 = vpop.f32.mrb[0].mxu0
  %v3035 = vadd.f32 %v2978, %v3034
  %v3036 = vpop.f32.mrb[0].mxu0
  %v3037 = vpop.f32.mrb[0].mxu0
  %v3038 = vadd.f32 %v2978, %v3037
  %v3039 = vpop.f32.mrb[0].mxu0
  %3040 = vmatprep.mubr.bf16.mxu0 0
  %3041 = vmatmul.mubr.bf16.gmra.mrb[0].mxu0 %v535
  %v3042 = vpop.f32.mrb[0].mxu0
  %v3043 = vadd.f32 %v2978, %v3042
  %v3044 = vpop.f32.mrb[0].mxu0
  %v3045 = vpop.f32.mrb[0].mxu0
  %v3046 = vpop.f32.mrb[0].mxu0
  %3047 = vdwg.mxu0
  %s3048 = scalar_lea.vmem %s4, 16
  %v3049 = vld [vmem:[%s3048] sm:$0xf]
  %v3050 = vld [vmem:[%s3048 + $0x4] sm:$0xf]
  %v3051 = vld [vmem:[%s3048 + $0x8] sm:$0xf]
  %v3052 = vld [vmem:[%s3048 + $0xc] sm:$0xf]
  %s3053 = scalar_lea.vmem %s7, 1
  %v3054 = vld [vmem:[%s3053] sm:$0x1]
  %v3056 = vlaneseq
  %v3057 = vshrl.u32 %v3056, 7
  %v3058 = vsub.s32 0, %v3057
  %v3059 = vrot.slane %v3054, %v3058
  %v3065 = vunpack.c.l.b16 %v3049
  %v3066 = vunpack.c.l.b16 %v3050
  %v3067 = vunpack.c.l.b16 %v3051
  %v3068 = vunpack.c.l.b16 %v3052
  %v3069 = vpack.c.b16 %v3066, %v3065
  %v3070 = vpack.c.b16 %v3068, %v3067
  %3073 = vmatprep.subr.bf16.mxu0 0
  %3074 = vmatpush1.bf16.msra.mxu0 %v3069
  %3075 = vmatprep.subr.bf16.mxu0 0
  %3076 = vmatpush1.bf16.msra.mxu0 %v3070
  %3077 = vmatprep.subr.bf16.mxu0 0
  %3078 = vmatpush1.bf16.msra.mxu0 0
  %3079 = vmatprep.subr.bf16.mxu0 0
  %3080 = vmatpush1.bf16.msra.mxu0 0
  %3081 = vmatprep.subr.bf16.mxu0 0
  %3082 = vmatpush1.bf16.msra.mxu0 0
  %3083 = vmatprep.subr.bf16.mxu0 0
  %3084 = vmatpush1.bf16.msra.mxu0 0
  %3085 = vmatprep.subr.bf16.mxu0 0
  %3086 = vmatpush1.bf16.msra.mxu0 0
  %3087 = vmatprep.subr.bf16.mxu0 0
  %3088 = vmatpush1.bf16.msra.mxu0 0
  %3089 = vmatprep.subr.bf16.mxu0 0
  %3090 = vmatpush1.bf16.msra.mxu0 0
  %3091 = vmatprep.subr.bf16.mxu0 0
  %3092 = vmatpush1.bf16.msra.mxu0 0
  %3093 = vmatprep.subr.bf16.mxu0 0
  %3094 = vmatpush1.bf16.msra.mxu0 0
  %3095 = vmatprep.subr.bf16.mxu0 0
  %3096 = vmatpush1.bf16.msra.mxu0 0
  %3097 = vmatprep.subr.bf16.mxu0 0
  %3098 = vmatpush1.bf16.msra.mxu0 0
  %3099 = vmatprep.subr.bf16.mxu0 0
  %3100 = vmatpush1.bf16.msra.mxu0 0
  %3101 = vmatprep.subr.bf16.mxu0 0
  %3102 = vmatpush1.bf16.msra.mxu0 0
  %3103 = vmatprep.subr.bf16.mxu0 0
  %3104 = vmatpush1.bf16.msra.mxu0 0
  %3105 = vmatprep.mubr.bf16.mxu0 0
  %3106 = vmatmul.mubr.bf16.gmra.mrb[0].mxu0 %v529
  %v3107 = vpop.f32.mrb[0].mxu0
  %v3108 = vadd.f32 %v3059, %v3107
  %v3109 = vpop.f32.mrb[0].mxu0
  %v3110 = vpop.f32.mrb[0].mxu0
  %v3111 = vadd.f32 %v3059, %v3110
  %v3112 = vpop.f32.mrb[0].mxu0
  %3113 = vmatprep.mubr.bf16.mxu0 0
  %3114 = vmatmul.mubr.bf16.gmra.mrb[0].mxu0 %v532
  %v3115 = vpop.f32.mrb[0].mxu0
  %v3116 = vadd.f32 %v3059, %v3115
  %v3117 = vpop.f32.mrb[0].mxu0
  %v3118 = vpop.f32.mrb[0].mxu0
  %v3119 = vadd.f32 %v3059, %v3118
  %v3120 = vpop.f32.mrb[0].mxu0
  %3121 = vmatprep.mubr.bf16.mxu0 0
  %3122 = vmatmul.mubr.bf16.gmra.mrb[0].mxu0 %v535
  %v3123 = vpop.f32.mrb[0].mxu0
  %v3124 = vadd.f32 %v3059, %v3123
  %v3125 = vpop.f32.mrb[0].mxu0
  %v3126 = vpop.f32.mrb[0].mxu0
  %v3127 = vpop.f32.mrb[0].mxu0
  %3128 = vdwg.mxu0
  %v3129 = vmul.f32 %v2946, 0.35355338
  %v3130 = vmul.f32 %v2949, 0.35355338
  %v3131 = vmul.f32 %v2954, 0.35355338
  %v3132 = vmul.f32 %v2957, 0.35355338
  %v3133 = vmul.f32 %v2962, 0.35355338
  %v3139 = vcombine.high %v3129, %v3129
  %v3141 = vunpack.c.l.s4 1966171168
  %v3142 = vunpack.c.0.s8 %v3141
  %v3143 = vlaneseq
  %v3144 = vshrl.u32 %v3143, 7
  %v3145 = vsub.s32 %v3142, %v3144
  %v3146 = vrot.slane %v3129, %v3145
  %v3148 = vunpack.c.l.s4 1966171168
  %v3149 = vunpack.c.0.s8 %v3148
  %v3150 = vlaneseq
  %v3151 = vshrl.u32 %v3150, 7
  %v3152 = vsub.s32 %v3149, %v3151
  %v3153 = vrot.slane %v3139, %v3152
  %v3154 = vcombine.high %v3146, %v3146
  %v3155 = vcombine.high %v3153, %v3153
  %v3157 = vunpack.c.l.s4 1966171168
  %v3158 = vunpack.c.0.s8 %v3157
  %v3159 = vlaneseq
  %v3160 = vshrl.u32 %v3159, 7
  %v3161 = vsub.s32 %v3158, %v3160
  %v3162 = vrot.slane %v3146, %v3161
  %v3164 = vunpack.c.l.s4 1966171168
  %v3165 = vunpack.c.0.s8 %v3164
  %v3166 = vlaneseq
  %v3167 = vshrl.u32 %v3166, 7
  %v3168 = vsub.s32 %v3165, %v3167
  %v3169 = vrot.slane %v3153, %v3168
  %v3171 = vunpack.c.l.s4 1966171168
  %v3172 = vunpack.c.0.s8 %v3171
  %v3173 = vlaneseq
  %v3174 = vshrl.u32 %v3173, 7
  %v3175 = vsub.s32 %v3172, %v3174
  %v3176 = vrot.slane %v3154, %v3175
  %v3178 = vunpack.c.l.s4 1966171168
  %v3179 = vunpack.c.0.s8 %v3178
  %v3180 = vlaneseq
  %v3181 = vshrl.u32 %v3180, 7
  %v3182 = vsub.s32 %v3179, %v3181
  %v3183 = vrot.slane %v3155, %v3182
  %v3184 = vcombine.high %v3162, %v3162
  %v3185 = vcombine.high %v3169, %v3169
  %v3186 = vcombine.high %v3176, %v3176
  %v3187 = vcombine.high %v3183, %v3183
  %v3188 = vcombine.high %v3130, %v3130
  %v3190 = vunpack.c.l.s4 1966171168
  %v3191 = vunpack.c.0.s8 %v3190
  %v3192 = vlaneseq
  %v3193 = vshrl.u32 %v3192, 7
  %v3194 = vsub.s32 %v3191, %v3193
  %v3195 = vrot.slane %v3130, %v3194
  %v3197 = vunpack.c.l.s4 1966171168
  %v3198 = vunpack.c.0.s8 %v3197
  %v3199 = vlaneseq
  %v3200 = vshrl.u32 %v3199, 7
  %v3201 = vsub.s32 %v3198, %v3200
  %v3202 = vrot.slane %v3188, %v3201
  %v3203 = vcombine.high %v3195, %v3195
  %v3204 = vcombine.high %v3202, %v3202
  %v3206 = vunpack.c.l.s4 1966171168
  %v3207 = vunpack.c.0.s8 %v3206
  %v3208 = vlaneseq
  %v3209 = vshrl.u32 %v3208, 7
  %v3210 = vsub.s32 %v3207, %v3209
  %v3211 = vrot.slane %v3195, %v3210
  %v3213 = vunpack.c.l.s4 1966171168
  %v3214 = vunpack.c.0.s8 %v3213
  %v3215 = vlaneseq
  %v3216 = vshrl.u32 %v3215, 7
  %v3217 = vsub.s32 %v3214, %v3216
  %v3218 = vrot.slane %v3202, %v3217
  %v3220 = vunpack.c.l.s4 1966171168
  %v3221 = vunpack.c.0.s8 %v3220
  %v3222 = vlaneseq
  %v3223 = vshrl.u32 %v3222, 7
  %v3224 = vsub.s32 %v3221, %v3223
  %v3225 = vrot.slane %v3203, %v3224
  %v3227 = vunpack.c.l.s4 1966171168
  %v3228 = vunpack.c.0.s8 %v3227
  %v3229 = vlaneseq
  %v3230 = vshrl.u32 %v3229, 7
  %v3231 = vsub.s32 %v3228, %v3230
  %v3232 = vrot.slane %v3204, %v3231
  %v3233 = vcombine.high %v3211, %v3211
  %v3234 = vcombine.high %v3218, %v3218
  %v3235 = vcombine.high %v3225, %v3225
  %v3236 = vcombine.high %v3232, %v3232
  %v3237 = vcombine.high %v3131, %v3131
  %v3239 = vunpack.c.l.s4 1966171168
  %v3240 = vunpack.c.0.s8 %v3239
  %v3241 = vlaneseq
  %v3242 = vshrl.u32 %v3241, 7
  %v3243 = vsub.s32 %v3240, %v3242
  %v3244 = vrot.slane %v3131, %v3243
  %v3246 = vunpack.c.l.s4 1966171168
  %v3247 = vunpack.c.0.s8 %v3246
  %v3248 = vlaneseq
  %v3249 = vshrl.u32 %v3248, 7
  %v3250 = vsub.s32 %v3247, %v3249
  %v3251 = vrot.slane %v3237, %v3250
  %v3252 = vcombine.high %v3244, %v3244
  %v3253 = vcombine.high %v3251, %v3251
  %v3255 = vunpack.c.l.s4 1966171168
  %v3256 = vunpack.c.0.s8 %v3255
  %v3257 = vlaneseq
  %v3258 = vshrl.u32 %v3257, 7
  %v3259 = vsub.s32 %v3256, %v3258
  %v3260 = vrot.slane %v3244, %v3259
  %v3262 = vunpack.c.l.s4 1966171168
  %v3263 = vunpack.c.0.s8 %v3262
  %v3264 = vlaneseq
  %v3265 = vshrl.u32 %v3264, 7
  %v3266 = vsub.s32 %v3263, %v3265
  %v3267 = vrot.slane %v3251, %v3266
  %v3269 = vunpack.c.l.s4 1966171168
  %v3270 = vunpack.c.0.s8 %v3269
  %v3271 = vlaneseq
  %v3272 = vshrl.u32 %v3271, 7
  %v3273 = vsub.s32 %v3270, %v3272
  %v3274 = vrot.slane %v3252, %v3273
  %v3276 = vunpack.c.l.s4 1966171168
  %v3277 = vunpack.c.0.s8 %v3276
  %v3278 = vlaneseq
  %v3279 = vshrl.u32 %v3278, 7
  %v3280 = vsub.s32 %v3277, %v3279
  %v3281 = vrot.slane %v3253, %v3280
  %v3282 = vcombine.high %v3260, %v3260
  %v3283 = vcombine.high %v3267, %v3267
  %v3284 = vcombine.high %v3274, %v3274
  %v3285 = vcombine.high %v3281, %v3281
  %v3286 = vcombine.high %v3132, %v3132
  %v3288 = vunpack.c.l.s4 1966171168
  %v3289 = vunpack.c.0.s8 %v3288
  %v3290 = vlaneseq
  %v3291 = vshrl.u32 %v3290, 7
  %v3292 = vsub.s32 %v3289, %v3291
  %v3293 = vrot.slane %v3132, %v3292
  %v3295 = vunpack.c.l.s4 1966171168
  %v3296 = vunpack.c.0.s8 %v3295
  %v3297 = vlaneseq
  %v3298 = vshrl.u32 %v3297, 7
  %v3299 = vsub.s32 %v3296, %v3298
  %v3300 = vrot.slane %v3286, %v3299
  %v3301 = vcombine.high %v3293, %v3293
  %v3302 = vcombine.high %v3300, %v3300
  %v3304 = vunpack.c.l.s4 1966171168
  %v3305 = vunpack.c.0.s8 %v3304
  %v3306 = vlaneseq
  %v3307 = vshrl.u32 %v3306, 7
  %v3308 = vsub.s32 %v3305, %v3307
  %v3309 = vrot.slane %v3293, %v3308
  %v3311 = vunpack.c.l.s4 1966171168
  %v3312 = vunpack.c.0.s8 %v3311
  %v3313 = vlaneseq
  %v3314 = vshrl.u32 %v3313, 7
  %v3315 = vsub.s32 %v3312, %v3314
  %v3316 = vrot.slane %v3300, %v3315
  %v3318 = vunpack.c.l.s4 1966171168
  %v3319 = vunpack.c.0.s8 %v3318
  %v3320 = vlaneseq
  %v3321 = vshrl.u32 %v3320, 7
  %v3322 = vsub.s32 %v3319, %v3321
  %v3323 = vrot.slane %v3301, %v3322
  %v3325 = vunpack.c.l.s4 1966171168
  %v3326 = vunpack.c.0.s8 %v3325
  %v3327 = vlaneseq
  %v3328 = vshrl.u32 %v3327, 7
  %v3329 = vsub.s32 %v3326, %v3328
  %v3330 = vrot.slane %v3302, %v3329
  %v3331 = vcombine.high %v3309, %v3309
  %v3332 = vcombine.high %v3316, %v3316
  %v3333 = vcombine.high %v3323, %v3323
  %v3334 = vcombine.high %v3330, %v3330
  %v3336 = vunpack.c.l.s4 1966171168
  %v3337 = vunpack.c.0.s8 %v3336
  %v3338 = vlaneseq
  %v3339 = vshrl.u32 %v3338, 7
  %v3340 = vsub.s32 %v3337, %v3339
  %v3341 = vrot.slane %v3133, %v3340
  %v3342 = vcombine.high %v3341, %v3341
  %v3344 = vunpack.c.l.s4 1966171168
  %v3345 = vunpack.c.0.s8 %v3344
  %v3346 = vlaneseq
  %v3347 = vshrl.u32 %v3346, 7
  %v3348 = vsub.s32 %v3345, %v3347
  %v3349 = vrot.slane %v3341, %v3348
  %v3351 = vunpack.c.l.s4 1966171168
  %v3352 = vunpack.c.0.s8 %v3351
  %v3353 = vlaneseq
  %v3354 = vshrl.u32 %v3353, 7
  %v3355 = vsub.s32 %v3352, %v3354
  %v3356 = vrot.slane %v3342, %v3355
  %v3362 = vcombine.high %v3027, %v3027
  %v3364 = vunpack.c.l.s4 1966171168
  %v3365 = vunpack.c.0.s8 %v3364
  %v3366 = vlaneseq
  %v3367 = vshrl.u32 %v3366, 7
  %v3368 = vsub.s32 %v3365, %v3367
  %v3369 = vrot.slane %v3027, %v3368
  %v3371 = vunpack.c.l.s4 1966171168
  %v3372 = vunpack.c.0.s8 %v3371
  %v3373 = vlaneseq
  %v3374 = vshrl.u32 %v3373, 7
  %v3375 = vsub.s32 %v3372, %v3374
  %v3376 = vrot.slane %v3362, %v3375
  %v3377 = vcombine.high %v3369, %v3369
  %v3378 = vcombine.high %v3376, %v3376
  %v3380 = vunpack.c.l.s4 1966171168
  %v3381 = vunpack.c.0.s8 %v3380
  %v3382 = vlaneseq
  %v3383 = vshrl.u32 %v3382, 7
  %v3384 = vsub.s32 %v3381, %v3383
  %v3385 = vrot.slane %v3369, %v3384
  %v3387 = vunpack.c.l.s4 1966171168
  %v3388 = vunpack.c.0.s8 %v3387
  %v3389 = vlaneseq
  %v3390 = vshrl.u32 %v3389, 7
  %v3391 = vsub.s32 %v3388, %v3390
  %v3392 = vrot.slane %v3376, %v3391
  %v3394 = vunpack.c.l.s4 1966171168
  %v3395 = vunpack.c.0.s8 %v3394
  %v3396 = vlaneseq
  %v3397 = vshrl.u32 %v3396, 7
  %v3398 = vsub.s32 %v3395, %v3397
  %v3399 = vrot.slane %v3377, %v3398
  %v3401 = vunpack.c.l.s4 1966171168
  %v3402 = vunpack.c.0.s8 %v3401
  %v3403 = vlaneseq
  %v3404 = vshrl.u32 %v3403, 7
  %v3405 = vsub.s32 %v3402, %v3404
  %v3406 = vrot.slane %v3378, %v3405
  %v3407 = vcombine.high %v3385, %v3385
  %v3408 = vcombine.high %v3392, %v3392
  %v3409 = vcombine.high %v3399, %v3399
  %v3410 = vcombine.high %v3406, %v3406
  %v3411 = vcombine.high %v3030, %v3030
  %v3413 = vunpack.c.l.s4 1966171168
  %v3414 = vunpack.c.0.s8 %v3413
  %v3415 = vlaneseq
  %v3416 = vshrl.u32 %v3415, 7
  %v3417 = vsub.s32 %v3414, %v3416
  %v3418 = vrot.slane %v3030, %v3417
  %v3420 = vunpack.c.l.s4 1966171168
  %v3421 = vunpack.c.0.s8 %v3420
  %v3422 = vlaneseq
  %v3423 = vshrl.u32 %v3422, 7
  %v3424 = vsub.s32 %v3421, %v3423
  %v3425 = vrot.slane %v3411, %v3424
  %v3426 = vcombine.high %v3418, %v3418
  %v3427 = vcombine.high %v3425, %v3425
  %v3429 = vunpack.c.l.s4 1966171168
  %v3430 = vunpack.c.0.s8 %v3429
  %v3431 = vlaneseq
  %v3432 = vshrl.u32 %v3431, 7
  %v3433 = vsub.s32 %v3430, %v3432
  %v3434 = vrot.slane %v3418, %v3433
  %v3436 = vunpack.c.l.s4 1966171168
  %v3437 = vunpack.c.0.s8 %v3436
  %v3438 = vlaneseq
  %v3439 = vshrl.u32 %v3438, 7
  %v3440 = vsub.s32 %v3437, %v3439
  %v3441 = vrot.slane %v3425, %v3440
  %v3443 = vunpack.c.l.s4 1966171168
  %v3444 = vunpack.c.0.s8 %v3443
  %v3445 = vlaneseq
  %v3446 = vshrl.u32 %v3445, 7
  %v3447 = vsub.s32 %v3444, %v3446
  %v3448 = vrot.slane %v3426, %v3447
  %v3450 = vunpack.c.l.s4 1966171168
  %v3451 = vunpack.c.0.s8 %v3450
  %v3452 = vlaneseq
  %v3453 = vshrl.u32 %v3452, 7
  %v3454 = vsub.s32 %v3451, %v3453
  %v3455 = vrot.slane %v3427, %v3454
  %v3456 = vcombine.high %v3434, %v3434
  %v3457 = vcombine.high %v3441, %v3441
  %v3458 = vcombine.high %v3448, %v3448
  %v3459 = vcombine.high %v3455, %v3455
  %v3460 = vcombine.high %v3035, %v3035
  %v3462 = vunpack.c.l.s4 1966171168
  %v3463 = vunpack.c.0.s8 %v3462
  %v3464 = vlaneseq
  %v3465 = vshrl.u32 %v3464, 7
  %v3466 = vsub.s32 %v3463, %v3465
  %v3467 = vrot.slane %v3035, %v3466
  %v3469 = vunpack.c.l.s4 1966171168
  %v3470 = vunpack.c.0.s8 %v3469
  %v3471 = vlaneseq
  %v3472 = vshrl.u32 %v3471, 7
  %v3473 = vsub.s32 %v3470, %v3472
  %v3474 = vrot.slane %v3460, %v3473
  %v3475 = vcombine.high %v3467, %v3467
  %v3476 = vcombine.high %v3474, %v3474
  %v3478 = vunpack.c.l.s4 1966171168
  %v3479 = vunpack.c.0.s8 %v3478
  %v3480 = vlaneseq
  %v3481 = vshrl.u32 %v3480, 7
  %v3482 = vsub.s32 %v3479, %v3481
  %v3483 = vrot.slane %v3467, %v3482
  %v3485 = vunpack.c.l.s4 1966171168
  %v3486 = vunpack.c.0.s8 %v3485
  %v3487 = vlaneseq
  %v3488 = vshrl.u32 %v3487, 7
  %v3489 = vsub.s32 %v3486, %v3488
  %v3490 = vrot.slane %v3474, %v3489
  %v3492 = vunpack.c.l.s4 1966171168
  %v3493 = vunpack.c.0.s8 %v3492
  %v3494 = vlaneseq
  %v3495 = vshrl.u32 %v3494, 7
  %v3496 = vsub.s32 %v3493, %v3495
  %v3497 = vrot.slane %v3475, %v3496
  %v3499 = vunpack.c.l.s4 1966171168
  %v3500 = vunpack.c.0.s8 %v3499
  %v3501 = vlaneseq
  %v3502 = vshrl.u32 %v3501, 7
  %v3503 = vsub.s32 %v3500, %v3502
  %v3504 = vrot.slane %v3476, %v3503
  %v3505 = vcombine.high %v3483, %v3483
  %v3506 = vcombine.high %v3490, %v3490
  %v3507 = vcombine.high %v3497, %v3497
  %v3508 = vcombine.high %v3504, %v3504
  %v3509 = vcombine.high %v3038, %v3038
  %v3511 = vunpack.c.l.s4 1966171168
  %v3512 = vunpack.c.0.s8 %v3511
  %v3513 = vlaneseq
  %v3514 = vshrl.u32 %v3513, 7
  %v3515 = vsub.s32 %v3512, %v3514
  %v3516 = vrot.slane %v3038, %v3515
  %v3518 = vunpack.c.l.s4 1966171168
  %v3519 = vunpack.c.0.s8 %v3518
  %v3520 = vlaneseq
  %v3521 = vshrl.u32 %v3520, 7
  %v3522 = vsub.s32 %v3519, %v3521
  %v3523 = vrot.slane %v3509, %v3522
  %v3524 = vcombine.high %v3516, %v3516
  %v3525 = vcombine.high %v3523, %v3523
  %v3527 = vunpack.c.l.s4 1966171168
  %v3528 = vunpack.c.0.s8 %v3527
  %v3529 = vlaneseq
  %v3530 = vshrl.u32 %v3529, 7
  %v3531 = vsub.s32 %v3528, %v3530
  %v3532 = vrot.slane %v3516, %v3531
  %v3534 = vunpack.c.l.s4 1966171168
  %v3535 = vunpack.c.0.s8 %v3534
  %v3536 = vlaneseq
  %v3537 = vshrl.u32 %v3536, 7
  %v3538 = vsub.s32 %v3535, %v3537
  %v3539 = vrot.slane %v3523, %v3538
  %v3541 = vunpack.c.l.s4 1966171168
  %v3542 = vunpack.c.0.s8 %v3541
  %v3543 = vlaneseq
  %v3544 = vshrl.u32 %v3543, 7
  %v3545 = vsub.s32 %v3542, %v3544
  %v3546 = vrot.slane %v3524, %v3545
  %v3548 = vunpack.c.l.s4 1966171168
  %v3549 = vunpack.c.0.s8 %v3548
  %v3550 = vlaneseq
  %v3551 = vshrl.u32 %v3550, 7
  %v3552 = vsub.s32 %v3549, %v3551
  %v3553 = vrot.slane %v3525, %v3552
  %v3554 = vcombine.high %v3532, %v3532
  %v3555 = vcombine.high %v3539, %v3539
  %v3556 = vcombine.high %v3546, %v3546
  %v3557 = vcombine.high %v3553, %v3553
  %v3559 = vunpack.c.l.s4 1966171168
  %v3560 = vunpack.c.0.s8 %v3559
  %v3561 = vlaneseq
  %v3562 = vshrl.u32 %v3561, 7
  %v3563 = vsub.s32 %v3560, %v3562
  %v3564 = vrot.slane %v3043, %v3563
  %v3565 = vcombine.high %v3564, %v3564
  %v3567 = vunpack.c.l.s4 1966171168
  %v3568 = vunpack.c.0.s8 %v3567
  %v3569 = vlaneseq
  %v3570 = vshrl.u32 %v3569, 7
  %v3571 = vsub.s32 %v3568, %v3570
  %v3572 = vrot.slane %v3564, %v3571
  %v3574 = vunpack.c.l.s4 1966171168
  %v3575 = vunpack.c.0.s8 %v3574
  %v3576 = vlaneseq
  %v3577 = vshrl.u32 %v3576, 7
  %v3578 = vsub.s32 %v3575, %v3577
  %v3579 = vrot.slane %v3565, %v3578
  %v3585 = vcombine.high %v3108, %v3108
  %v3587 = vunpack.c.l.s4 1966171168
  %v3588 = vunpack.c.0.s8 %v3587
  %v3589 = vlaneseq
  %v3590 = vshrl.u32 %v3589, 7
  %v3591 = vsub.s32 %v3588, %v3590
  %v3592 = vrot.slane %v3108, %v3591
  %v3594 = vunpack.c.l.s4 1966171168
  %v3595 = vunpack.c.0.s8 %v3594
  %v3596 = vlaneseq
  %v3597 = vshrl.u32 %v3596, 7
  %v3598 = vsub.s32 %v3595, %v3597
  %v3599 = vrot.slane %v3585, %v3598
  %v3600 = vcombine.high %v3592, %v3592
  %v3601 = vcombine.high %v3599, %v3599
  %v3603 = vunpack.c.l.s4 1966171168
  %v3604 = vunpack.c.0.s8 %v3603
  %v3605 = vlaneseq
  %v3606 = vshrl.u32 %v3605, 7
  %v3607 = vsub.s32 %v3604, %v3606
  %v3608 = vrot.slane %v3592, %v3607
  %v3610 = vunpack.c.l.s4 1966171168
  %v3611 = vunpack.c.0.s8 %v3610
  %v3612 = vlaneseq
  %v3613 = vshrl.u32 %v3612, 7
  %v3614 = vsub.s32 %v3611, %v3613
  %v3615 = vrot.slane %v3599, %v3614
  %v3617 = vunpack.c.l.s4 1966171168
  %v3618 = vunpack.c.0.s8 %v3617
  %v3619 = vlaneseq
  %v3620 = vshrl.u32 %v3619, 7
  %v3621 = vsub.s32 %v3618, %v3620
  %v3622 = vrot.slane %v3600, %v3621
  %v3624 = vunpack.c.l.s4 1966171168
  %v3625 = vunpack.c.0.s8 %v3624
  %v3626 = vlaneseq
  %v3627 = vshrl.u32 %v3626, 7
  %v3628 = vsub.s32 %v3625, %v3627
  %v3629 = vrot.slane %v3601, %v3628
  %v3630 = vcombine.high %v3608, %v3608
  %v3631 = vcombine.high %v3615, %v3615
  %v3632 = vcombine.high %v3622, %v3622
  %v3633 = vcombine.high %v3629, %v3629
  %v3634 = vcombine.high %v3111, %v3111
  %v3636 = vunpack.c.l.s4 1966171168
  %v3637 = vunpack.c.0.s8 %v3636
  %v3638 = vlaneseq
  %v3639 = vshrl.u32 %v3638, 7
  %v3640 = vsub.s32 %v3637, %v3639
  %v3641 = vrot.slane %v3111, %v3640
  %v3643 = vunpack.c.l.s4 1966171168
  %v3644 = vunpack.c.0.s8 %v3643
  %v3645 = vlaneseq
  %v3646 = vshrl.u32 %v3645, 7
  %v3647 = vsub.s32 %v3644, %v3646
  %v3648 = vrot.slane %v3634, %v3647
  %v3649 = vcombine.high %v3641, %v3641
  %v3650 = vcombine.high %v3648, %v3648
  %v3652 = vunpack.c.l.s4 1966171168
  %v3653 = vunpack.c.0.s8 %v3652
  %v3654 = vlaneseq
  %v3655 = vshrl.u32 %v3654, 7
  %v3656 = vsub.s32 %v3653, %v3655
  %v3657 = vrot.slane %v3641, %v3656
  %v3659 = vunpack.c.l.s4 1966171168
  %v3660 = vunpack.c.0.s8 %v3659
  %v3661 = vlaneseq
  %v3662 = vshrl.u32 %v3661, 7
  %v3663 = vsub.s32 %v3660, %v3662
  %v3664 = vrot.slane %v3648, %v3663
  %v3666 = vunpack.c.l.s4 1966171168
  %v3667 = vunpack.c.0.s8 %v3666
  %v3668 = vlaneseq
  %v3669 = vshrl.u32 %v3668, 7
  %v3670 = vsub.s32 %v3667, %v3669
  %v3671 = vrot.slane %v3649, %v3670
  %v3673 = vunpack.c.l.s4 1966171168
  %v3674 = vunpack.c.0.s8 %v3673
  %v3675 = vlaneseq
  %v3676 = vshrl.u32 %v3675, 7
  %v3677 = vsub.s32 %v3674, %v3676
  %v3678 = vrot.slane %v3650, %v3677
  %v3679 = vcombine.high %v3657, %v3657
  %v3680 = vcombine.high %v3664, %v3664
  %v3681 = vcombine.high %v3671, %v3671
  %v3682 = vcombine.high %v3678, %v3678
  %v3683 = vcombine.high %v3116, %v3116
  %v3685 = vunpack.c.l.s4 1966171168
  %v3686 = vunpack.c.0.s8 %v3685
  %v3687 = vlaneseq
  %v3688 = vshrl.u32 %v3687, 7
  %v3689 = vsub.s32 %v3686, %v3688
  %v3690 = vrot.slane %v3116, %v3689
  %v3692 = vunpack.c.l.s4 1966171168
  %v3693 = vunpack.c.0.s8 %v3692
  %v3694 = vlaneseq
  %v3695 = vshrl.u32 %v3694, 7
  %v3696 = vsub.s32 %v3693, %v3695
  %v3697 = vrot.slane %v3683, %v3696
  %v3698 = vcombine.high %v3690, %v3690
  %v3699 = vcombine.high %v3697, %v3697
  %v3701 = vunpack.c.l.s4 1966171168
  %v3702 = vunpack.c.0.s8 %v3701
  %v3703 = vlaneseq
  %v3704 = vshrl.u32 %v3703, 7
  %v3705 = vsub.s32 %v3702, %v3704
  %v3706 = vrot.slane %v3690, %v3705
  %v3708 = vunpack.c.l.s4 1966171168
  %v3709 = vunpack.c.0.s8 %v3708
  %v3710 = vlaneseq
  %v3711 = vshrl.u32 %v3710, 7
  %v3712 = vsub.s32 %v3709, %v3711
  %v3713 = vrot.slane %v3697, %v3712
  %v3715 = vunpack.c.l.s4 1966171168
  %v3716 = vunpack.c.0.s8 %v3715
  %v3717 = vlaneseq
  %v3718 = vshrl.u32 %v3717, 7
  %v3719 = vsub.s32 %v3716, %v3718
  %v3720 = vrot.slane %v3698, %v3719
  %v3722 = vunpack.c.l.s4 1966171168
  %v3723 = vunpack.c.0.s8 %v3722
  %v3724 = vlaneseq
  %v3725 = vshrl.u32 %v3724, 7
  %v3726 = vsub.s32 %v3723, %v3725
  %v3727 = vrot.slane %v3699, %v3726
  %v3728 = vcombine.high %v3706, %v3706
  %v3729 = vcombine.high %v3713, %v3713
  %v3730 = vcombine.high %v3720, %v3720
  %v3731 = vcombine.high %v3727, %v3727
  %v3732 = vcombine.high %v3119, %v3119
  %v3734 = vunpack.c.l.s4 1966171168
  %v3735 = vunpack.c.0.s8 %v3734
  %v3736 = vlaneseq
  %v3737 = vshrl.u32 %v3736, 7
  %v3738 = vsub.s32 %v3735, %v3737
  %v3739 = vrot.slane %v3119, %v3738
  %v3741 = vunpack.c.l.s4 1966171168
  %v3742 = vunpack.c.0.s8 %v3741
  %v3743 = vlaneseq
  %v3744 = vshrl.u32 %v3743, 7
  %v3745 = vsub.s32 %v3742, %v3744
  %v3746 = vrot.slane %v3732, %v3745
  %v3747 = vcombine.high %v3739, %v3739
  %v3748 = vcombine.high %v3746, %v3746
  %v3750 = vunpack.c.l.s4 1966171168
  %v3751 = vunpack.c.0.s8 %v3750
  %v3752 = vlaneseq
  %v3753 = vshrl.u32 %v3752, 7
  %v3754 = vsub.s32 %v3751, %v3753
  %v3755 = vrot.slane %v3739, %v3754
  %v3757 = vunpack.c.l.s4 1966171168
  %v3758 = vunpack.c.0.s8 %v3757
  %v3759 = vlaneseq
  %v3760 = vshrl.u32 %v3759, 7
  %v3761 = vsub.s32 %v3758, %v3760
  %v3762 = vrot.slane %v3746, %v3761
  %v3764 = vunpack.c.l.s4 1966171168
  %v3765 = vunpack.c.0.s8 %v3764
  %v3766 = vlaneseq
  %v3767 = vshrl.u32 %v3766, 7
  %v3768 = vsub.s32 %v3765, %v3767
  %v3769 = vrot.slane %v3747, %v3768
  %v3771 = vunpack.c.l.s4 1966171168
  %v3772 = vunpack.c.0.s8 %v3771
  %v3773 = vlaneseq
  %v3774 = vshrl.u32 %v3773, 7
  %v3775 = vsub.s32 %v3772, %v3774
  %v3776 = vrot.slane %v3748, %v3775
  %v3777 = vcombine.high %v3755, %v3755
  %v3778 = vcombine.high %v3762, %v3762
  %v3779 = vcombine.high %v3769, %v3769
  %v3780 = vcombine.high %v3776, %v3776
  %v3782 = vunpack.c.l.s4 1966171168
  %v3783 = vunpack.c.0.s8 %v3782
  %v3784 = vlaneseq
  %v3785 = vshrl.u32 %v3784, 7
  %v3786 = vsub.s32 %v3783, %v3785
  %v3787 = vrot.slane %v3124, %v3786
  %v3788 = vcombine.high %v3787, %v3787
  %v3790 = vunpack.c.l.s4 1966171168
  %v3791 = vunpack.c.0.s8 %v3790
  %v3792 = vlaneseq
  %v3793 = vshrl.u32 %v3792, 7
  %v3794 = vsub.s32 %v3791, %v3793
  %v3795 = vrot.slane %v3787, %v3794
  %v3797 = vunpack.c.l.s4 1966171168
  %v3798 = vunpack.c.0.s8 %v3797
  %v3799 = vlaneseq
  %v3800 = vshrl.u32 %v3799, 7
  %v3801 = vsub.s32 %v3798, %v3800
  %v3802 = vrot.slane %v3788, %v3801
  %v3803 = vcombine.low %v3162, %v3176
  %v3804 = vcombine.low %v3184, %v3186
  %v3805 = vcombine.low %v3169, %v3183
  %v3806 = vcombine.low %v3185, %v3187
  %v3808 = vunpack.c.l.s4 1966171168
  %v3809 = vunpack.c.0.s8 %v3808
  %v3810 = vlaneseq
  %v3811 = vshrl.u32 %v3810, 7
  %v3812 = vsub.s32 %v3809, %v3811
  %v3813 = vrot.slane %v3803, %v3812
  %v3815 = vunpack.c.l.s4 1966171168
  %v3816 = vunpack.c.0.s8 %v3815
  %v3817 = vlaneseq
  %v3818 = vshrl.u32 %v3817, 7
  %v3819 = vsub.s32 %v3816, %v3818
  %v3820 = vrot.slane %v3804, %v3819
  %v3822 = vunpack.c.l.s4 1966171168
  %v3823 = vunpack.c.0.s8 %v3822
  %v3824 = vlaneseq
  %v3825 = vshrl.u32 %v3824, 7
  %v3826 = vsub.s32 %v3823, %v3825
  %v3827 = vrot.slane %v3805, %v3826
  %v3829 = vunpack.c.l.s4 1966171168
  %v3830 = vunpack.c.0.s8 %v3829
  %v3831 = vlaneseq
  %v3832 = vshrl.u32 %v3831, 7
  %v3833 = vsub.s32 %v3830, %v3832
  %v3834 = vrot.slane %v3806, %v3833
  %v3835 = vcombine.low %v3813, %v3820
  %v3836 = vcombine.low %v3827, %v3834
  %v3838 = vunpack.c.l.s4 1966171168
  %v3839 = vunpack.c.0.s8 %v3838
  %v3840 = vlaneseq
  %v3841 = vshrl.u32 %v3840, 7
  %v3842 = vsub.s32 %v3839, %v3841
  %v3843 = vrot.slane %v3835, %v3842
  %v3845 = vunpack.c.l.s4 1966171168
  %v3846 = vunpack.c.0.s8 %v3845
  %v3847 = vlaneseq
  %v3848 = vshrl.u32 %v3847, 7
  %v3849 = vsub.s32 %v3846, %v3848
  %v3850 = vrot.slane %v3836, %v3849
  %v3851 = vcombine.low %v3843, %v3850
  %v3852 = vcombine.low %v3211, %v3225
  %v3853 = vcombine.low %v3233, %v3235
  %v3854 = vcombine.low %v3218, %v3232
  %v3855 = vcombine.low %v3234, %v3236
  %v3857 = vunpack.c.l.s4 1966171168
  %v3858 = vunpack.c.0.s8 %v3857
  %v3859 = vlaneseq
  %v3860 = vshrl.u32 %v3859, 7
  %v3861 = vsub.s32 %v3858, %v3860
  %v3862 = vrot.slane %v3852, %v3861
  %v3864 = vunpack.c.l.s4 1966171168
  %v3865 = vunpack.c.0.s8 %v3864
  %v3866 = vlaneseq
  %v3867 = vshrl.u32 %v3866, 7
  %v3868 = vsub.s32 %v3865, %v3867
  %v3869 = vrot.slane %v3853, %v3868
  %v3871 = vunpack.c.l.s4 1966171168
  %v3872 = vunpack.c.0.s8 %v3871
  %v3873 = vlaneseq
  %v3874 = vshrl.u32 %v3873, 7
  %v3875 = vsub.s32 %v3872, %v3874
  %v3876 = vrot.slane %v3854, %v3875
  %v3878 = vunpack.c.l.s4 1966171168
  %v3879 = vunpack.c.0.s8 %v3878
  %v3880 = vlaneseq
  %v3881 = vshrl.u32 %v3880, 7
  %v3882 = vsub.s32 %v3879, %v3881
  %v3883 = vrot.slane %v3855, %v3882
  %v3884 = vcombine.low %v3862, %v3869
  %v3885 = vcombine.low %v3876, %v3883
  %v3887 = vunpack.c.l.s4 1966171168
  %v3888 = vunpack.c.0.s8 %v3887
  %v3889 = vlaneseq
  %v3890 = vshrl.u32 %v3889, 7
  %v3891 = vsub.s32 %v3888, %v3890
  %v3892 = vrot.slane %v3884, %v3891
  %v3894 = vunpack.c.l.s4 1966171168
  %v3895 = vunpack.c.0.s8 %v3894
  %v3896 = vlaneseq
  %v3897 = vshrl.u32 %v3896, 7
  %v3898 = vsub.s32 %v3895, %v3897
  %v3899 = vrot.slane %v3885, %v3898
  %v3900 = vcombine.low %v3892, %v3899
  %v3902 = vunpack.c.l.s4 1966171168
  %v3903 = vunpack.c.0.s8 %v3902
  %v3904 = vlaneseq
  %v3905 = vshrl.u32 %v3904, 7
  %v3906 = vsub.s32 %v3903, %v3905
  %v3907 = vrot.slane %v3260, %v3906
  %v3909 = vunpack.c.l.s4 1966171168
  %v3910 = vunpack.c.0.s8 %v3909
  %v3911 = vlaneseq
  %v3912 = vshrl.u32 %v3911, 7
  %v3913 = vsub.s32 %v3910, %v3912
  %v3914 = vrot.slane %v3907, %v3913
  %v3915 = vcombine.low %v3274, %v3282
  %v3916 = vcombine.low %v3284, %v3267
  %v3917 = vcombine.low %v3281, %v3283
  %v3918 = vcombine.low %v3285, %v3309
  %v3920 = vunpack.c.l.s4 1966171168
  %v3921 = vunpack.c.0.s8 %v3920
  %v3922 = vlaneseq
  %v3923 = vshrl.u32 %v3922, 7
  %v3924 = vsub.s32 %v3921, %v3923
  %v3925 = vrot.slane %v3915, %v3924
  %v3927 = vunpack.c.l.s4 1966171168
  %v3928 = vunpack.c.0.s8 %v3927
  %v3929 = vlaneseq
  %v3930 = vshrl.u32 %v3929, 7
  %v3931 = vsub.s32 %v3928, %v3930
  %v3932 = vrot.slane %v3916, %v3931
  %v3934 = vunpack.c.l.s4 1966171168
  %v3935 = vunpack.c.0.s8 %v3934
  %v3936 = vlaneseq
  %v3937 = vshrl.u32 %v3936, 7
  %v3938 = vsub.s32 %v3935, %v3937
  %v3939 = vrot.slane %v3917, %v3938
  %v3941 = vunpack.c.l.s4 1966171168
  %v3942 = vunpack.c.0.s8 %v3941
  %v3943 = vlaneseq
  %v3944 = vshrl.u32 %v3943, 7
  %v3945 = vsub.s32 %v3942, %v3944
  %v3946 = vrot.slane %v3918, %v3945
  %v3947 = vcombine.low %v3925, %v3932
  %v3948 = vcombine.low %v3939, %v3946
  %v3950 = vunpack.c.l.s4 1966171168
  %v3951 = vunpack.c.0.s8 %v3950
  %v3952 = vlaneseq
  %v3953 = vshrl.u32 %v3952, 7
  %v3954 = vsub.s32 %v3951, %v3953
  %v3955 = vrot.slane %v3947, %v3954
  %v3957 = vunpack.c.l.s4 1966171168
  %v3958 = vunpack.c.0.s8 %v3957
  %v3959 = vlaneseq
  %v3960 = vshrl.u32 %v3959, 7
  %v3961 = vsub.s32 %v3958, %v3960
  %v3962 = vrot.slane %v3948, %v3961
  %v3963 = vcombine.low %v3955, %v3962
  %v3964 = vcombine.low %v3323, %v3331
  %v3965 = vcombine.low %v3333, %v3316
  %v3966 = vcombine.low %v3330, %v3332
  %v3967 = vcombine.low %v3334, %v3349
  %v3969 = vunpack.c.l.s4 1966171168
  %v3970 = vunpack.c.0.s8 %v3969
  %v3971 = vlaneseq
  %v3972 = vshrl.u32 %v3971, 7
  %v3973 = vsub.s32 %v3970, %v3972
  %v3974 = vrot.slane %v3964, %v3973
  %v3976 = vunpack.c.l.s4 1966171168
  %v3977 = vunpack.c.0.s8 %v3976
  %v3978 = vlaneseq
  %v3979 = vshrl.u32 %v3978, 7
  %v3980 = vsub.s32 %v3977, %v3979
  %v3981 = vrot.slane %v3965, %v3980
  %v3983 = vunpack.c.l.s4 1966171168
  %v3984 = vunpack.c.0.s8 %v3983
  %v3985 = vlaneseq
  %v3986 = vshrl.u32 %v3985, 7
  %v3987 = vsub.s32 %v3984, %v3986
  %v3988 = vrot.slane %v3966, %v3987
  %v3990 = vunpack.c.l.s4 1966171168
  %v3991 = vunpack.c.0.s8 %v3990
  %v3992 = vlaneseq
  %v3993 = vshrl.u32 %v3992, 7
  %v3994 = vsub.s32 %v3991, %v3993
  %v3995 = vrot.slane %v3967, %v3994
  %v3996 = vcombine.low %v3974, %v3981
  %v3997 = vcombine.low %v3988, %v3995
  %v3999 = vunpack.c.l.s4 1966171168
  %v4000 = vunpack.c.0.s8 %v3999
  %v4001 = vlaneseq
  %v4002 = vshrl.u32 %v4001, 7
  %v4003 = vsub.s32 %v4000, %v4002
  %v4004 = vrot.slane %v3996, %v4003
  %v4006 = vunpack.c.l.s4 1966171168
  %v4007 = vunpack.c.0.s8 %v4006
  %v4008 = vlaneseq
  %v4009 = vshrl.u32 %v4008, 7
  %v4010 = vsub.s32 %v4007, %v4009
  %v4011 = vrot.slane %v3997, %v4010
  %v4012 = vcombine.low %v4004, %v4011
  %v4014 = vunpack.c.l.s4 1966171168
  %v4015 = vunpack.c.0.s8 %v4014
  %v4016 = vlaneseq
  %v4017 = vshrl.u32 %v4016, 7
  %v4018 = vsub.s32 %v4015, %v4017
  %v4019 = vrot.slane %v3356, %v4018
  %v4021 = vunpack.c.l.s4 1966171168
  %v4022 = vunpack.c.0.s8 %v4021
  %v4023 = vlaneseq
  %v4024 = vshrl.u32 %v4023, 7
  %v4025 = vsub.s32 %v4022, %v4024
  %v4026 = vrot.slane %v4019, %v4025
  %v4033 = vpack.c.bf16 %v3900, %v3851
  %v4034 = vpack.c.bf16 %v3914, %v3914
  %v4035 = vpack.c.bf16 %v4012, %v3963
  %v4036 = vpack.c.bf16 %v4026, %v4026
  %v4037 = vcombine.low %v3385, %v3399
  %v4038 = vcombine.low %v3407, %v3409
  %v4039 = vcombine.low %v3392, %v3406
  %v4040 = vcombine.low %v3408, %v3410
  %v4042 = vunpack.c.l.s4 1966171168
  %v4043 = vunpack.c.0.s8 %v4042
  %v4044 = vlaneseq
  %v4045 = vshrl.u32 %v4044, 7
  %v4046 = vsub.s32 %v4043, %v4045
  %v4047 = vrot.slane %v4037, %v4046
  %v4049 = vunpack.c.l.s4 1966171168
  %v4050 = vunpack.c.0.s8 %v4049
  %v4051 = vlaneseq
  %v4052 = vshrl.u32 %v4051, 7
  %v4053 = vsub.s32 %v4050, %v4052
  %v4054 = vrot.slane %v4038, %v4053
  %v4056 = vunpack.c.l.s4 1966171168
  %v4057 = vunpack.c.0.s8 %v4056
  %v4058 = vlaneseq
  %v4059 = vshrl.u32 %v4058, 7
  %v4060 = vsub.s32 %v4057, %v4059
  %v4061 = vrot.slane %v4039, %v4060
  %v4063 = vunpack.c.l.s4 1966171168
  %v4064 = vunpack.c.0.s8 %v4063
  %v4065 = vlaneseq
  %v4066 = vshrl.u32 %v4065, 7
  %v4067 = vsub.s32 %v4064, %v4066
  %v4068 = vrot.slane %v4040, %v4067
  %v4069 = vcombine.low %v4047, %v4054
  %v4070 = vcombine.low %v4061, %v4068
  %v4072 = vunpack.c.l.s4 1966171168
  %v4073 = vunpack.c.0.s8 %v4072
  %v4074 = vlaneseq
  %v4075 = vshrl.u32 %v4074, 7
  %v4076 = vsub.s32 %v4073, %v4075
  %v4077 = vrot.slane %v4069, %v4076
  %v4079 = vunpack.c.l.s4 1966171168
  %v4080 = vunpack.c.0.s8 %v4079
  %v4081 = vlaneseq
  %v4082 = vshrl.u32 %v4081, 7
  %v4083 = vsub.s32 %v4080, %v4082
  %v4084 = vrot.slane %v4070, %v4083
  %v4085 = vcombine.low %v4077, %v4084
  %v4086 = vcombine.low %v3434, %v3448
  %v4087 = vcombine.low %v3456, %v3458
  %v4088 = vcombine.low %v3441, %v3455
  %v4089 = vcombine.low %v3457, %v3459
  %v4091 = vunpack.c.l.s4 1966171168
  %v4092 = vunpack.c.0.s8 %v4091
  %v4093 = vlaneseq
  %v4094 = vshrl.u32 %v4093, 7
  %v4095 = vsub.s32 %v4092, %v4094
  %v4096 = vrot.slane %v4086, %v4095
  %v4098 = vunpack.c.l.s4 1966171168
  %v4099 = vunpack.c.0.s8 %v4098
  %v4100 = vlaneseq
  %v4101 = vshrl.u32 %v4100, 7
  %v4102 = vsub.s32 %v4099, %v4101
  %v4103 = vrot.slane %v4087, %v4102
  %v4105 = vunpack.c.l.s4 1966171168
  %v4106 = vunpack.c.0.s8 %v4105
  %v4107 = vlaneseq
  %v4108 = vshrl.u32 %v4107, 7
  %v4109 = vsub.s32 %v4106, %v4108
  %v4110 = vrot.slane %v4088, %v4109
  %v4112 = vunpack.c.l.s4 1966171168
  %v4113 = vunpack.c.0.s8 %v4112
  %v4114 = vlaneseq
  %v4115 = vshrl.u32 %v4114, 7
  %v4116 = vsub.s32 %v4113, %v4115
  %v4117 = vrot.slane %v4089, %v4116
  %v4118 = vcombine.low %v4096, %v4103
  %v4119 = vcombine.low %v4110, %v4117
  %v4121 = vunpack.c.l.s4 1966171168
  %v4122 = vunpack.c.0.s8 %v4121
  %v4123 = vlaneseq
  %v4124 = vshrl.u32 %v4123, 7
  %v4125 = vsub.s32 %v4122, %v4124
  %v4126 = vrot.slane %v4118, %v4125
  %v4128 = vunpack.c.l.s4 1966171168
  %v4129 = vunpack.c.0.s8 %v4128
  %v4130 = vlaneseq
  %v4131 = vshrl.u32 %v4130, 7
  %v4132 = vsub.s32 %v4129, %v4131
  %v4133 = vrot.slane %v4119, %v4132
  %v4134 = vcombine.low %v4126, %v4133
  %v4136 = vunpack.c.l.s4 1966171168
  %v4137 = vunpack.c.0.s8 %v4136
  %v4138 = vlaneseq
  %v4139 = vshrl.u32 %v4138, 7
  %v4140 = vsub.s32 %v4137, %v4139
  %v4141 = vrot.slane %v3483, %v4140
  %v4143 = vunpack.c.l.s4 1966171168
  %v4144 = vunpack.c.0.s8 %v4143
  %v4145 = vlaneseq
  %v4146 = vshrl.u32 %v4145, 7
  %v4147 = vsub.s32 %v4144, %v4146
  %v4148 = vrot.slane %v4141, %v4147
  %v4149 = vcombine.low %v3497, %v3505
  %v4150 = vcombine.low %v3507, %v3490
  %v4151 = vcombine.low %v3504, %v3506
  %v4152 = vcombine.low %v3508, %v3532
  %v4154 = vunpack.c.l.s4 1966171168
  %v4155 = vunpack.c.0.s8 %v4154
  %v4156 = vlaneseq
  %v4157 = vshrl.u32 %v4156, 7
  %v4158 = vsub.s32 %v4155, %v4157
  %v4159 = vrot.slane %v4149, %v4158
  %v4161 = vunpack.c.l.s4 1966171168
  %v4162 = vunpack.c.0.s8 %v4161
  %v4163 = vlaneseq
  %v4164 = vshrl.u32 %v4163, 7
  %v4165 = vsub.s32 %v4162, %v4164
  %v4166 = vrot.slane %v4150, %v4165
  %v4168 = vunpack.c.l.s4 1966171168
  %v4169 = vunpack.c.0.s8 %v4168
  %v4170 = vlaneseq
  %v4171 = vshrl.u32 %v4170, 7
  %v4172 = vsub.s32 %v4169, %v4171
  %v4173 = vrot.slane %v4151, %v4172
  %v4175 = vunpack.c.l.s4 1966171168
  %v4176 = vunpack.c.0.s8 %v4175
  %v4177 = vlaneseq
  %v4178 = vshrl.u32 %v4177, 7
  %v4179 = vsub.s32 %v4176, %v4178
  %v4180 = vrot.slane %v4152, %v4179
  %v4181 = vcombine.low %v4159, %v4166
  %v4182 = vcombine.low %v4173, %v4180
  %v4184 = vunpack.c.l.s4 1966171168
  %v4185 = vunpack.c.0.s8 %v4184
  %v4186 = vlaneseq
  %v4187 = vshrl.u32 %v4186, 7
  %v4188 = vsub.s32 %v4185, %v4187
  %v4189 = vrot.slane %v4181, %v4188
  %v4191 = vunpack.c.l.s4 1966171168
  %v4192 = vunpack.c.0.s8 %v4191
  %v4193 = vlaneseq
  %v4194 = vshrl.u32 %v4193, 7
  %v4195 = vsub.s32 %v4192, %v4194
  %v4196 = vrot.slane %v4182, %v4195
  %v4197 = vcombine.low %v4189, %v4196
  %v4198 = vcombine.low %v3546, %v3554
  %v4199 = vcombine.low %v3556, %v3539
  %v4200 = vcombine.low %v3553, %v3555
  %v4201 = vcombine.low %v3557, %v3572
  %v4203 = vunpack.c.l.s4 1966171168
  %v4204 = vunpack.c.0.s8 %v4203
  %v4205 = vlaneseq
  %v4206 = vshrl.u32 %v4205, 7
  %v4207 = vsub.s32 %v4204, %v4206
  %v4208 = vrot.slane %v4198, %v4207
  %v4210 = vunpack.c.l.s4 1966171168
  %v4211 = vunpack.c.0.s8 %v4210
  %v4212 = vlaneseq
  %v4213 = vshrl.u32 %v4212, 7
  %v4214 = vsub.s32 %v4211, %v4213
  %v4215 = vrot.slane %v4199, %v4214
  %v4217 = vunpack.c.l.s4 1966171168
  %v4218 = vunpack.c.0.s8 %v4217
  %v4219 = vlaneseq
  %v4220 = vshrl.u32 %v4219, 7
  %v4221 = vsub.s32 %v4218, %v4220
  %v4222 = vrot.slane %v4200, %v4221
  %v4224 = vunpack.c.l.s4 1966171168
  %v4225 = vunpack.c.0.s8 %v4224
  %v4226 = vlaneseq
  %v4227 = vshrl.u32 %v4226, 7
  %v4228 = vsub.s32 %v4225, %v4227
  %v4229 = vrot.slane %v4201, %v4228
  %v4230 = vcombine.low %v4208, %v4215
  %v4231 = vcombine.low %v4222, %v4229
  %v4233 = vunpack.c.l.s4 1966171168
  %v4234 = vunpack.c.0.s8 %v4233
  %v4235 = vlaneseq
  %v4236 = vshrl.u32 %v4235, 7
  %v4237 = vsub.s32 %v4234, %v4236
  %v4238 = vrot.slane %v4230, %v4237
  %v4240 = vunpack.c.l.s4 1966171168
  %v4241 = vunpack.c.0.s8 %v4240
  %v4242 = vlaneseq
  %v4243 = vshrl.u32 %v4242, 7
  %v4244 = vsub.s32 %v4241, %v4243
  %v4245 = vrot.slane %v4231, %v4244
  %v4246 = vcombine.low %v4238, %v4245
  %v4248 = vunpack.c.l.s4 1966171168
  %v4249 = vunpack.c.0.s8 %v4248
  %v4250 = vlaneseq
  %v4251 = vshrl.u32 %v4250, 7
  %v4252 = vsub.s32 %v4249, %v4251
  %v4253 = vrot.slane %v3579, %v4252
  %v4255 = vunpack.c.l.s4 1966171168
  %v4256 = vunpack.c.0.s8 %v4255
  %v4257 = vlaneseq
  %v4258 = vshrl.u32 %v4257, 7
  %v4259 = vsub.s32 %v4256, %v4258
  %v4260 = vrot.slane %v4253, %v4259
  %v4267 = vpack.c.bf16 %v4134, %v4085
  %v4268 = vpack.c.bf16 %v4148, %v4148
  %v4269 = vpack.c.bf16 %v4246, %v4197
  %v4270 = vpack.c.bf16 %v4260, %v4260
  %v4272 = vsel %vm1893, %v4033, 0
  %v4275 = vsel %vm1893, %v4034, 0
  %v4278 = vsel %vm1893, %v4267, 0
  %v4281 = vsel %vm1893, %v4268, 0
  %4283 = vmatprep.subr.bf16.mxu0 0
  %4284 = vmatpush1.bf16.xpose.msra.mxu0 %v4278
  %4285 = vmatprep.subr.bf16.mxu0 0
  %4286 = vmatpush1.bf16.xpose.msra.mxu0 %v4281
  %4287 = vmatprep.subr.bf16.mxu0 0
  %4288 = vmatpush1.bf16.xpose.msra.mxu0 0
  %4289 = vmatprep.subr.bf16.mxu0 0
  %4290 = vmatpush1.bf16.xpose.msra.mxu0 0
  %4291 = vmatprep.subr.bf16.mxu0 0
  %4292 = vmatpush1.bf16.xpose.msra.mxu0 0
  %4293 = vmatprep.subr.bf16.mxu0 0
  %4294 = vmatpush1.bf16.xpose.msra.mxu0 0
  %4295 = vmatprep.subr.bf16.mxu0 0
  %4296 = vmatpush1.bf16.xpose.msra.mxu0 0
  %4297 = vmatprep.subr.bf16.mxu0 0
  %4298 = vmatpush1.bf16.xpose.msra.mxu0 0
  %4299 = vmatprep.subr.bf16.mxu0 0
  %4300 = vmatpush1.bf16.xpose.msra.mxu0 0
  %4301 = vmatprep.subr.bf16.mxu0 0
  %4302 = vmatpush1.bf16.xpose.msra.mxu0 0
  %4303 = vmatprep.subr.bf16.mxu0 0
  %4304 = vmatpush1.bf16.xpose.msra.mxu0 0
  %4305 = vmatprep.subr.bf16.mxu0 0
  %4306 = vmatpush1.bf16.xpose.msra.mxu0 0
  %4307 = vmatprep.subr.bf16.mxu0 0
  %4308 = vmatpush1.bf16.xpose.msra.mxu0 0
  %4309 = vmatprep.subr.bf16.mxu0 0
  %4310 = vmatpush1.bf16.xpose.msra.mxu0 0
  %4311 = vmatprep.subr.bf16.mxu0 0
  %4312 = vmatpush1.bf16.xpose.msra.mxu0 0
  %4313 = vmatprep.subr.bf16.mxu0 0
  %4314 = vmatpush1.bf16.xpose.msra.mxu0 0
  %4315 = vmatprep.mubr.bf16.mxu0 0
  %4316 = vmatmul.mubr.bf16.gmra.mrb[0].mxu0 %v4272
  %v4317 = vpop.f32.mrb[0].mxu0
  %v4318 = vadd.f32 0.0, %v4317
  %v4319 = vpop.f32.mrb[0].mxu0
  %v4320 = vpop.f32.mrb[0].mxu0
  %v4321 = vadd.f32 0.0, %v4320
  %v4322 = vpop.f32.mrb[0].mxu0
  %4323 = vmatprep.mubr.bf16.mxu0 0
  %4324 = vmatmul.mubr.bf16.gmra.mrb[0].mxu0 %v4275
  %v4325 = vpop.f32.mrb[0].mxu0
  %v4326 = vadd.f32 0.0, %v4325
  %v4327 = vpop.f32.mrb[0].mxu0
  %v4328 = vpop.f32.mrb[0].mxu0
  %v4329 = vpop.f32.mrb[0].mxu0
  %4330 = vdwg.mxu0
  %v4332 = vsel %vm1893, %v4035, 0
  %v4335 = vsel %vm1893, %v4036, 0
  %v4338 = vsel %vm1893, %v4269, 0
  %v4341 = vsel %vm1893, %v4270, 0
  %4343 = vmatprep.subr.bf16.mxu0 0
  %4344 = vmatpush1.bf16.xpose.msra.mxu0 %v4338
  %4345 = vmatprep.subr.bf16.mxu0 0
  %4346 = vmatpush1.bf16.xpose.msra.mxu0 %v4341
  %4347 = vmatprep.subr.bf16.mxu0 0
  %4348 = vmatpush1.bf16.xpose.msra.mxu0 0
  %4349 = vmatprep.subr.bf16.mxu0 0
  %4350 = vmatpush1.bf16.xpose.msra.mxu0 0
  %4351 = vmatprep.subr.bf16.mxu0 0
  %4352 = vmatpush1.bf16.xpose.msra.mxu0 0
  %4353 = vmatprep.subr.bf16.mxu0 0
  %4354 = vmatpush1.bf16.xpose.msra.mxu0 0
  %4355 = vmatprep.subr.bf16.mxu0 0
  %4356 = vmatpush1.bf16.xpose.msra.mxu0 0
  %4357 = vmatprep.subr.bf16.mxu0 0
  %4358 = vmatpush1.bf16.xpose.msra.mxu0 0
  %4359 = vmatprep.subr.bf16.mxu0 0
  %4360 = vmatpush1.bf16.xpose.msra.mxu0 0
  %4361 = vmatprep.subr.bf16.mxu0 0
  %4362 = vmatpush1.bf16.xpose.msra.mxu0 0
  %4363 = vmatprep.subr.bf16.mxu0 0
  %4364 = vmatpush1.bf16.xpose.msra.mxu0 0
  %4365 = vmatprep.subr.bf16.mxu0 0
  %4366 = vmatpush1.bf16.xpose.msra.mxu0 0
  %4367 = vmatprep.subr.bf16.mxu0 0
  %4368 = vmatpush1.bf16.xpose.msra.mxu0 0
  %4369 = vmatprep.subr.bf16.mxu0 0
  %4370 = vmatpush1.bf16.xpose.msra.mxu0 0
  %4371 = vmatprep.subr.bf16.mxu0 0
  %4372 = vmatpush1.bf16.xpose.msra.mxu0 0
  %4373 = vmatprep.subr.bf16.mxu0 0
  %4374 = vmatpush1.bf16.xpose.msra.mxu0 0
  %4375 = vmatprep.mubr.bf16.mxu0 0
  %4376 = vmatmul.mubr.bf16.gmra.mrb[0].mxu0 %v4332
  %v4377 = vpop.f32.mrb[0].mxu0
  %v4378 = vadd.f32 0.0, %v4377
  %v4379 = vpop.f32.mrb[0].mxu0
  %v4380 = vpop.f32.mrb[0].mxu0
  %v4381 = vadd.f32 0.0, %v4380
  %v4382 = vpop.f32.mrb[0].mxu0
  %4383 = vmatprep.mubr.bf16.mxu0 0
  %4384 = vmatmul.mubr.bf16.gmra.mrb[0].mxu0 %v4335
  %v4385 = vpop.f32.mrb[0].mxu0
  %v4386 = vadd.f32 0.0, %v4385
  %v4387 = vpop.f32.mrb[0].mxu0
  %v4388 = vpop.f32.mrb[0].mxu0
  %v4389 = vpop.f32.mrb[0].mxu0
  %4390 = vdwg.mxu0
  %v4391 = vsel %vm2014, %v4318, -inf
  %4392 = vmax.xlane.f32.xlu0 %v4391
  %v4393 = vpop.xlane.xlu0 %4392
  %v4394 = vsel %vm2014, %v4321, -inf
  %4395 = vmax.xlane.f32.xlu0 %v4394
  %v4396 = vpop.xlane.xlu0 %4395
  %v4397 = vsel %vm2021, %v4326, -inf
  %4398 = vmax.xlane.f32.xlu0 %v4397
  %v4399 = vpop.xlane.xlu0 %4398
  %v4400 = vsel %vm2014, %v4378, -inf
  %4401 = vmax.xlane.f32.xlu0 %v4400
  %v4402 = vpop.xlane.xlu0 %4401
  %v4403 = vsel %vm2014, %v4381, -inf
  %4404 = vmax.xlane.f32.xlu0 %v4403
  %v4405 = vpop.xlane.xlu0 %4404
  %v4406 = vsel %vm2021, %v4386, -inf
  %4407 = vmax.xlane.f32.xlu0 %v4406
  %v4408 = vpop.xlane.xlu0 %4407
  %v4409 = vsub.f32 %v4318, %v4393
  %v4410 = vsub.f32 %v4321, %v4396
  %v4411 = vsub.f32 %v4326, %v4399
  %v4412 = vsub.f32 %v4378, %v4402
  %v4413 = vsub.f32 %v4381, %v4405
  %v4414 = vsub.f32 %v4386, %v4408
  %v4415 = vmul.f32 %v4409, 1.442695
  %v4416 = vpow.pop %v4415
  %v4417 = vmul.f32 %v4410, 1.442695
  %v4418 = vpow.pop %v4417
  %v4419 = vmul.f32 %v4411, 1.442695
  %v4420 = vpow.pop %v4419
  %v4421 = vmul.f32 %v4412, 1.442695
  %v4422 = vpow.pop %v4421
  %v4423 = vmul.f32 %v4413, 1.442695
  %v4424 = vpow.pop %v4423
  %v4425 = vmul.f32 %v4414, 1.442695
  %v4426 = vpow.pop %v4425
  %v4427 = vsel %vm2014, %v4416, 0.0
  %4428 = vadd.xlane.f32.xlu0 %v4427
  %v4429 = vpop.xlane.xlu0 %4428
  %v4430 = vsel %vm2014, %v4418, 0.0
  %4431 = vadd.xlane.f32.xlu0 %v4430
  %v4432 = vpop.xlane.xlu0 %4431
  %v4433 = vsel %vm2021, %v4420, 0.0
  %4434 = vadd.xlane.f32.xlu0 %v4433
  %v4435 = vpop.xlane.xlu0 %4434
  %v4436 = vsel %vm2014, %v4422, 0.0
  %4437 = vadd.xlane.f32.xlu0 %v4436
  %v4438 = vpop.xlane.xlu0 %4437
  %v4439 = vsel %vm2014, %v4424, 0.0
  %4440 = vadd.xlane.f32.xlu0 %v4439
  %v4441 = vpop.xlane.xlu0 %4440
  %v4442 = vsel %vm2021, %v4426, 0.0
  %4443 = vadd.xlane.f32.xlu0 %v4442
  %v4444 = vpop.xlane.xlu0 %4443
  %v4445 = vrcp.pop %v4429
  %v4446 = vrcp.pop %v4432
  %v4447 = vrcp.pop %v4435
  %v4448 = vrcp.pop %v4438
  %v4449 = vrcp.pop %v4441
  %v4450 = vrcp.pop %v4444
  %v4451 = vmul.f32 %v4416, %v4445
  %v4452 = vmul.f32 %v4418, %v4446
  %v4453 = vmul.f32 %v4420, %v4447
  %v4454 = vmul.f32 %v4422, %v4448
  %v4455 = vmul.f32 %v4424, %v4449
  %v4456 = vmul.f32 %v4426, %v4450
  %v4457 = vpack.c.bf16 %v4452, %v4451
  %v4458 = vpack.c.bf16 %v4453, %v4453
  %v4459 = vpack.c.bf16 %v4455, %v4454
  %v4460 = vpack.c.bf16 %v4456, %v4456
  %v4461 = vcombine.low %v3608, %v3622
  %v4462 = vcombine.low %v3630, %v3632
  %v4463 = vcombine.low %v3615, %v3629
  %v4464 = vcombine.low %v3631, %v3633
  %v4466 = vunpack.c.l.s4 1966171168
  %v4467 = vunpack.c.0.s8 %v4466
  %v4468 = vlaneseq
  %v4469 = vshrl.u32 %v4468, 7
  %v4470 = vsub.s32 %v4467, %v4469
  %v4471 = vrot.slane %v4461, %v4470
  %v4473 = vunpack.c.l.s4 1966171168
  %v4474 = vunpack.c.0.s8 %v4473
  %v4475 = vlaneseq
  %v4476 = vshrl.u32 %v4475, 7
  %v4477 = vsub.s32 %v4474, %v4476
  %v4478 = vrot.slane %v4462, %v4477
  %v4480 = vunpack.c.l.s4 1966171168
  %v4481 = vunpack.c.0.s8 %v4480
  %v4482 = vlaneseq
  %v4483 = vshrl.u32 %v4482, 7
  %v4484 = vsub.s32 %v4481, %v4483
  %v4485 = vrot.slane %v4463, %v4484
  %v4487 = vunpack.c.l.s4 1966171168
  %v4488 = vunpack.c.0.s8 %v4487
  %v4489 = vlaneseq
  %v4490 = vshrl.u32 %v4489, 7
  %v4491 = vsub.s32 %v4488, %v4490
  %v4492 = vrot.slane %v4464, %v4491
  %v4493 = vcombine.low %v4471, %v4478
  %v4494 = vcombine.low %v4485, %v4492
  %v4496 = vunpack.c.l.s4 1966171168
  %v4497 = vunpack.c.0.s8 %v4496
  %v4498 = vlaneseq
  %v4499 = vshrl.u32 %v4498, 7
  %v4500 = vsub.s32 %v4497, %v4499
  %v4501 = vrot.slane %v4493, %v4500
  %v4503 = vunpack.c.l.s4 1966171168
  %v4504 = vunpack.c.0.s8 %v4503
  %v4505 = vlaneseq
  %v4506 = vshrl.u32 %v4505, 7
  %v4507 = vsub.s32 %v4504, %v4506
  %v4508 = vrot.slane %v4494, %v4507
  %v4509 = vcombine.low %v4501, %v4508
  %v4510 = vcombine.low %v3657, %v3671
  %v4511 = vcombine.low %v3679, %v3681
  %v4512 = vcombine.low %v3664, %v3678
  %v4513 = vcombine.low %v3680, %v3682
  %v4515 = vunpack.c.l.s4 1966171168
  %v4516 = vunpack.c.0.s8 %v4515
  %v4517 = vlaneseq
  %v4518 = vshrl.u32 %v4517, 7
  %v4519 = vsub.s32 %v4516, %v4518
  %v4520 = vrot.slane %v4510, %v4519
  %v4522 = vunpack.c.l.s4 1966171168
  %v4523 = vunpack.c.0.s8 %v4522
  %v4524 = vlaneseq
  %v4525 = vshrl.u32 %v4524, 7
  %v4526 = vsub.s32 %v4523, %v4525
  %v4527 = vrot.slane %v4511, %v4526
  %v4529 = vunpack.c.l.s4 1966171168
  %v4530 = vunpack.c.0.s8 %v4529
  %v4531 = vlaneseq
  %v4532 = vshrl.u32 %v4531, 7
  %v4533 = vsub.s32 %v4530, %v4532
  %v4534 = vrot.slane %v4512, %v4533
  %v4536 = vunpack.c.l.s4 1966171168
  %v4537 = vunpack.c.0.s8 %v4536
  %v4538 = vlaneseq
  %v4539 = vshrl.u32 %v4538, 7
  %v4540 = vsub.s32 %v4537, %v4539
  %v4541 = vrot.slane %v4513, %v4540
  %v4542 = vcombine.low %v4520, %v4527
  %v4543 = vcombine.low %v4534, %v4541
  %v4545 = vunpack.c.l.s4 1966171168
  %v4546 = vunpack.c.0.s8 %v4545
  %v4547 = vlaneseq
  %v4548 = vshrl.u32 %v4547, 7
  %v4549 = vsub.s32 %v4546, %v4548
  %v4550 = vrot.slane %v4542, %v4549
  %v4552 = vunpack.c.l.s4 1966171168
  %v4553 = vunpack.c.0.s8 %v4552
  %v4554 = vlaneseq
  %v4555 = vshrl.u32 %v4554, 7
  %v4556 = vsub.s32 %v4553, %v4555
  %v4557 = vrot.slane %v4543, %v4556
  %v4558 = vcombine.low %v4550, %v4557
  %v4560 = vunpack.c.l.s4 1966171168
  %v4561 = vunpack.c.0.s8 %v4560
  %v4562 = vlaneseq
  %v4563 = vshrl.u32 %v4562, 7
  %v4564 = vsub.s32 %v4561, %v4563
  %v4565 = vrot.slane %v3706, %v4564
  %v4567 = vunpack.c.l.s4 1966171168
  %v4568 = vunpack.c.0.s8 %v4567
  %v4569 = vlaneseq
  %v4570 = vshrl.u32 %v4569, 7
  %v4571 = vsub.s32 %v4568, %v4570
  %v4572 = vrot.slane %v4565, %v4571
  %v4573 = vcombine.low %v3720, %v3728
  %v4574 = vcombine.low %v3730, %v3713
  %v4575 = vcombine.low %v3727, %v3729
  %v4576 = vcombine.low %v3731, %v3755
  %v4578 = vunpack.c.l.s4 1966171168
  %v4579 = vunpack.c.0.s8 %v4578
  %v4580 = vlaneseq
  %v4581 = vshrl.u32 %v4580, 7
  %v4582 = vsub.s32 %v4579, %v4581
  %v4583 = vrot.slane %v4573, %v4582
  %v4585 = vunpack.c.l.s4 1966171168
  %v4586 = vunpack.c.0.s8 %v4585
  %v4587 = vlaneseq
  %v4588 = vshrl.u32 %v4587, 7
  %v4589 = vsub.s32 %v4586, %v4588
  %v4590 = vrot.slane %v4574, %v4589
  %v4592 = vunpack.c.l.s4 1966171168
  %v4593 = vunpack.c.0.s8 %v4592
  %v4594 = vlaneseq
  %v4595 = vshrl.u32 %v4594, 7
  %v4596 = vsub.s32 %v4593, %v4595
  %v4597 = vrot.slane %v4575, %v4596
  %v4599 = vunpack.c.l.s4 1966171168
  %v4600 = vunpack.c.0.s8 %v4599
  %v4601 = vlaneseq
  %v4602 = vshrl.u32 %v4601, 7
  %v4603 = vsub.s32 %v4600, %v4602
  %v4604 = vrot.slane %v4576, %v4603
  %v4605 = vcombine.low %v4583, %v4590
  %v4606 = vcombine.low %v4597, %v4604
  %v4608 = vunpack.c.l.s4 1966171168
  %v4609 = vunpack.c.0.s8 %v4608
  %v4610 = vlaneseq
  %v4611 = vshrl.u32 %v4610, 7
  %v4612 = vsub.s32 %v4609, %v4611
  %v4613 = vrot.slane %v4605, %v4612
  %v4615 = vunpack.c.l.s4 1966171168
  %v4616 = vunpack.c.0.s8 %v4615
  %v4617 = vlaneseq
  %v4618 = vshrl.u32 %v4617, 7
  %v4619 = vsub.s32 %v4616, %v4618
  %v4620 = vrot.slane %v4606, %v4619
  %v4621 = vcombine.low %v4613, %v4620
  %v4622 = vcombine.low %v3769, %v3777
  %v4623 = vcombine.low %v3779, %v3762
  %v4624 = vcombine.low %v3776, %v3778
  %v4625 = vcombine.low %v3780, %v3795
  %v4627 = vunpack.c.l.s4 1966171168
  %v4628 = vunpack.c.0.s8 %v4627
  %v4629 = vlaneseq
  %v4630 = vshrl.u32 %v4629, 7
  %v4631 = vsub.s32 %v4628, %v4630
  %v4632 = vrot.slane %v4622, %v4631
  %v4634 = vunpack.c.l.s4 1966171168
  %v4635 = vunpack.c.0.s8 %v4634
  %v4636 = vlaneseq
  %v4637 = vshrl.u32 %v4636, 7
  %v4638 = vsub.s32 %v4635, %v4637
  %v4639 = vrot.slane %v4623, %v4638
  %v4641 = vunpack.c.l.s4 1966171168
  %v4642 = vunpack.c.0.s8 %v4641
  %v4643 = vlaneseq
  %v4644 = vshrl.u32 %v4643, 7
  %v4645 = vsub.s32 %v4642, %v4644
  %v4646 = vrot.slane %v4624, %v4645
  %v4648 = vunpack.c.l.s4 1966171168
  %v4649 = vunpack.c.0.s8 %v4648
  %v4650 = vlaneseq
  %v4651 = vshrl.u32 %v4650, 7
  %v4652 = vsub.s32 %v4649, %v4651
  %v4653 = vrot.slane %v4625, %v4652
  %v4654 = vcombine.low %v4632, %v4639
  %v4655 = vcombine.low %v4646, %v4653
  %v4657 = vunpack.c.l.s4 1966171168
  %v4658 = vunpack.c.0.s8 %v4657
  %v4659 = vlaneseq
  %v4660 = vshrl.u32 %v4659, 7
  %v4661 = vsub.s32 %v4658, %v4660
  %v4662 = vrot.slane %v4654, %v4661
  %v4664 = vunpack.c.l.s4 1966171168
  %v4665 = vunpack.c.0.s8 %v4664
  %v4666 = vlaneseq
  %v4667 = vshrl.u32 %v4666, 7
  %v4668 = vsub.s32 %v4665, %v4667
  %v4669 = vrot.slane %v4655, %v4668
  %v4670 = vcombine.low %v4662, %v4669
  %v4672 = vunpack.c.l.s4 1966171168
  %v4673 = vunpack.c.0.s8 %v4672
  %v4674 = vlaneseq
  %v4675 = vshrl.u32 %v4674, 7
  %v4676 = vsub.s32 %v4673, %v4675
  %v4677 = vrot.slane %v3802, %v4676
  %v4679 = vunpack.c.l.s4 1966171168
  %v4680 = vunpack.c.0.s8 %v4679
  %v4681 = vlaneseq
  %v4682 = vshrl.u32 %v4681, 7
  %v4683 = vsub.s32 %v4680, %v4682
  %v4684 = vrot.slane %v4677, %v4683
  %v4691 = vpack.c.bf16 %v4558, %v4509
  %v4692 = vpack.c.bf16 %v4572, %v4572
  %v4693 = vpack.c.bf16 %v4670, %v4621
  %v4694 = vpack.c.bf16 %v4684, %v4684
  %v4696 = vsel %vm2014, %v4457, 0
  %v4699 = vsel %vm2014, %v4458, 0
  %v4702 = vand.u32 %v4692, %v2327
  %4704 = vmatprep.subr.bf16.mxu0 0
  %4705 = vmatpush1.bf16.msra.mxu0 %v4691
  %4706 = vmatprep.subr.bf16.mxu0 0
  %4707 = vmatpush1.bf16.msra.mxu0 %v4702
  %4708 = vmatprep.subr.bf16.mxu0 0
  %4709 = vmatpush1.bf16.msra.mxu0 0
  %4710 = vmatprep.subr.bf16.mxu0 0
  %4711 = vmatpush1.bf16.msra.mxu0 0
  %4712 = vmatprep.subr.bf16.mxu0 0
  %4713 = vmatpush1.bf16.msra.mxu0 0
  %4714 = vmatprep.subr.bf16.mxu0 0
  %4715 = vmatpush1.bf16.msra.mxu0 0
  %4716 = vmatprep.subr.bf16.mxu0 0
  %4717 = vmatpush1.bf16.msra.mxu0 0
  %4718 = vmatprep.subr.bf16.mxu0 0
  %4719 = vmatpush1.bf16.msra.mxu0 0
  %4720 = vmatprep.subr.bf16.mxu0 0
  %4721 = vmatpush1.bf16.msra.mxu0 0
  %4722 = vmatprep.subr.bf16.mxu0 0
  %4723 = vmatpush1.bf16.msra.mxu0 0
  %4724 = vmatprep.subr.bf16.mxu0 0
  %4725 = vmatpush1.bf16.msra.mxu0 0
  %4726 = vmatprep.subr.bf16.mxu0 0
  %4727 = vmatpush1.bf16.msra.mxu0 0
  %4728 = vmatprep.subr.bf16.mxu0 0
  %4729 = vmatpush1.bf16.msra.mxu0 0
  %4730 = vmatprep.subr.bf16.mxu0 0
  %4731 = vmatpush1.bf16.msra.mxu0 0
  %4732 = vmatprep.subr.bf16.mxu0 0
  %4733 = vmatpush1.bf16.msra.mxu0 0
  %4734 = vmatprep.subr.bf16.mxu0 0
  %4735 = vmatpush1.bf16.msra.mxu0 0
  %4736 = vmatprep.mubr.bf16.mxu0 0
  %4737 = vmatmul.mubr.bf16.gmra.mrb[0].mxu0 %v4696
  %v4738 = vpop.f32.mrb[0].mxu0
  %v4739 = vadd.f32 0.0, %v4738
  %v4740 = vpop.f32.mrb[0].mxu0
  %v4741 = vpop.f32.mrb[0].mxu0
  %v4742 = vadd.f32 0.0, %v4741
  %v4743 = vpop.f32.mrb[0].mxu0
  %4744 = vmatprep.mubr.bf16.mxu0 0
  %4745 = vmatmul.mubr.bf16.gmra.mrb[0].mxu0 %v4699
  %v4746 = vpop.f32.mrb[0].mxu0
  %v4747 = vadd.f32 0.0, %v4746
  %v4748 = vpop.f32.mrb[0].mxu0
  %v4749 = vpop.f32.mrb[0].mxu0
  %v4750 = vpop.f32.mrb[0].mxu0
  %4751 = vdwg.mxu0
  %v4753 = vsel %vm2014, %v4459, 0
  %v4756 = vsel %vm2014, %v4460, 0
  %v4759 = vand.u32 %v4694, %v2327
  %4761 = vmatprep.subr.bf16.mxu0 0
  %4762 = vmatpush1.bf16.msra.mxu0 %v4693
  %4763 = vmatprep.subr.bf16.mxu0 0
  %4764 = vmatpush1.bf16.msra.mxu0 %v4759
  %4765 = vmatprep.subr.bf16.mxu0 0
  %4766 = vmatpush1.bf16.msra.mxu0 0
  %4767 = vmatprep.subr.bf16.mxu0 0
  %4768 = vmatpush1.bf16.msra.mxu0 0
  %4769 = vmatprep.subr.bf16.mxu0 0
  %4770 = vmatpush1.bf16.msra.mxu0 0
  %4771 = vmatprep.subr.bf16.mxu0 0
  %4772 = vmatpush1.bf16.msra.mxu0 0
  %4773 = vmatprep.subr.bf16.mxu0 0
  %4774 = vmatpush1.bf16.msra.mxu0 0
  %4775 = vmatprep.subr.bf16.mxu0 0
  %4776 = vmatpush1.bf16.msra.mxu0 0
  %4777 = vmatprep.subr.bf16.mxu0 0
  %4778 = vmatpush1.bf16.msra.mxu0 0
  %4779 = vmatprep.subr.bf16.mxu0 0
  %4780 = vmatpush1.bf16.msra.mxu0 0
  %4781 = vmatprep.subr.bf16.mxu0 0
  %4782 = vmatpush1.bf16.msra.mxu0 0
  %4783 = vmatprep.subr.bf16.mxu0 0
  %4784 = vmatpush1.bf16.msra.mxu0 0
  %4785 = vmatprep.subr.bf16.mxu0 0
  %4786 = vmatpush1.bf16.msra.mxu0 0
  %4787 = vmatprep.subr.bf16.mxu0 0
  %4788 = vmatpush1.bf16.msra.mxu0 0
  %4789 = vmatprep.subr.bf16.mxu0 0
  %4790 = vmatpush1.bf16.msra.mxu0 0
  %4791 = vmatprep.subr.bf16.mxu0 0
  %4792 = vmatpush1.bf16.msra.mxu0 0
  %4793 = vmatprep.mubr.bf16.mxu0 0
  %4794 = vmatmul.mubr.bf16.gmra.mrb[0].mxu0 %v4753
  %v4795 = vpop.f32.mrb[0].mxu0
  %v4796 = vadd.f32 0.0, %v4795
  %v4797 = vpop.f32.mrb[0].mxu0
  %v4798 = vpop.f32.mrb[0].mxu0
  %v4799 = vadd.f32 0.0, %v4798
  %v4800 = vpop.f32.mrb[0].mxu0
  %4801 = vmatprep.mubr.bf16.mxu0 0
  %4802 = vmatmul.mubr.bf16.gmra.mrb[0].mxu0 %v4756
  %v4803 = vpop.f32.mrb[0].mxu0
  %v4804 = vadd.f32 0.0, %v4803
  %v4805 = vpop.f32.mrb[0].mxu0
  %v4806 = vpop.f32.mrb[0].mxu0
  %v4807 = vpop.f32.mrb[0].mxu0
  %4808 = vdwg.mxu0
  %v4815 = vcombine.high %v4739, %v4739
  %v4817 = vunpack.c.l.s4 1966171168
  %v4818 = vunpack.c.0.s8 %v4817
  %v4819 = vlaneseq
  %v4820 = vshrl.u32 %v4819, 7
  %v4821 = vsub.s32 %v4818, %v4820
  %v4822 = vrot.slane %v4739, %v4821
  %v4824 = vunpack.c.l.s4 1966171168
  %v4825 = vunpack.c.0.s8 %v4824
  %v4826 = vlaneseq
  %v4827 = vshrl.u32 %v4826, 7
  %v4828 = vsub.s32 %v4825, %v4827
  %v4829 = vrot.slane %v4815, %v4828
  %v4830 = vcombine.high %v4822, %v4822
  %v4831 = vcombine.high %v4829, %v4829
  %v4833 = vunpack.c.l.s4 1966171168
  %v4834 = vunpack.c.0.s8 %v4833
  %v4835 = vlaneseq
  %v4836 = vshrl.u32 %v4835, 7
  %v4837 = vsub.s32 %v4834, %v4836
  %v4838 = vrot.slane %v4822, %v4837
  %v4840 = vunpack.c.l.s4 1966171168
  %v4841 = vunpack.c.0.s8 %v4840
  %v4842 = vlaneseq
  %v4843 = vshrl.u32 %v4842, 7
  %v4844 = vsub.s32 %v4841, %v4843
  %v4845 = vrot.slane %v4829, %v4844
  %v4847 = vunpack.c.l.s4 1966171168
  %v4848 = vunpack.c.0.s8 %v4847
  %v4849 = vlaneseq
  %v4850 = vshrl.u32 %v4849, 7
  %v4851 = vsub.s32 %v4848, %v4850
  %v4852 = vrot.slane %v4830, %v4851
  %v4854 = vunpack.c.l.s4 1966171168
  %v4855 = vunpack.c.0.s8 %v4854
  %v4856 = vlaneseq
  %v4857 = vshrl.u32 %v4856, 7
  %v4858 = vsub.s32 %v4855, %v4857
  %v4859 = vrot.slane %v4831, %v4858
  %v4860 = vcombine.high %v4838, %v4838
  %v4861 = vcombine.high %v4845, %v4845
  %v4862 = vcombine.high %v4852, %v4852
  %v4863 = vcombine.high %v4859, %v4859
  %v4864 = vcombine.high %v4742, %v4742
  %v4866 = vunpack.c.l.s4 1966171168
  %v4867 = vunpack.c.0.s8 %v4866
  %v4868 = vlaneseq
  %v4869 = vshrl.u32 %v4868, 7
  %v4870 = vsub.s32 %v4867, %v4869
  %v4871 = vrot.slane %v4742, %v4870
  %v4873 = vunpack.c.l.s4 1966171168
  %v4874 = vunpack.c.0.s8 %v4873
  %v4875 = vlaneseq
  %v4876 = vshrl.u32 %v4875, 7
  %v4877 = vsub.s32 %v4874, %v4876
  %v4878 = vrot.slane %v4864, %v4877
  %v4879 = vcombine.high %v4871, %v4871
  %v4880 = vcombine.high %v4878, %v4878
  %v4882 = vunpack.c.l.s4 1966171168
  %v4883 = vunpack.c.0.s8 %v4882
  %v4884 = vlaneseq
  %v4885 = vshrl.u32 %v4884, 7
  %v4886 = vsub.s32 %v4883, %v4885
  %v4887 = vrot.slane %v4871, %v4886
  %v4889 = vunpack.c.l.s4 1966171168
  %v4890 = vunpack.c.0.s8 %v4889
  %v4891 = vlaneseq
  %v4892 = vshrl.u32 %v4891, 7
  %v4893 = vsub.s32 %v4890, %v4892
  %v4894 = vrot.slane %v4878, %v4893
  %v4896 = vunpack.c.l.s4 1966171168
  %v4897 = vunpack.c.0.s8 %v4896
  %v4898 = vlaneseq
  %v4899 = vshrl.u32 %v4898, 7
  %v4900 = vsub.s32 %v4897, %v4899
  %v4901 = vrot.slane %v4879, %v4900
  %v4903 = vunpack.c.l.s4 1966171168
  %v4904 = vunpack.c.0.s8 %v4903
  %v4905 = vlaneseq
  %v4906 = vshrl.u32 %v4905, 7
  %v4907 = vsub.s32 %v4904, %v4906
  %v4908 = vrot.slane %v4880, %v4907
  %v4909 = vcombine.high %v4887, %v4887
  %v4910 = vcombine.high %v4894, %v4894
  %v4911 = vcombine.high %v4901, %v4901
  %v4912 = vcombine.high %v4908, %v4908
  %v4914 = vunpack.c.l.s4 1966171168
  %v4915 = vunpack.c.0.s8 %v4914
  %v4916 = vlaneseq
  %v4917 = vshrl.u32 %v4916, 7
  %v4918 = vsub.s32 %v4915, %v4917
  %v4919 = vrot.slane %v4747, %v4918
  %v4921 = vunpack.c.l.s4 1966171168
  %v4922 = vunpack.c.0.s8 %v4921
  %v4923 = vlaneseq
  %v4924 = vshrl.u32 %v4923, 7
  %v4925 = vsub.s32 %v4922, %v4924
  %v4926 = vrot.slane %v4919, %v4925
  %v4927 = vcombine.high %v4796, %v4796
  %v4929 = vunpack.c.l.s4 1966171168
  %v4930 = vunpack.c.0.s8 %v4929
  %v4931 = vlaneseq
  %v4932 = vshrl.u32 %v4931, 7
  %v4933 = vsub.s32 %v4930, %v4932
  %v4934 = vrot.slane %v4796, %v4933
  %v4936 = vunpack.c.l.s4 1966171168
  %v4937 = vunpack.c.0.s8 %v4936
  %v4938 = vlaneseq
  %v4939 = vshrl.u32 %v4938, 7
  %v4940 = vsub.s32 %v4937, %v4939
  %v4941 = vrot.slane %v4927, %v4940
  %v4942 = vcombine.high %v4934, %v4934
  %v4943 = vcombine.high %v4941, %v4941
  %v4945 = vunpack.c.l.s4 1966171168
  %v4946 = vunpack.c.0.s8 %v4945
  %v4947 = vlaneseq
  %v4948 = vshrl.u32 %v4947, 7
  %v4949 = vsub.s32 %v4946, %v4948
  %v4950 = vrot.slane %v4934, %v4949
  %v4952 = vunpack.c.l.s4 1966171168
  %v4953 = vunpack.c.0.s8 %v4952
  %v4954 = vlaneseq
  %v4955 = vshrl.u32 %v4954, 7
  %v4956 = vsub.s32 %v4953, %v4955
  %v4957 = vrot.slane %v4941, %v4956
  %v4959 = vunpack.c.l.s4 1966171168
  %v4960 = vunpack.c.0.s8 %v4959
  %v4961 = vlaneseq
  %v4962 = vshrl.u32 %v4961, 7
  %v4963 = vsub.s32 %v4960, %v4962
  %v4964 = vrot.slane %v4942, %v4963
  %v4966 = vunpack.c.l.s4 1966171168
  %v4967 = vunpack.c.0.s8 %v4966
  %v4968 = vlaneseq
  %v4969 = vshrl.u32 %v4968, 7
  %v4970 = vsub.s32 %v4967, %v4969
  %v4971 = vrot.slane %v4943, %v4970
  %v4972 = vcombine.high %v4950, %v4950
  %v4973 = vcombine.high %v4957, %v4957
  %v4974 = vcombine.high %v4964, %v4964
  %v4975 = vcombine.high %v4971, %v4971
  %v4976 = vcombine.high %v4799, %v4799
  %v4978 = vunpack.c.l.s4 1966171168
  %v4979 = vunpack.c.0.s8 %v4978
  %v4980 = vlaneseq
  %v4981 = vshrl.u32 %v4980, 7
  %v4982 = vsub.s32 %v4979, %v4981
  %v4983 = vrot.slane %v4799, %v4982
  %v4985 = vunpack.c.l.s4 1966171168
  %v4986 = vunpack.c.0.s8 %v4985
  %v4987 = vlaneseq
  %v4988 = vshrl.u32 %v4987, 7
  %v4989 = vsub.s32 %v4986, %v4988
  %v4990 = vrot.slane %v4976, %v4989
  %v4991 = vcombine.high %v4983, %v4983
  %v4992 = vcombine.high %v4990, %v4990
  %v4994 = vunpack.c.l.s4 1966171168
  %v4995 = vunpack.c.0.s8 %v4994
  %v4996 = vlaneseq
  %v4997 = vshrl.u32 %v4996, 7
  %v4998 = vsub.s32 %v4995, %v4997
  %v4999 = vrot.slane %v4983, %v4998
  %v5001 = vunpack.c.l.s4 1966171168
  %v5002 = vunpack.c.0.s8 %v5001
  %v5003 = vlaneseq
  %v5004 = vshrl.u32 %v5003, 7
  %v5005 = vsub.s32 %v5002, %v5004
  %v5006 = vrot.slane %v4990, %v5005
  %v5008 = vunpack.c.l.s4 1966171168
  %v5009 = vunpack.c.0.s8 %v5008
  %v5010 = vlaneseq
  %v5011 = vshrl.u32 %v5010, 7
  %v5012 = vsub.s32 %v5009, %v5011
  %v5013 = vrot.slane %v4991, %v5012
  %v5015 = vunpack.c.l.s4 1966171168
  %v5016 = vunpack.c.0.s8 %v5015
  %v5017 = vlaneseq
  %v5018 = vshrl.u32 %v5017, 7
  %v5019 = vsub.s32 %v5016, %v5018
  %v5020 = vrot.slane %v4992, %v5019
  %v5021 = vcombine.high %v4999, %v4999
  %v5022 = vcombine.high %v5006, %v5006
  %v5023 = vcombine.high %v5013, %v5013
  %v5024 = vcombine.high %v5020, %v5020
  %v5026 = vunpack.c.l.s4 1966171168
  %v5027 = vunpack.c.0.s8 %v5026
  %v5028 = vlaneseq
  %v5029 = vshrl.u32 %v5028, 7
  %v5030 = vsub.s32 %v5027, %v5029
  %v5031 = vrot.slane %v4804, %v5030
  %v5033 = vunpack.c.l.s4 1966171168
  %v5034 = vunpack.c.0.s8 %v5033
  %v5035 = vlaneseq
  %v5036 = vshrl.u32 %v5035, 7
  %v5037 = vsub.s32 %v5034, %v5036
  %v5038 = vrot.slane %v5031, %v5037
  %v5039 = vcombine.low %v4838, %v4852
  %v5040 = vcombine.low %v4860, %v4862
  %v5041 = vcombine.low %v4845, %v4859
  %v5042 = vcombine.low %v4861, %v4863
  %v5044 = vunpack.c.l.s4 1966171168
  %v5045 = vunpack.c.0.s8 %v5044
  %v5046 = vlaneseq
  %v5047 = vshrl.u32 %v5046, 7
  %v5048 = vsub.s32 %v5045, %v5047
  %v5049 = vrot.slane %v5039, %v5048
  %v5051 = vunpack.c.l.s4 1966171168
  %v5052 = vunpack.c.0.s8 %v5051
  %v5053 = vlaneseq
  %v5054 = vshrl.u32 %v5053, 7
  %v5055 = vsub.s32 %v5052, %v5054
  %v5056 = vrot.slane %v5040, %v5055
  %v5058 = vunpack.c.l.s4 1966171168
  %v5059 = vunpack.c.0.s8 %v5058
  %v5060 = vlaneseq
  %v5061 = vshrl.u32 %v5060, 7
  %v5062 = vsub.s32 %v5059, %v5061
  %v5063 = vrot.slane %v5041, %v5062
  %v5065 = vunpack.c.l.s4 1966171168
  %v5066 = vunpack.c.0.s8 %v5065
  %v5067 = vlaneseq
  %v5068 = vshrl.u32 %v5067, 7
  %v5069 = vsub.s32 %v5066, %v5068
  %v5070 = vrot.slane %v5042, %v5069
  %v5071 = vcombine.low %v5049, %v5056
  %v5072 = vcombine.low %v5063, %v5070
  %v5074 = vunpack.c.l.s4 1966171168
  %v5075 = vunpack.c.0.s8 %v5074
  %v5076 = vlaneseq
  %v5077 = vshrl.u32 %v5076, 7
  %v5078 = vsub.s32 %v5075, %v5077
  %v5079 = vrot.slane %v5071, %v5078
  %v5081 = vunpack.c.l.s4 1966171168
  %v5082 = vunpack.c.0.s8 %v5081
  %v5083 = vlaneseq
  %v5084 = vshrl.u32 %v5083, 7
  %v5085 = vsub.s32 %v5082, %v5084
  %v5086 = vrot.slane %v5072, %v5085
  %v5087 = vcombine.low %v5079, %v5086
  %v5088 = vcombine.low %v4887, %v4901
  %v5089 = vcombine.low %v4909, %v4911
  %v5090 = vcombine.low %v4894, %v4908
  %v5091 = vcombine.low %v4910, %v4912
  %v5093 = vunpack.c.l.s4 1966171168
  %v5094 = vunpack.c.0.s8 %v5093
  %v5095 = vlaneseq
  %v5096 = vshrl.u32 %v5095, 7
  %v5097 = vsub.s32 %v5094, %v5096
  %v5098 = vrot.slane %v5088, %v5097
  %v5100 = vunpack.c.l.s4 1966171168
  %v5101 = vunpack.c.0.s8 %v5100
  %v5102 = vlaneseq
  %v5103 = vshrl.u32 %v5102, 7
  %v5104 = vsub.s32 %v5101, %v5103
  %v5105 = vrot.slane %v5089, %v5104
  %v5107 = vunpack.c.l.s4 1966171168
  %v5108 = vunpack.c.0.s8 %v5107
  %v5109 = vlaneseq
  %v5110 = vshrl.u32 %v5109, 7
  %v5111 = vsub.s32 %v5108, %v5110
  %v5112 = vrot.slane %v5090, %v5111
  %v5114 = vunpack.c.l.s4 1966171168
  %v5115 = vunpack.c.0.s8 %v5114
  %v5116 = vlaneseq
  %v5117 = vshrl.u32 %v5116, 7
  %v5118 = vsub.s32 %v5115, %v5117
  %v5119 = vrot.slane %v5091, %v5118
  %v5120 = vcombine.low %v5098, %v5105
  %v5121 = vcombine.low %v5112, %v5119
  %v5123 = vunpack.c.l.s4 1966171168
  %v5124 = vunpack.c.0.s8 %v5123
  %v5125 = vlaneseq
  %v5126 = vshrl.u32 %v5125, 7
  %v5127 = vsub.s32 %v5124, %v5126
  %v5128 = vrot.slane %v5120, %v5127
  %v5130 = vunpack.c.l.s4 1966171168
  %v5131 = vunpack.c.0.s8 %v5130
  %v5132 = vlaneseq
  %v5133 = vshrl.u32 %v5132, 7
  %v5134 = vsub.s32 %v5131, %v5133
  %v5135 = vrot.slane %v5121, %v5134
  %v5136 = vcombine.low %v5128, %v5135
  %v5137 = vcombine.low %v4926, %v4950
  %v5138 = vcombine.low %v4964, %v4972
  %v5139 = vcombine.low %v4974, %v4957
  %v5140 = vcombine.low %v4971, %v4973
  %v5142 = vunpack.c.l.s4 1966171168
  %v5143 = vunpack.c.0.s8 %v5142
  %v5144 = vlaneseq
  %v5145 = vshrl.u32 %v5144, 7
  %v5146 = vsub.s32 %v5143, %v5145
  %v5147 = vrot.slane %v5137, %v5146
  %v5149 = vunpack.c.l.s4 1966171168
  %v5150 = vunpack.c.0.s8 %v5149
  %v5151 = vlaneseq
  %v5152 = vshrl.u32 %v5151, 7
  %v5153 = vsub.s32 %v5150, %v5152
  %v5154 = vrot.slane %v5138, %v5153
  %v5156 = vunpack.c.l.s4 1966171168
  %v5157 = vunpack.c.0.s8 %v5156
  %v5158 = vlaneseq
  %v5159 = vshrl.u32 %v5158, 7
  %v5160 = vsub.s32 %v5157, %v5159
  %v5161 = vrot.slane %v5139, %v5160
  %v5163 = vunpack.c.l.s4 1966171168
  %v5164 = vunpack.c.0.s8 %v5163
  %v5165 = vlaneseq
  %v5166 = vshrl.u32 %v5165, 7
  %v5167 = vsub.s32 %v5164, %v5166
  %v5168 = vrot.slane %v5140, %v5167
  %v5169 = vcombine.low %v5147, %v5154
  %v5170 = vcombine.low %v5161, %v5168
  %v5172 = vunpack.c.l.s4 1966171168
  %v5173 = vunpack.c.0.s8 %v5172
  %v5174 = vlaneseq
  %v5175 = vshrl.u32 %v5174, 7
  %v5176 = vsub.s32 %v5173, %v5175
  %v5177 = vrot.slane %v5169, %v5176
  %v5179 = vunpack.c.l.s4 1966171168
  %v5180 = vunpack.c.0.s8 %v5179
  %v5181 = vlaneseq
  %v5182 = vshrl.u32 %v5181, 7
  %v5183 = vsub.s32 %v5180, %v5182
  %v5184 = vrot.slane %v5170, %v5183
  %v5185 = vcombine.low %v5177, %v5184
  %v5186 = vcombine.low %v4975, %v4999
  %v5187 = vcombine.low %v5013, %v5021
  %v5188 = vcombine.low %v5023, %v5006
  %v5189 = vcombine.low %v5020, %v5022
  %v5191 = vunpack.c.l.s4 1966171168
  %v5192 = vunpack.c.0.s8 %v5191
  %v5193 = vlaneseq
  %v5194 = vshrl.u32 %v5193, 7
  %v5195 = vsub.s32 %v5192, %v5194
  %v5196 = vrot.slane %v5186, %v5195
  %v5198 = vunpack.c.l.s4 1966171168
  %v5199 = vunpack.c.0.s8 %v5198
  %v5200 = vlaneseq
  %v5201 = vshrl.u32 %v5200, 7
  %v5202 = vsub.s32 %v5199, %v5201
  %v5203 = vrot.slane %v5187, %v5202
  %v5205 = vunpack.c.l.s4 1966171168
  %v5206 = vunpack.c.0.s8 %v5205
  %v5207 = vlaneseq
  %v5208 = vshrl.u32 %v5207, 7
  %v5209 = vsub.s32 %v5206, %v5208
  %v5210 = vrot.slane %v5188, %v5209
  %v5212 = vunpack.c.l.s4 1966171168
  %v5213 = vunpack.c.0.s8 %v5212
  %v5214 = vlaneseq
  %v5215 = vshrl.u32 %v5214, 7
  %v5216 = vsub.s32 %v5213, %v5215
  %v5217 = vrot.slane %v5189, %v5216
  %v5218 = vcombine.low %v5196, %v5203
  %v5219 = vcombine.low %v5210, %v5217
  %v5221 = vunpack.c.l.s4 1966171168
  %v5222 = vunpack.c.0.s8 %v5221
  %v5223 = vlaneseq
  %v5224 = vshrl.u32 %v5223, 7
  %v5225 = vsub.s32 %v5222, %v5224
  %v5226 = vrot.slane %v5218, %v5225
  %v5228 = vunpack.c.l.s4 1966171168
  %v5229 = vunpack.c.0.s8 %v5228
  %v5230 = vlaneseq
  %v5231 = vshrl.u32 %v5230, 7
  %v5232 = vsub.s32 %v5229, %v5231
  %v5233 = vrot.slane %v5219, %v5232
  %v5234 = vcombine.low %v5226, %v5233
  %v5235 = vcombine.low %v5024, %v5038
  %v5237 = vunpack.c.l.s4 1966171168
  %v5238 = vunpack.c.0.s8 %v5237
  %v5239 = vlaneseq
  %v5240 = vshrl.u32 %v5239, 7
  %v5241 = vsub.s32 %v5238, %v5240
  %v5242 = vrot.slane %v5235, %v5241
  %v5244 = vunpack.c.l.s4 1966171168
  %v5245 = vunpack.c.0.s8 %v5244
  %v5246 = vlaneseq
  %v5247 = vshrl.u32 %v5246, 7
  %v5248 = vsub.s32 %v5245, %v5247
  %v5249 = vrot.slane %v5242, %v5248
  %v5255 = vpack.c.bf16 %v5136, %v5087
  %v5256 = vpack.c.bf16 %v5234, %v5185
  %v5257 = vpack.c.bf16 %v5249, %v5249
  %s5258 = scalar_lea.vmem %s8, 4
  %v5259 = vld [vmem:[%s5258] sm:$0xf]
  %v5261 = vsel %vm1893, %v5255, 0
  %v5264 = vsel %vm1893, %v5256, 0
  %v5267 = vsel %vm1893, %v5257, 0
  %vm5269 = vcmask 1043456
  %v5271 = vsel %vm5269, %v5259, 0
  %5273 = vmatprep.subr.bf16.mxu0 0
  %5274 = vmatpush1.bf16.msra.mxu0 %v5271
  %5275 = vmatprep.subr.bf16.mxu0 0
  %5276 = vmatpush1.bf16.msra.mxu0 0
  %5277 = vmatprep.subr.bf16.mxu0 0
  %5278 = vmatpush1.bf16.msra.mxu0 0
  %5279 = vmatprep.subr.bf16.mxu0 0
  %5280 = vmatpush1.bf16.msra.mxu0 0
  %5281 = vmatprep.subr.bf16.mxu0 0
  %5282 = vmatpush1.bf16.msra.mxu0 0
  %5283 = vmatprep.subr.bf16.mxu0 0
  %5284 = vmatpush1.bf16.msra.mxu0 0
  %5285 = vmatprep.subr.bf16.mxu0 0
  %5286 = vmatpush1.bf16.msra.mxu0 0
  %5287 = vmatprep.subr.bf16.mxu0 0
  %5288 = vmatpush1.bf16.msra.mxu0 0
  %5289 = vmatprep.subr.bf16.mxu0 0
  %5290 = vmatpush1.bf16.msra.mxu0 0
  %5291 = vmatprep.subr.bf16.mxu0 0
  %5292 = vmatpush1.bf16.msra.mxu0 0
  %5293 = vmatprep.subr.bf16.mxu0 0
  %5294 = vmatpush1.bf16.msra.mxu0 0
  %5295 = vmatprep.subr.bf16.mxu0 0
  %5296 = vmatpush1.bf16.msra.mxu0 0
  %5297 = vmatprep.subr.bf16.mxu0 0
  %5298 = vmatpush1.bf16.msra.mxu0 0
  %5299 = vmatprep.subr.bf16.mxu0 0
  %5300 = vmatpush1.bf16.msra.mxu0 0
  %5301 = vmatprep.subr.bf16.mxu0 0
  %5302 = vmatpush1.bf16.msra.mxu0 0
  %5303 = vmatprep.subr.bf16.mxu0 0
  %5304 = vmatpush1.bf16.msra.mxu0 0
  %5305 = vmatprep.mubr.bf16.mxu0 0
  %5306 = vmatmul.mubr.bf16.gmra.mrb[0].mxu0 %v5261
  %v5307 = vpop.f32.mrb[0].mxu0
  %v5308 = vadd.f32 0.0, %v5307
  %v5309 = vpop.f32.mrb[0].mxu0
  %v5310 = vpop.f32.mrb[0].mxu0
  %v5311 = vadd.f32 0.0, %v5310
  %v5312 = vpop.f32.mrb[0].mxu0
  %5313 = vmatprep.mubr.bf16.mxu0 0
  %5314 = vmatmul.mubr.bf16.gmra.mrb[0].mxu0 %v5264
  %v5315 = vpop.f32.mrb[0].mxu0
  %v5316 = vadd.f32 0.0, %v5315
  %v5317 = vpop.f32.mrb[0].mxu0
  %v5318 = vpop.f32.mrb[0].mxu0
  %v5319 = vadd.f32 0.0, %v5318
  %v5320 = vpop.f32.mrb[0].mxu0
  %5321 = vmatprep.mubr.bf16.mxu0 0
  %5322 = vmatmul.mubr.bf16.gmra.mrb[0].mxu0 %v5267
  %v5323 = vpop.f32.mrb[0].mxu0
  %v5324 = vadd.f32 0.0, %v5323
  %v5325 = vpop.f32.mrb[0].mxu0
  %v5326 = vpop.f32.mrb[0].mxu0
  %v5327 = vpop.f32.mrb[0].mxu0
  %5328 = vdwg.mxu0
  %v5330 = vsel %vm1893, %v2882, 0
  %v5333 = vsel %vm1893, %v2883, 0
  %v5336 = vsel %vm1893, %v2884, 0
  %v5339 = vsel %vm5269, %v2885, 0
  %5341 = vmatprep.subr.bf16.mxu0 0
  %5342 = vmatpush1.bf16.msra.mxu0 %v5339
  %5343 = vmatprep.subr.bf16.mxu0 0
  %5344 = vmatpush1.bf16.msra.mxu0 0
  %5345 = vmatprep.subr.bf16.mxu0 0
  %5346 = vmatpush1.bf16.msra.mxu0 0
  %5347 = vmatprep.subr.bf16.mxu0 0
  %5348 = vmatpush1.bf16.msra.mxu0 0
  %5349 = vmatprep.subr.bf16.mxu0 0
  %5350 = vmatpush1.bf16.msra.mxu0 0
  %5351 = vmatprep.subr.bf16.mxu0 0
  %5352 = vmatpush1.bf16.msra.mxu0 0
  %5353 = vmatprep.subr.bf16.mxu0 0
  %5354 = vmatpush1.bf16.msra.mxu0 0
  %5355 = vmatprep.subr.bf16.mxu0 0
  %5356 = vmatpush1.bf16.msra.mxu0 0
  %5357 = vmatprep.subr.bf16.mxu0 0
  %5358 = vmatpush1.bf16.msra.mxu0 0
  %5359 = vmatprep.subr.bf16.mxu0 0
  %5360 = vmatpush1.bf16.msra.mxu0 0
  %5361 = vmatprep.subr.bf16.mxu0 0
  %5362 = vmatpush1.bf16.msra.mxu0 0
  %5363 = vmatprep.subr.bf16.mxu0 0
  %5364 = vmatpush1.bf16.msra.mxu0 0
  %5365 = vmatprep.subr.bf16.mxu0 0
  %5366 = vmatpush1.bf16.msra.mxu0 0
  %5367 = vmatprep.subr.bf16.mxu0 0
  %5368 = vmatpush1.bf16.msra.mxu0 0
  %5369 = vmatprep.subr.bf16.mxu0 0
  %5370 = vmatpush1.bf16.msra.mxu0 0
  %5371 = vmatprep.subr.bf16.mxu0 0
  %5372 = vmatpush1.bf16.msra.mxu0 0
  %5373 = vmatprep.mubr.bf16.mxu0 0
  %5374 = vmatmul.mubr.bf16.gmra.mrb[0].mxu0 %v5330
  %v5375 = vpop.f32.mrb[0].mxu0
  %v5376 = vadd.f32 %v5308, %v5375
  %v5377 = vpop.f32.mrb[0].mxu0
  %v5378 = vpop.f32.mrb[0].mxu0
  %v5379 = vadd.f32 %v5311, %v5378
  %v5380 = vpop.f32.mrb[0].mxu0
  %5381 = vmatprep.mubr.bf16.mxu0 0
  %5382 = vmatmul.mubr.bf16.gmra.mrb[0].mxu0 %v5333
  %v5383 = vpop.f32.mrb[0].mxu0
  %v5384 = vadd.f32 %v5316, %v5383
  %v5385 = vpop.f32.mrb[0].mxu0
  %v5386 = vpop.f32.mrb[0].mxu0
  %v5387 = vadd.f32 %v5319, %v5386
  %v5388 = vpop.f32.mrb[0].mxu0
  %5389 = vmatprep.mubr.bf16.mxu0 0
  %5390 = vmatmul.mubr.bf16.gmra.mrb[0].mxu0 %v5336
  %v5391 = vpop.f32.mrb[0].mxu0
  %v5392 = vadd.f32 %v5324, %v5391
  %v5393 = vpop.f32.mrb[0].mxu0
  %v5394 = vpop.f32.mrb[0].mxu0
  %v5395 = vpop.f32.mrb[0].mxu0
  %5396 = vdwg.mxu0
  %s5397 = scalar_lea.vmem %s2, 32
  %v5398 = vld [vmem:[%s5397] sm:$0xf]
  %v5399 = vld [vmem:[%s5397 + $0x4] sm:$0xf]
  %v5400 = vld [vmem:[%s5397 + $0x8] sm:$0xf]
  %v5401 = vld [vmem:[%s5397 + $0xc] sm:$0xf]
  %s5402 = scalar_lea.vmem %s5, 2
  %v5403 = vld [vmem:[%s5402] sm:$0x1]
  %v5405 = vlaneseq
  %v5406 = vshrl.u32 %v5405, 7
  %v5407 = vsub.s32 0, %v5406
  %v5408 = vrot.slane %v5403, %v5407
  %v5414 = vunpack.c.l.b16 %v5398
  %v5415 = vunpack.c.l.b16 %v5399
  %v5416 = vunpack.c.l.b16 %v5400
  %v5417 = vunpack.c.l.b16 %v5401
  %v5418 = vpack.c.b16 %v5415, %v5414
  %v5419 = vpack.c.b16 %v5417, %v5416
  %5422 = vmatprep.subr.bf16.mxu0 0
  %5423 = vmatpush1.bf16.msra.mxu0 %v5418
  %5424 = vmatprep.subr.bf16.mxu0 0
  %5425 = vmatpush1.bf16.msra.mxu0 %v5419
  %5426 = vmatprep.subr.bf16.mxu0 0
  %5427 = vmatpush1.bf16.msra.mxu0 0
  %5428 = vmatprep.subr.bf16.mxu0 0
  %5429 = vmatpush1.bf16.msra.mxu0 0
  %5430 = vmatprep.subr.bf16.mxu0 0
  %5431 = vmatpush1.bf16.msra.mxu0 0
  %5432 = vmatprep.subr.bf16.mxu0 0
  %5433 = vmatpush1.bf16.msra.mxu0 0
  %5434 = vmatprep.subr.bf16.mxu0 0
  %5435 = vmatpush1.bf16.msra.mxu0 0
  %5436 = vmatprep.subr.bf16.mxu0 0
  %5437 = vmatpush1.bf16.msra.mxu0 0
  %5438 = vmatprep.subr.bf16.mxu0 0
  %5439 = vmatpush1.bf16.msra.mxu0 0
  %5440 = vmatprep.subr.bf16.mxu0 0
  %5441 = vmatpush1.bf16.msra.mxu0 0
  %5442 = vmatprep.subr.bf16.mxu0 0
  %5443 = vmatpush1.bf16.msra.mxu0 0
  %5444 = vmatprep.subr.bf16.mxu0 0
  %5445 = vmatpush1.bf16.msra.mxu0 0
  %5446 = vmatprep.subr.bf16.mxu0 0
  %5447 = vmatpush1.bf16.msra.mxu0 0
  %5448 = vmatprep.subr.bf16.mxu0 0
  %5449 = vmatpush1.bf16.msra.mxu0 0
  %5450 = vmatprep.subr.bf16.mxu0 0
  %5451 = vmatpush1.bf16.msra.mxu0 0
  %5452 = vmatprep.subr.bf16.mxu0 0
  %5453 = vmatpush1.bf16.msra.mxu0 0
  %5454 = vmatprep.mubr.bf16.mxu0 0
  %5455 = vmatmul.mubr.bf16.gmra.mrb[0].mxu0 %v529
  %v5456 = vpop.f32.mrb[0].mxu0
  %v5457 = vadd.f32 %v5408, %v5456
  %v5458 = vpop.f32.mrb[0].mxu0
  %v5459 = vpop.f32.mrb[0].mxu0
  %v5460 = vadd.f32 %v5408, %v5459
  %v5461 = vpop.f32.mrb[0].mxu0
  %5462 = vmatprep.mubr.bf16.mxu0 0
  %5463 = vmatmul.mubr.bf16.gmra.mrb[0].mxu0 %v532
  %v5464 = vpop.f32.mrb[0].mxu0
  %v5465 = vadd.f32 %v5408, %v5464
  %v5466 = vpop.f32.mrb[0].mxu0
  %v5467 = vpop.f32.mrb[0].mxu0
  %v5468 = vadd.f32 %v5408, %v5467
  %v5469 = vpop.f32.mrb[0].mxu0
  %5470 = vmatprep.mubr.bf16.mxu0 0
  %5471 = vmatmul.mubr.bf16.gmra.mrb[0].mxu0 %v535
  %v5472 = vpop.f32.mrb[0].mxu0
  %v5473 = vadd.f32 %v5408, %v5472
  %v5474 = vpop.f32.mrb[0].mxu0
  %v5475 = vpop.f32.mrb[0].mxu0
  %v5476 = vpop.f32.mrb[0].mxu0
  %5477 = vdwg.mxu0
  %s5478 = scalar_lea.vmem %s3, 32
  %v5479 = vld [vmem:[%s5478] sm:$0xf]
  %v5480 = vld [vmem:[%s5478 + $0x4] sm:$0xf]
  %v5481 = vld [vmem:[%s5478 + $0x8] sm:$0xf]
  %v5482 = vld [vmem:[%s5478 + $0xc] sm:$0xf]
  %s5483 = scalar_lea.vmem %s6, 2
  %v5484 = vld [vmem:[%s5483] sm:$0x1]
  %v5486 = vlaneseq
  %v5487 = vshrl.u32 %v5486, 7
  %v5488 = vsub.s32 0, %v5487
  %v5489 = vrot.slane %v5484, %v5488
  %v5495 = vunpack.c.l.b16 %v5479
  %v5496 = vunpack.c.l.b16 %v5480
  %v5497 = vunpack.c.l.b16 %v5481
  %v5498 = vunpack.c.l.b16 %v5482
  %v5499 = vpack.c.b16 %v5496, %v5495
  %v5500 = vpack.c.b16 %v5498, %v5497
  %5503 = vmatprep.subr.bf16.mxu0 0
  %5504 = vmatpush1.bf16.msra.mxu0 %v5499
  %5505 = vmatprep.subr.bf16.mxu0 0
  %5506 = vmatpush1.bf16.msra.mxu0 %v5500
  %5507 = vmatprep.subr.bf16.mxu0 0
  %5508 = vmatpush1.bf16.msra.mxu0 0
  %5509 = vmatprep.subr.bf16.mxu0 0
  %5510 = vmatpush1.bf16.msra.mxu0 0
  %5511 = vmatprep.subr.bf16.mxu0 0
  %5512 = vmatpush1.bf16.msra.mxu0 0
  %5513 = vmatprep.subr.bf16.mxu0 0
  %5514 = vmatpush1.bf16.msra.mxu0 0
  %5515 = vmatprep.subr.bf16.mxu0 0
  %5516 = vmatpush1.bf16.msra.mxu0 0
  %5517 = vmatprep.subr.bf16.mxu0 0
  %5518 = vmatpush1.bf16.msra.mxu0 0
  %5519 = vmatprep.subr.bf16.mxu0 0
  %5520 = vmatpush1.bf16.msra.mxu0 0
  %5521 = vmatprep.subr.bf16.mxu0 0
  %5522 = vmatpush1.bf16.msra.mxu0 0
  %5523 = vmatprep.subr.bf16.mxu0 0
  %5524 = vmatpush1.bf16.msra.mxu0 0
  %5525 = vmatprep.subr.bf16.mxu0 0
  %5526 = vmatpush1.bf16.msra.mxu0 0
  %5527 = vmatprep.subr.bf16.mxu0 0
  %5528 = vmatpush1.bf16.msra.mxu0 0
  %5529 = vmatprep.subr.bf16.mxu0 0
  %5530 = vmatpush1.bf16.msra.mxu0 0
  %5531 = vmatprep.subr.bf16.mxu0 0
  %5532 = vmatpush1.bf16.msra.mxu0 0
  %5533 = vmatprep.subr.bf16.mxu0 0
  %5534 = vmatpush1.bf16.msra.mxu0 0
  %5535 = vmatprep.mubr.bf16.mxu0 0
  %5536 = vmatmul.mubr.bf16.gmra.mrb[0].mxu0 %v529
  %v5537 = vpop.f32.mrb[0].mxu0
  %v5538 = vadd.f32 %v5489, %v5537
  %v5539 = vpop.f32.mrb[0].mxu0
  %v5540 = vpop.f32.mrb[0].mxu0
  %v5541 = vadd.f32 %v5489, %v5540
  %v5542 = vpop.f32.mrb[0].mxu0
  %5543 = vmatprep.mubr.bf16.mxu0 0
  %5544 = vmatmul.mubr.bf16.gmra.mrb[0].mxu0 %v532
  %v5545 = vpop.f32.mrb[0].mxu0
  %v5546 = vadd.f32 %v5489, %v5545
  %v5547 = vpop.f32.mrb[0].mxu0
  %v5548 = vpop.f32.mrb[0].mxu0
  %v5549 = vadd.f32 %v5489, %v5548
  %v5550 = vpop.f32.mrb[0].mxu0
  %5551 = vmatprep.mubr.bf16.mxu0 0
  %5552 = vmatmul.mubr.bf16.gmra.mrb[0].mxu0 %v535
  %v5553 = vpop.f32.mrb[0].mxu0
  %v5554 = vadd.f32 %v5489, %v5553
  %v5555 = vpop.f32.mrb[0].mxu0
  %v5556 = vpop.f32.mrb[0].mxu0
  %v5557 = vpop.f32.mrb[0].mxu0
  %5558 = vdwg.mxu0
  %s5559 = scalar_lea.vmem %s4, 32
  %v5560 = vld [vmem:[%s5559] sm:$0xf]
  %v5561 = vld [vmem:[%s5559 + $0x4] sm:$0xf]
  %v5562 = vld [vmem:[%s5559 + $0x8] sm:$0xf]
  %v5563 = vld [vmem:[%s5559 + $0xc] sm:$0xf]
  %s5564 = scalar_lea.vmem %s7, 2
  %v5565 = vld [vmem:[%s5564] sm:$0x1]
  %v5567 = vlaneseq
  %v5568 = vshrl.u32 %v5567, 7
  %v5569 = vsub.s32 0, %v5568
  %v5570 = vrot.slane %v5565, %v5569
  %v5576 = vunpack.c.l.b16 %v5560
  %v5577 = vunpack.c.l.b16 %v5561
  %v5578 = vunpack.c.l.b16 %v5562
  %v5579 = vunpack.c.l.b16 %v5563
  %v5580 = vpack.c.b16 %v5577, %v5576
  %v5581 = vpack.c.b16 %v5579, %v5578
  %5584 = vmatprep.subr.bf16.mxu0 0
  %5585 = vmatpush1.bf16.msra.mxu0 %v5580
  %5586 = vmatprep.subr.bf16.mxu0 0
  %5587 = vmatpush1.bf16.msra.mxu0 %v5581
  %5588 = vmatprep.subr.bf16.mxu0 0
  %5589 = vmatpush1.bf16.msra.mxu0 0
  %5590 = vmatprep.subr.bf16.mxu0 0
  %5591 = vmatpush1.bf16.msra.mxu0 0
  %5592 = vmatprep.subr.bf16.mxu0 0
  %5593 = vmatpush1.bf16.msra.mxu0 0
  %5594 = vmatprep.subr.bf16.mxu0 0
  %5595 = vmatpush1.bf16.msra.mxu0 0
  %5596 = vmatprep.subr.bf16.mxu0 0
  %5597 = vmatpush1.bf16.msra.mxu0 0
  %5598 = vmatprep.subr.bf16.mxu0 0
  %5599 = vmatpush1.bf16.msra.mxu0 0
  %5600 = vmatprep.subr.bf16.mxu0 0
  %5601 = vmatpush1.bf16.msra.mxu0 0
  %5602 = vmatprep.subr.bf16.mxu0 0
  %5603 = vmatpush1.bf16.msra.mxu0 0
  %5604 = vmatprep.subr.bf16.mxu0 0
  %5605 = vmatpush1.bf16.msra.mxu0 0
  %5606 = vmatprep.subr.bf16.mxu0 0
  %5607 = vmatpush1.bf16.msra.mxu0 0
  %5608 = vmatprep.subr.bf16.mxu0 0
  %5609 = vmatpush1.bf16.msra.mxu0 0
  %5610 = vmatprep.subr.bf16.mxu0 0
  %5611 = vmatpush1.bf16.msra.mxu0 0
  %5612 = vmatprep.subr.bf16.mxu0 0
  %5613 = vmatpush1.bf16.msra.mxu0 0
  %5614 = vmatprep.subr.bf16.mxu0 0
  %5615 = vmatpush1.bf16.msra.mxu0 0
  %5616 = vmatprep.mubr.bf16.mxu0 0
  %5617 = vmatmul.mubr.bf16.gmra.mrb[0].mxu0 %v529
  %v5618 = vpop.f32.mrb[0].mxu0
  %v5619 = vadd.f32 %v5570, %v5618
  %v5620 = vpop.f32.mrb[0].mxu0
  %v5621 = vpop.f32.mrb[0].mxu0
  %v5622 = vadd.f32 %v5570, %v5621
  %v5623 = vpop.f32.mrb[0].mxu0
  %5624 = vmatprep.mubr.bf16.mxu0 0
  %5625 = vmatmul.mubr.bf16.gmra.mrb[0].mxu0 %v532
  %v5626 = vpop.f32.mrb[0].mxu0
  %v5627 = vadd.f32 %v5570, %v5626
  %v5628 = vpop.f32.mrb[0].mxu0
  %v5629 = vpop.f32.mrb[0].mxu0
  %v5630 = vadd.f32 %v5570, %v5629
  %v5631 = vpop.f32.mrb[0].mxu0
  %5632 = vmatprep.mubr.bf16.mxu0 0
  %5633 = vmatmul.mubr.bf16.gmra.mrb[0].mxu0 %v535
  %v5634 = vpop.f32.mrb[0].mxu0
  %v5635 = vadd.f32 %v5570, %v5634
  %v5636 = vpop.f32.mrb[0].mxu0
  %v5637 = vpop.f32.mrb[0].mxu0
  %v5638 = vpop.f32.mrb[0].mxu0
  %5639 = vdwg.mxu0
  %v5640 = vmul.f32 %v5457, 0.35355338
  %v5641 = vmul.f32 %v5460, 0.35355338
  %v5642 = vmul.f32 %v5465, 0.35355338
  %v5643 = vmul.f32 %v5468, 0.35355338
  %v5644 = vmul.f32 %v5473, 0.35355338
  %v5650 = vcombine.high %v5640, %v5640
  %v5652 = vunpack.c.l.s4 1966171168
  %v5653 = vunpack.c.0.s8 %v5652
  %v5654 = vlaneseq
  %v5655 = vshrl.u32 %v5654, 7
  %v5656 = vsub.s32 %v5653, %v5655
  %v5657 = vrot.slane %v5640, %v5656
  %v5659 = vunpack.c.l.s4 1966171168
  %v5660 = vunpack.c.0.s8 %v5659
  %v5661 = vlaneseq
  %v5662 = vshrl.u32 %v5661, 7
  %v5663 = vsub.s32 %v5660, %v5662
  %v5664 = vrot.slane %v5650, %v5663
  %v5665 = vcombine.high %v5657, %v5657
  %v5666 = vcombine.high %v5664, %v5664
  %v5668 = vunpack.c.l.s4 1966171168
  %v5669 = vunpack.c.0.s8 %v5668
  %v5670 = vlaneseq
  %v5671 = vshrl.u32 %v5670, 7
  %v5672 = vsub.s32 %v5669, %v5671
  %v5673 = vrot.slane %v5657, %v5672
  %v5675 = vunpack.c.l.s4 1966171168
  %v5676 = vunpack.c.0.s8 %v5675
  %v5677 = vlaneseq
  %v5678 = vshrl.u32 %v5677, 7
  %v5679 = vsub.s32 %v5676, %v5678
  %v5680 = vrot.slane %v5664, %v5679
  %v5682 = vunpack.c.l.s4 1966171168
  %v5683 = vunpack.c.0.s8 %v5682
  %v5684 = vlaneseq
  %v5685 = vshrl.u32 %v5684, 7
  %v5686 = vsub.s32 %v5683, %v5685
  %v5687 = vrot.slane %v5665, %v5686
  %v5689 = vunpack.c.l.s4 1966171168
  %v5690 = vunpack.c.0.s8 %v5689
  %v5691 = vlaneseq
  %v5692 = vshrl.u32 %v5691, 7
  %v5693 = vsub.s32 %v5690, %v5692
  %v5694 = vrot.slane %v5666, %v5693
  %v5695 = vcombine.high %v5673, %v5673
  %v5696 = vcombine.high %v5680, %v5680
  %v5697 = vcombine.high %v5687, %v5687
  %v5698 = vcombine.high %v5694, %v5694
  %v5699 = vcombine.high %v5641, %v5641
  %v5701 = vunpack.c.l.s4 1966171168
  %v5702 = vunpack.c.0.s8 %v5701
  %v5703 = vlaneseq
  %v5704 = vshrl.u32 %v5703, 7
  %v5705 = vsub.s32 %v5702, %v5704
  %v5706 = vrot.slane %v5641, %v5705
  %v5708 = vunpack.c.l.s4 1966171168
  %v5709 = vunpack.c.0.s8 %v5708
  %v5710 = vlaneseq
  %v5711 = vshrl.u32 %v5710, 7
  %v5712 = vsub.s32 %v5709, %v5711
  %v5713 = vrot.slane %v5699, %v5712
  %v5714 = vcombine.high %v5706, %v5706
  %v5715 = vcombine.high %v5713, %v5713
  %v5717 = vunpack.c.l.s4 1966171168
  %v5718 = vunpack.c.0.s8 %v5717
  %v5719 = vlaneseq
  %v5720 = vshrl.u32 %v5719, 7
  %v5721 = vsub.s32 %v5718, %v5720
  %v5722 = vrot.slane %v5706, %v5721
  %v5724 = vunpack.c.l.s4 1966171168
  %v5725 = vunpack.c.0.s8 %v5724
  %v5726 = vlaneseq
  %v5727 = vshrl.u32 %v5726, 7
  %v5728 = vsub.s32 %v5725, %v5727
  %v5729 = vrot.slane %v5713, %v5728
  %v5731 = vunpack.c.l.s4 1966171168
  %v5732 = vunpack.c.0.s8 %v5731
  %v5733 = vlaneseq
  %v5734 = vshrl.u32 %v5733, 7
  %v5735 = vsub.s32 %v5732, %v5734
  %v5736 = vrot.slane %v5714, %v5735
  %v5738 = vunpack.c.l.s4 1966171168
  %v5739 = vunpack.c.0.s8 %v5738
  %v5740 = vlaneseq
  %v5741 = vshrl.u32 %v5740, 7
  %v5742 = vsub.s32 %v5739, %v5741
  %v5743 = vrot.slane %v5715, %v5742
  %v5744 = vcombine.high %v5722, %v5722
  %v5745 = vcombine.high %v5729, %v5729
  %v5746 = vcombine.high %v5736, %v5736
  %v5747 = vcombine.high %v5743, %v5743
  %v5748 = vcombine.high %v5642, %v5642
  %v5750 = vunpack.c.l.s4 1966171168
  %v5751 = vunpack.c.0.s8 %v5750
  %v5752 = vlaneseq
  %v5753 = vshrl.u32 %v5752, 7
  %v5754 = vsub.s32 %v5751, %v5753
  %v5755 = vrot.slane %v5642, %v5754
  %v5757 = vunpack.c.l.s4 1966171168
  %v5758 = vunpack.c.0.s8 %v5757
  %v5759 = vlaneseq
  %v5760 = vshrl.u32 %v5759, 7
  %v5761 = vsub.s32 %v5758, %v5760
  %v5762 = vrot.slane %v5748, %v5761
  %v5763 = vcombine.high %v5755, %v5755
  %v5764 = vcombine.high %v5762, %v5762
  %v5766 = vunpack.c.l.s4 1966171168
  %v5767 = vunpack.c.0.s8 %v5766
  %v5768 = vlaneseq
  %v5769 = vshrl.u32 %v5768, 7
  %v5770 = vsub.s32 %v5767, %v5769
  %v5771 = vrot.slane %v5755, %v5770
  %v5773 = vunpack.c.l.s4 1966171168
  %v5774 = vunpack.c.0.s8 %v5773
  %v5775 = vlaneseq
  %v5776 = vshrl.u32 %v5775, 7
  %v5777 = vsub.s32 %v5774, %v5776
  %v5778 = vrot.slane %v5762, %v5777
  %v5780 = vunpack.c.l.s4 1966171168
  %v5781 = vunpack.c.0.s8 %v5780
  %v5782 = vlaneseq
  %v5783 = vshrl.u32 %v5782, 7
  %v5784 = vsub.s32 %v5781, %v5783
  %v5785 = vrot.slane %v5763, %v5784
  %v5787 = vunpack.c.l.s4 1966171168
  %v5788 = vunpack.c.0.s8 %v5787
  %v5789 = vlaneseq
  %v5790 = vshrl.u32 %v5789, 7
  %v5791 = vsub.s32 %v5788, %v5790
  %v5792 = vrot.slane %v5764, %v5791
  %v5793 = vcombine.high %v5771, %v5771
  %v5794 = vcombine.high %v5778, %v5778
  %v5795 = vcombine.high %v5785, %v5785
  %v5796 = vcombine.high %v5792, %v5792
  %v5797 = vcombine.high %v5643, %v5643
  %v5799 = vunpack.c.l.s4 1966171168
  %v5800 = vunpack.c.0.s8 %v5799
  %v5801 = vlaneseq
  %v5802 = vshrl.u32 %v5801, 7
  %v5803 = vsub.s32 %v5800, %v5802
  %v5804 = vrot.slane %v5643, %v5803
  %v5806 = vunpack.c.l.s4 1966171168
  %v5807 = vunpack.c.0.s8 %v5806
  %v5808 = vlaneseq
  %v5809 = vshrl.u32 %v5808, 7
  %v5810 = vsub.s32 %v5807, %v5809
  %v5811 = vrot.slane %v5797, %v5810
  %v5812 = vcombine.high %v5804, %v5804
  %v5813 = vcombine.high %v5811, %v5811
  %v5815 = vunpack.c.l.s4 1966171168
  %v5816 = vunpack.c.0.s8 %v5815
  %v5817 = vlaneseq
  %v5818 = vshrl.u32 %v5817, 7
  %v5819 = vsub.s32 %v5816, %v5818
  %v5820 = vrot.slane %v5804, %v5819
  %v5822 = vunpack.c.l.s4 1966171168
  %v5823 = vunpack.c.0.s8 %v5822
  %v5824 = vlaneseq
  %v5825 = vshrl.u32 %v5824, 7
  %v5826 = vsub.s32 %v5823, %v5825
  %v5827 = vrot.slane %v5811, %v5826
  %v5829 = vunpack.c.l.s4 1966171168
  %v5830 = vunpack.c.0.s8 %v5829
  %v5831 = vlaneseq
  %v5832 = vshrl.u32 %v5831, 7
  %v5833 = vsub.s32 %v5830, %v5832
  %v5834 = vrot.slane %v5812, %v5833
  %v5836 = vunpack.c.l.s4 1966171168
  %v5837 = vunpack.c.0.s8 %v5836
  %v5838 = vlaneseq
  %v5839 = vshrl.u32 %v5838, 7
  %v5840 = vsub.s32 %v5837, %v5839
  %v5841 = vrot.slane %v5813, %v5840
  %v5842 = vcombine.high %v5820, %v5820
  %v5843 = vcombine.high %v5827, %v5827
  %v5844 = vcombine.high %v5834, %v5834
  %v5845 = vcombine.high %v5841, %v5841
  %v5847 = vunpack.c.l.s4 1966171168
  %v5848 = vunpack.c.0.s8 %v5847
  %v5849 = vlaneseq
  %v5850 = vshrl.u32 %v5849, 7
  %v5851 = vsub.s32 %v5848, %v5850
  %v5852 = vrot.slane %v5644, %v5851
  %v5853 = vcombine.high %v5852, %v5852
  %v5855 = vunpack.c.l.s4 1966171168
  %v5856 = vunpack.c.0.s8 %v5855
  %v5857 = vlaneseq
  %v5858 = vshrl.u32 %v5857, 7
  %v5859 = vsub.s32 %v5856, %v5858
  %v5860 = vrot.slane %v5852, %v5859
  %v5862 = vunpack.c.l.s4 1966171168
  %v5863 = vunpack.c.0.s8 %v5862
  %v5864 = vlaneseq
  %v5865 = vshrl.u32 %v5864, 7
  %v5866 = vsub.s32 %v5863, %v5865
  %v5867 = vrot.slane %v5853, %v5866
  %v5873 = vcombine.high %v5538, %v5538
  %v5875 = vunpack.c.l.s4 1966171168
  %v5876 = vunpack.c.0.s8 %v5875
  %v5877 = vlaneseq
  %v5878 = vshrl.u32 %v5877, 7
  %v5879 = vsub.s32 %v5876, %v5878
  %v5880 = vrot.slane %v5538, %v5879
  %v5882 = vunpack.c.l.s4 1966171168
  %v5883 = vunpack.c.0.s8 %v5882
  %v5884 = vlaneseq
  %v5885 = vshrl.u32 %v5884, 7
  %v5886 = vsub.s32 %v5883, %v5885
  %v5887 = vrot.slane %v5873, %v5886
  %v5888 = vcombine.high %v5880, %v5880
  %v5889 = vcombine.high %v5887, %v5887
  %v5891 = vunpack.c.l.s4 1966171168
  %v5892 = vunpack.c.0.s8 %v5891
  %v5893 = vlaneseq
  %v5894 = vshrl.u32 %v5893, 7
  %v5895 = vsub.s32 %v5892, %v5894
  %v5896 = vrot.slane %v5880, %v5895
  %v5898 = vunpack.c.l.s4 1966171168
  %v5899 = vunpack.c.0.s8 %v5898
  %v5900 = vlaneseq
  %v5901 = vshrl.u32 %v5900, 7
  %v5902 = vsub.s32 %v5899, %v5901
  %v5903 = vrot.slane %v5887, %v5902
  %v5905 = vunpack.c.l.s4 1966171168
  %v5906 = vunpack.c.0.s8 %v5905
  %v5907 = vlaneseq
  %v5908 = vshrl.u32 %v5907, 7
  %v5909 = vsub.s32 %v5906, %v5908
  %v5910 = vrot.slane %v5888, %v5909
  %v5912 = vunpack.c.l.s4 1966171168
  %v5913 = vunpack.c.0.s8 %v5912
  %v5914 = vlaneseq
  %v5915 = vshrl.u32 %v5914, 7
  %v5916 = vsub.s32 %v5913, %v5915
  %v5917 = vrot.slane %v5889, %v5916
  %v5918 = vcombine.high %v5896, %v5896
  %v5919 = vcombine.high %v5903, %v5903
  %v5920 = vcombine.high %v5910, %v5910
  %v5921 = vcombine.high %v5917, %v5917
  %v5922 = vcombine.high %v5541, %v5541
  %v5924 = vunpack.c.l.s4 1966171168
  %v5925 = vunpack.c.0.s8 %v5924
  %v5926 = vlaneseq
  %v5927 = vshrl.u32 %v5926, 7
  %v5928 = vsub.s32 %v5925, %v5927
  %v5929 = vrot.slane %v5541, %v5928
  %v5931 = vunpack.c.l.s4 1966171168
  %v5932 = vunpack.c.0.s8 %v5931
  %v5933 = vlaneseq
  %v5934 = vshrl.u32 %v5933, 7
  %v5935 = vsub.s32 %v5932, %v5934
  %v5936 = vrot.slane %v5922, %v5935
  %v5937 = vcombine.high %v5929, %v5929
  %v5938 = vcombine.high %v5936, %v5936
  %v5940 = vunpack.c.l.s4 1966171168
  %v5941 = vunpack.c.0.s8 %v5940
  %v5942 = vlaneseq
  %v5943 = vshrl.u32 %v5942, 7
  %v5944 = vsub.s32 %v5941, %v5943
  %v5945 = vrot.slane %v5929, %v5944
  %v5947 = vunpack.c.l.s4 1966171168
  %v5948 = vunpack.c.0.s8 %v5947
  %v5949 = vlaneseq
  %v5950 = vshrl.u32 %v5949, 7
  %v5951 = vsub.s32 %v5948, %v5950
  %v5952 = vrot.slane %v5936, %v5951
  %v5954 = vunpack.c.l.s4 1966171168
  %v5955 = vunpack.c.0.s8 %v5954
  %v5956 = vlaneseq
  %v5957 = vshrl.u32 %v5956, 7
  %v5958 = vsub.s32 %v5955, %v5957
  %v5959 = vrot.slane %v5937, %v5958
  %v5961 = vunpack.c.l.s4 1966171168
  %v5962 = vunpack.c.0.s8 %v5961
  %v5963 = vlaneseq
  %v5964 = vshrl.u32 %v5963, 7
  %v5965 = vsub.s32 %v5962, %v5964
  %v5966 = vrot.slane %v5938, %v5965
  %v5967 = vcombine.high %v5945, %v5945
  %v5968 = vcombine.high %v5952, %v5952
  %v5969 = vcombine.high %v5959, %v5959
  %v5970 = vcombine.high %v5966, %v5966
  %v5971 = vcombine.high %v5546, %v5546
  %v5973 = vunpack.c.l.s4 1966171168
  %v5974 = vunpack.c.0.s8 %v5973
  %v5975 = vlaneseq
  %v5976 = vshrl.u32 %v5975, 7
  %v5977 = vsub.s32 %v5974, %v5976
  %v5978 = vrot.slane %v5546, %v5977
  %v5980 = vunpack.c.l.s4 1966171168
  %v5981 = vunpack.c.0.s8 %v5980
  %v5982 = vlaneseq
  %v5983 = vshrl.u32 %v5982, 7
  %v5984 = vsub.s32 %v5981, %v5983
  %v5985 = vrot.slane %v5971, %v5984
  %v5986 = vcombine.high %v5978, %v5978
  %v5987 = vcombine.high %v5985, %v5985
  %v5989 = vunpack.c.l.s4 1966171168
  %v5990 = vunpack.c.0.s8 %v5989
  %v5991 = vlaneseq
  %v5992 = vshrl.u32 %v5991, 7
  %v5993 = vsub.s32 %v5990, %v5992
  %v5994 = vrot.slane %v5978, %v5993
  %v5996 = vunpack.c.l.s4 1966171168
  %v5997 = vunpack.c.0.s8 %v5996
  %v5998 = vlaneseq
  %v5999 = vshrl.u32 %v5998, 7
  %v6000 = vsub.s32 %v5997, %v5999
  %v6001 = vrot.slane %v5985, %v6000
  %v6003 = vunpack.c.l.s4 1966171168
  %v6004 = vunpack.c.0.s8 %v6003
  %v6005 = vlaneseq
  %v6006 = vshrl.u32 %v6005, 7
  %v6007 = vsub.s32 %v6004, %v6006
  %v6008 = vrot.slane %v5986, %v6007
  %v6010 = vunpack.c.l.s4 1966171168
  %v6011 = vunpack.c.0.s8 %v6010
  %v6012 = vlaneseq
  %v6013 = vshrl.u32 %v6012, 7
  %v6014 = vsub.s32 %v6011, %v6013
  %v6015 = vrot.slane %v5987, %v6014
  %v6016 = vcombine.high %v5994, %v5994
  %v6017 = vcombine.high %v6001, %v6001
  %v6018 = vcombine.high %v6008, %v6008
  %v6019 = vcombine.high %v6015, %v6015
  %v6020 = vcombine.high %v5549, %v5549
  %v6022 = vunpack.c.l.s4 1966171168
  %v6023 = vunpack.c.0.s8 %v6022
  %v6024 = vlaneseq
  %v6025 = vshrl.u32 %v6024, 7
  %v6026 = vsub.s32 %v6023, %v6025
  %v6027 = vrot.slane %v5549, %v6026
  %v6029 = vunpack.c.l.s4 1966171168
  %v6030 = vunpack.c.0.s8 %v6029
  %v6031 = vlaneseq
  %v6032 = vshrl.u32 %v6031, 7
  %v6033 = vsub.s32 %v6030, %v6032
  %v6034 = vrot.slane %v6020, %v6033
  %v6035 = vcombine.high %v6027, %v6027
  %v6036 = vcombine.high %v6034, %v6034
  %v6038 = vunpack.c.l.s4 1966171168
  %v6039 = vunpack.c.0.s8 %v6038
  %v6040 = vlaneseq
  %v6041 = vshrl.u32 %v6040, 7
  %v6042 = vsub.s32 %v6039, %v6041
  %v6043 = vrot.slane %v6027, %v6042
  %v6045 = vunpack.c.l.s4 1966171168
  %v6046 = vunpack.c.0.s8 %v6045
  %v6047 = vlaneseq
  %v6048 = vshrl.u32 %v6047, 7
  %v6049 = vsub.s32 %v6046, %v6048
  %v6050 = vrot.slane %v6034, %v6049
  %v6052 = vunpack.c.l.s4 1966171168
  %v6053 = vunpack.c.0.s8 %v6052
  %v6054 = vlaneseq
  %v6055 = vshrl.u32 %v6054, 7
  %v6056 = vsub.s32 %v6053, %v6055
  %v6057 = vrot.slane %v6035, %v6056
  %v6059 = vunpack.c.l.s4 1966171168
  %v6060 = vunpack.c.0.s8 %v6059
  %v6061 = vlaneseq
  %v6062 = vshrl.u32 %v6061, 7
  %v6063 = vsub.s32 %v6060, %v6062
  %v6064 = vrot.slane %v6036, %v6063
  %v6065 = vcombine.high %v6043, %v6043
  %v6066 = vcombine.high %v6050, %v6050
  %v6067 = vcombine.high %v6057, %v6057
  %v6068 = vcombine.high %v6064, %v6064
  %v6070 = vunpack.c.l.s4 1966171168
  %v6071 = vunpack.c.0.s8 %v6070
  %v6072 = vlaneseq
  %v6073 = vshrl.u32 %v6072, 7
  %v6074 = vsub.s32 %v6071, %v6073
  %v6075 = vrot.slane %v5554, %v6074
  %v6076 = vcombine.high %v6075, %v6075
  %v6078 = vunpack.c.l.s4 1966171168
  %v6079 = vunpack.c.0.s8 %v6078
  %v6080 = vlaneseq
  %v6081 = vshrl.u32 %v6080, 7
  %v6082 = vsub.s32 %v6079, %v6081
  %v6083 = vrot.slane %v6075, %v6082
  %v6085 = vunpack.c.l.s4 1966171168
  %v6086 = vunpack.c.0.s8 %v6085
  %v6087 = vlaneseq
  %v6088 = vshrl.u32 %v6087, 7
  %v6089 = vsub.s32 %v6086, %v6088
  %v6090 = vrot.slane %v6076, %v6089
  %v6096 = vcombine.high %v5619, %v5619
  %v6098 = vunpack.c.l.s4 1966171168
  %v6099 = vunpack.c.0.s8 %v6098
  %v6100 = vlaneseq
  %v6101 = vshrl.u32 %v6100, 7
  %v6102 = vsub.s32 %v6099, %v6101
  %v6103 = vrot.slane %v5619, %v6102
  %v6105 = vunpack.c.l.s4 1966171168
  %v6106 = vunpack.c.0.s8 %v6105
  %v6107 = vlaneseq
  %v6108 = vshrl.u32 %v6107, 7
  %v6109 = vsub.s32 %v6106, %v6108
  %v6110 = vrot.slane %v6096, %v6109
  %v6111 = vcombine.high %v6103, %v6103
  %v6112 = vcombine.high %v6110, %v6110
  %v6114 = vunpack.c.l.s4 1966171168
  %v6115 = vunpack.c.0.s8 %v6114
  %v6116 = vlaneseq
  %v6117 = vshrl.u32 %v6116, 7
  %v6118 = vsub.s32 %v6115, %v6117
  %v6119 = vrot.slane %v6103, %v6118
  %v6121 = vunpack.c.l.s4 1966171168
  %v6122 = vunpack.c.0.s8 %v6121
  %v6123 = vlaneseq
  %v6124 = vshrl.u32 %v6123, 7
  %v6125 = vsub.s32 %v6122, %v6124
  %v6126 = vrot.slane %v6110, %v6125
  %v6128 = vunpack.c.l.s4 1966171168
  %v6129 = vunpack.c.0.s8 %v6128
  %v6130 = vlaneseq
  %v6131 = vshrl.u32 %v6130, 7
  %v6132 = vsub.s32 %v6129, %v6131
  %v6133 = vrot.slane %v6111, %v6132
  %v6135 = vunpack.c.l.s4 1966171168
  %v6136 = vunpack.c.0.s8 %v6135
  %v6137 = vlaneseq
  %v6138 = vshrl.u32 %v6137, 7
  %v6139 = vsub.s32 %v6136, %v6138
  %v6140 = vrot.slane %v6112, %v6139
  %v6141 = vcombine.high %v6119, %v6119
  %v6142 = vcombine.high %v6126, %v6126
  %v6143 = vcombine.high %v6133, %v6133
  %v6144 = vcombine.high %v6140, %v6140
  %v6145 = vcombine.high %v5622, %v5622
  %v6147 = vunpack.c.l.s4 1966171168
  %v6148 = vunpack.c.0.s8 %v6147
  %v6149 = vlaneseq
  %v6150 = vshrl.u32 %v6149, 7
  %v6151 = vsub.s32 %v6148, %v6150
  %v6152 = vrot.slane %v5622, %v6151
  %v6154 = vunpack.c.l.s4 1966171168
  %v6155 = vunpack.c.0.s8 %v6154
  %v6156 = vlaneseq
  %v6157 = vshrl.u32 %v6156, 7
  %v6158 = vsub.s32 %v6155, %v6157
  %v6159 = vrot.slane %v6145, %v6158
  %v6160 = vcombine.high %v6152, %v6152
  %v6161 = vcombine.high %v6159, %v6159
  %v6163 = vunpack.c.l.s4 1966171168
  %v6164 = vunpack.c.0.s8 %v6163
  %v6165 = vlaneseq
  %v6166 = vshrl.u32 %v6165, 7
  %v6167 = vsub.s32 %v6164, %v6166
  %v6168 = vrot.slane %v6152, %v6167
  %v6170 = vunpack.c.l.s4 1966171168
  %v6171 = vunpack.c.0.s8 %v6170
  %v6172 = vlaneseq
  %v6173 = vshrl.u32 %v6172, 7
  %v6174 = vsub.s32 %v6171, %v6173
  %v6175 = vrot.slane %v6159, %v6174
  %v6177 = vunpack.c.l.s4 1966171168
  %v6178 = vunpack.c.0.s8 %v6177
  %v6179 = vlaneseq
  %v6180 = vshrl.u32 %v6179, 7
  %v6181 = vsub.s32 %v6178, %v6180
  %v6182 = vrot.slane %v6160, %v6181
  %v6184 = vunpack.c.l.s4 1966171168
  %v6185 = vunpack.c.0.s8 %v6184
  %v6186 = vlaneseq
  %v6187 = vshrl.u32 %v6186, 7
  %v6188 = vsub.s32 %v6185, %v6187
  %v6189 = vrot.slane %v6161, %v6188
  %v6190 = vcombine.high %v6168, %v6168
  %v6191 = vcombine.high %v6175, %v6175
  %v6192 = vcombine.high %v6182, %v6182
  %v6193 = vcombine.high %v6189, %v6189
  %v6194 = vcombine.high %v5627, %v5627
  %v6196 = vunpack.c.l.s4 1966171168
  %v6197 = vunpack.c.0.s8 %v6196
  %v6198 = vlaneseq
  %v6199 = vshrl.u32 %v6198, 7
  %v6200 = vsub.s32 %v6197, %v6199
  %v6201 = vrot.slane %v5627, %v6200
  %v6203 = vunpack.c.l.s4 1966171168
  %v6204 = vunpack.c.0.s8 %v6203
  %v6205 = vlaneseq
  %v6206 = vshrl.u32 %v6205, 7
  %v6207 = vsub.s32 %v6204, %v6206
  %v6208 = vrot.slane %v6194, %v6207
  %v6209 = vcombine.high %v6201, %v6201
  %v6210 = vcombine.high %v6208, %v6208
  %v6212 = vunpack.c.l.s4 1966171168
  %v6213 = vunpack.c.0.s8 %v6212
  %v6214 = vlaneseq
  %v6215 = vshrl.u32 %v6214, 7
  %v6216 = vsub.s32 %v6213, %v6215
  %v6217 = vrot.slane %v6201, %v6216
  %v6219 = vunpack.c.l.s4 1966171168
  %v6220 = vunpack.c.0.s8 %v6219
  %v6221 = vlaneseq
  %v6222 = vshrl.u32 %v6221, 7
  %v6223 = vsub.s32 %v6220, %v6222
  %v6224 = vrot.slane %v6208, %v6223
  %v6226 = vunpack.c.l.s4 1966171168
  %v6227 = vunpack.c.0.s8 %v6226
  %v6228 = vlaneseq
  %v6229 = vshrl.u32 %v6228, 7
  %v6230 = vsub.s32 %v6227, %v6229
  %v6231 = vrot.slane %v6209, %v6230
  %v6233 = vunpack.c.l.s4 1966171168
  %v6234 = vunpack.c.0.s8 %v6233
  %v6235 = vlaneseq
  %v6236 = vshrl.u32 %v6235, 7
  %v6237 = vsub.s32 %v6234, %v6236
  %v6238 = vrot.slane %v6210, %v6237
  %v6239 = vcombine.high %v6217, %v6217
  %v6240 = vcombine.high %v6224, %v6224
  %v6241 = vcombine.high %v6231, %v6231
  %v6242 = vcombine.high %v6238, %v6238
  %v6243 = vcombine.high %v5630, %v5630
  %v6245 = vunpack.c.l.s4 1966171168
  %v6246 = vunpack.c.0.s8 %v6245
  %v6247 = vlaneseq
  %v6248 = vshrl.u32 %v6247, 7
  %v6249 = vsub.s32 %v6246, %v6248
  %v6250 = vrot.slane %v5630, %v6249
  %v6252 = vunpack.c.l.s4 1966171168
  %v6253 = vunpack.c.0.s8 %v6252
  %v6254 = vlaneseq
  %v6255 = vshrl.u32 %v6254, 7
  %v6256 = vsub.s32 %v6253, %v6255
  %v6257 = vrot.slane %v6243, %v6256
  %v6258 = vcombine.high %v6250, %v6250
  %v6259 = vcombine.high %v6257, %v6257
  %v6261 = vunpack.c.l.s4 1966171168
  %v6262 = vunpack.c.0.s8 %v6261
  %v6263 = vlaneseq
  %v6264 = vshrl.u32 %v6263, 7
  %v6265 = vsub.s32 %v6262, %v6264
  %v6266 = vrot.slane %v6250, %v6265
  %v6268 = vunpack.c.l.s4 1966171168
  %v6269 = vunpack.c.0.s8 %v6268
  %v6270 = vlaneseq
  %v6271 = vshrl.u32 %v6270, 7
  %v6272 = vsub.s32 %v6269, %v6271
  %v6273 = vrot.slane %v6257, %v6272
  %v6275 = vunpack.c.l.s4 1966171168
  %v6276 = vunpack.c.0.s8 %v6275
  %v6277 = vlaneseq
  %v6278 = vshrl.u32 %v6277, 7
  %v6279 = vsub.s32 %v6276, %v6278
  %v6280 = vrot.slane %v6258, %v6279
  %v6282 = vunpack.c.l.s4 1966171168
  %v6283 = vunpack.c.0.s8 %v6282
  %v6284 = vlaneseq
  %v6285 = vshrl.u32 %v6284, 7
  %v6286 = vsub.s32 %v6283, %v6285
  %v6287 = vrot.slane %v6259, %v6286
  %v6288 = vcombine.high %v6266, %v6266
  %v6289 = vcombine.high %v6273, %v6273
  %v6290 = vcombine.high %v6280, %v6280
  %v6291 = vcombine.high %v6287, %v6287
  %v6293 = vunpack.c.l.s4 1966171168
  %v6294 = vunpack.c.0.s8 %v6293
  %v6295 = vlaneseq
  %v6296 = vshrl.u32 %v6295, 7
  %v6297 = vsub.s32 %v6294, %v6296
  %v6298 = vrot.slane %v5635, %v6297
  %v6299 = vcombine.high %v6298, %v6298
  %v6301 = vunpack.c.l.s4 1966171168
  %v6302 = vunpack.c.0.s8 %v6301
  %v6303 = vlaneseq
  %v6304 = vshrl.u32 %v6303, 7
  %v6305 = vsub.s32 %v6302, %v6304
  %v6306 = vrot.slane %v6298, %v6305
  %v6308 = vunpack.c.l.s4 1966171168
  %v6309 = vunpack.c.0.s8 %v6308
  %v6310 = vlaneseq
  %v6311 = vshrl.u32 %v6310, 7
  %v6312 = vsub.s32 %v6309, %v6311
  %v6313 = vrot.slane %v6299, %v6312
  %v6314 = vcombine.low %v5673, %v5687
  %v6315 = vcombine.low %v5695, %v5697
  %v6316 = vcombine.low %v5680, %v5694
  %v6317 = vcombine.low %v5696, %v5698
  %v6319 = vunpack.c.l.s4 1966171168
  %v6320 = vunpack.c.0.s8 %v6319
  %v6321 = vlaneseq
  %v6322 = vshrl.u32 %v6321, 7
  %v6323 = vsub.s32 %v6320, %v6322
  %v6324 = vrot.slane %v6314, %v6323
  %v6326 = vunpack.c.l.s4 1966171168
  %v6327 = vunpack.c.0.s8 %v6326
  %v6328 = vlaneseq
  %v6329 = vshrl.u32 %v6328, 7
  %v6330 = vsub.s32 %v6327, %v6329
  %v6331 = vrot.slane %v6315, %v6330
  %v6333 = vunpack.c.l.s4 1966171168
  %v6334 = vunpack.c.0.s8 %v6333
  %v6335 = vlaneseq
  %v6336 = vshrl.u32 %v6335, 7
  %v6337 = vsub.s32 %v6334, %v6336
  %v6338 = vrot.slane %v6316, %v6337
  %v6340 = vunpack.c.l.s4 1966171168
  %v6341 = vunpack.c.0.s8 %v6340
  %v6342 = vlaneseq
  %v6343 = vshrl.u32 %v6342, 7
  %v6344 = vsub.s32 %v6341, %v6343
  %v6345 = vrot.slane %v6317, %v6344
  %v6346 = vcombine.low %v6324, %v6331
  %v6347 = vcombine.low %v6338, %v6345
  %v6349 = vunpack.c.l.s4 1966171168
  %v6350 = vunpack.c.0.s8 %v6349
  %v6351 = vlaneseq
  %v6352 = vshrl.u32 %v6351, 7
  %v6353 = vsub.s32 %v6350, %v6352
  %v6354 = vrot.slane %v6346, %v6353
  %v6356 = vunpack.c.l.s4 1966171168
  %v6357 = vunpack.c.0.s8 %v6356
  %v6358 = vlaneseq
  %v6359 = vshrl.u32 %v6358, 7
  %v6360 = vsub.s32 %v6357, %v6359
  %v6361 = vrot.slane %v6347, %v6360
  %v6362 = vcombine.low %v6354, %v6361
  %v6363 = vcombine.low %v5722, %v5736
  %v6364 = vcombine.low %v5744, %v5746
  %v6365 = vcombine.low %v5729, %v5743
  %v6366 = vcombine.low %v5745, %v5747
  %v6368 = vunpack.c.l.s4 1966171168
  %v6369 = vunpack.c.0.s8 %v6368
  %v6370 = vlaneseq
  %v6371 = vshrl.u32 %v6370, 7
  %v6372 = vsub.s32 %v6369, %v6371
  %v6373 = vrot.slane %v6363, %v6372
  %v6375 = vunpack.c.l.s4 1966171168
  %v6376 = vunpack.c.0.s8 %v6375
  %v6377 = vlaneseq
  %v6378 = vshrl.u32 %v6377, 7
  %v6379 = vsub.s32 %v6376, %v6378
  %v6380 = vrot.slane %v6364, %v6379
  %v6382 = vunpack.c.l.s4 1966171168
  %v6383 = vunpack.c.0.s8 %v6382
  %v6384 = vlaneseq
  %v6385 = vshrl.u32 %v6384, 7
  %v6386 = vsub.s32 %v6383, %v6385
  %v6387 = vrot.slane %v6365, %v6386
  %v6389 = vunpack.c.l.s4 1966171168
  %v6390 = vunpack.c.0.s8 %v6389
  %v6391 = vlaneseq
  %v6392 = vshrl.u32 %v6391, 7
  %v6393 = vsub.s32 %v6390, %v6392
  %v6394 = vrot.slane %v6366, %v6393
  %v6395 = vcombine.low %v6373, %v6380
  %v6396 = vcombine.low %v6387, %v6394
  %v6398 = vunpack.c.l.s4 1966171168
  %v6399 = vunpack.c.0.s8 %v6398
  %v6400 = vlaneseq
  %v6401 = vshrl.u32 %v6400, 7
  %v6402 = vsub.s32 %v6399, %v6401
  %v6403 = vrot.slane %v6395, %v6402
  %v6405 = vunpack.c.l.s4 1966171168
  %v6406 = vunpack.c.0.s8 %v6405
  %v6407 = vlaneseq
  %v6408 = vshrl.u32 %v6407, 7
  %v6409 = vsub.s32 %v6406, %v6408
  %v6410 = vrot.slane %v6396, %v6409
  %v6411 = vcombine.low %v6403, %v6410
  %v6413 = vunpack.c.l.s4 1966171168
  %v6414 = vunpack.c.0.s8 %v6413
  %v6415 = vlaneseq
  %v6416 = vshrl.u32 %v6415, 7
  %v6417 = vsub.s32 %v6414, %v6416
  %v6418 = vrot.slane %v5771, %v6417
  %v6420 = vunpack.c.l.s4 1966171168
  %v6421 = vunpack.c.0.s8 %v6420
  %v6422 = vlaneseq
  %v6423 = vshrl.u32 %v6422, 7
  %v6424 = vsub.s32 %v6421, %v6423
  %v6425 = vrot.slane %v6418, %v6424
  %v6426 = vcombine.low %v5785, %v5793
  %v6427 = vcombine.low %v5795, %v5778
  %v6428 = vcombine.low %v5792, %v5794
  %v6429 = vcombine.low %v5796, %v5820
  %v6431 = vunpack.c.l.s4 1966171168
  %v6432 = vunpack.c.0.s8 %v6431
  %v6433 = vlaneseq
  %v6434 = vshrl.u32 %v6433, 7
  %v6435 = vsub.s32 %v6432, %v6434
  %v6436 = vrot.slane %v6426, %v6435
  %v6438 = vunpack.c.l.s4 1966171168
  %v6439 = vunpack.c.0.s8 %v6438
  %v6440 = vlaneseq
  %v6441 = vshrl.u32 %v6440, 7
  %v6442 = vsub.s32 %v6439, %v6441
  %v6443 = vrot.slane %v6427, %v6442
  %v6445 = vunpack.c.l.s4 1966171168
  %v6446 = vunpack.c.0.s8 %v6445
  %v6447 = vlaneseq
  %v6448 = vshrl.u32 %v6447, 7
  %v6449 = vsub.s32 %v6446, %v6448
  %v6450 = vrot.slane %v6428, %v6449
  %v6452 = vunpack.c.l.s4 1966171168
  %v6453 = vunpack.c.0.s8 %v6452
  %v6454 = vlaneseq
  %v6455 = vshrl.u32 %v6454, 7
  %v6456 = vsub.s32 %v6453, %v6455
  %v6457 = vrot.slane %v6429, %v6456
  %v6458 = vcombine.low %v6436, %v6443
  %v6459 = vcombine.low %v6450, %v6457
  %v6461 = vunpack.c.l.s4 1966171168
  %v6462 = vunpack.c.0.s8 %v6461
  %v6463 = vlaneseq
  %v6464 = vshrl.u32 %v6463, 7
  %v6465 = vsub.s32 %v6462, %v6464
  %v6466 = vrot.slane %v6458, %v6465
  %v6468 = vunpack.c.l.s4 1966171168
  %v6469 = vunpack.c.0.s8 %v6468
  %v6470 = vlaneseq
  %v6471 = vshrl.u32 %v6470, 7
  %v6472 = vsub.s32 %v6469, %v6471
  %v6473 = vrot.slane %v6459, %v6472
  %v6474 = vcombine.low %v6466, %v6473
  %v6475 = vcombine.low %v5834, %v5842
  %v6476 = vcombine.low %v5844, %v5827
  %v6477 = vcombine.low %v5841, %v5843
  %v6478 = vcombine.low %v5845, %v5860
  %v6480 = vunpack.c.l.s4 1966171168
  %v6481 = vunpack.c.0.s8 %v6480
  %v6482 = vlaneseq
  %v6483 = vshrl.u32 %v6482, 7
  %v6484 = vsub.s32 %v6481, %v6483
  %v6485 = vrot.slane %v6475, %v6484
  %v6487 = vunpack.c.l.s4 1966171168
  %v6488 = vunpack.c.0.s8 %v6487
  %v6489 = vlaneseq
  %v6490 = vshrl.u32 %v6489, 7
  %v6491 = vsub.s32 %v6488, %v6490
  %v6492 = vrot.slane %v6476, %v6491
  %v6494 = vunpack.c.l.s4 1966171168
  %v6495 = vunpack.c.0.s8 %v6494
  %v6496 = vlaneseq
  %v6497 = vshrl.u32 %v6496, 7
  %v6498 = vsub.s32 %v6495, %v6497
  %v6499 = vrot.slane %v6477, %v6498
  %v6501 = vunpack.c.l.s4 1966171168
  %v6502 = vunpack.c.0.s8 %v6501
  %v6503 = vlaneseq
  %v6504 = vshrl.u32 %v6503, 7
  %v6505 = vsub.s32 %v6502, %v6504
  %v6506 = vrot.slane %v6478, %v6505
  %v6507 = vcombine.low %v6485, %v6492
  %v6508 = vcombine.low %v6499, %v6506
  %v6510 = vunpack.c.l.s4 1966171168
  %v6511 = vunpack.c.0.s8 %v6510
  %v6512 = vlaneseq
  %v6513 = vshrl.u32 %v6512, 7
  %v6514 = vsub.s32 %v6511, %v6513
  %v6515 = vrot.slane %v6507, %v6514
  %v6517 = vunpack.c.l.s4 1966171168
  %v6518 = vunpack.c.0.s8 %v6517
  %v6519 = vlaneseq
  %v6520 = vshrl.u32 %v6519, 7
  %v6521 = vsub.s32 %v6518, %v6520
  %v6522 = vrot.slane %v6508, %v6521
  %v6523 = vcombine.low %v6515, %v6522
  %v6525 = vunpack.c.l.s4 1966171168
  %v6526 = vunpack.c.0.s8 %v6525
  %v6527 = vlaneseq
  %v6528 = vshrl.u32 %v6527, 7
  %v6529 = vsub.s32 %v6526, %v6528
  %v6530 = vrot.slane %v5867, %v6529
  %v6532 = vunpack.c.l.s4 1966171168
  %v6533 = vunpack.c.0.s8 %v6532
  %v6534 = vlaneseq
  %v6535 = vshrl.u32 %v6534, 7
  %v6536 = vsub.s32 %v6533, %v6535
  %v6537 = vrot.slane %v6530, %v6536
  %v6544 = vpack.c.bf16 %v6411, %v6362
  %v6545 = vpack.c.bf16 %v6425, %v6425
  %v6546 = vpack.c.bf16 %v6523, %v6474
  %v6547 = vpack.c.bf16 %v6537, %v6537
  %v6548 = vcombine.low %v5896, %v5910
  %v6549 = vcombine.low %v5918, %v5920
  %v6550 = vcombine.low %v5903, %v5917
  %v6551 = vcombine.low %v5919, %v5921
  %v6553 = vunpack.c.l.s4 1966171168
  %v6554 = vunpack.c.0.s8 %v6553
  %v6555 = vlaneseq
  %v6556 = vshrl.u32 %v6555, 7
  %v6557 = vsub.s32 %v6554, %v6556
  %v6558 = vrot.slane %v6548, %v6557
  %v6560 = vunpack.c.l.s4 1966171168
  %v6561 = vunpack.c.0.s8 %v6560
  %v6562 = vlaneseq
  %v6563 = vshrl.u32 %v6562, 7
  %v6564 = vsub.s32 %v6561, %v6563
  %v6565 = vrot.slane %v6549, %v6564
  %v6567 = vunpack.c.l.s4 1966171168
  %v6568 = vunpack.c.0.s8 %v6567
  %v6569 = vlaneseq
  %v6570 = vshrl.u32 %v6569, 7
  %v6571 = vsub.s32 %v6568, %v6570
  %v6572 = vrot.slane %v6550, %v6571
  %v6574 = vunpack.c.l.s4 1966171168
  %v6575 = vunpack.c.0.s8 %v6574
  %v6576 = vlaneseq
  %v6577 = vshrl.u32 %v6576, 7
  %v6578 = vsub.s32 %v6575, %v6577
  %v6579 = vrot.slane %v6551, %v6578
  %v6580 = vcombine.low %v6558, %v6565
  %v6581 = vcombine.low %v6572, %v6579
  %v6583 = vunpack.c.l.s4 1966171168
  %v6584 = vunpack.c.0.s8 %v6583
  %v6585 = vlaneseq
  %v6586 = vshrl.u32 %v6585, 7
  %v6587 = vsub.s32 %v6584, %v6586
  %v6588 = vrot.slane %v6580, %v6587
  %v6590 = vunpack.c.l.s4 1966171168
  %v6591 = vunpack.c.0.s8 %v6590
  %v6592 = vlaneseq
  %v6593 = vshrl.u32 %v6592, 7
  %v6594 = vsub.s32 %v6591, %v6593
  %v6595 = vrot.slane %v6581, %v6594
  %v6596 = vcombine.low %v6588, %v6595
  %v6597 = vcombine.low %v5945, %v5959
  %v6598 = vcombine.low %v5967, %v5969
  %v6599 = vcombine.low %v5952, %v5966
  %v6600 = vcombine.low %v5968, %v5970
  %v6602 = vunpack.c.l.s4 1966171168
  %v6603 = vunpack.c.0.s8 %v6602
  %v6604 = vlaneseq
  %v6605 = vshrl.u32 %v6604, 7
  %v6606 = vsub.s32 %v6603, %v6605
  %v6607 = vrot.slane %v6597, %v6606
  %v6609 = vunpack.c.l.s4 1966171168
  %v6610 = vunpack.c.0.s8 %v6609
  %v6611 = vlaneseq
  %v6612 = vshrl.u32 %v6611, 7
  %v6613 = vsub.s32 %v6610, %v6612
  %v6614 = vrot.slane %v6598, %v6613
  %v6616 = vunpack.c.l.s4 1966171168
  %v6617 = vunpack.c.0.s8 %v6616
  %v6618 = vlaneseq
  %v6619 = vshrl.u32 %v6618, 7
  %v6620 = vsub.s32 %v6617, %v6619
  %v6621 = vrot.slane %v6599, %v6620
  %v6623 = vunpack.c.l.s4 1966171168
  %v6624 = vunpack.c.0.s8 %v6623
  %v6625 = vlaneseq
  %v6626 = vshrl.u32 %v6625, 7
  %v6627 = vsub.s32 %v6624, %v6626
  %v6628 = vrot.slane %v6600, %v6627
  %v6629 = vcombine.low %v6607, %v6614
  %v6630 = vcombine.low %v6621, %v6628
  %v6632 = vunpack.c.l.s4 1966171168
  %v6633 = vunpack.c.0.s8 %v6632
  %v6634 = vlaneseq
  %v6635 = vshrl.u32 %v6634, 7
  %v6636 = vsub.s32 %v6633, %v6635
  %v6637 = vrot.slane %v6629, %v6636
  %v6639 = vunpack.c.l.s4 1966171168
  %v6640 = vunpack.c.0.s8 %v6639
  %v6641 = vlaneseq
  %v6642 = vshrl.u32 %v6641, 7
  %v6643 = vsub.s32 %v6640, %v6642
  %v6644 = vrot.slane %v6630, %v6643
  %v6645 = vcombine.low %v6637, %v6644
  %v6647 = vunpack.c.l.s4 1966171168
  %v6648 = vunpack.c.0.s8 %v6647
  %v6649 = vlaneseq
  %v6650 = vshrl.u32 %v6649, 7
  %v6651 = vsub.s32 %v6648, %v6650
  %v6652 = vrot.slane %v5994, %v6651
  %v6654 = vunpack.c.l.s4 1966171168
  %v6655 = vunpack.c.0.s8 %v6654
  %v6656 = vlaneseq
  %v6657 = vshrl.u32 %v6656, 7
  %v6658 = vsub.s32 %v6655, %v6657
  %v6659 = vrot.slane %v6652, %v6658
  %v6660 = vcombine.low %v6008, %v6016
  %v6661 = vcombine.low %v6018, %v6001
  %v6662 = vcombine.low %v6015, %v6017
  %v6663 = vcombine.low %v6019, %v6043
  %v6665 = vunpack.c.l.s4 1966171168
  %v6666 = vunpack.c.0.s8 %v6665
  %v6667 = vlaneseq
  %v6668 = vshrl.u32 %v6667, 7
  %v6669 = vsub.s32 %v6666, %v6668
  %v6670 = vrot.slane %v6660, %v6669
  %v6672 = vunpack.c.l.s4 1966171168
  %v6673 = vunpack.c.0.s8 %v6672
  %v6674 = vlaneseq
  %v6675 = vshrl.u32 %v6674, 7
  %v6676 = vsub.s32 %v6673, %v6675
  %v6677 = vrot.slane %v6661, %v6676
  %v6679 = vunpack.c.l.s4 1966171168
  %v6680 = vunpack.c.0.s8 %v6679
  %v6681 = vlaneseq
  %v6682 = vshrl.u32 %v6681, 7
  %v6683 = vsub.s32 %v6680, %v6682
  %v6684 = vrot.slane %v6662, %v6683
  %v6686 = vunpack.c.l.s4 1966171168
  %v6687 = vunpack.c.0.s8 %v6686
  %v6688 = vlaneseq
  %v6689 = vshrl.u32 %v6688, 7
  %v6690 = vsub.s32 %v6687, %v6689
  %v6691 = vrot.slane %v6663, %v6690
  %v6692 = vcombine.low %v6670, %v6677
  %v6693 = vcombine.low %v6684, %v6691
  %v6695 = vunpack.c.l.s4 1966171168
  %v6696 = vunpack.c.0.s8 %v6695
  %v6697 = vlaneseq
  %v6698 = vshrl.u32 %v6697, 7
  %v6699 = vsub.s32 %v6696, %v6698
  %v6700 = vrot.slane %v6692, %v6699
  %v6702 = vunpack.c.l.s4 1966171168
  %v6703 = vunpack.c.0.s8 %v6702
  %v6704 = vlaneseq
  %v6705 = vshrl.u32 %v6704, 7
  %v6706 = vsub.s32 %v6703, %v6705
  %v6707 = vrot.slane %v6693, %v6706
  %v6708 = vcombine.low %v6700, %v6707
  %v6709 = vcombine.low %v6057, %v6065
  %v6710 = vcombine.low %v6067, %v6050
  %v6711 = vcombine.low %v6064, %v6066
  %v6712 = vcombine.low %v6068, %v6083
  %v6714 = vunpack.c.l.s4 1966171168
  %v6715 = vunpack.c.0.s8 %v6714
  %v6716 = vlaneseq
  %v6717 = vshrl.u32 %v6716, 7
  %v6718 = vsub.s32 %v6715, %v6717
  %v6719 = vrot.slane %v6709, %v6718
  %v6721 = vunpack.c.l.s4 1966171168
  %v6722 = vunpack.c.0.s8 %v6721
  %v6723 = vlaneseq
  %v6724 = vshrl.u32 %v6723, 7
  %v6725 = vsub.s32 %v6722, %v6724
  %v6726 = vrot.slane %v6710, %v6725
  %v6728 = vunpack.c.l.s4 1966171168
  %v6729 = vunpack.c.0.s8 %v6728
  %v6730 = vlaneseq
  %v6731 = vshrl.u32 %v6730, 7
  %v6732 = vsub.s32 %v6729, %v6731
  %v6733 = vrot.slane %v6711, %v6732
  %v6735 = vunpack.c.l.s4 1966171168
  %v6736 = vunpack.c.0.s8 %v6735
  %v6737 = vlaneseq
  %v6738 = vshrl.u32 %v6737, 7
  %v6739 = vsub.s32 %v6736, %v6738
  %v6740 = vrot.slane %v6712, %v6739
  %v6741 = vcombine.low %v6719, %v6726
  %v6742 = vcombine.low %v6733, %v6740
  %v6744 = vunpack.c.l.s4 1966171168
  %v6745 = vunpack.c.0.s8 %v6744
  %v6746 = vlaneseq
  %v6747 = vshrl.u32 %v6746, 7
  %v6748 = vsub.s32 %v6745, %v6747
  %v6749 = vrot.slane %v6741, %v6748
  %v6751 = vunpack.c.l.s4 1966171168
  %v6752 = vunpack.c.0.s8 %v6751
  %v6753 = vlaneseq
  %v6754 = vshrl.u32 %v6753, 7
  %v6755 = vsub.s32 %v6752, %v6754
  %v6756 = vrot.slane %v6742, %v6755
  %v6757 = vcombine.low %v6749, %v6756
  %v6759 = vunpack.c.l.s4 1966171168
  %v6760 = vunpack.c.0.s8 %v6759
  %v6761 = vlaneseq
  %v6762 = vshrl.u32 %v6761, 7
  %v6763 = vsub.s32 %v6760, %v6762
  %v6764 = vrot.slane %v6090, %v6763
  %v6766 = vunpack.c.l.s4 1966171168
  %v6767 = vunpack.c.0.s8 %v6766
  %v6768 = vlaneseq
  %v6769 = vshrl.u32 %v6768, 7
  %v6770 = vsub.s32 %v6767, %v6769
  %v6771 = vrot.slane %v6764, %v6770
  %v6778 = vpack.c.bf16 %v6645, %v6596
  %v6779 = vpack.c.bf16 %v6659, %v6659
  %v6780 = vpack.c.bf16 %v6757, %v6708
  %v6781 = vpack.c.bf16 %v6771, %v6771
  %v6783 = vsel %vm1893, %v6544, 0
  %v6786 = vsel %vm1893, %v6545, 0
  %v6789 = vsel %vm1893, %v6778, 0
  %v6792 = vsel %vm1893, %v6779, 0
  %6794 = vmatprep.subr.bf16.mxu0 0
  %6795 = vmatpush1.bf16.xpose.msra.mxu0 %v6789
  %6796 = vmatprep.subr.bf16.mxu0 0
  %6797 = vmatpush1.bf16.xpose.msra.mxu0 %v6792
  %6798 = vmatprep.subr.bf16.mxu0 0
  %6799 = vmatpush1.bf16.xpose.msra.mxu0 0
  %6800 = vmatprep.subr.bf16.mxu0 0
  %6801 = vmatpush1.bf16.xpose.msra.mxu0 0
  %6802 = vmatprep.subr.bf16.mxu0 0
  %6803 = vmatpush1.bf16.xpose.msra.mxu0 0
  %6804 = vmatprep.subr.bf16.mxu0 0
  %6805 = vmatpush1.bf16.xpose.msra.mxu0 0
  %6806 = vmatprep.subr.bf16.mxu0 0
  %6807 = vmatpush1.bf16.xpose.msra.mxu0 0
  %6808 = vmatprep.subr.bf16.mxu0 0
  %6809 = vmatpush1.bf16.xpose.msra.mxu0 0
  %6810 = vmatprep.subr.bf16.mxu0 0
  %6811 = vmatpush1.bf16.xpose.msra.mxu0 0
  %6812 = vmatprep.subr.bf16.mxu0 0
  %6813 = vmatpush1.bf16.xpose.msra.mxu0 0
  %6814 = vmatprep.subr.bf16.mxu0 0
  %6815 = vmatpush1.bf16.xpose.msra.mxu0 0
  %6816 = vmatprep.subr.bf16.mxu0 0
  %6817 = vmatpush1.bf16.xpose.msra.mxu0 0
  %6818 = vmatprep.subr.bf16.mxu0 0
  %6819 = vmatpush1.bf16.xpose.msra.mxu0 0
  %6820 = vmatprep.subr.bf16.mxu0 0
  %6821 = vmatpush1.bf16.xpose.msra.mxu0 0
  %6822 = vmatprep.subr.bf16.mxu0 0
  %6823 = vmatpush1.bf16.xpose.msra.mxu0 0
  %6824 = vmatprep.subr.bf16.mxu0 0
  %6825 = vmatpush1.bf16.xpose.msra.mxu0 0
  %6826 = vmatprep.mubr.bf16.mxu0 0
  %6827 = vmatmul.mubr.bf16.gmra.mrb[0].mxu0 %v6783
  %v6828 = vpop.f32.mrb[0].mxu0
  %v6829 = vadd.f32 0.0, %v6828
  %v6830 = vpop.f32.mrb[0].mxu0
  %v6831 = vpop.f32.mrb[0].mxu0
  %v6832 = vadd.f32 0.0, %v6831
  %v6833 = vpop.f32.mrb[0].mxu0
  %6834 = vmatprep.mubr.bf16.mxu0 0
  %6835 = vmatmul.mubr.bf16.gmra.mrb[0].mxu0 %v6786
  %v6836 = vpop.f32.mrb[0].mxu0
  %v6837 = vadd.f32 0.0, %v6836
  %v6838 = vpop.f32.mrb[0].mxu0
  %v6839 = vpop.f32.mrb[0].mxu0
  %v6840 = vpop.f32.mrb[0].mxu0
  %6841 = vdwg.mxu0
  %v6843 = vsel %vm1893, %v6546, 0
  %v6846 = vsel %vm1893, %v6547, 0
  %v6849 = vsel %vm1893, %v6780, 0
  %v6852 = vsel %vm1893, %v6781, 0
  %6854 = vmatprep.subr.bf16.mxu0 0
  %6855 = vmatpush1.bf16.xpose.msra.mxu0 %v6849
  %6856 = vmatprep.subr.bf16.mxu0 0
  %6857 = vmatpush1.bf16.xpose.msra.mxu0 %v6852
  %6858 = vmatprep.subr.bf16.mxu0 0
  %6859 = vmatpush1.bf16.xpose.msra.mxu0 0
  %6860 = vmatprep.subr.bf16.mxu0 0
  %6861 = vmatpush1.bf16.xpose.msra.mxu0 0
  %6862 = vmatprep.subr.bf16.mxu0 0
  %6863 = vmatpush1.bf16.xpose.msra.mxu0 0
  %6864 = vmatprep.subr.bf16.mxu0 0
  %6865 = vmatpush1.bf16.xpose.msra.mxu0 0
  %6866 = vmatprep.subr.bf16.mxu0 0
  %6867 = vmatpush1.bf16.xpose.msra.mxu0 0
  %6868 = vmatprep.subr.bf16.mxu0 0
  %6869 = vmatpush1.bf16.xpose.msra.mxu0 0
  %6870 = vmatprep.subr.bf16.mxu0 0
  %6871 = vmatpush1.bf16.xpose.msra.mxu0 0
  %6872 = vmatprep.subr.bf16.mxu0 0
  %6873 = vmatpush1.bf16.xpose.msra.mxu0 0
  %6874 = vmatprep.subr.bf16.mxu0 0
  %6875 = vmatpush1.bf16.xpose.msra.mxu0 0
  %6876 = vmatprep.subr.bf16.mxu0 0
  %6877 = vmatpush1.bf16.xpose.msra.mxu0 0
  %6878 = vmatprep.subr.bf16.mxu0 0
  %6879 = vmatpush1.bf16.xpose.msra.mxu0 0
  %6880 = vmatprep.subr.bf16.mxu0 0
  %6881 = vmatpush1.bf16.xpose.msra.mxu0 0
  %6882 = vmatprep.subr.bf16.mxu0 0
  %6883 = vmatpush1.bf16.xpose.msra.mxu0 0
  %6884 = vmatprep.subr.bf16.mxu0 0
  %6885 = vmatpush1.bf16.xpose.msra.mxu0 0
  %6886 = vmatprep.mubr.bf16.mxu0 0
  %6887 = vmatmul.mubr.bf16.gmra.mrb[0].mxu0 %v6843
  %v6888 = vpop.f32.mrb[0].mxu0
  %v6889 = vadd.f32 0.0, %v6888
  %v6890 = vpop.f32.mrb[0].mxu0
  %v6891 = vpop.f32.mrb[0].mxu0
  %v6892 = vadd.f32 0.0, %v6891
  %v6893 = vpop.f32.mrb[0].mxu0
  %6894 = vmatprep.mubr.bf16.mxu0 0
  %6895 = vmatmul.mubr.bf16.gmra.mrb[0].mxu0 %v6846
  %v6896 = vpop.f32.mrb[0].mxu0
  %v6897 = vadd.f32 0.0, %v6896
  %v6898 = vpop.f32.mrb[0].mxu0
  %v6899 = vpop.f32.mrb[0].mxu0
  %v6900 = vpop.f32.mrb[0].mxu0
  %6901 = vdwg.mxu0
  %v6902 = vsel %vm2014, %v6829, -inf
  %6903 = vmax.xlane.f32.xlu0 %v6902
  %v6904 = vpop.xlane.xlu0 %6903
  %v6905 = vsel %vm2014, %v6832, -inf
  %6906 = vmax.xlane.f32.xlu0 %v6905
  %v6907 = vpop.xlane.xlu0 %6906
  %v6908 = vsel %vm2021, %v6837, -inf
  %6909 = vmax.xlane.f32.xlu0 %v6908
  %v6910 = vpop.xlane.xlu0 %6909
  %v6911 = vsel %vm2014, %v6889, -inf
  %6912 = vmax.xlane.f32.xlu0 %v6911
  %v6913 = vpop.xlane.xlu0 %6912
  %v6914 = vsel %vm2014, %v6892, -inf
  %6915 = vmax.xlane.f32.xlu0 %v6914
  %v6916 = vpop.xlane.xlu0 %6915
  %v6917 = vsel %vm2021, %v6897, -inf
  %6918 = vmax.xlane.f32.xlu0 %v6917
  %v6919 = vpop.xlane.xlu0 %6918
  %v6920 = vsub.f32 %v6829, %v6904
  %v6921 = vsub.f32 %v6832, %v6907
  %v6922 = vsub.f32 %v6837, %v6910
  %v6923 = vsub.f32 %v6889, %v6913
  %v6924 = vsub.f32 %v6892, %v6916
  %v6925 = vsub.f32 %v6897, %v6919
  %v6926 = vmul.f32 %v6920, 1.442695
  %v6927 = vpow.pop %v6926
  %v6928 = vmul.f32 %v6921, 1.442695
  %v6929 = vpow.pop %v6928
  %v6930 = vmul.f32 %v6922, 1.442695
  %v6931 = vpow.pop %v6930
  %v6932 = vmul.f32 %v6923, 1.442695
  %v6933 = vpow.pop %v6932
  %v6934 = vmul.f32 %v6924, 1.442695
  %v6935 = vpow.pop %v6934
  %v6936 = vmul.f32 %v6925, 1.442695
  %v6937 = vpow.pop %v6936
  %v6938 = vsel %vm2014, %v6927, 0.0
  %6939 = vadd.xlane.f32.xlu0 %v6938
  %v6940 = vpop.xlane.xlu0 %6939
  %v6941 = vsel %vm2014, %v6929, 0.0
  %6942 = vadd.xlane.f32.xlu0 %v6941
  %v6943 = vpop.xlane.xlu0 %6942
  %v6944 = vsel %vm2021, %v6931, 0.0
  %6945 = vadd.xlane.f32.xlu0 %v6944
  %v6946 = vpop.xlane.xlu0 %6945
  %v6947 = vsel %vm2014, %v6933, 0.0
  %6948 = vadd.xlane.f32.xlu0 %v6947
  %v6949 = vpop.xlane.xlu0 %6948
  %v6950 = vsel %vm2014, %v6935, 0.0
  %6951 = vadd.xlane.f32.xlu0 %v6950
  %v6952 = vpop.xlane.xlu0 %6951
  %v6953 = vsel %vm2021, %v6937, 0.0
  %6954 = vadd.xlane.f32.xlu0 %v6953
  %v6955 = vpop.xlane.xlu0 %6954
  %v6956 = vrcp.pop %v6940
  %v6957 = vrcp.pop %v6943
  %v6958 = vrcp.pop %v6946
  %v6959 = vrcp.pop %v6949
  %v6960 = vrcp.pop %v6952
  %v6961 = vrcp.pop %v6955
  %v6962 = vmul.f32 %v6927, %v6956
  %v6963 = vmul.f32 %v6929, %v6957
  %v6964 = vmul.f32 %v6931, %v6958
  %v6965 = vmul.f32 %v6933, %v6959
  %v6966 = vmul.f32 %v6935, %v6960
  %v6967 = vmul.f32 %v6937, %v6961
  %v6968 = vpack.c.bf16 %v6963, %v6962
  %v6969 = vpack.c.bf16 %v6964, %v6964
  %v6970 = vpack.c.bf16 %v6966, %v6965
  %v6971 = vpack.c.bf16 %v6967, %v6967
  %v6972 = vcombine.low %v6119, %v6133
  %v6973 = vcombine.low %v6141, %v6143
  %v6974 = vcombine.low %v6126, %v6140
  %v6975 = vcombine.low %v6142, %v6144
  %v6977 = vunpack.c.l.s4 1966171168
  %v6978 = vunpack.c.0.s8 %v6977
  %v6979 = vlaneseq
  %v6980 = vshrl.u32 %v6979, 7
  %v6981 = vsub.s32 %v6978, %v6980
  %v6982 = vrot.slane %v6972, %v6981
  %v6984 = vunpack.c.l.s4 1966171168
  %v6985 = vunpack.c.0.s8 %v6984
  %v6986 = vlaneseq
  %v6987 = vshrl.u32 %v6986, 7
  %v6988 = vsub.s32 %v6985, %v6987
  %v6989 = vrot.slane %v6973, %v6988
  %v6991 = vunpack.c.l.s4 1966171168
  %v6992 = vunpack.c.0.s8 %v6991
  %v6993 = vlaneseq
  %v6994 = vshrl.u32 %v6993, 7
  %v6995 = vsub.s32 %v6992, %v6994
  %v6996 = vrot.slane %v6974, %v6995
  %v6998 = vunpack.c.l.s4 1966171168
  %v6999 = vunpack.c.0.s8 %v6998
  %v7000 = vlaneseq
  %v7001 = vshrl.u32 %v7000, 7
  %v7002 = vsub.s32 %v6999, %v7001
  %v7003 = vrot.slane %v6975, %v7002
  %v7004 = vcombine.low %v6982, %v6989
  %v7005 = vcombine.low %v6996, %v7003
  %v7007 = vunpack.c.l.s4 1966171168
  %v7008 = vunpack.c.0.s8 %v7007
  %v7009 = vlaneseq
  %v7010 = vshrl.u32 %v7009, 7
  %v7011 = vsub.s32 %v7008, %v7010
  %v7012 = vrot.slane %v7004, %v7011
  %v7014 = vunpack.c.l.s4 1966171168
  %v7015 = vunpack.c.0.s8 %v7014
  %v7016 = vlaneseq
  %v7017 = vshrl.u32 %v7016, 7
  %v7018 = vsub.s32 %v7015, %v7017
  %v7019 = vrot.slane %v7005, %v7018
  %v7020 = vcombine.low %v7012, %v7019
  %v7021 = vcombine.low %v6168, %v6182
  %v7022 = vcombine.low %v6190, %v6192
  %v7023 = vcombine.low %v6175, %v6189
  %v7024 = vcombine.low %v6191, %v6193
  %v7026 = vunpack.c.l.s4 1966171168
  %v7027 = vunpack.c.0.s8 %v7026
  %v7028 = vlaneseq
  %v7029 = vshrl.u32 %v7028, 7
  %v7030 = vsub.s32 %v7027, %v7029
  %v7031 = vrot.slane %v7021, %v7030
  %v7033 = vunpack.c.l.s4 1966171168
  %v7034 = vunpack.c.0.s8 %v7033
  %v7035 = vlaneseq
  %v7036 = vshrl.u32 %v7035, 7
  %v7037 = vsub.s32 %v7034, %v7036
  %v7038 = vrot.slane %v7022, %v7037
  %v7040 = vunpack.c.l.s4 1966171168
  %v7041 = vunpack.c.0.s8 %v7040
  %v7042 = vlaneseq
  %v7043 = vshrl.u32 %v7042, 7
  %v7044 = vsub.s32 %v7041, %v7043
  %v7045 = vrot.slane %v7023, %v7044
  %v7047 = vunpack.c.l.s4 1966171168
  %v7048 = vunpack.c.0.s8 %v7047
  %v7049 = vlaneseq
  %v7050 = vshrl.u32 %v7049, 7
  %v7051 = vsub.s32 %v7048, %v7050
  %v7052 = vrot.slane %v7024, %v7051
  %v7053 = vcombine.low %v7031, %v7038
  %v7054 = vcombine.low %v7045, %v7052
  %v7056 = vunpack.c.l.s4 1966171168
  %v7057 = vunpack.c.0.s8 %v7056
  %v7058 = vlaneseq
  %v7059 = vshrl.u32 %v7058, 7
  %v7060 = vsub.s32 %v7057, %v7059
  %v7061 = vrot.slane %v7053, %v7060
  %v7063 = vunpack.c.l.s4 1966171168
  %v7064 = vunpack.c.0.s8 %v7063
  %v7065 = vlaneseq
  %v7066 = vshrl.u32 %v7065, 7
  %v7067 = vsub.s32 %v7064, %v7066
  %v7068 = vrot.slane %v7054, %v7067
  %v7069 = vcombine.low %v7061, %v7068
  %v7071 = vunpack.c.l.s4 1966171168
  %v7072 = vunpack.c.0.s8 %v7071
  %v7073 = vlaneseq
  %v7074 = vshrl.u32 %v7073, 7
  %v7075 = vsub.s32 %v7072, %v7074
  %v7076 = vrot.slane %v6217, %v7075
  %v7078 = vunpack.c.l.s4 1966171168
  %v7079 = vunpack.c.0.s8 %v7078
  %v7080 = vlaneseq
  %v7081 = vshrl.u32 %v7080, 7
  %v7082 = vsub.s32 %v7079, %v7081
  %v7083 = vrot.slane %v7076, %v7082
  %v7084 = vcombine.low %v6231, %v6239
  %v7085 = vcombine.low %v6241, %v6224
  %v7086 = vcombine.low %v6238, %v6240
  %v7087 = vcombine.low %v6242, %v6266
  %v7089 = vunpack.c.l.s4 1966171168
  %v7090 = vunpack.c.0.s8 %v7089
  %v7091 = vlaneseq
  %v7092 = vshrl.u32 %v7091, 7
  %v7093 = vsub.s32 %v7090, %v7092
  %v7094 = vrot.slane %v7084, %v7093
  %v7096 = vunpack.c.l.s4 1966171168
  %v7097 = vunpack.c.0.s8 %v7096
  %v7098 = vlaneseq
  %v7099 = vshrl.u32 %v7098, 7
  %v7100 = vsub.s32 %v7097, %v7099
  %v7101 = vrot.slane %v7085, %v7100
  %v7103 = vunpack.c.l.s4 1966171168
  %v7104 = vunpack.c.0.s8 %v7103
  %v7105 = vlaneseq
  %v7106 = vshrl.u32 %v7105, 7
  %v7107 = vsub.s32 %v7104, %v7106
  %v7108 = vrot.slane %v7086, %v7107
  %v7110 = vunpack.c.l.s4 1966171168
  %v7111 = vunpack.c.0.s8 %v7110
  %v7112 = vlaneseq
  %v7113 = vshrl.u32 %v7112, 7
  %v7114 = vsub.s32 %v7111, %v7113
  %v7115 = vrot.slane %v7087, %v7114
  %v7116 = vcombine.low %v7094, %v7101
  %v7117 = vcombine.low %v7108, %v7115
  %v7119 = vunpack.c.l.s4 1966171168
  %v7120 = vunpack.c.0.s8 %v7119
  %v7121 = vlaneseq
  %v7122 = vshrl.u32 %v7121, 7
  %v7123 = vsub.s32 %v7120, %v7122
  %v7124 = vrot.slane %v7116, %v7123
  %v7126 = vunpack.c.l.s4 1966171168
  %v7127 = vunpack.c.0.s8 %v7126
  %v7128 = vlaneseq
  %v7129 = vshrl.u32 %v7128, 7
  %v7130 = vsub.s32 %v7127, %v7129
  %v7131 = vrot.slane %v7117, %v7130
  %v7132 = vcombine.low %v7124, %v7131
  %v7133 = vcombine.low %v6280, %v6288
  %v7134 = vcombine.low %v6290, %v6273
  %v7135 = vcombine.low %v6287, %v6289
  %v7136 = vcombine.low %v6291, %v6306
  %v7138 = vunpack.c.l.s4 1966171168
  %v7139 = vunpack.c.0.s8 %v7138
  %v7140 = vlaneseq
  %v7141 = vshrl.u32 %v7140, 7
  %v7142 = vsub.s32 %v7139, %v7141
  %v7143 = vrot.slane %v7133, %v7142
  %v7145 = vunpack.c.l.s4 1966171168
  %v7146 = vunpack.c.0.s8 %v7145
  %v7147 = vlaneseq
  %v7148 = vshrl.u32 %v7147, 7
  %v7149 = vsub.s32 %v7146, %v7148
  %v7150 = vrot.slane %v7134, %v7149
  %v7152 = vunpack.c.l.s4 1966171168
  %v7153 = vunpack.c.0.s8 %v7152
  %v7154 = vlaneseq
  %v7155 = vshrl.u32 %v7154, 7
  %v7156 = vsub.s32 %v7153, %v7155
  %v7157 = vrot.slane %v7135, %v7156
  %v7159 = vunpack.c.l.s4 1966171168
  %v7160 = vunpack.c.0.s8 %v7159
  %v7161 = vlaneseq
  %v7162 = vshrl.u32 %v7161, 7
  %v7163 = vsub.s32 %v7160, %v7162
  %v7164 = vrot.slane %v7136, %v7163
  %v7165 = vcombine.low %v7143, %v7150
  %v7166 = vcombine.low %v7157, %v7164
  %v7168 = vunpack.c.l.s4 1966171168
  %v7169 = vunpack.c.0.s8 %v7168
  %v7170 = vlaneseq
  %v7171 = vshrl.u32 %v7170, 7
  %v7172 = vsub.s32 %v7169, %v7171
  %v7173 = vrot.slane %v7165, %v7172
  %v7175 = vunpack.c.l.s4 1966171168
  %v7176 = vunpack.c.0.s8 %v7175
  %v7177 = vlaneseq
  %v7178 = vshrl.u32 %v7177, 7
  %v7179 = vsub.s32 %v7176, %v7178
  %v7180 = vrot.slane %v7166, %v7179
  %v7181 = vcombine.low %v7173, %v7180
  %v7183 = vunpack.c.l.s4 1966171168
  %v7184 = vunpack.c.0.s8 %v7183
  %v7185 = vlaneseq
  %v7186 = vshrl.u32 %v7185, 7
  %v7187 = vsub.s32 %v7184, %v7186
  %v7188 = vrot.slane %v6313, %v7187
  %v7190 = vunpack.c.l.s4 1966171168
  %v7191 = vunpack.c.0.s8 %v7190
  %v7192 = vlaneseq
  %v7193 = vshrl.u32 %v7192, 7
  %v7194 = vsub.s32 %v7191, %v7193
  %v7195 = vrot.slane %v7188, %v7194
  %v7202 = vpack.c.bf16 %v7069, %v7020
  %v7203 = vpack.c.bf16 %v7083, %v7083
  %v7204 = vpack.c.bf16 %v7181, %v7132
  %v7205 = vpack.c.bf16 %v7195, %v7195
  %v7207 = vsel %vm2014, %v6968, 0
  %v7210 = vsel %vm2014, %v6969, 0
  %v7213 = vand.u32 %v7203, %v2327
  %7215 = vmatprep.subr.bf16.mxu0 0
  %7216 = vmatpush1.bf16.msra.mxu0 %v7202
  %7217 = vmatprep.subr.bf16.mxu0 0
  %7218 = vmatpush1.bf16.msra.mxu0 %v7213
  %7219 = vmatprep.subr.bf16.mxu0 0
  %7220 = vmatpush1.bf16.msra.mxu0 0
  %7221 = vmatprep.subr.bf16.mxu0 0
  %7222 = vmatpush1.bf16.msra.mxu0 0
  %7223 = vmatprep.subr.bf16.mxu0 0
  %7224 = vmatpush1.bf16.msra.mxu0 0
  %7225 = vmatprep.subr.bf16.mxu0 0
  %7226 = vmatpush1.bf16.msra.mxu0 0
  %7227 = vmatprep.subr.bf16.mxu0 0
  %7228 = vmatpush1.bf16.msra.mxu0 0
  %7229 = vmatprep.subr.bf16.mxu0 0
  %7230 = vmatpush1.bf16.msra.mxu0 0
  %7231 = vmatprep.subr.bf16.mxu0 0
  %7232 = vmatpush1.bf16.msra.mxu0 0
  %7233 = vmatprep.subr.bf16.mxu0 0
  %7234 = vmatpush1.bf16.msra.mxu0 0
  %7235 = vmatprep.subr.bf16.mxu0 0
  %7236 = vmatpush1.bf16.msra.mxu0 0
  %7237 = vmatprep.subr.bf16.mxu0 0
  %7238 = vmatpush1.bf16.msra.mxu0 0
  %7239 = vmatprep.subr.bf16.mxu0 0
  %7240 = vmatpush1.bf16.msra.mxu0 0
  %7241 = vmatprep.subr.bf16.mxu0 0
  %7242 = vmatpush1.bf16.msra.mxu0 0
  %7243 = vmatprep.subr.bf16.mxu0 0
  %7244 = vmatpush1.bf16.msra.mxu0 0
  %7245 = vmatprep.subr.bf16.mxu0 0
  %7246 = vmatpush1.bf16.msra.mxu0 0
  %7247 = vmatprep.mubr.bf16.mxu0 0
  %7248 = vmatmul.mubr.bf16.gmra.mrb[0].mxu0 %v7207
  %v7249 = vpop.f32.mrb[0].mxu0
  %v7250 = vadd.f32 0.0, %v7249
  %v7251 = vpop.f32.mrb[0].mxu0
  %v7252 = vpop.f32.mrb[0].mxu0
  %v7253 = vadd.f32 0.0, %v7252
  %v7254 = vpop.f32.mrb[0].mxu0
  %7255 = vmatprep.mubr.bf16.mxu0 0
  %7256 = vmatmul.mubr.bf16.gmra.mrb[0].mxu0 %v7210
  %v7257 = vpop.f32.mrb[0].mxu0
  %v7258 = vadd.f32 0.0, %v7257
  %v7259 = vpop.f32.mrb[0].mxu0
  %v7260 = vpop.f32.mrb[0].mxu0
  %v7261 = vpop.f32.mrb[0].mxu0
  %7262 = vdwg.mxu0
  %v7264 = vsel %vm2014, %v6970, 0
  %v7267 = vsel %vm2014, %v6971, 0
  %v7270 = vand.u32 %v7205, %v2327
  %7272 = vmatprep.subr.bf16.mxu0 0
  %7273 = vmatpush1.bf16.msra.mxu0 %v7204
  %7274 = vmatprep.subr.bf16.mxu0 0
  %7275 = vmatpush1.bf16.msra.mxu0 %v7270
  %7276 = vmatprep.subr.bf16.mxu0 0
  %7277 = vmatpush1.bf16.msra.mxu0 0
  %7278 = vmatprep.subr.bf16.mxu0 0
  %7279 = vmatpush1.bf16.msra.mxu0 0
  %7280 = vmatprep.subr.bf16.mxu0 0
  %7281 = vmatpush1.bf16.msra.mxu0 0
  %7282 = vmatprep.subr.bf16.mxu0 0
  %7283 = vmatpush1.bf16.msra.mxu0 0
  %7284 = vmatprep.subr.bf16.mxu0 0
  %7285 = vmatpush1.bf16.msra.mxu0 0
  %7286 = vmatprep.subr.bf16.mxu0 0
  %7287 = vmatpush1.bf16.msra.mxu0 0
  %7288 = vmatprep.subr.bf16.mxu0 0
  %7289 = vmatpush1.bf16.msra.mxu0 0
  %7290 = vmatprep.subr.bf16.mxu0 0
  %7291 = vmatpush1.bf16.msra.mxu0 0
  %7292 = vmatprep.subr.bf16.mxu0 0
  %7293 = vmatpush1.bf16.msra.mxu0 0
  %7294 = vmatprep.subr.bf16.mxu0 0
  %7295 = vmatpush1.bf16.msra.mxu0 0
  %7296 = vmatprep.subr.bf16.mxu0 0
  %7297 = vmatpush1.bf16.msra.mxu0 0
  %7298 = vmatprep.subr.bf16.mxu0 0
  %7299 = vmatpush1.bf16.msra.mxu0 0
  %7300 = vmatprep.subr.bf16.mxu0 0
  %7301 = vmatpush1.bf16.msra.mxu0 0
  %7302 = vmatprep.subr.bf16.mxu0 0
  %7303 = vmatpush1.bf16.msra.mxu0 0
  %7304 = vmatprep.mubr.bf16.mxu0 0
  %7305 = vmatmul.mubr.bf16.gmra.mrb[0].mxu0 %v7264
  %v7306 = vpop.f32.mrb[0].mxu0
  %v7307 = vadd.f32 0.0, %v7306
  %v7308 = vpop.f32.mrb[0].mxu0
  %v7309 = vpop.f32.mrb[0].mxu0
  %v7310 = vadd.f32 0.0, %v7309
  %v7311 = vpop.f32.mrb[0].mxu0
  %7312 = vmatprep.mubr.bf16.mxu0 0
  %7313 = vmatmul.mubr.bf16.gmra.mrb[0].mxu0 %v7267
  %v7314 = vpop.f32.mrb[0].mxu0
  %v7315 = vadd.f32 0.0, %v7314
  %v7316 = vpop.f32.mrb[0].mxu0
  %v7317 = vpop.f32.mrb[0].mxu0
  %v7318 = vpop.f32.mrb[0].mxu0
  %7319 = vdwg.mxu0
  %v7326 = vcombine.high %v7250, %v7250
  %v7328 = vunpack.c.l.s4 1966171168
  %v7329 = vunpack.c.0.s8 %v7328
  %v7330 = vlaneseq
  %v7331 = vshrl.u32 %v7330, 7
  %v7332 = vsub.s32 %v7329, %v7331
  %v7333 = vrot.slane %v7250, %v7332
  %v7335 = vunpack.c.l.s4 1966171168
  %v7336 = vunpack.c.0.s8 %v7335
  %v7337 = vlaneseq
  %v7338 = vshrl.u32 %v7337, 7
  %v7339 = vsub.s32 %v7336, %v7338
  %v7340 = vrot.slane %v7326, %v7339
  %v7341 = vcombine.high %v7333, %v7333
  %v7342 = vcombine.high %v7340, %v7340
  %v7344 = vunpack.c.l.s4 1966171168
  %v7345 = vunpack.c.0.s8 %v7344
  %v7346 = vlaneseq
  %v7347 = vshrl.u32 %v7346, 7
  %v7348 = vsub.s32 %v7345, %v7347
  %v7349 = vrot.slane %v7333, %v7348
  %v7351 = vunpack.c.l.s4 1966171168
  %v7352 = vunpack.c.0.s8 %v7351
  %v7353 = vlaneseq
  %v7354 = vshrl.u32 %v7353, 7
  %v7355 = vsub.s32 %v7352, %v7354
  %v7356 = vrot.slane %v7340, %v7355
  %v7358 = vunpack.c.l.s4 1966171168
  %v7359 = vunpack.c.0.s8 %v7358
  %v7360 = vlaneseq
  %v7361 = vshrl.u32 %v7360, 7
  %v7362 = vsub.s32 %v7359, %v7361
  %v7363 = vrot.slane %v7341, %v7362
  %v7365 = vunpack.c.l.s4 1966171168
  %v7366 = vunpack.c.0.s8 %v7365
  %v7367 = vlaneseq
  %v7368 = vshrl.u32 %v7367, 7
  %v7369 = vsub.s32 %v7366, %v7368
  %v7370 = vrot.slane %v7342, %v7369
  %v7371 = vcombine.high %v7349, %v7349
  %v7372 = vcombine.high %v7356, %v7356
  %v7373 = vcombine.high %v7363, %v7363
  %v7374 = vcombine.high %v7370, %v7370
  %v7375 = vcombine.high %v7253, %v7253
  %v7377 = vunpack.c.l.s4 1966171168
  %v7378 = vunpack.c.0.s8 %v7377
  %v7379 = vlaneseq
  %v7380 = vshrl.u32 %v7379, 7
  %v7381 = vsub.s32 %v7378, %v7380
  %v7382 = vrot.slane %v7253, %v7381
  %v7384 = vunpack.c.l.s4 1966171168
  %v7385 = vunpack.c.0.s8 %v7384
  %v7386 = vlaneseq
  %v7387 = vshrl.u32 %v7386, 7
  %v7388 = vsub.s32 %v7385, %v7387
  %v7389 = vrot.slane %v7375, %v7388
  %v7390 = vcombine.high %v7382, %v7382
  %v7391 = vcombine.high %v7389, %v7389
  %v7393 = vunpack.c.l.s4 1966171168
  %v7394 = vunpack.c.0.s8 %v7393
  %v7395 = vlaneseq
  %v7396 = vshrl.u32 %v7395, 7
  %v7397 = vsub.s32 %v7394, %v7396
  %v7398 = vrot.slane %v7382, %v7397
  %v7400 = vunpack.c.l.s4 1966171168
  %v7401 = vunpack.c.0.s8 %v7400
  %v7402 = vlaneseq
  %v7403 = vshrl.u32 %v7402, 7
  %v7404 = vsub.s32 %v7401, %v7403
  %v7405 = vrot.slane %v7389, %v7404
  %v7407 = vunpack.c.l.s4 1966171168
  %v7408 = vunpack.c.0.s8 %v7407
  %v7409 = vlaneseq
  %v7410 = vshrl.u32 %v7409, 7
  %v7411 = vsub.s32 %v7408, %v7410
  %v7412 = vrot.slane %v7390, %v7411
  %v7414 = vunpack.c.l.s4 1966171168
  %v7415 = vunpack.c.0.s8 %v7414
  %v7416 = vlaneseq
  %v7417 = vshrl.u32 %v7416, 7
  %v7418 = vsub.s32 %v7415, %v7417
  %v7419 = vrot.slane %v7391, %v7418
  %v7420 = vcombine.high %v7398, %v7398
  %v7421 = vcombine.high %v7405, %v7405
  %v7422 = vcombine.high %v7412, %v7412
  %v7423 = vcombine.high %v7419, %v7419
  %v7425 = vunpack.c.l.s4 1966171168
  %v7426 = vunpack.c.0.s8 %v7425
  %v7427 = vlaneseq
  %v7428 = vshrl.u32 %v7427, 7
  %v7429 = vsub.s32 %v7426, %v7428
  %v7430 = vrot.slane %v7258, %v7429
  %v7432 = vunpack.c.l.s4 1966171168
  %v7433 = vunpack.c.0.s8 %v7432
  %v7434 = vlaneseq
  %v7435 = vshrl.u32 %v7434, 7
  %v7436 = vsub.s32 %v7433, %v7435
  %v7437 = vrot.slane %v7430, %v7436
  %v7438 = vcombine.high %v7307, %v7307
  %v7440 = vunpack.c.l.s4 1966171168
  %v7441 = vunpack.c.0.s8 %v7440
  %v7442 = vlaneseq
  %v7443 = vshrl.u32 %v7442, 7
  %v7444 = vsub.s32 %v7441, %v7443
  %v7445 = vrot.slane %v7307, %v7444
  %v7447 = vunpack.c.l.s4 1966171168
  %v7448 = vunpack.c.0.s8 %v7447
  %v7449 = vlaneseq
  %v7450 = vshrl.u32 %v7449, 7
  %v7451 = vsub.s32 %v7448, %v7450
  %v7452 = vrot.slane %v7438, %v7451
  %v7453 = vcombine.high %v7445, %v7445
  %v7454 = vcombine.high %v7452, %v7452
  %v7456 = vunpack.c.l.s4 1966171168
  %v7457 = vunpack.c.0.s8 %v7456
  %v7458 = vlaneseq
  %v7459 = vshrl.u32 %v7458, 7
  %v7460 = vsub.s32 %v7457, %v7459
  %v7461 = vrot.slane %v7445, %v7460
  %v7463 = vunpack.c.l.s4 1966171168
  %v7464 = vunpack.c.0.s8 %v7463
  %v7465 = vlaneseq
  %v7466 = vshrl.u32 %v7465, 7
  %v7467 = vsub.s32 %v7464, %v7466
  %v7468 = vrot.slane %v7452, %v7467
  %v7470 = vunpack.c.l.s4 1966171168
  %v7471 = vunpack.c.0.s8 %v7470
  %v7472 = vlaneseq
  %v7473 = vshrl.u32 %v7472, 7
  %v7474 = vsub.s32 %v7471, %v7473
  %v7475 = vrot.slane %v7453, %v7474
  %v7477 = vunpack.c.l.s4 1966171168
  %v7478 = vunpack.c.0.s8 %v7477
  %v7479 = vlaneseq
  %v7480 = vshrl.u32 %v7479, 7
  %v7481 = vsub.s32 %v7478, %v7480
  %v7482 = vrot.slane %v7454, %v7481
  %v7483 = vcombine.high %v7461, %v7461
  %v7484 = vcombine.high %v7468, %v7468
  %v7485 = vcombine.high %v7475, %v7475
  %v7486 = vcombine.high %v7482, %v7482
  %v7487 = vcombine.high %v7310, %v7310
  %v7489 = vunpack.c.l.s4 1966171168
  %v7490 = vunpack.c.0.s8 %v7489
  %v7491 = vlaneseq
  %v7492 = vshrl.u32 %v7491, 7
  %v7493 = vsub.s32 %v7490, %v7492
  %v7494 = vrot.slane %v7310, %v7493
  %v7496 = vunpack.c.l.s4 1966171168
  %v7497 = vunpack.c.0.s8 %v7496
  %v7498 = vlaneseq
  %v7499 = vshrl.u32 %v7498, 7
  %v7500 = vsub.s32 %v7497, %v7499
  %v7501 = vrot.slane %v7487, %v7500
  %v7502 = vcombine.high %v7494, %v7494
  %v7503 = vcombine.high %v7501, %v7501
  %v7505 = vunpack.c.l.s4 1966171168
  %v7506 = vunpack.c.0.s8 %v7505
  %v7507 = vlaneseq
  %v7508 = vshrl.u32 %v7507, 7
  %v7509 = vsub.s32 %v7506, %v7508
  %v7510 = vrot.slane %v7494, %v7509
  %v7512 = vunpack.c.l.s4 1966171168
  %v7513 = vunpack.c.0.s8 %v7512
  %v7514 = vlaneseq
  %v7515 = vshrl.u32 %v7514, 7
  %v7516 = vsub.s32 %v7513, %v7515
  %v7517 = vrot.slane %v7501, %v7516
  %v7519 = vunpack.c.l.s4 1966171168
  %v7520 = vunpack.c.0.s8 %v7519
  %v7521 = vlaneseq
  %v7522 = vshrl.u32 %v7521, 7
  %v7523 = vsub.s32 %v7520, %v7522
  %v7524 = vrot.slane %v7502, %v7523
  %v7526 = vunpack.c.l.s4 1966171168
  %v7527 = vunpack.c.0.s8 %v7526
  %v7528 = vlaneseq
  %v7529 = vshrl.u32 %v7528, 7
  %v7530 = vsub.s32 %v7527, %v7529
  %v7531 = vrot.slane %v7503, %v7530
  %v7532 = vcombine.high %v7510, %v7510
  %v7533 = vcombine.high %v7517, %v7517
  %v7534 = vcombine.high %v7524, %v7524
  %v7535 = vcombine.high %v7531, %v7531
  %v7537 = vunpack.c.l.s4 1966171168
  %v7538 = vunpack.c.0.s8 %v7537
  %v7539 = vlaneseq
  %v7540 = vshrl.u32 %v7539, 7
  %v7541 = vsub.s32 %v7538, %v7540
  %v7542 = vrot.slane %v7315, %v7541
  %v7544 = vunpack.c.l.s4 1966171168
  %v7545 = vunpack.c.0.s8 %v7544
  %v7546 = vlaneseq
  %v7547 = vshrl.u32 %v7546, 7
  %v7548 = vsub.s32 %v7545, %v7547
  %v7549 = vrot.slane %v7542, %v7548
  %v7550 = vcombine.low %v7349, %v7363
  %v7551 = vcombine.low %v7371, %v7373
  %v7552 = vcombine.low %v7356, %v7370
  %v7553 = vcombine.low %v7372, %v7374
  %v7555 = vunpack.c.l.s4 1966171168
  %v7556 = vunpack.c.0.s8 %v7555
  %v7557 = vlaneseq
  %v7558 = vshrl.u32 %v7557, 7
  %v7559 = vsub.s32 %v7556, %v7558
  %v7560 = vrot.slane %v7550, %v7559
  %v7562 = vunpack.c.l.s4 1966171168
  %v7563 = vunpack.c.0.s8 %v7562
  %v7564 = vlaneseq
  %v7565 = vshrl.u32 %v7564, 7
  %v7566 = vsub.s32 %v7563, %v7565
  %v7567 = vrot.slane %v7551, %v7566
  %v7569 = vunpack.c.l.s4 1966171168
  %v7570 = vunpack.c.0.s8 %v7569
  %v7571 = vlaneseq
  %v7572 = vshrl.u32 %v7571, 7
  %v7573 = vsub.s32 %v7570, %v7572
  %v7574 = vrot.slane %v7552, %v7573
  %v7576 = vunpack.c.l.s4 1966171168
  %v7577 = vunpack.c.0.s8 %v7576
  %v7578 = vlaneseq
  %v7579 = vshrl.u32 %v7578, 7
  %v7580 = vsub.s32 %v7577, %v7579
  %v7581 = vrot.slane %v7553, %v7580
  %v7582 = vcombine.low %v7560, %v7567
  %v7583 = vcombine.low %v7574, %v7581
  %v7585 = vunpack.c.l.s4 1966171168
  %v7586 = vunpack.c.0.s8 %v7585
  %v7587 = vlaneseq
  %v7588 = vshrl.u32 %v7587, 7
  %v7589 = vsub.s32 %v7586, %v7588
  %v7590 = vrot.slane %v7582, %v7589
  %v7592 = vunpack.c.l.s4 1966171168
  %v7593 = vunpack.c.0.s8 %v7592
  %v7594 = vlaneseq
  %v7595 = vshrl.u32 %v7594, 7
  %v7596 = vsub.s32 %v7593, %v7595
  %v7597 = vrot.slane %v7583, %v7596
  %v7598 = vcombine.low %v7590, %v7597
  %v7599 = vcombine.low %v7398, %v7412
  %v7600 = vcombine.low %v7420, %v7422
  %v7601 = vcombine.low %v7405, %v7419
  %v7602 = vcombine.low %v7421, %v7423
  %v7604 = vunpack.c.l.s4 1966171168
  %v7605 = vunpack.c.0.s8 %v7604
  %v7606 = vlaneseq
  %v7607 = vshrl.u32 %v7606, 7
  %v7608 = vsub.s32 %v7605, %v7607
  %v7609 = vrot.slane %v7599, %v7608
  %v7611 = vunpack.c.l.s4 1966171168
  %v7612 = vunpack.c.0.s8 %v7611
  %v7613 = vlaneseq
  %v7614 = vshrl.u32 %v7613, 7
  %v7615 = vsub.s32 %v7612, %v7614
  %v7616 = vrot.slane %v7600, %v7615
  %v7618 = vunpack.c.l.s4 1966171168
  %v7619 = vunpack.c.0.s8 %v7618
  %v7620 = vlaneseq
  %v7621 = vshrl.u32 %v7620, 7
  %v7622 = vsub.s32 %v7619, %v7621
  %v7623 = vrot.slane %v7601, %v7622
  %v7625 = vunpack.c.l.s4 1966171168
  %v7626 = vunpack.c.0.s8 %v7625
  %v7627 = vlaneseq
  %v7628 = vshrl.u32 %v7627, 7
  %v7629 = vsub.s32 %v7626, %v7628
  %v7630 = vrot.slane %v7602, %v7629
  %v7631 = vcombine.low %v7609, %v7616
  %v7632 = vcombine.low %v7623, %v7630
  %v7634 = vunpack.c.l.s4 1966171168
  %v7635 = vunpack.c.0.s8 %v7634
  %v7636 = vlaneseq
  %v7637 = vshrl.u32 %v7636, 7
  %v7638 = vsub.s32 %v7635, %v7637
  %v7639 = vrot.slane %v7631, %v7638
  %v7641 = vunpack.c.l.s4 1966171168
  %v7642 = vunpack.c.0.s8 %v7641
  %v7643 = vlaneseq
  %v7644 = vshrl.u32 %v7643, 7
  %v7645 = vsub.s32 %v7642, %v7644
  %v7646 = vrot.slane %v7632, %v7645
  %v7647 = vcombine.low %v7639, %v7646
  %v7648 = vcombine.low %v7437, %v7461
  %v7649 = vcombine.low %v7475, %v7483
  %v7650 = vcombine.low %v7485, %v7468
  %v7651 = vcombine.low %v7482, %v7484
  %v7653 = vunpack.c.l.s4 1966171168
  %v7654 = vunpack.c.0.s8 %v7653
  %v7655 = vlaneseq
  %v7656 = vshrl.u32 %v7655, 7
  %v7657 = vsub.s32 %v7654, %v7656
  %v7658 = vrot.slane %v7648, %v7657
  %v7660 = vunpack.c.l.s4 1966171168
  %v7661 = vunpack.c.0.s8 %v7660
  %v7662 = vlaneseq
  %v7663 = vshrl.u32 %v7662, 7
  %v7664 = vsub.s32 %v7661, %v7663
  %v7665 = vrot.slane %v7649, %v7664
  %v7667 = vunpack.c.l.s4 1966171168
  %v7668 = vunpack.c.0.s8 %v7667
  %v7669 = vlaneseq
  %v7670 = vshrl.u32 %v7669, 7
  %v7671 = vsub.s32 %v7668, %v7670
  %v7672 = vrot.slane %v7650, %v7671
  %v7674 = vunpack.c.l.s4 1966171168
  %v7675 = vunpack.c.0.s8 %v7674
  %v7676 = vlaneseq
  %v7677 = vshrl.u32 %v7676, 7
  %v7678 = vsub.s32 %v7675, %v7677
  %v7679 = vrot.slane %v7651, %v7678
  %v7680 = vcombine.low %v7658, %v7665
  %v7681 = vcombine.low %v7672, %v7679
  %v7683 = vunpack.c.l.s4 1966171168
  %v7684 = vunpack.c.0.s8 %v7683
  %v7685 = vlaneseq
  %v7686 = vshrl.u32 %v7685, 7
  %v7687 = vsub.s32 %v7684, %v7686
  %v7688 = vrot.slane %v7680, %v7687
  %v7690 = vunpack.c.l.s4 1966171168
  %v7691 = vunpack.c.0.s8 %v7690
  %v7692 = vlaneseq
  %v7693 = vshrl.u32 %v7692, 7
  %v7694 = vsub.s32 %v7691, %v7693
  %v7695 = vrot.slane %v7681, %v7694
  %v7696 = vcombine.low %v7688, %v7695
  %v7697 = vcombine.low %v7486, %v7510
  %v7698 = vcombine.low %v7524, %v7532
  %v7699 = vcombine.low %v7534, %v7517
  %v7700 = vcombine.low %v7531, %v7533
  %v7702 = vunpack.c.l.s4 1966171168
  %v7703 = vunpack.c.0.s8 %v7702
  %v7704 = vlaneseq
  %v7705 = vshrl.u32 %v7704, 7
  %v7706 = vsub.s32 %v7703, %v7705
  %v7707 = vrot.slane %v7697, %v7706
  %v7709 = vunpack.c.l.s4 1966171168
  %v7710 = vunpack.c.0.s8 %v7709
  %v7711 = vlaneseq
  %v7712 = vshrl.u32 %v7711, 7
  %v7713 = vsub.s32 %v7710, %v7712
  %v7714 = vrot.slane %v7698, %v7713
  %v7716 = vunpack.c.l.s4 1966171168
  %v7717 = vunpack.c.0.s8 %v7716
  %v7718 = vlaneseq
  %v7719 = vshrl.u32 %v7718, 7
  %v7720 = vsub.s32 %v7717, %v7719
  %v7721 = vrot.slane %v7699, %v7720
  %v7723 = vunpack.c.l.s4 1966171168
  %v7724 = vunpack.c.0.s8 %v7723
  %v7725 = vlaneseq
  %v7726 = vshrl.u32 %v7725, 7
  %v7727 = vsub.s32 %v7724, %v7726
  %v7728 = vrot.slane %v7700, %v7727
  %v7729 = vcombine.low %v7707, %v7714
  %v7730 = vcombine.low %v7721, %v7728
  %v7732 = vunpack.c.l.s4 1966171168
  %v7733 = vunpack.c.0.s8 %v7732
  %v7734 = vlaneseq
  %v7735 = vshrl.u32 %v7734, 7
  %v7736 = vsub.s32 %v7733, %v7735
  %v7737 = vrot.slane %v7729, %v7736
  %v7739 = vunpack.c.l.s4 1966171168
  %v7740 = vunpack.c.0.s8 %v7739
  %v7741 = vlaneseq
  %v7742 = vshrl.u32 %v7741, 7
  %v7743 = vsub.s32 %v7740, %v7742
  %v7744 = vrot.slane %v7730, %v7743
  %v7745 = vcombine.low %v7737, %v7744
  %v7746 = vcombine.low %v7535, %v7549
  %v7748 = vunpack.c.l.s4 1966171168
  %v7749 = vunpack.c.0.s8 %v7748
  %v7750 = vlaneseq
  %v7751 = vshrl.u32 %v7750, 7
  %v7752 = vsub.s32 %v7749, %v7751
  %v7753 = vrot.slane %v7746, %v7752
  %v7755 = vunpack.c.l.s4 1966171168
  %v7756 = vunpack.c.0.s8 %v7755
  %v7757 = vlaneseq
  %v7758 = vshrl.u32 %v7757, 7
  %v7759 = vsub.s32 %v7756, %v7758
  %v7760 = vrot.slane %v7753, %v7759
  %v7766 = vpack.c.bf16 %v7647, %v7598
  %v7767 = vpack.c.bf16 %v7745, %v7696
  %v7768 = vpack.c.bf16 %v7760, %v7760
  %s7769 = scalar_lea.vmem %s8, 8
  %v7770 = vld [vmem:[%s7769] sm:$0xf]
  %v7772 = vsel %vm1893, %v7766, 0
  %v7775 = vsel %vm1893, %v7767, 0
  %v7778 = vsel %vm1893, %v7768, 0
  %v7781 = vsel %vm5269, %v7770, 0
  %7783 = vmatprep.subr.bf16.mxu0 0
  %7784 = vmatpush1.bf16.msra.mxu0 %v7781
  %7785 = vmatprep.subr.bf16.mxu0 0
  %7786 = vmatpush1.bf16.msra.mxu0 0
  %7787 = vmatprep.subr.bf16.mxu0 0
  %7788 = vmatpush1.bf16.msra.mxu0 0
  %7789 = vmatprep.subr.bf16.mxu0 0
  %7790 = vmatpush1.bf16.msra.mxu0 0
  %7791 = vmatprep.subr.bf16.mxu0 0
  %7792 = vmatpush1.bf16.msra.mxu0 0
  %7793 = vmatprep.subr.bf16.mxu0 0
  %7794 = vmatpush1.bf16.msra.mxu0 0
  %7795 = vmatprep.subr.bf16.mxu0 0
  %7796 = vmatpush1.bf16.msra.mxu0 0
  %7797 = vmatprep.subr.bf16.mxu0 0
  %7798 = vmatpush1.bf16.msra.mxu0 0
  %7799 = vmatprep.subr.bf16.mxu0 0
  %7800 = vmatpush1.bf16.msra.mxu0 0
  %7801 = vmatprep.subr.bf16.mxu0 0
  %7802 = vmatpush1.bf16.msra.mxu0 0
  %7803 = vmatprep.subr.bf16.mxu0 0
  %7804 = vmatpush1.bf16.msra.mxu0 0
  %7805 = vmatprep.subr.bf16.mxu0 0
  %7806 = vmatpush1.bf16.msra.mxu0 0
  %7807 = vmatprep.subr.bf16.mxu0 0
  %7808 = vmatpush1.bf16.msra.mxu0 0
  %7809 = vmatprep.subr.bf16.mxu0 0
  %7810 = vmatpush1.bf16.msra.mxu0 0
  %7811 = vmatprep.subr.bf16.mxu0 0
  %7812 = vmatpush1.bf16.msra.mxu0 0
  %7813 = vmatprep.subr.bf16.mxu0 0
  %7814 = vmatpush1.bf16.msra.mxu0 0
  %7815 = vmatprep.mubr.bf16.mxu0 0
  %7816 = vmatmul.mubr.bf16.gmra.mrb[0].mxu0 %v7772
  %v7817 = vpop.f32.mrb[0].mxu0
  %v7818 = vadd.f32 0.0, %v7817
  %v7819 = vpop.f32.mrb[0].mxu0
  %v7820 = vpop.f32.mrb[0].mxu0
  %v7821 = vadd.f32 0.0, %v7820
  %v7822 = vpop.f32.mrb[0].mxu0
  %7823 = vmatprep.mubr.bf16.mxu0 0
  %7824 = vmatmul.mubr.bf16.gmra.mrb[0].mxu0 %v7775
  %v7825 = vpop.f32.mrb[0].mxu0
  %v7826 = vadd.f32 0.0, %v7825
  %v7827 = vpop.f32.mrb[0].mxu0
  %v7828 = vpop.f32.mrb[0].mxu0
  %v7829 = vadd.f32 0.0, %v7828
  %v7830 = vpop.f32.mrb[0].mxu0
  %7831 = vmatprep.mubr.bf16.mxu0 0
  %7832 = vmatmul.mubr.bf16.gmra.mrb[0].mxu0 %v7778
  %v7833 = vpop.f32.mrb[0].mxu0
  %v7834 = vadd.f32 0.0, %v7833
  %v7835 = vpop.f32.mrb[0].mxu0
  %v7836 = vpop.f32.mrb[0].mxu0
  %v7837 = vpop.f32.mrb[0].mxu0
  %7838 = vdwg.mxu0
  %v7839 = vadd.f32 %v5376, %v7818
  %v7840 = vadd.f32 %v5379, %v7821
  %v7841 = vadd.f32 %v5384, %v7826
  %v7842 = vadd.f32 %v5387, %v7829
  %v7843 = vadd.f32 %v5392, %v7834
  %s7844 = scalar_lea.vmem %s2, 48
  %v7845 = vld [vmem:[%s7844] sm:$0xf]
  %v7846 = vld [vmem:[%s7844 + $0x4] sm:$0xf]
  %v7847 = vld [vmem:[%s7844 + $0x8] sm:$0xf]
  %v7848 = vld [vmem:[%s7844 + $0xc] sm:$0xf]
  %s7849 = scalar_lea.vmem %s5, 3
  %v7850 = vld [vmem:[%s7849] sm:$0x1]
  %v7852 = vlaneseq
  %v7853 = vshrl.u32 %v7852, 7
  %v7854 = vsub.s32 0, %v7853
  %v7855 = vrot.slane %v7850, %v7854
  %v7861 = vunpack.c.l.b16 %v7845
  %v7862 = vunpack.c.l.b16 %v7846
  %v7863 = vunpack.c.l.b16 %v7847
  %v7864 = vunpack.c.l.b16 %v7848
  %v7865 = vpack.c.b16 %v7862, %v7861
  %v7866 = vpack.c.b16 %v7864, %v7863
  %7869 = vmatprep.subr.bf16.mxu0 0
  %7870 = vmatpush1.bf16.msra.mxu0 %v7865
  %7871 = vmatprep.subr.bf16.mxu0 0
  %7872 = vmatpush1.bf16.msra.mxu0 %v7866
  %7873 = vmatprep.subr.bf16.mxu0 0
  %7874 = vmatpush1.bf16.msra.mxu0 0
  %7875 = vmatprep.subr.bf16.mxu0 0
  %7876 = vmatpush1.bf16.msra.mxu0 0
  %7877 = vmatprep.subr.bf16.mxu0 0
  %7878 = vmatpush1.bf16.msra.mxu0 0
  %7879 = vmatprep.subr.bf16.mxu0 0
  %7880 = vmatpush1.bf16.msra.mxu0 0
  %7881 = vmatprep.subr.bf16.mxu0 0
  %7882 = vmatpush1.bf16.msra.mxu0 0
  %7883 = vmatprep.subr.bf16.mxu0 0
  %7884 = vmatpush1.bf16.msra.mxu0 0
  %7885 = vmatprep.subr.bf16.mxu0 0
  %7886 = vmatpush1.bf16.msra.mxu0 0
  %7887 = vmatprep.subr.bf16.mxu0 0
  %7888 = vmatpush1.bf16.msra.mxu0 0
  %7889 = vmatprep.subr.bf16.mxu0 0
  %7890 = vmatpush1.bf16.msra.mxu0 0
  %7891 = vmatprep.subr.bf16.mxu0 0
  %7892 = vmatpush1.bf16.msra.mxu0 0
  %7893 = vmatprep.subr.bf16.mxu0 0
  %7894 = vmatpush1.bf16.msra.mxu0 0
  %7895 = vmatprep.subr.bf16.mxu0 0
  %7896 = vmatpush1.bf16.msra.mxu0 0
  %7897 = vmatprep.subr.bf16.mxu0 0
  %7898 = vmatpush1.bf16.msra.mxu0 0
  %7899 = vmatprep.subr.bf16.mxu0 0
  %7900 = vmatpush1.bf16.msra.mxu0 0
  %7901 = vmatprep.mubr.bf16.mxu0 0
  %7902 = vmatmul.mubr.bf16.gmra.mrb[0].mxu0 %v529
  %v7903 = vpop.f32.mrb[0].mxu0
  %v7904 = vadd.f32 %v7855, %v7903
  %v7905 = vpop.f32.mrb[0].mxu0
  %v7906 = vpop.f32.mrb[0].mxu0
  %v7907 = vadd.f32 %v7855, %v7906
  %v7908 = vpop.f32.mrb[0].mxu0
  %7909 = vmatprep.mubr.bf16.mxu0 0
  %7910 = vmatmul.mubr.bf16.gmra.mrb[0].mxu0 %v532
  %v7911 = vpop.f32.mrb[0].mxu0
  %v7912 = vadd.f32 %v7855, %v7911
  %v7913 = vpop.f32.mrb[0].mxu0
  %v7914 = vpop.f32.mrb[0].mxu0
  %v7915 = vadd.f32 %v7855, %v7914
  %v7916 = vpop.f32.mrb[0].mxu0
  %7917 = vmatprep.mubr.bf16.mxu0 0
  %7918 = vmatmul.mubr.bf16.gmra.mrb[0].mxu0 %v535
  %v7919 = vpop.f32.mrb[0].mxu0
  %v7920 = vadd.f32 %v7855, %v7919
  %v7921 = vpop.f32.mrb[0].mxu0
  %v7922 = vpop.f32.mrb[0].mxu0
  %v7923 = vpop.f32.mrb[0].mxu0
  %7924 = vdwg.mxu0
  %s7925 = scalar_lea.vmem %s3, 48
  %v7926 = vld [vmem:[%s7925] sm:$0xf]
  %v7927 = vld [vmem:[%s7925 + $0x4] sm:$0xf]
  %v7928 = vld [vmem:[%s7925 + $0x8] sm:$0xf]
  %v7929 = vld [vmem:[%s7925 + $0xc] sm:$0xf]
  %s7930 = scalar_lea.vmem %s6, 3
  %v7931 = vld [vmem:[%s7930] sm:$0x1]
  %v7933 = vlaneseq
  %v7934 = vshrl.u32 %v7933, 7
  %v7935 = vsub.s32 0, %v7934
  %v7936 = vrot.slane %v7931, %v7935
  %v7942 = vunpack.c.l.b16 %v7926
  %v7943 = vunpack.c.l.b16 %v7927
  %v7944 = vunpack.c.l.b16 %v7928
  %v7945 = vunpack.c.l.b16 %v7929
  %v7946 = vpack.c.b16 %v7943, %v7942
  %v7947 = vpack.c.b16 %v7945, %v7944
  %7950 = vmatprep.subr.bf16.mxu0 0
  %7951 = vmatpush1.bf16.msra.mxu0 %v7946
  %7952 = vmatprep.subr.bf16.mxu0 0
  %7953 = vmatpush1.bf16.msra.mxu0 %v7947
  %7954 = vmatprep.subr.bf16.mxu0 0
  %7955 = vmatpush1.bf16.msra.mxu0 0
  %7956 = vmatprep.subr.bf16.mxu0 0
  %7957 = vmatpush1.bf16.msra.mxu0 0
  %7958 = vmatprep.subr.bf16.mxu0 0
  %7959 = vmatpush1.bf16.msra.mxu0 0
  %7960 = vmatprep.subr.bf16.mxu0 0
  %7961 = vmatpush1.bf16.msra.mxu0 0
  %7962 = vmatprep.subr.bf16.mxu0 0
  %7963 = vmatpush1.bf16.msra.mxu0 0
  %7964 = vmatprep.subr.bf16.mxu0 0
  %7965 = vmatpush1.bf16.msra.mxu0 0
  %7966 = vmatprep.subr.bf16.mxu0 0
  %7967 = vmatpush1.bf16.msra.mxu0 0
  %7968 = vmatprep.subr.bf16.mxu0 0
  %7969 = vmatpush1.bf16.msra.mxu0 0
  %7970 = vmatprep.subr.bf16.mxu0 0
  %7971 = vmatpush1.bf16.msra.mxu0 0
  %7972 = vmatprep.subr.bf16.mxu0 0
  %7973 = vmatpush1.bf16.msra.mxu0 0
  %7974 = vmatprep.subr.bf16.mxu0 0
  %7975 = vmatpush1.bf16.msra.mxu0 0
  %7976 = vmatprep.subr.bf16.mxu0 0
  %7977 = vmatpush1.bf16.msra.mxu0 0
  %7978 = vmatprep.subr.bf16.mxu0 0
  %7979 = vmatpush1.bf16.msra.mxu0 0
  %7980 = vmatprep.subr.bf16.mxu0 0
  %7981 = vmatpush1.bf16.msra.mxu0 0
  %7982 = vmatprep.mubr.bf16.mxu0 0
  %7983 = vmatmul.mubr.bf16.gmra.mrb[0].mxu0 %v529
  %v7984 = vpop.f32.mrb[0].mxu0
  %v7985 = vadd.f32 %v7936, %v7984
  %v7986 = vpop.f32.mrb[0].mxu0
  %v7987 = vpop.f32.mrb[0].mxu0
  %v7988 = vadd.f32 %v7936, %v7987
  %v7989 = vpop.f32.mrb[0].mxu0
  %7990 = vmatprep.mubr.bf16.mxu0 0
  %7991 = vmatmul.mubr.bf16.gmra.mrb[0].mxu0 %v532
  %v7992 = vpop.f32.mrb[0].mxu0
  %v7993 = vadd.f32 %v7936, %v7992
  %v7994 = vpop.f32.mrb[0].mxu0
  %v7995 = vpop.f32.mrb[0].mxu0
  %v7996 = vadd.f32 %v7936, %v7995
  %v7997 = vpop.f32.mrb[0].mxu0
  %7998 = vmatprep.mubr.bf16.mxu0 0
  %7999 = vmatmul.mubr.bf16.gmra.mrb[0].mxu0 %v535
  %v8000 = vpop.f32.mrb[0].mxu0
  %v8001 = vadd.f32 %v7936, %v8000
  %v8002 = vpop.f32.mrb[0].mxu0
  %v8003 = vpop.f32.mrb[0].mxu0
  %v8004 = vpop.f32.mrb[0].mxu0
  %8005 = vdwg.mxu0
  %s8006 = scalar_lea.vmem %s4, 48
  %v8007 = vld [vmem:[%s8006] sm:$0xf]
  %v8008 = vld [vmem:[%s8006 + $0x4] sm:$0xf]
  %v8009 = vld [vmem:[%s8006 + $0x8] sm:$0xf]
  %v8010 = vld [vmem:[%s8006 + $0xc] sm:$0xf]
  %s8011 = scalar_lea.vmem %s7, 3
  %v8012 = vld [vmem:[%s8011] sm:$0x1]
  %v8014 = vlaneseq
  %v8015 = vshrl.u32 %v8014, 7
  %v8016 = vsub.s32 0, %v8015
  %v8017 = vrot.slane %v8012, %v8016
  %v8023 = vunpack.c.l.b16 %v8007
  %v8024 = vunpack.c.l.b16 %v8008
  %v8025 = vunpack.c.l.b16 %v8009
  %v8026 = vunpack.c.l.b16 %v8010
  %v8027 = vpack.c.b16 %v8024, %v8023
  %v8028 = vpack.c.b16 %v8026, %v8025
  %8031 = vmatprep.subr.bf16.mxu0 0
  %8032 = vmatpush1.bf16.msra.mxu0 %v8027
  %8033 = vmatprep.subr.bf16.mxu0 0
  %8034 = vmatpush1.bf16.msra.mxu0 %v8028
  %8035 = vmatprep.subr.bf16.mxu0 0
  %8036 = vmatpush1.bf16.msra.mxu0 0
  %8037 = vmatprep.subr.bf16.mxu0 0
  %8038 = vmatpush1.bf16.msra.mxu0 0
  %8039 = vmatprep.subr.bf16.mxu0 0
  %8040 = vmatpush1.bf16.msra.mxu0 0
  %8041 = vmatprep.subr.bf16.mxu0 0
  %8042 = vmatpush1.bf16.msra.mxu0 0
  %8043 = vmatprep.subr.bf16.mxu0 0
  %8044 = vmatpush1.bf16.msra.mxu0 0
  %8045 = vmatprep.subr.bf16.mxu0 0
  %8046 = vmatpush1.bf16.msra.mxu0 0
  %8047 = vmatprep.subr.bf16.mxu0 0
  %8048 = vmatpush1.bf16.msra.mxu0 0
  %8049 = vmatprep.subr.bf16.mxu0 0
  %8050 = vmatpush1.bf16.msra.mxu0 0
  %8051 = vmatprep.subr.bf16.mxu0 0
  %8052 = vmatpush1.bf16.msra.mxu0 0
  %8053 = vmatprep.subr.bf16.mxu0 0
  %8054 = vmatpush1.bf16.msra.mxu0 0
  %8055 = vmatprep.subr.bf16.mxu0 0
  %8056 = vmatpush1.bf16.msra.mxu0 0
  %8057 = vmatprep.subr.bf16.mxu0 0
  %8058 = vmatpush1.bf16.msra.mxu0 0
  %8059 = vmatprep.subr.bf16.mxu0 0
  %8060 = vmatpush1.bf16.msra.mxu0 0
  %8061 = vmatprep.subr.bf16.mxu0 0
  %8062 = vmatpush1.bf16.msra.mxu0 0
  %8063 = vmatprep.mubr.bf16.mxu0 0
  %8064 = vmatmul.mubr.bf16.gmra.mrb[0].mxu0 %v529
  %v8065 = vpop.f32.mrb[0].mxu0
  %v8066 = vadd.f32 %v8017, %v8065
  %v8067 = vpop.f32.mrb[0].mxu0
  %v8068 = vpop.f32.mrb[0].mxu0
  %v8069 = vadd.f32 %v8017, %v8068
  %v8070 = vpop.f32.mrb[0].mxu0
  %8071 = vmatprep.mubr.bf16.mxu0 0
  %8072 = vmatmul.mubr.bf16.gmra.mrb[0].mxu0 %v532
  %v8073 = vpop.f32.mrb[0].mxu0
  %v8074 = vadd.f32 %v8017, %v8073
  %v8075 = vpop.f32.mrb[0].mxu0
  %v8076 = vpop.f32.mrb[0].mxu0
  %v8077 = vadd.f32 %v8017, %v8076
  %v8078 = vpop.f32.mrb[0].mxu0
  %8079 = vmatprep.mubr.bf16.mxu0 0
  %8080 = vmatmul.mubr.bf16.gmra.mrb[0].mxu0 %v535
  %v8081 = vpop.f32.mrb[0].mxu0
  %v8082 = vadd.f32 %v8017, %v8081
  %v8083 = vpop.f32.mrb[0].mxu0
  %v8084 = vpop.f32.mrb[0].mxu0
  %v8085 = vpop.f32.mrb[0].mxu0
  %8086 = vdwg.mxu0
  %v8087 = vmul.f32 %v7904, 0.35355338
  %v8088 = vmul.f32 %v7907, 0.35355338
  %v8089 = vmul.f32 %v7912, 0.35355338
  %v8090 = vmul.f32 %v7915, 0.35355338
  %v8091 = vmul.f32 %v7920, 0.35355338
  %v8097 = vcombine.high %v8087, %v8087
  %v8099 = vunpack.c.l.s4 1966171168
  %v8100 = vunpack.c.0.s8 %v8099
  %v8101 = vlaneseq
  %v8102 = vshrl.u32 %v8101, 7
  %v8103 = vsub.s32 %v8100, %v8102
  %v8104 = vrot.slane %v8087, %v8103
  %v8106 = vunpack.c.l.s4 1966171168
  %v8107 = vunpack.c.0.s8 %v8106
  %v8108 = vlaneseq
  %v8109 = vshrl.u32 %v8108, 7
  %v8110 = vsub.s32 %v8107, %v8109
  %v8111 = vrot.slane %v8097, %v8110
  %v8112 = vcombine.high %v8104, %v8104
  %v8113 = vcombine.high %v8111, %v8111
  %v8115 = vunpack.c.l.s4 1966171168
  %v8116 = vunpack.c.0.s8 %v8115
  %v8117 = vlaneseq
  %v8118 = vshrl.u32 %v8117, 7
  %v8119 = vsub.s32 %v8116, %v8118
  %v8120 = vrot.slane %v8104, %v8119
  %v8122 = vunpack.c.l.s4 1966171168
  %v8123 = vunpack.c.0.s8 %v8122
  %v8124 = vlaneseq
  %v8125 = vshrl.u32 %v8124, 7
  %v8126 = vsub.s32 %v8123, %v8125
  %v8127 = vrot.slane %v8111, %v8126
  %v8129 = vunpack.c.l.s4 1966171168
  %v8130 = vunpack.c.0.s8 %v8129
  %v8131 = vlaneseq
  %v8132 = vshrl.u32 %v8131, 7
  %v8133 = vsub.s32 %v8130, %v8132
  %v8134 = vrot.slane %v8112, %v8133
  %v8136 = vunpack.c.l.s4 1966171168
  %v8137 = vunpack.c.0.s8 %v8136
  %v8138 = vlaneseq
  %v8139 = vshrl.u32 %v8138, 7
  %v8140 = vsub.s32 %v8137, %v8139
  %v8141 = vrot.slane %v8113, %v8140
  %v8142 = vcombine.high %v8120, %v8120
  %v8143 = vcombine.high %v8127, %v8127
  %v8144 = vcombine.high %v8134, %v8134
  %v8145 = vcombine.high %v8141, %v8141
  %v8146 = vcombine.high %v8088, %v8088
  %v8148 = vunpack.c.l.s4 1966171168
  %v8149 = vunpack.c.0.s8 %v8148
  %v8150 = vlaneseq
  %v8151 = vshrl.u32 %v8150, 7
  %v8152 = vsub.s32 %v8149, %v8151
  %v8153 = vrot.slane %v8088, %v8152
  %v8155 = vunpack.c.l.s4 1966171168
  %v8156 = vunpack.c.0.s8 %v8155
  %v8157 = vlaneseq
  %v8158 = vshrl.u32 %v8157, 7
  %v8159 = vsub.s32 %v8156, %v8158
  %v8160 = vrot.slane %v8146, %v8159
  %v8161 = vcombine.high %v8153, %v8153
  %v8162 = vcombine.high %v8160, %v8160
  %v8164 = vunpack.c.l.s4 1966171168
  %v8165 = vunpack.c.0.s8 %v8164
  %v8166 = vlaneseq
  %v8167 = vshrl.u32 %v8166, 7
  %v8168 = vsub.s32 %v8165, %v8167
  %v8169 = vrot.slane %v8153, %v8168
  %v8171 = vunpack.c.l.s4 1966171168
  %v8172 = vunpack.c.0.s8 %v8171
  %v8173 = vlaneseq
  %v8174 = vshrl.u32 %v8173, 7
  %v8175 = vsub.s32 %v8172, %v8174
  %v8176 = vrot.slane %v8160, %v8175
  %v8178 = vunpack.c.l.s4 1966171168
  %v8179 = vunpack.c.0.s8 %v8178
  %v8180 = vlaneseq
  %v8181 = vshrl.u32 %v8180, 7
  %v8182 = vsub.s32 %v8179, %v8181
  %v8183 = vrot.slane %v8161, %v8182
  %v8185 = vunpack.c.l.s4 1966171168
  %v8186 = vunpack.c.0.s8 %v8185
  %v8187 = vlaneseq
  %v8188 = vshrl.u32 %v8187, 7
  %v8189 = vsub.s32 %v8186, %v8188
  %v8190 = vrot.slane %v8162, %v8189
  %v8191 = vcombine.high %v8169, %v8169
  %v8192 = vcombine.high %v8176, %v8176
  %v8193 = vcombine.high %v8183, %v8183
  %v8194 = vcombine.high %v8190, %v8190
  %v8195 = vcombine.high %v8089, %v8089
  %v8197 = vunpack.c.l.s4 1966171168
  %v8198 = vunpack.c.0.s8 %v8197
  %v8199 = vlaneseq
  %v8200 = vshrl.u32 %v8199, 7
  %v8201 = vsub.s32 %v8198, %v8200
  %v8202 = vrot.slane %v8089, %v8201
  %v8204 = vunpack.c.l.s4 1966171168
  %v8205 = vunpack.c.0.s8 %v8204
  %v8206 = vlaneseq
  %v8207 = vshrl.u32 %v8206, 7
  %v8208 = vsub.s32 %v8205, %v8207
  %v8209 = vrot.slane %v8195, %v8208
  %v8210 = vcombine.high %v8202, %v8202
  %v8211 = vcombine.high %v8209, %v8209
  %v8213 = vunpack.c.l.s4 1966171168
  %v8214 = vunpack.c.0.s8 %v8213
  %v8215 = vlaneseq
  %v8216 = vshrl.u32 %v8215, 7
  %v8217 = vsub.s32 %v8214, %v8216
  %v8218 = vrot.slane %v8202, %v8217
  %v8220 = vunpack.c.l.s4 1966171168
  %v8221 = vunpack.c.0.s8 %v8220
  %v8222 = vlaneseq
  %v8223 = vshrl.u32 %v8222, 7
  %v8224 = vsub.s32 %v8221, %v8223
  %v8225 = vrot.slane %v8209, %v8224
  %v8227 = vunpack.c.l.s4 1966171168
  %v8228 = vunpack.c.0.s8 %v8227
  %v8229 = vlaneseq
  %v8230 = vshrl.u32 %v8229, 7
  %v8231 = vsub.s32 %v8228, %v8230
  %v8232 = vrot.slane %v8210, %v8231
  %v8234 = vunpack.c.l.s4 1966171168
  %v8235 = vunpack.c.0.s8 %v8234
  %v8236 = vlaneseq
  %v8237 = vshrl.u32 %v8236, 7
  %v8238 = vsub.s32 %v8235, %v8237
  %v8239 = vrot.slane %v8211, %v8238
  %v8240 = vcombine.high %v8218, %v8218
  %v8241 = vcombine.high %v8225, %v8225
  %v8242 = vcombine.high %v8232, %v8232
  %v8243 = vcombine.high %v8239, %v8239
  %v8244 = vcombine.high %v8090, %v8090
  %v8246 = vunpack.c.l.s4 1966171168
  %v8247 = vunpack.c.0.s8 %v8246
  %v8248 = vlaneseq
  %v8249 = vshrl.u32 %v8248, 7
  %v8250 = vsub.s32 %v8247, %v8249
  %v8251 = vrot.slane %v8090, %v8250
  %v8253 = vunpack.c.l.s4 1966171168
  %v8254 = vunpack.c.0.s8 %v8253
  %v8255 = vlaneseq
  %v8256 = vshrl.u32 %v8255, 7
  %v8257 = vsub.s32 %v8254, %v8256
  %v8258 = vrot.slane %v8244, %v8257
  %v8259 = vcombine.high %v8251, %v8251
  %v8260 = vcombine.high %v8258, %v8258
  %v8262 = vunpack.c.l.s4 1966171168
  %v8263 = vunpack.c.0.s8 %v8262
  %v8264 = vlaneseq
  %v8265 = vshrl.u32 %v8264, 7
  %v8266 = vsub.s32 %v8263, %v8265
  %v8267 = vrot.slane %v8251, %v8266
  %v8269 = vunpack.c.l.s4 1966171168
  %v8270 = vunpack.c.0.s8 %v8269
  %v8271 = vlaneseq
  %v8272 = vshrl.u32 %v8271, 7
  %v8273 = vsub.s32 %v8270, %v8272
  %v8274 = vrot.slane %v8258, %v8273
  %v8276 = vunpack.c.l.s4 1966171168
  %v8277 = vunpack.c.0.s8 %v8276
  %v8278 = vlaneseq
  %v8279 = vshrl.u32 %v8278, 7
  %v8280 = vsub.s32 %v8277, %v8279
  %v8281 = vrot.slane %v8259, %v8280
  %v8283 = vunpack.c.l.s4 1966171168
  %v8284 = vunpack.c.0.s8 %v8283
  %v8285 = vlaneseq
  %v8286 = vshrl.u32 %v8285, 7
  %v8287 = vsub.s32 %v8284, %v8286
  %v8288 = vrot.slane %v8260, %v8287
  %v8289 = vcombine.high %v8267, %v8267
  %v8290 = vcombine.high %v8274, %v8274
  %v8291 = vcombine.high %v8281, %v8281
  %v8292 = vcombine.high %v8288, %v8288
  %v8294 = vunpack.c.l.s4 1966171168
  %v8295 = vunpack.c.0.s8 %v8294
  %v8296 = vlaneseq
  %v8297 = vshrl.u32 %v8296, 7
  %v8298 = vsub.s32 %v8295, %v8297
  %v8299 = vrot.slane %v8091, %v8298
  %v8300 = vcombine.high %v8299, %v8299
  %v8302 = vunpack.c.l.s4 1966171168
  %v8303 = vunpack.c.0.s8 %v8302
  %v8304 = vlaneseq
  %v8305 = vshrl.u32 %v8304, 7
  %v8306 = vsub.s32 %v8303, %v8305
  %v8307 = vrot.slane %v8299, %v8306
  %v8309 = vunpack.c.l.s4 1966171168
  %v8310 = vunpack.c.0.s8 %v8309
  %v8311 = vlaneseq
  %v8312 = vshrl.u32 %v8311, 7
  %v8313 = vsub.s32 %v8310, %v8312
  %v8314 = vrot.slane %v8300, %v8313
  %v8320 = vcombine.high %v7985, %v7985
  %v8322 = vunpack.c.l.s4 1966171168
  %v8323 = vunpack.c.0.s8 %v8322
  %v8324 = vlaneseq
  %v8325 = vshrl.u32 %v8324, 7
  %v8326 = vsub.s32 %v8323, %v8325
  %v8327 = vrot.slane %v7985, %v8326
  %v8329 = vunpack.c.l.s4 1966171168
  %v8330 = vunpack.c.0.s8 %v8329
  %v8331 = vlaneseq
  %v8332 = vshrl.u32 %v8331, 7
  %v8333 = vsub.s32 %v8330, %v8332
  %v8334 = vrot.slane %v8320, %v8333
  %v8335 = vcombine.high %v8327, %v8327
  %v8336 = vcombine.high %v8334, %v8334
  %v8338 = vunpack.c.l.s4 1966171168
  %v8339 = vunpack.c.0.s8 %v8338
  %v8340 = vlaneseq
  %v8341 = vshrl.u32 %v8340, 7
  %v8342 = vsub.s32 %v8339, %v8341
  %v8343 = vrot.slane %v8327, %v8342
  %v8345 = vunpack.c.l.s4 1966171168
  %v8346 = vunpack.c.0.s8 %v8345
  %v8347 = vlaneseq
  %v8348 = vshrl.u32 %v8347, 7
  %v8349 = vsub.s32 %v8346, %v8348
  %v8350 = vrot.slane %v8334, %v8349
  %v8352 = vunpack.c.l.s4 1966171168
  %v8353 = vunpack.c.0.s8 %v8352
  %v8354 = vlaneseq
  %v8355 = vshrl.u32 %v8354, 7
  %v8356 = vsub.s32 %v8353, %v8355
  %v8357 = vrot.slane %v8335, %v8356
  %v8359 = vunpack.c.l.s4 1966171168
  %v8360 = vunpack.c.0.s8 %v8359
  %v8361 = vlaneseq
  %v8362 = vshrl.u32 %v8361, 7
  %v8363 = vsub.s32 %v8360, %v8362
  %v8364 = vrot.slane %v8336, %v8363
  %v8365 = vcombine.high %v8343, %v8343
  %v8366 = vcombine.high %v8350, %v8350
  %v8367 = vcombine.high %v8357, %v8357
  %v8368 = vcombine.high %v8364, %v8364
  %v8369 = vcombine.high %v7988, %v7988
  %v8371 = vunpack.c.l.s4 1966171168
  %v8372 = vunpack.c.0.s8 %v8371
  %v8373 = vlaneseq
  %v8374 = vshrl.u32 %v8373, 7
  %v8375 = vsub.s32 %v8372, %v8374
  %v8376 = vrot.slane %v7988, %v8375
  %v8378 = vunpack.c.l.s4 1966171168
  %v8379 = vunpack.c.0.s8 %v8378
  %v8380 = vlaneseq
  %v8381 = vshrl.u32 %v8380, 7
  %v8382 = vsub.s32 %v8379, %v8381
  %v8383 = vrot.slane %v8369, %v8382
  %v8384 = vcombine.high %v8376, %v8376
  %v8385 = vcombine.high %v8383, %v8383
  %v8387 = vunpack.c.l.s4 1966171168
  %v8388 = vunpack.c.0.s8 %v8387
  %v8389 = vlaneseq
  %v8390 = vshrl.u32 %v8389, 7
  %v8391 = vsub.s32 %v8388, %v8390
  %v8392 = vrot.slane %v8376, %v8391
  %v8394 = vunpack.c.l.s4 1966171168
  %v8395 = vunpack.c.0.s8 %v8394
  %v8396 = vlaneseq
  %v8397 = vshrl.u32 %v8396, 7
  %v8398 = vsub.s32 %v8395, %v8397
  %v8399 = vrot.slane %v8383, %v8398
  %v8401 = vunpack.c.l.s4 1966171168
  %v8402 = vunpack.c.0.s8 %v8401
  %v8403 = vlaneseq
  %v8404 = vshrl.u32 %v8403, 7
  %v8405 = vsub.s32 %v8402, %v8404
  %v8406 = vrot.slane %v8384, %v8405
  %v8408 = vunpack.c.l.s4 1966171168
  %v8409 = vunpack.c.0.s8 %v8408
  %v8410 = vlaneseq
  %v8411 = vshrl.u32 %v8410, 7
  %v8412 = vsub.s32 %v8409, %v8411
  %v8413 = vrot.slane %v8385, %v8412
  %v8414 = vcombine.high %v8392, %v8392
  %v8415 = vcombine.high %v8399, %v8399
  %v8416 = vcombine.high %v8406, %v8406
  %v8417 = vcombine.high %v8413, %v8413
  %v8418 = vcombine.high %v7993, %v7993
  %v8420 = vunpack.c.l.s4 1966171168
  %v8421 = vunpack.c.0.s8 %v8420
  %v8422 = vlaneseq
  %v8423 = vshrl.u32 %v8422, 7
  %v8424 = vsub.s32 %v8421, %v8423
  %v8425 = vrot.slane %v7993, %v8424
  %v8427 = vunpack.c.l.s4 1966171168
  %v8428 = vunpack.c.0.s8 %v8427
  %v8429 = vlaneseq
  %v8430 = vshrl.u32 %v8429, 7
  %v8431 = vsub.s32 %v8428, %v8430
  %v8432 = vrot.slane %v8418, %v8431
  %v8433 = vcombine.high %v8425, %v8425
  %v8434 = vcombine.high %v8432, %v8432
  %v8436 = vunpack.c.l.s4 1966171168
  %v8437 = vunpack.c.0.s8 %v8436
  %v8438 = vlaneseq
  %v8439 = vshrl.u32 %v8438, 7
  %v8440 = vsub.s32 %v8437, %v8439
  %v8441 = vrot.slane %v8425, %v8440
  %v8443 = vunpack.c.l.s4 1966171168
  %v8444 = vunpack.c.0.s8 %v8443
  %v8445 = vlaneseq
  %v8446 = vshrl.u32 %v8445, 7
  %v8447 = vsub.s32 %v8444, %v8446
  %v8448 = vrot.slane %v8432, %v8447
  %v8450 = vunpack.c.l.s4 1966171168
  %v8451 = vunpack.c.0.s8 %v8450
  %v8452 = vlaneseq
  %v8453 = vshrl.u32 %v8452, 7
  %v8454 = vsub.s32 %v8451, %v8453
  %v8455 = vrot.slane %v8433, %v8454
  %v8457 = vunpack.c.l.s4 1966171168
  %v8458 = vunpack.c.0.s8 %v8457
  %v8459 = vlaneseq
  %v8460 = vshrl.u32 %v8459, 7
  %v8461 = vsub.s32 %v8458, %v8460
  %v8462 = vrot.slane %v8434, %v8461
  %v8463 = vcombine.high %v8441, %v8441
  %v8464 = vcombine.high %v8448, %v8448
  %v8465 = vcombine.high %v8455, %v8455
  %v8466 = vcombine.high %v8462, %v8462
  %v8467 = vcombine.high %v7996, %v7996
  %v8469 = vunpack.c.l.s4 1966171168
  %v8470 = vunpack.c.0.s8 %v8469
  %v8471 = vlaneseq
  %v8472 = vshrl.u32 %v8471, 7
  %v8473 = vsub.s32 %v8470, %v8472
  %v8474 = vrot.slane %v7996, %v8473
  %v8476 = vunpack.c.l.s4 1966171168
  %v8477 = vunpack.c.0.s8 %v8476
  %v8478 = vlaneseq
  %v8479 = vshrl.u32 %v8478, 7
  %v8480 = vsub.s32 %v8477, %v8479
  %v8481 = vrot.slane %v8467, %v8480
  %v8482 = vcombine.high %v8474, %v8474
  %v8483 = vcombine.high %v8481, %v8481
  %v8485 = vunpack.c.l.s4 1966171168
  %v8486 = vunpack.c.0.s8 %v8485
  %v8487 = vlaneseq
  %v8488 = vshrl.u32 %v8487, 7
  %v8489 = vsub.s32 %v8486, %v8488
  %v8490 = vrot.slane %v8474, %v8489
  %v8492 = vunpack.c.l.s4 1966171168
  %v8493 = vunpack.c.0.s8 %v8492
  %v8494 = vlaneseq
  %v8495 = vshrl.u32 %v8494, 7
  %v8496 = vsub.s32 %v8493, %v8495
  %v8497 = vrot.slane %v8481, %v8496
  %v8499 = vunpack.c.l.s4 1966171168
  %v8500 = vunpack.c.0.s8 %v8499
  %v8501 = vlaneseq
  %v8502 = vshrl.u32 %v8501, 7
  %v8503 = vsub.s32 %v8500, %v8502
  %v8504 = vrot.slane %v8482, %v8503
  %v8506 = vunpack.c.l.s4 1966171168
  %v8507 = vunpack.c.0.s8 %v8506
  %v8508 = vlaneseq
  %v8509 = vshrl.u32 %v8508, 7
  %v8510 = vsub.s32 %v8507, %v8509
  %v8511 = vrot.slane %v8483, %v8510
  %v8512 = vcombine.high %v8490, %v8490
  %v8513 = vcombine.high %v8497, %v8497
  %v8514 = vcombine.high %v8504, %v8504
  %v8515 = vcombine.high %v8511, %v8511
  %v8517 = vunpack.c.l.s4 1966171168
  %v8518 = vunpack.c.0.s8 %v8517
  %v8519 = vlaneseq
  %v8520 = vshrl.u32 %v8519, 7
  %v8521 = vsub.s32 %v8518, %v8520
  %v8522 = vrot.slane %v8001, %v8521
  %v8523 = vcombine.high %v8522, %v8522
  %v8525 = vunpack.c.l.s4 1966171168
  %v8526 = vunpack.c.0.s8 %v8525
  %v8527 = vlaneseq
  %v8528 = vshrl.u32 %v8527, 7
  %v8529 = vsub.s32 %v8526, %v8528
  %v8530 = vrot.slane %v8522, %v8529
  %v8532 = vunpack.c.l.s4 1966171168
  %v8533 = vunpack.c.0.s8 %v8532
  %v8534 = vlaneseq
  %v8535 = vshrl.u32 %v8534, 7
  %v8536 = vsub.s32 %v8533, %v8535
  %v8537 = vrot.slane %v8523, %v8536
  %v8543 = vcombine.high %v8066, %v8066
  %v8545 = vunpack.c.l.s4 1966171168
  %v8546 = vunpack.c.0.s8 %v8545
  %v8547 = vlaneseq
  %v8548 = vshrl.u32 %v8547, 7
  %v8549 = vsub.s32 %v8546, %v8548
  %v8550 = vrot.slane %v8066, %v8549
  %v8552 = vunpack.c.l.s4 1966171168
  %v8553 = vunpack.c.0.s8 %v8552
  %v8554 = vlaneseq
  %v8555 = vshrl.u32 %v8554, 7
  %v8556 = vsub.s32 %v8553, %v8555
  %v8557 = vrot.slane %v8543, %v8556
  %v8558 = vcombine.high %v8550, %v8550
  %v8559 = vcombine.high %v8557, %v8557
  %v8561 = vunpack.c.l.s4 1966171168
  %v8562 = vunpack.c.0.s8 %v8561
  %v8563 = vlaneseq
  %v8564 = vshrl.u32 %v8563, 7
  %v8565 = vsub.s32 %v8562, %v8564
  %v8566 = vrot.slane %v8550, %v8565
  %v8568 = vunpack.c.l.s4 1966171168
  %v8569 = vunpack.c.0.s8 %v8568
  %v8570 = vlaneseq
  %v8571 = vshrl.u32 %v8570, 7
  %v8572 = vsub.s32 %v8569, %v8571
  %v8573 = vrot.slane %v8557, %v8572
  %v8575 = vunpack.c.l.s4 1966171168
  %v8576 = vunpack.c.0.s8 %v8575
  %v8577 = vlaneseq
  %v8578 = vshrl.u32 %v8577, 7
  %v8579 = vsub.s32 %v8576, %v8578
  %v8580 = vrot.slane %v8558, %v8579
  %v8582 = vunpack.c.l.s4 1966171168
  %v8583 = vunpack.c.0.s8 %v8582
  %v8584 = vlaneseq
  %v8585 = vshrl.u32 %v8584, 7
  %v8586 = vsub.s32 %v8583, %v8585
  %v8587 = vrot.slane %v8559, %v8586
  %v8588 = vcombine.high %v8566, %v8566
  %v8589 = vcombine.high %v8573, %v8573
  %v8590 = vcombine.high %v8580, %v8580
  %v8591 = vcombine.high %v8587, %v8587
  %v8592 = vcombine.high %v8069, %v8069
  %v8594 = vunpack.c.l.s4 1966171168
  %v8595 = vunpack.c.0.s8 %v8594
  %v8596 = vlaneseq
  %v8597 = vshrl.u32 %v8596, 7
  %v8598 = vsub.s32 %v8595, %v8597
  %v8599 = vrot.slane %v8069, %v8598
  %v8601 = vunpack.c.l.s4 1966171168
  %v8602 = vunpack.c.0.s8 %v8601
  %v8603 = vlaneseq
  %v8604 = vshrl.u32 %v8603, 7
  %v8605 = vsub.s32 %v8602, %v8604
  %v8606 = vrot.slane %v8592, %v8605
  %v8607 = vcombine.high %v8599, %v8599
  %v8608 = vcombine.high %v8606, %v8606
  %v8610 = vunpack.c.l.s4 1966171168
  %v8611 = vunpack.c.0.s8 %v8610
  %v8612 = vlaneseq
  %v8613 = vshrl.u32 %v8612, 7
  %v8614 = vsub.s32 %v8611, %v8613
  %v8615 = vrot.slane %v8599, %v8614
  %v8617 = vunpack.c.l.s4 1966171168
  %v8618 = vunpack.c.0.s8 %v8617
  %v8619 = vlaneseq
  %v8620 = vshrl.u32 %v8619, 7
  %v8621 = vsub.s32 %v8618, %v8620
  %v8622 = vrot.slane %v8606, %v8621
  %v8624 = vunpack.c.l.s4 1966171168
  %v8625 = vunpack.c.0.s8 %v8624
  %v8626 = vlaneseq
  %v8627 = vshrl.u32 %v8626, 7
  %v8628 = vsub.s32 %v8625, %v8627
  %v8629 = vrot.slane %v8607, %v8628
  %v8631 = vunpack.c.l.s4 1966171168
  %v8632 = vunpack.c.0.s8 %v8631
  %v8633 = vlaneseq
  %v8634 = vshrl.u32 %v8633, 7
  %v8635 = vsub.s32 %v8632, %v8634
  %v8636 = vrot.slane %v8608, %v8635
  %v8637 = vcombine.high %v8615, %v8615
  %v8638 = vcombine.high %v8622, %v8622
  %v8639 = vcombine.high %v8629, %v8629
  %v8640 = vcombine.high %v8636, %v8636
  %v8641 = vcombine.high %v8074, %v8074
  %v8643 = vunpack.c.l.s4 1966171168
  %v8644 = vunpack.c.0.s8 %v8643
  %v8645 = vlaneseq
  %v8646 = vshrl.u32 %v8645, 7
  %v8647 = vsub.s32 %v8644, %v8646
  %v8648 = vrot.slane %v8074, %v8647
  %v8650 = vunpack.c.l.s4 1966171168
  %v8651 = vunpack.c.0.s8 %v8650
  %v8652 = vlaneseq
  %v8653 = vshrl.u32 %v8652, 7
  %v8654 = vsub.s32 %v8651, %v8653
  %v8655 = vrot.slane %v8641, %v8654
  %v8656 = vcombine.high %v8648, %v8648
  %v8657 = vcombine.high %v8655, %v8655
  %v8659 = vunpack.c.l.s4 1966171168
  %v8660 = vunpack.c.0.s8 %v8659
  %v8661 = vlaneseq
  %v8662 = vshrl.u32 %v8661, 7
  %v8663 = vsub.s32 %v8660, %v8662
  %v8664 = vrot.slane %v8648, %v8663
  %v8666 = vunpack.c.l.s4 1966171168
  %v8667 = vunpack.c.0.s8 %v8666
  %v8668 = vlaneseq
  %v8669 = vshrl.u32 %v8668, 7
  %v8670 = vsub.s32 %v8667, %v8669
  %v8671 = vrot.slane %v8655, %v8670
  %v8673 = vunpack.c.l.s4 1966171168
  %v8674 = vunpack.c.0.s8 %v8673
  %v8675 = vlaneseq
  %v8676 = vshrl.u32 %v8675, 7
  %v8677 = vsub.s32 %v8674, %v8676
  %v8678 = vrot.slane %v8656, %v8677
  %v8680 = vunpack.c.l.s4 1966171168
  %v8681 = vunpack.c.0.s8 %v8680
  %v8682 = vlaneseq
  %v8683 = vshrl.u32 %v8682, 7
  %v8684 = vsub.s32 %v8681, %v8683
  %v8685 = vrot.slane %v8657, %v8684
  %v8686 = vcombine.high %v8664, %v8664
  %v8687 = vcombine.high %v8671, %v8671
  %v8688 = vcombine.high %v8678, %v8678
  %v8689 = vcombine.high %v8685, %v8685
  %v8690 = vcombine.high %v8077, %v8077
  %v8692 = vunpack.c.l.s4 1966171168
  %v8693 = vunpack.c.0.s8 %v8692
  %v8694 = vlaneseq
  %v8695 = vshrl.u32 %v8694, 7
  %v8696 = vsub.s32 %v8693, %v8695
  %v8697 = vrot.slane %v8077, %v8696
  %v8699 = vunpack.c.l.s4 1966171168
  %v8700 = vunpack.c.0.s8 %v8699
  %v8701 = vlaneseq
  %v8702 = vshrl.u32 %v8701, 7
  %v8703 = vsub.s32 %v8700, %v8702
  %v8704 = vrot.slane %v8690, %v8703
  %v8705 = vcombine.high %v8697, %v8697
  %v8706 = vcombine.high %v8704, %v8704
  %v8708 = vunpack.c.l.s4 1966171168
  %v8709 = vunpack.c.0.s8 %v8708
  %v8710 = vlaneseq
  %v8711 = vshrl.u32 %v8710, 7
  %v8712 = vsub.s32 %v8709, %v8711
  %v8713 = vrot.slane %v8697, %v8712
  %v8715 = vunpack.c.l.s4 1966171168
  %v8716 = vunpack.c.0.s8 %v8715
  %v8717 = vlaneseq
  %v8718 = vshrl.u32 %v8717, 7
  %v8719 = vsub.s32 %v8716, %v8718
  %v8720 = vrot.slane %v8704, %v8719
  %v8722 = vunpack.c.l.s4 1966171168
  %v8723 = vunpack.c.0.s8 %v8722
  %v8724 = vlaneseq
  %v8725 = vshrl.u32 %v8724, 7
  %v8726 = vsub.s32 %v8723, %v8725
  %v8727 = vrot.slane %v8705, %v8726
  %v8729 = vunpack.c.l.s4 1966171168
  %v8730 = vunpack.c.0.s8 %v8729
  %v8731 = vlaneseq
  %v8732 = vshrl.u32 %v8731, 7
  %v8733 = vsub.s32 %v8730, %v8732
  %v8734 = vrot.slane %v8706, %v8733
  %v8735 = vcombine.high %v8713, %v8713
  %v8736 = vcombine.high %v8720, %v8720
  %v8737 = vcombine.high %v8727, %v8727
  %v8738 = vcombine.high %v8734, %v8734
  %v8740 = vunpack.c.l.s4 1966171168
  %v8741 = vunpack.c.0.s8 %v8740
  %v8742 = vlaneseq
  %v8743 = vshrl.u32 %v8742, 7
  %v8744 = vsub.s32 %v8741, %v8743
  %v8745 = vrot.slane %v8082, %v8744
  %v8746 = vcombine.high %v8745, %v8745
  %v8748 = vunpack.c.l.s4 1966171168
  %v8749 = vunpack.c.0.s8 %v8748
  %v8750 = vlaneseq
  %v8751 = vshrl.u32 %v8750, 7
  %v8752 = vsub.s32 %v8749, %v8751
  %v8753 = vrot.slane %v8745, %v8752
  %v8755 = vunpack.c.l.s4 1966171168
  %v8756 = vunpack.c.0.s8 %v8755
  %v8757 = vlaneseq
  %v8758 = vshrl.u32 %v8757, 7
  %v8759 = vsub.s32 %v8756, %v8758
  %v8760 = vrot.slane %v8746, %v8759
  %v8761 = vcombine.low %v8120, %v8134
  %v8762 = vcombine.low %v8142, %v8144
  %v8763 = vcombine.low %v8127, %v8141
  %v8764 = vcombine.low %v8143, %v8145
  %v8766 = vunpack.c.l.s4 1966171168
  %v8767 = vunpack.c.0.s8 %v8766
  %v8768 = vlaneseq
  %v8769 = vshrl.u32 %v8768, 7
  %v8770 = vsub.s32 %v8767, %v8769
  %v8771 = vrot.slane %v8761, %v8770
  %v8773 = vunpack.c.l.s4 1966171168
  %v8774 = vunpack.c.0.s8 %v8773
  %v8775 = vlaneseq
  %v8776 = vshrl.u32 %v8775, 7
  %v8777 = vsub.s32 %v8774, %v8776
  %v8778 = vrot.slane %v8762, %v8777
  %v8780 = vunpack.c.l.s4 1966171168
  %v8781 = vunpack.c.0.s8 %v8780
  %v8782 = vlaneseq
  %v8783 = vshrl.u32 %v8782, 7
  %v8784 = vsub.s32 %v8781, %v8783
  %v8785 = vrot.slane %v8763, %v8784
  %v8787 = vunpack.c.l.s4 1966171168
  %v8788 = vunpack.c.0.s8 %v8787
  %v8789 = vlaneseq
  %v8790 = vshrl.u32 %v8789, 7
  %v8791 = vsub.s32 %v8788, %v8790
  %v8792 = vrot.slane %v8764, %v8791
  %v8793 = vcombine.low %v8771, %v8778
  %v8794 = vcombine.low %v8785, %v8792
  %v8796 = vunpack.c.l.s4 1966171168
  %v8797 = vunpack.c.0.s8 %v8796
  %v8798 = vlaneseq
  %v8799 = vshrl.u32 %v8798, 7
  %v8800 = vsub.s32 %v8797, %v8799
  %v8801 = vrot.slane %v8793, %v8800
  %v8803 = vunpack.c.l.s4 1966171168
  %v8804 = vunpack.c.0.s8 %v8803
  %v8805 = vlaneseq
  %v8806 = vshrl.u32 %v8805, 7
  %v8807 = vsub.s32 %v8804, %v8806
  %v8808 = vrot.slane %v8794, %v8807
  %v8809 = vcombine.low %v8801, %v8808
  %v8810 = vcombine.low %v8169, %v8183
  %v8811 = vcombine.low %v8191, %v8193
  %v8812 = vcombine.low %v8176, %v8190
  %v8813 = vcombine.low %v8192, %v8194
  %v8815 = vunpack.c.l.s4 1966171168
  %v8816 = vunpack.c.0.s8 %v8815
  %v8817 = vlaneseq
  %v8818 = vshrl.u32 %v8817, 7
  %v8819 = vsub.s32 %v8816, %v8818
  %v8820 = vrot.slane %v8810, %v8819
  %v8822 = vunpack.c.l.s4 1966171168
  %v8823 = vunpack.c.0.s8 %v8822
  %v8824 = vlaneseq
  %v8825 = vshrl.u32 %v8824, 7
  %v8826 = vsub.s32 %v8823, %v8825
  %v8827 = vrot.slane %v8811, %v8826
  %v8829 = vunpack.c.l.s4 1966171168
  %v8830 = vunpack.c.0.s8 %v8829
  %v8831 = vlaneseq
  %v8832 = vshrl.u32 %v8831, 7
  %v8833 = vsub.s32 %v8830, %v8832
  %v8834 = vrot.slane %v8812, %v8833
  %v8836 = vunpack.c.l.s4 1966171168
  %v8837 = vunpack.c.0.s8 %v8836
  %v8838 = vlaneseq
  %v8839 = vshrl.u32 %v8838, 7
  %v8840 = vsub.s32 %v8837, %v8839
  %v8841 = vrot.slane %v8813, %v8840
  %v8842 = vcombine.low %v8820, %v8827
  %v8843 = vcombine.low %v8834, %v8841
  %v8845 = vunpack.c.l.s4 1966171168
  %v8846 = vunpack.c.0.s8 %v8845
  %v8847 = vlaneseq
  %v8848 = vshrl.u32 %v8847, 7
  %v8849 = vsub.s32 %v8846, %v8848
  %v8850 = vrot.slane %v8842, %v8849
  %v8852 = vunpack.c.l.s4 1966171168
  %v8853 = vunpack.c.0.s8 %v8852
  %v8854 = vlaneseq
  %v8855 = vshrl.u32 %v8854, 7
  %v8856 = vsub.s32 %v8853, %v8855
  %v8857 = vrot.slane %v8843, %v8856
  %v8858 = vcombine.low %v8850, %v8857
  %v8860 = vunpack.c.l.s4 1966171168
  %v8861 = vunpack.c.0.s8 %v8860
  %v8862 = vlaneseq
  %v8863 = vshrl.u32 %v8862, 7
  %v8864 = vsub.s32 %v8861, %v8863
  %v8865 = vrot.slane %v8218, %v8864
  %v8867 = vunpack.c.l.s4 1966171168
  %v8868 = vunpack.c.0.s8 %v8867
  %v8869 = vlaneseq
  %v8870 = vshrl.u32 %v8869, 7
  %v8871 = vsub.s32 %v8868, %v8870
  %v8872 = vrot.slane %v8865, %v8871
  %v8873 = vcombine.low %v8232, %v8240
  %v8874 = vcombine.low %v8242, %v8225
  %v8875 = vcombine.low %v8239, %v8241
  %v8876 = vcombine.low %v8243, %v8267
  %v8878 = vunpack.c.l.s4 1966171168
  %v8879 = vunpack.c.0.s8 %v8878
  %v8880 = vlaneseq
  %v8881 = vshrl.u32 %v8880, 7
  %v8882 = vsub.s32 %v8879, %v8881
  %v8883 = vrot.slane %v8873, %v8882
  %v8885 = vunpack.c.l.s4 1966171168
  %v8886 = vunpack.c.0.s8 %v8885
  %v8887 = vlaneseq
  %v8888 = vshrl.u32 %v8887, 7
  %v8889 = vsub.s32 %v8886, %v8888
  %v8890 = vrot.slane %v8874, %v8889
  %v8892 = vunpack.c.l.s4 1966171168
  %v8893 = vunpack.c.0.s8 %v8892
  %v8894 = vlaneseq
  %v8895 = vshrl.u32 %v8894, 7
  %v8896 = vsub.s32 %v8893, %v8895
  %v8897 = vrot.slane %v8875, %v8896
  %v8899 = vunpack.c.l.s4 1966171168
  %v8900 = vunpack.c.0.s8 %v8899
  %v8901 = vlaneseq
  %v8902 = vshrl.u32 %v8901, 7
  %v8903 = vsub.s32 %v8900, %v8902
  %v8904 = vrot.slane %v8876, %v8903
  %v8905 = vcombine.low %v8883, %v8890
  %v8906 = vcombine.low %v8897, %v8904
  %v8908 = vunpack.c.l.s4 1966171168
  %v8909 = vunpack.c.0.s8 %v8908
  %v8910 = vlaneseq
  %v8911 = vshrl.u32 %v8910, 7
  %v8912 = vsub.s32 %v8909, %v8911
  %v8913 = vrot.slane %v8905, %v8912
  %v8915 = vunpack.c.l.s4 1966171168
  %v8916 = vunpack.c.0.s8 %v8915
  %v8917 = vlaneseq
  %v8918 = vshrl.u32 %v8917, 7
  %v8919 = vsub.s32 %v8916, %v8918
  %v8920 = vrot.slane %v8906, %v8919
  %v8921 = vcombine.low %v8913, %v8920
  %v8922 = vcombine.low %v8281, %v8289
  %v8923 = vcombine.low %v8291, %v8274
  %v8924 = vcombine.low %v8288, %v8290
  %v8925 = vcombine.low %v8292, %v8307
  %v8927 = vunpack.c.l.s4 1966171168
  %v8928 = vunpack.c.0.s8 %v8927
  %v8929 = vlaneseq
  %v8930 = vshrl.u32 %v8929, 7
  %v8931 = vsub.s32 %v8928, %v8930
  %v8932 = vrot.slane %v8922, %v8931
  %v8934 = vunpack.c.l.s4 1966171168
  %v8935 = vunpack.c.0.s8 %v8934
  %v8936 = vlaneseq
  %v8937 = vshrl.u32 %v8936, 7
  %v8938 = vsub.s32 %v8935, %v8937
  %v8939 = vrot.slane %v8923, %v8938
  %v8941 = vunpack.c.l.s4 1966171168
  %v8942 = vunpack.c.0.s8 %v8941
  %v8943 = vlaneseq
  %v8944 = vshrl.u32 %v8943, 7
  %v8945 = vsub.s32 %v8942, %v8944
  %v8946 = vrot.slane %v8924, %v8945
  %v8948 = vunpack.c.l.s4 1966171168
  %v8949 = vunpack.c.0.s8 %v8948
  %v8950 = vlaneseq
  %v8951 = vshrl.u32 %v8950, 7
  %v8952 = vsub.s32 %v8949, %v8951
  %v8953 = vrot.slane %v8925, %v8952
  %v8954 = vcombine.low %v8932, %v8939
  %v8955 = vcombine.low %v8946, %v8953
  %v8957 = vunpack.c.l.s4 1966171168
  %v8958 = vunpack.c.0.s8 %v8957
  %v8959 = vlaneseq
  %v8960 = vshrl.u32 %v8959, 7
  %v8961 = vsub.s32 %v8958, %v8960
  %v8962 = vrot.slane %v8954, %v8961
  %v8964 = vunpack.c.l.s4 1966171168
  %v8965 = vunpack.c.0.s8 %v8964
  %v8966 = vlaneseq
  %v8967 = vshrl.u32 %v8966, 7
  %v8968 = vsub.s32 %v8965, %v8967
  %v8969 = vrot.slane %v8955, %v8968
  %v8970 = vcombine.low %v8962, %v8969
  %v8972 = vunpack.c.l.s4 1966171168
  %v8973 = vunpack.c.0.s8 %v8972
  %v8974 = vlaneseq
  %v8975 = vshrl.u32 %v8974, 7
  %v8976 = vsub.s32 %v8973, %v8975
  %v8977 = vrot.slane %v8314, %v8976
  %v8979 = vunpack.c.l.s4 1966171168
  %v8980 = vunpack.c.0.s8 %v8979
  %v8981 = vlaneseq
  %v8982 = vshrl.u32 %v8981, 7
  %v8983 = vsub.s32 %v8980, %v8982
  %v8984 = vrot.slane %v8977, %v8983
  %v8991 = vpack.c.bf16 %v8858, %v8809
  %v8992 = vpack.c.bf16 %v8872, %v8872
  %v8993 = vpack.c.bf16 %v8970, %v8921
  %v8994 = vpack.c.bf16 %v8984, %v8984
  %v8995 = vcombine.low %v8343, %v8357
  %v8996 = vcombine.low %v8365, %v8367
  %v8997 = vcombine.low %v8350, %v8364
  %v8998 = vcombine.low %v8366, %v8368
  %v9000 = vunpack.c.l.s4 1966171168
  %v9001 = vunpack.c.0.s8 %v9000
  %v9002 = vlaneseq
  %v9003 = vshrl.u32 %v9002, 7
  %v9004 = vsub.s32 %v9001, %v9003
  %v9005 = vrot.slane %v8995, %v9004
  %v9007 = vunpack.c.l.s4 1966171168
  %v9008 = vunpack.c.0.s8 %v9007
  %v9009 = vlaneseq
  %v9010 = vshrl.u32 %v9009, 7
  %v9011 = vsub.s32 %v9008, %v9010
  %v9012 = vrot.slane %v8996, %v9011
  %v9014 = vunpack.c.l.s4 1966171168
  %v9015 = vunpack.c.0.s8 %v9014
  %v9016 = vlaneseq
  %v9017 = vshrl.u32 %v9016, 7
  %v9018 = vsub.s32 %v9015, %v9017
  %v9019 = vrot.slane %v8997, %v9018
  %v9021 = vunpack.c.l.s4 1966171168
  %v9022 = vunpack.c.0.s8 %v9021
  %v9023 = vlaneseq
  %v9024 = vshrl.u32 %v9023, 7
  %v9025 = vsub.s32 %v9022, %v9024
  %v9026 = vrot.slane %v8998, %v9025
  %v9027 = vcombine.low %v9005, %v9012
  %v9028 = vcombine.low %v9019, %v9026
  %v9030 = vunpack.c.l.s4 1966171168
  %v9031 = vunpack.c.0.s8 %v9030
  %v9032 = vlaneseq
  %v9033 = vshrl.u32 %v9032, 7
  %v9034 = vsub.s32 %v9031, %v9033
  %v9035 = vrot.slane %v9027, %v9034
  %v9037 = vunpack.c.l.s4 1966171168
  %v9038 = vunpack.c.0.s8 %v9037
  %v9039 = vlaneseq
  %v9040 = vshrl.u32 %v9039, 7
  %v9041 = vsub.s32 %v9038, %v9040
  %v9042 = vrot.slane %v9028, %v9041
  %v9043 = vcombine.low %v9035, %v9042
  %v9044 = vcombine.low %v8392, %v8406
  %v9045 = vcombine.low %v8414, %v8416
  %v9046 = vcombine.low %v8399, %v8413
  %v9047 = vcombine.low %v8415, %v8417
  %v9049 = vunpack.c.l.s4 1966171168
  %v9050 = vunpack.c.0.s8 %v9049
  %v9051 = vlaneseq
  %v9052 = vshrl.u32 %v9051, 7
  %v9053 = vsub.s32 %v9050, %v9052
  %v9054 = vrot.slane %v9044, %v9053
  %v9056 = vunpack.c.l.s4 1966171168
  %v9057 = vunpack.c.0.s8 %v9056
  %v9058 = vlaneseq
  %v9059 = vshrl.u32 %v9058, 7
  %v9060 = vsub.s32 %v9057, %v9059
  %v9061 = vrot.slane %v9045, %v9060
  %v9063 = vunpack.c.l.s4 1966171168
  %v9064 = vunpack.c.0.s8 %v9063
  %v9065 = vlaneseq
  %v9066 = vshrl.u32 %v9065, 7
  %v9067 = vsub.s32 %v9064, %v9066
  %v9068 = vrot.slane %v9046, %v9067
  %v9070 = vunpack.c.l.s4 1966171168
  %v9071 = vunpack.c.0.s8 %v9070
  %v9072 = vlaneseq
  %v9073 = vshrl.u32 %v9072, 7
  %v9074 = vsub.s32 %v9071, %v9073
  %v9075 = vrot.slane %v9047, %v9074
  %v9076 = vcombine.low %v9054, %v9061
  %v9077 = vcombine.low %v9068, %v9075
  %v9079 = vunpack.c.l.s4 1966171168
  %v9080 = vunpack.c.0.s8 %v9079
  %v9081 = vlaneseq
  %v9082 = vshrl.u32 %v9081, 7
  %v9083 = vsub.s32 %v9080, %v9082
  %v9084 = vrot.slane %v9076, %v9083
  %v9086 = vunpack.c.l.s4 1966171168
  %v9087 = vunpack.c.0.s8 %v9086
  %v9088 = vlaneseq
  %v9089 = vshrl.u32 %v9088, 7
  %v9090 = vsub.s32 %v9087, %v9089
  %v9091 = vrot.slane %v9077, %v9090
  %v9092 = vcombine.low %v9084, %v9091
  %v9094 = vunpack.c.l.s4 1966171168
  %v9095 = vunpack.c.0.s8 %v9094
  %v9096 = vlaneseq
  %v9097 = vshrl.u32 %v9096, 7
  %v9098 = vsub.s32 %v9095, %v9097
  %v9099 = vrot.slane %v8441, %v9098
  %v9101 = vunpack.c.l.s4 1966171168
  %v9102 = vunpack.c.0.s8 %v9101
  %v9103 = vlaneseq
  %v9104 = vshrl.u32 %v9103, 7
  %v9105 = vsub.s32 %v9102, %v9104
  %v9106 = vrot.slane %v9099, %v9105
  %v9107 = vcombine.low %v8455, %v8463
  %v9108 = vcombine.low %v8465, %v8448
  %v9109 = vcombine.low %v8462, %v8464
  %v9110 = vcombine.low %v8466, %v8490
  %v9112 = vunpack.c.l.s4 1966171168
  %v9113 = vunpack.c.0.s8 %v9112
  %v9114 = vlaneseq
  %v9115 = vshrl.u32 %v9114, 7
  %v9116 = vsub.s32 %v9113, %v9115
  %v9117 = vrot.slane %v9107, %v9116
  %v9119 = vunpack.c.l.s4 1966171168
  %v9120 = vunpack.c.0.s8 %v9119
  %v9121 = vlaneseq
  %v9122 = vshrl.u32 %v9121, 7
  %v9123 = vsub.s32 %v9120, %v9122
  %v9124 = vrot.slane %v9108, %v9123
  %v9126 = vunpack.c.l.s4 1966171168
  %v9127 = vunpack.c.0.s8 %v9126
  %v9128 = vlaneseq
  %v9129 = vshrl.u32 %v9128, 7
  %v9130 = vsub.s32 %v9127, %v9129
  %v9131 = vrot.slane %v9109, %v9130
  %v9133 = vunpack.c.l.s4 1966171168
  %v9134 = vunpack.c.0.s8 %v9133
  %v9135 = vlaneseq
  %v9136 = vshrl.u32 %v9135, 7
  %v9137 = vsub.s32 %v9134, %v9136
  %v9138 = vrot.slane %v9110, %v9137
  %v9139 = vcombine.low %v9117, %v9124
  %v9140 = vcombine.low %v9131, %v9138
  %v9142 = vunpack.c.l.s4 1966171168
  %v9143 = vunpack.c.0.s8 %v9142
  %v9144 = vlaneseq
  %v9145 = vshrl.u32 %v9144, 7
  %v9146 = vsub.s32 %v9143, %v9145
  %v9147 = vrot.slane %v9139, %v9146
  %v9149 = vunpack.c.l.s4 1966171168
  %v9150 = vunpack.c.0.s8 %v9149
  %v9151 = vlaneseq
  %v9152 = vshrl.u32 %v9151, 7
  %v9153 = vsub.s32 %v9150, %v9152
  %v9154 = vrot.slane %v9140, %v9153
  %v9155 = vcombine.low %v9147, %v9154
  %v9156 = vcombine.low %v8504, %v8512
  %v9157 = vcombine.low %v8514, %v8497
  %v9158 = vcombine.low %v8511, %v8513
  %v9159 = vcombine.low %v8515, %v8530
  %v9161 = vunpack.c.l.s4 1966171168
  %v9162 = vunpack.c.0.s8 %v9161
  %v9163 = vlaneseq
  %v9164 = vshrl.u32 %v9163, 7
  %v9165 = vsub.s32 %v9162, %v9164
  %v9166 = vrot.slane %v9156, %v9165
  %v9168 = vunpack.c.l.s4 1966171168
  %v9169 = vunpack.c.0.s8 %v9168
  %v9170 = vlaneseq
  %v9171 = vshrl.u32 %v9170, 7
  %v9172 = vsub.s32 %v9169, %v9171
  %v9173 = vrot.slane %v9157, %v9172
  %v9175 = vunpack.c.l.s4 1966171168
  %v9176 = vunpack.c.0.s8 %v9175
  %v9177 = vlaneseq
  %v9178 = vshrl.u32 %v9177, 7
  %v9179 = vsub.s32 %v9176, %v9178
  %v9180 = vrot.slane %v9158, %v9179
  %v9182 = vunpack.c.l.s4 1966171168
  %v9183 = vunpack.c.0.s8 %v9182
  %v9184 = vlaneseq
  %v9185 = vshrl.u32 %v9184, 7
  %v9186 = vsub.s32 %v9183, %v9185
  %v9187 = vrot.slane %v9159, %v9186
  %v9188 = vcombine.low %v9166, %v9173
  %v9189 = vcombine.low %v9180, %v9187
  %v9191 = vunpack.c.l.s4 1966171168
  %v9192 = vunpack.c.0.s8 %v9191
  %v9193 = vlaneseq
  %v9194 = vshrl.u32 %v9193, 7
  %v9195 = vsub.s32 %v9192, %v9194
  %v9196 = vrot.slane %v9188, %v9195
  %v9198 = vunpack.c.l.s4 1966171168
  %v9199 = vunpack.c.0.s8 %v9198
  %v9200 = vlaneseq
  %v9201 = vshrl.u32 %v9200, 7
  %v9202 = vsub.s32 %v9199, %v9201
  %v9203 = vrot.slane %v9189, %v9202
  %v9204 = vcombine.low %v9196, %v9203
  %v9206 = vunpack.c.l.s4 1966171168
  %v9207 = vunpack.c.0.s8 %v9206
  %v9208 = vlaneseq
  %v9209 = vshrl.u32 %v9208, 7
  %v9210 = vsub.s32 %v9207, %v9209
  %v9211 = vrot.slane %v8537, %v9210
  %v9213 = vunpack.c.l.s4 1966171168
  %v9214 = vunpack.c.0.s8 %v9213
  %v9215 = vlaneseq
  %v9216 = vshrl.u32 %v9215, 7
  %v9217 = vsub.s32 %v9214, %v9216
  %v9218 = vrot.slane %v9211, %v9217
  %v9225 = vpack.c.bf16 %v9092, %v9043
  %v9226 = vpack.c.bf16 %v9106, %v9106
  %v9227 = vpack.c.bf16 %v9204, %v9155
  %v9228 = vpack.c.bf16 %v9218, %v9218
  %v9230 = vsel %vm1893, %v8991, 0
  %v9233 = vsel %vm1893, %v8992, 0
  %v9236 = vsel %vm1893, %v9225, 0
  %v9239 = vsel %vm1893, %v9226, 0
  %9241 = vmatprep.subr.bf16.mxu0 0
  %9242 = vmatpush1.bf16.xpose.msra.mxu0 %v9236
  %9243 = vmatprep.subr.bf16.mxu0 0
  %9244 = vmatpush1.bf16.xpose.msra.mxu0 %v9239
  %9245 = vmatprep.subr.bf16.mxu0 0
  %9246 = vmatpush1.bf16.xpose.msra.mxu0 0
  %9247 = vmatprep.subr.bf16.mxu0 0
  %9248 = vmatpush1.bf16.xpose.msra.mxu0 0
  %9249 = vmatprep.subr.bf16.mxu0 0
  %9250 = vmatpush1.bf16.xpose.msra.mxu0 0
  %9251 = vmatprep.subr.bf16.mxu0 0
  %9252 = vmatpush1.bf16.xpose.msra.mxu0 0
  %9253 = vmatprep.subr.bf16.mxu0 0
  %9254 = vmatpush1.bf16.xpose.msra.mxu0 0
  %9255 = vmatprep.subr.bf16.mxu0 0
  %9256 = vmatpush1.bf16.xpose.msra.mxu0 0
  %9257 = vmatprep.subr.bf16.mxu0 0
  %9258 = vmatpush1.bf16.xpose.msra.mxu0 0
  %9259 = vmatprep.subr.bf16.mxu0 0
  %9260 = vmatpush1.bf16.xpose.msra.mxu0 0
  %9261 = vmatprep.subr.bf16.mxu0 0
  %9262 = vmatpush1.bf16.xpose.msra.mxu0 0
  %9263 = vmatprep.subr.bf16.mxu0 0
  %9264 = vmatpush1.bf16.xpose.msra.mxu0 0
  %9265 = vmatprep.subr.bf16.mxu0 0
  %9266 = vmatpush1.bf16.xpose.msra.mxu0 0
  %9267 = vmatprep.subr.bf16.mxu0 0
  %9268 = vmatpush1.bf16.xpose.msra.mxu0 0
  %9269 = vmatprep.subr.bf16.mxu0 0
  %9270 = vmatpush1.bf16.xpose.msra.mxu0 0
  %9271 = vmatprep.subr.bf16.mxu0 0
  %9272 = vmatpush1.bf16.xpose.msra.mxu0 0
  %9273 = vmatprep.mubr.bf16.mxu0 0
  %9274 = vmatmul.mubr.bf16.gmra.mrb[0].mxu0 %v9230
  %v9275 = vpop.f32.mrb[0].mxu0
  %v9276 = vadd.f32 0.0, %v9275
  %v9277 = vpop.f32.mrb[0].mxu0
  %v9278 = vpop.f32.mrb[0].mxu0
  %v9279 = vadd.f32 0.0, %v9278
  %v9280 = vpop.f32.mrb[0].mxu0
  %9281 = vmatprep.mubr.bf16.mxu0 0
  %9282 = vmatmul.mubr.bf16.gmra.mrb[0].mxu0 %v9233
  %v9283 = vpop.f32.mrb[0].mxu0
  %v9284 = vadd.f32 0.0, %v9283
  %v9285 = vpop.f32.mrb[0].mxu0
  %v9286 = vpop.f32.mrb[0].mxu0
  %v9287 = vpop.f32.mrb[0].mxu0
  %9288 = vdwg.mxu0
  %v9290 = vsel %vm1893, %v8993, 0
  %v9293 = vsel %vm1893, %v8994, 0
  %v9296 = vsel %vm1893, %v9227, 0
  %v9299 = vsel %vm1893, %v9228, 0
  %9301 = vmatprep.subr.bf16.mxu0 0
  %9302 = vmatpush1.bf16.xpose.msra.mxu0 %v9296
  %9303 = vmatprep.subr.bf16.mxu0 0
  %9304 = vmatpush1.bf16.xpose.msra.mxu0 %v9299
  %9305 = vmatprep.subr.bf16.mxu0 0
  %9306 = vmatpush1.bf16.xpose.msra.mxu0 0
  %9307 = vmatprep.subr.bf16.mxu0 0
  %9308 = vmatpush1.bf16.xpose.msra.mxu0 0
  %9309 = vmatprep.subr.bf16.mxu0 0
  %9310 = vmatpush1.bf16.xpose.msra.mxu0 0
  %9311 = vmatprep.subr.bf16.mxu0 0
  %9312 = vmatpush1.bf16.xpose.msra.mxu0 0
  %9313 = vmatprep.subr.bf16.mxu0 0
  %9314 = vmatpush1.bf16.xpose.msra.mxu0 0
  %9315 = vmatprep.subr.bf16.mxu0 0
  %9316 = vmatpush1.bf16.xpose.msra.mxu0 0
  %9317 = vmatprep.subr.bf16.mxu0 0
  %9318 = vmatpush1.bf16.xpose.msra.mxu0 0
  %9319 = vmatprep.subr.bf16.mxu0 0
  %9320 = vmatpush1.bf16.xpose.msra.mxu0 0
  %9321 = vmatprep.subr.bf16.mxu0 0
  %9322 = vmatpush1.bf16.xpose.msra.mxu0 0
  %9323 = vmatprep.subr.bf16.mxu0 0
  %9324 = vmatpush1.bf16.xpose.msra.mxu0 0
  %9325 = vmatprep.subr.bf16.mxu0 0
  %9326 = vmatpush1.bf16.xpose.msra.mxu0 0
  %9327 = vmatprep.subr.bf16.mxu0 0
  %9328 = vmatpush1.bf16.xpose.msra.mxu0 0
  %9329 = vmatprep.subr.bf16.mxu0 0
  %9330 = vmatpush1.bf16.xpose.msra.mxu0 0
  %9331 = vmatprep.subr.bf16.mxu0 0
  %9332 = vmatpush1.bf16.xpose.msra.mxu0 0
  %9333 = vmatprep.mubr.bf16.mxu0 0
  %9334 = vmatmul.mubr.bf16.gmra.mrb[0].mxu0 %v9290
  %v9335 = vpop.f32.mrb[0].mxu0
  %v9336 = vadd.f32 0.0, %v9335
  %v9337 = vpop.f32.mrb[0].mxu0
  %v9338 = vpop.f32.mrb[0].mxu0
  %v9339 = vadd.f32 0.0, %v9338
  %v9340 = vpop.f32.mrb[0].mxu0
  %9341 = vmatprep.mubr.bf16.mxu0 0
  %9342 = vmatmul.mubr.bf16.gmra.mrb[0].mxu0 %v9293
  %v9343 = vpop.f32.mrb[0].mxu0
  %v9344 = vadd.f32 0.0, %v9343
  %v9345 = vpop.f32.mrb[0].mxu0
  %v9346 = vpop.f32.mrb[0].mxu0
  %v9347 = vpop.f32.mrb[0].mxu0
  %9348 = vdwg.mxu0
  %v9349 = vsel %vm2014, %v9276, -inf
  %9350 = vmax.xlane.f32.xlu0 %v9349
  %v9351 = vpop.xlane.xlu0 %9350
  %v9352 = vsel %vm2014, %v9279, -inf
  %9353 = vmax.xlane.f32.xlu0 %v9352
  %v9354 = vpop.xlane.xlu0 %9353
  %v9355 = vsel %vm2021, %v9284, -inf
  %9356 = vmax.xlane.f32.xlu0 %v9355
  %v9357 = vpop.xlane.xlu0 %9356
  %v9358 = vsel %vm2014, %v9336, -inf
  %9359 = vmax.xlane.f32.xlu0 %v9358
  %v9360 = vpop.xlane.xlu0 %9359
  %v9361 = vsel %vm2014, %v9339, -inf
  %9362 = vmax.xlane.f32.xlu0 %v9361
  %v9363 = vpop.xlane.xlu0 %9362
  %v9364 = vsel %vm2021, %v9344, -inf
  %9365 = vmax.xlane.f32.xlu0 %v9364
  %v9366 = vpop.xlane.xlu0 %9365
  %v9367 = vsub.f32 %v9276, %v9351
  %v9368 = vsub.f32 %v9279, %v9354
  %v9369 = vsub.f32 %v9284, %v9357
  %v9370 = vsub.f32 %v9336, %v9360
  %v9371 = vsub.f32 %v9339, %v9363
  %v9372 = vsub.f32 %v9344, %v9366
  %v9373 = vmul.f32 %v9367, 1.442695
  %v9374 = vpow.pop %v9373
  %v9375 = vmul.f32 %v9368, 1.442695
  %v9376 = vpow.pop %v9375
  %v9377 = vmul.f32 %v9369, 1.442695
  %v9378 = vpow.pop %v9377
  %v9379 = vmul.f32 %v9370, 1.442695
  %v9380 = vpow.pop %v9379
  %v9381 = vmul.f32 %v9371, 1.442695
  %v9382 = vpow.pop %v9381
  %v9383 = vmul.f32 %v9372, 1.442695
  %v9384 = vpow.pop %v9383
  %v9385 = vsel %vm2014, %v9374, 0.0
  %9386 = vadd.xlane.f32.xlu0 %v9385
  %v9387 = vpop.xlane.xlu0 %9386
  %v9388 = vsel %vm2014, %v9376, 0.0
  %9389 = vadd.xlane.f32.xlu0 %v9388
  %v9390 = vpop.xlane.xlu0 %9389
  %v9391 = vsel %vm2021, %v9378, 0.0
  %9392 = vadd.xlane.f32.xlu0 %v9391
  %v9393 = vpop.xlane.xlu0 %9392
  %v9394 = vsel %vm2014, %v9380, 0.0
  %9395 = vadd.xlane.f32.xlu0 %v9394
  %v9396 = vpop.xlane.xlu0 %9395
  %v9397 = vsel %vm2014, %v9382, 0.0
  %9398 = vadd.xlane.f32.xlu0 %v9397
  %v9399 = vpop.xlane.xlu0 %9398
  %v9400 = vsel %vm2021, %v9384, 0.0
  %9401 = vadd.xlane.f32.xlu0 %v9400
  %v9402 = vpop.xlane.xlu0 %9401
  %v9403 = vrcp.pop %v9387
  %v9404 = vrcp.pop %v9390
  %v9405 = vrcp.pop %v9393
  %v9406 = vrcp.pop %v9396
  %v9407 = vrcp.pop %v9399
  %v9408 = vrcp.pop %v9402
  %v9409 = vmul.f32 %v9374, %v9403
  %v9410 = vmul.f32 %v9376, %v9404
  %v9411 = vmul.f32 %v9378, %v9405
  %v9412 = vmul.f32 %v9380, %v9406
  %v9413 = vmul.f32 %v9382, %v9407
  %v9414 = vmul.f32 %v9384, %v9408
  %v9415 = vpack.c.bf16 %v9410, %v9409
  %v9416 = vpack.c.bf16 %v9411, %v9411
  %v9417 = vpack.c.bf16 %v9413, %v9412
  %v9418 = vpack.c.bf16 %v9414, %v9414
  %v9419 = vcombine.low %v8566, %v8580
  %v9420 = vcombine.low %v8588, %v8590
  %v9421 = vcombine.low %v8573, %v8587
  %v9422 = vcombine.low %v8589, %v8591
  %v9424 = vunpack.c.l.s4 1966171168
  %v9425 = vunpack.c.0.s8 %v9424
  %v9426 = vlaneseq
  %v9427 = vshrl.u32 %v9426, 7
  %v9428 = vsub.s32 %v9425, %v9427
  %v9429 = vrot.slane %v9419, %v9428
  %v9431 = vunpack.c.l.s4 1966171168
  %v9432 = vunpack.c.0.s8 %v9431
  %v9433 = vlaneseq
  %v9434 = vshrl.u32 %v9433, 7
  %v9435 = vsub.s32 %v9432, %v9434
  %v9436 = vrot.slane %v9420, %v9435
  %v9438 = vunpack.c.l.s4 1966171168
  %v9439 = vunpack.c.0.s8 %v9438
  %v9440 = vlaneseq
  %v9441 = vshrl.u32 %v9440, 7
  %v9442 = vsub.s32 %v9439, %v9441
  %v9443 = vrot.slane %v9421, %v9442
  %v9445 = vunpack.c.l.s4 1966171168
  %v9446 = vunpack.c.0.s8 %v9445
  %v9447 = vlaneseq
  %v9448 = vshrl.u32 %v9447, 7
  %v9449 = vsub.s32 %v9446, %v9448
  %v9450 = vrot.slane %v9422, %v9449
  %v9451 = vcombine.low %v9429, %v9436
  %v9452 = vcombine.low %v9443, %v9450
  %v9454 = vunpack.c.l.s4 1966171168
  %v9455 = vunpack.c.0.s8 %v9454
  %v9456 = vlaneseq
  %v9457 = vshrl.u32 %v9456, 7
  %v9458 = vsub.s32 %v9455, %v9457
  %v9459 = vrot.slane %v9451, %v9458
  %v9461 = vunpack.c.l.s4 1966171168
  %v9462 = vunpack.c.0.s8 %v9461
  %v9463 = vlaneseq
  %v9464 = vshrl.u32 %v9463, 7
  %v9465 = vsub.s32 %v9462, %v9464
  %v9466 = vrot.slane %v9452, %v9465
  %v9467 = vcombine.low %v9459, %v9466
  %v9468 = vcombine.low %v8615, %v8629
  %v9469 = vcombine.low %v8637, %v8639
  %v9470 = vcombine.low %v8622, %v8636
  %v9471 = vcombine.low %v8638, %v8640
  %v9473 = vunpack.c.l.s4 1966171168
  %v9474 = vunpack.c.0.s8 %v9473
  %v9475 = vlaneseq
  %v9476 = vshrl.u32 %v9475, 7
  %v9477 = vsub.s32 %v9474, %v9476
  %v9478 = vrot.slane %v9468, %v9477
  %v9480 = vunpack.c.l.s4 1966171168
  %v9481 = vunpack.c.0.s8 %v9480
  %v9482 = vlaneseq
  %v9483 = vshrl.u32 %v9482, 7
  %v9484 = vsub.s32 %v9481, %v9483
  %v9485 = vrot.slane %v9469, %v9484
  %v9487 = vunpack.c.l.s4 1966171168
  %v9488 = vunpack.c.0.s8 %v9487
  %v9489 = vlaneseq
  %v9490 = vshrl.u32 %v9489, 7
  %v9491 = vsub.s32 %v9488, %v9490
  %v9492 = vrot.slane %v9470, %v9491
  %v9494 = vunpack.c.l.s4 1966171168
  %v9495 = vunpack.c.0.s8 %v9494
  %v9496 = vlaneseq
  %v9497 = vshrl.u32 %v9496, 7
  %v9498 = vsub.s32 %v9495, %v9497
  %v9499 = vrot.slane %v9471, %v9498
  %v9500 = vcombine.low %v9478, %v9485
  %v9501 = vcombine.low %v9492, %v9499
  %v9503 = vunpack.c.l.s4 1966171168
  %v9504 = vunpack.c.0.s8 %v9503
  %v9505 = vlaneseq
  %v9506 = vshrl.u32 %v9505, 7
  %v9507 = vsub.s32 %v9504, %v9506
  %v9508 = vrot.slane %v9500, %v9507
  %v9510 = vunpack.c.l.s4 1966171168
  %v9511 = vunpack.c.0.s8 %v9510
  %v9512 = vlaneseq
  %v9513 = vshrl.u32 %v9512, 7
  %v9514 = vsub.s32 %v9511, %v9513
  %v9515 = vrot.slane %v9501, %v9514
  %v9516 = vcombine.low %v9508, %v9515
  %v9518 = vunpack.c.l.s4 1966171168
  %v9519 = vunpack.c.0.s8 %v9518
  %v9520 = vlaneseq
  %v9521 = vshrl.u32 %v9520, 7
  %v9522 = vsub.s32 %v9519, %v9521
  %v9523 = vrot.slane %v8664, %v9522
  %v9525 = vunpack.c.l.s4 1966171168
  %v9526 = vunpack.c.0.s8 %v9525
  %v9527 = vlaneseq
  %v9528 = vshrl.u32 %v9527, 7
  %v9529 = vsub.s32 %v9526, %v9528
  %v9530 = vrot.slane %v9523, %v9529
  %v9531 = vcombine.low %v8678, %v8686
  %v9532 = vcombine.low %v8688, %v8671
  %v9533 = vcombine.low %v8685, %v8687
  %v9534 = vcombine.low %v8689, %v8713
  %v9536 = vunpack.c.l.s4 1966171168
  %v9537 = vunpack.c.0.s8 %v9536
  %v9538 = vlaneseq
  %v9539 = vshrl.u32 %v9538, 7
  %v9540 = vsub.s32 %v9537, %v9539
  %v9541 = vrot.slane %v9531, %v9540
  %v9543 = vunpack.c.l.s4 1966171168
  %v9544 = vunpack.c.0.s8 %v9543
  %v9545 = vlaneseq
  %v9546 = vshrl.u32 %v9545, 7
  %v9547 = vsub.s32 %v9544, %v9546
  %v9548 = vrot.slane %v9532, %v9547
  %v9550 = vunpack.c.l.s4 1966171168
  %v9551 = vunpack.c.0.s8 %v9550
  %v9552 = vlaneseq
  %v9553 = vshrl.u32 %v9552, 7
  %v9554 = vsub.s32 %v9551, %v9553
  %v9555 = vrot.slane %v9533, %v9554
  %v9557 = vunpack.c.l.s4 1966171168
  %v9558 = vunpack.c.0.s8 %v9557
  %v9559 = vlaneseq
  %v9560 = vshrl.u32 %v9559, 7
  %v9561 = vsub.s32 %v9558, %v9560
  %v9562 = vrot.slane %v9534, %v9561
  %v9563 = vcombine.low %v9541, %v9548
  %v9564 = vcombine.low %v9555, %v9562
  %v9566 = vunpack.c.l.s4 1966171168
  %v9567 = vunpack.c.0.s8 %v9566
  %v9568 = vlaneseq
  %v9569 = vshrl.u32 %v9568, 7
  %v9570 = vsub.s32 %v9567, %v9569
  %v9571 = vrot.slane %v9563, %v9570
  %v9573 = vunpack.c.l.s4 1966171168
  %v9574 = vunpack.c.0.s8 %v9573
  %v9575 = vlaneseq
  %v9576 = vshrl.u32 %v9575, 7
  %v9577 = vsub.s32 %v9574, %v9576
  %v9578 = vrot.slane %v9564, %v9577
  %v9579 = vcombine.low %v9571, %v9578
  %v9580 = vcombine.low %v8727, %v8735
  %v9581 = vcombine.low %v8737, %v8720
  %v9582 = vcombine.low %v8734, %v8736
  %v9583 = vcombine.low %v8738, %v8753
  %v9585 = vunpack.c.l.s4 1966171168
  %v9586 = vunpack.c.0.s8 %v9585
  %v9587 = vlaneseq
  %v9588 = vshrl.u32 %v9587, 7
  %v9589 = vsub.s32 %v9586, %v9588
  %v9590 = vrot.slane %v9580, %v9589
  %v9592 = vunpack.c.l.s4 1966171168
  %v9593 = vunpack.c.0.s8 %v9592
  %v9594 = vlaneseq
  %v9595 = vshrl.u32 %v9594, 7
  %v9596 = vsub.s32 %v9593, %v9595
  %v9597 = vrot.slane %v9581, %v9596
  %v9599 = vunpack.c.l.s4 1966171168
  %v9600 = vunpack.c.0.s8 %v9599
  %v9601 = vlaneseq
  %v9602 = vshrl.u32 %v9601, 7
  %v9603 = vsub.s32 %v9600, %v9602
  %v9604 = vrot.slane %v9582, %v9603
  %v9606 = vunpack.c.l.s4 1966171168
  %v9607 = vunpack.c.0.s8 %v9606
  %v9608 = vlaneseq
  %v9609 = vshrl.u32 %v9608, 7
  %v9610 = vsub.s32 %v9607, %v9609
  %v9611 = vrot.slane %v9583, %v9610
  %v9612 = vcombine.low %v9590, %v9597
  %v9613 = vcombine.low %v9604, %v9611
  %v9615 = vunpack.c.l.s4 1966171168
  %v9616 = vunpack.c.0.s8 %v9615
  %v9617 = vlaneseq
  %v9618 = vshrl.u32 %v9617, 7
  %v9619 = vsub.s32 %v9616, %v9618
  %v9620 = vrot.slane %v9612, %v9619
  %v9622 = vunpack.c.l.s4 1966171168
  %v9623 = vunpack.c.0.s8 %v9622
  %v9624 = vlaneseq
  %v9625 = vshrl.u32 %v9624, 7
  %v9626 = vsub.s32 %v9623, %v9625
  %v9627 = vrot.slane %v9613, %v9626
  %v9628 = vcombine.low %v9620, %v9627
  %v9630 = vunpack.c.l.s4 1966171168
  %v9631 = vunpack.c.0.s8 %v9630
  %v9632 = vlaneseq
  %v9633 = vshrl.u32 %v9632, 7
  %v9634 = vsub.s32 %v9631, %v9633
  %v9635 = vrot.slane %v8760, %v9634
  %v9637 = vunpack.c.l.s4 1966171168
  %v9638 = vunpack.c.0.s8 %v9637
  %v9639 = vlaneseq
  %v9640 = vshrl.u32 %v9639, 7
  %v9641 = vsub.s32 %v9638, %v9640
  %v9642 = vrot.slane %v9635, %v9641
  %v9649 = vpack.c.bf16 %v9516, %v9467
  %v9650 = vpack.c.bf16 %v9530, %v9530
  %v9651 = vpack.c.bf16 %v9628, %v9579
  %v9652 = vpack.c.bf16 %v9642, %v9642
  %v9654 = vsel %vm2014, %v9415, 0
  %v9657 = vsel %vm2014, %v9416, 0
  %v9660 = vand.u32 %v9650, %v2327
  %9662 = vmatprep.subr.bf16.mxu0 0
  %9663 = vmatpush1.bf16.msra.mxu0 %v9649
  %9664 = vmatprep.subr.bf16.mxu0 0
  %9665 = vmatpush1.bf16.msra.mxu0 %v9660
  %9666 = vmatprep.subr.bf16.mxu0 0
  %9667 = vmatpush1.bf16.msra.mxu0 0
  %9668 = vmatprep.subr.bf16.mxu0 0
  %9669 = vmatpush1.bf16.msra.mxu0 0
  %9670 = vmatprep.subr.bf16.mxu0 0
  %9671 = vmatpush1.bf16.msra.mxu0 0
  %9672 = vmatprep.subr.bf16.mxu0 0
  %9673 = vmatpush1.bf16.msra.mxu0 0
  %9674 = vmatprep.subr.bf16.mxu0 0
  %9675 = vmatpush1.bf16.msra.mxu0 0
  %9676 = vmatprep.subr.bf16.mxu0 0
  %9677 = vmatpush1.bf16.msra.mxu0 0
  %9678 = vmatprep.subr.bf16.mxu0 0
  %9679 = vmatpush1.bf16.msra.mxu0 0
  %9680 = vmatprep.subr.bf16.mxu0 0
  %9681 = vmatpush1.bf16.msra.mxu0 0
  %9682 = vmatprep.subr.bf16.mxu0 0
  %9683 = vmatpush1.bf16.msra.mxu0 0
  %9684 = vmatprep.subr.bf16.mxu0 0
  %9685 = vmatpush1.bf16.msra.mxu0 0
  %9686 = vmatprep.subr.bf16.mxu0 0
  %9687 = vmatpush1.bf16.msra.mxu0 0
  %9688 = vmatprep.subr.bf16.mxu0 0
  %9689 = vmatpush1.bf16.msra.mxu0 0
  %9690 = vmatprep.subr.bf16.mxu0 0
  %9691 = vmatpush1.bf16.msra.mxu0 0
  %9692 = vmatprep.subr.bf16.mxu0 0
  %9693 = vmatpush1.bf16.msra.mxu0 0
  %9694 = vmatprep.mubr.bf16.mxu0 0
  %9695 = vmatmul.mubr.bf16.gmra.mrb[0].mxu0 %v9654
  %v9696 = vpop.f32.mrb[0].mxu0
  %v9697 = vadd.f32 0.0, %v9696
  %v9698 = vpop.f32.mrb[0].mxu0
  %v9699 = vpop.f32.mrb[0].mxu0
  %v9700 = vadd.f32 0.0, %v9699
  %v9701 = vpop.f32.mrb[0].mxu0
  %9702 = vmatprep.mubr.bf16.mxu0 0
  %9703 = vmatmul.mubr.bf16.gmra.mrb[0].mxu0 %v9657
  %v9704 = vpop.f32.mrb[0].mxu0
  %v9705 = vadd.f32 0.0, %v9704
  %v9706 = vpop.f32.mrb[0].mxu0
  %v9707 = vpop.f32.mrb[0].mxu0
  %v9708 = vpop.f32.mrb[0].mxu0
  %9709 = vdwg.mxu0
  %v9711 = vsel %vm2014, %v9417, 0
  %v9714 = vsel %vm2014, %v9418, 0
  %v9717 = vand.u32 %v9652, %v2327
  %9719 = vmatprep.subr.bf16.mxu0 0
  %9720 = vmatpush1.bf16.msra.mxu0 %v9651
  %9721 = vmatprep.subr.bf16.mxu0 0
  %9722 = vmatpush1.bf16.msra.mxu0 %v9717
  %9723 = vmatprep.subr.bf16.mxu0 0
  %9724 = vmatpush1.bf16.msra.mxu0 0
  %9725 = vmatprep.subr.bf16.mxu0 0
  %9726 = vmatpush1.bf16.msra.mxu0 0
  %9727 = vmatprep.subr.bf16.mxu0 0
  %9728 = vmatpush1.bf16.msra.mxu0 0
  %9729 = vmatprep.subr.bf16.mxu0 0
  %9730 = vmatpush1.bf16.msra.mxu0 0
  %9731 = vmatprep.subr.bf16.mxu0 0
  %9732 = vmatpush1.bf16.msra.mxu0 0
  %9733 = vmatprep.subr.bf16.mxu0 0
  %9734 = vmatpush1.bf16.msra.mxu0 0
  %9735 = vmatprep.subr.bf16.mxu0 0
  %9736 = vmatpush1.bf16.msra.mxu0 0
  %9737 = vmatprep.subr.bf16.mxu0 0
  %9738 = vmatpush1.bf16.msra.mxu0 0
  %9739 = vmatprep.subr.bf16.mxu0 0
  %9740 = vmatpush1.bf16.msra.mxu0 0
  %9741 = vmatprep.subr.bf16.mxu0 0
  %9742 = vmatpush1.bf16.msra.mxu0 0
  %9743 = vmatprep.subr.bf16.mxu0 0
  %9744 = vmatpush1.bf16.msra.mxu0 0
  %9745 = vmatprep.subr.bf16.mxu0 0
  %9746 = vmatpush1.bf16.msra.mxu0 0
  %9747 = vmatprep.subr.bf16.mxu0 0
  %9748 = vmatpush1.bf16.msra.mxu0 0
  %9749 = vmatprep.subr.bf16.mxu0 0
  %9750 = vmatpush1.bf16.msra.mxu0 0
  %9751 = vmatprep.mubr.bf16.mxu0 0
  %9752 = vmatmul.mubr.bf16.gmra.mrb[0].mxu0 %v9711
  %v9753 = vpop.f32.mrb[0].mxu0
  %v9754 = vadd.f32 0.0, %v9753
  %v9755 = vpop.f32.mrb[0].mxu0
  %v9756 = vpop.f32.mrb[0].mxu0
  %v9757 = vadd.f32 0.0, %v9756
  %v9758 = vpop.f32.mrb[0].mxu0
  %9759 = vmatprep.mubr.bf16.mxu0 0
  %9760 = vmatmul.mubr.bf16.gmra.mrb[0].mxu0 %v9714
  %v9761 = vpop.f32.mrb[0].mxu0
  %v9762 = vadd.f32 0.0, %v9761
  %v9763 = vpop.f32.mrb[0].mxu0
  %v9764 = vpop.f32.mrb[0].mxu0
  %v9765 = vpop.f32.mrb[0].mxu0
  %9766 = vdwg.mxu0
  %v9773 = vcombine.high %v9697, %v9697
  %v9775 = vunpack.c.l.s4 1966171168
  %v9776 = vunpack.c.0.s8 %v9775
  %v9777 = vlaneseq
  %v9778 = vshrl.u32 %v9777, 7
  %v9779 = vsub.s32 %v9776, %v9778
  %v9780 = vrot.slane %v9697, %v9779
  %v9782 = vunpack.c.l.s4 1966171168
  %v9783 = vunpack.c.0.s8 %v9782
  %v9784 = vlaneseq
  %v9785 = vshrl.u32 %v9784, 7
  %v9786 = vsub.s32 %v9783, %v9785
  %v9787 = vrot.slane %v9773, %v9786
  %v9788 = vcombine.high %v9780, %v9780
  %v9789 = vcombine.high %v9787, %v9787
  %v9791 = vunpack.c.l.s4 1966171168
  %v9792 = vunpack.c.0.s8 %v9791
  %v9793 = vlaneseq
  %v9794 = vshrl.u32 %v9793, 7
  %v9795 = vsub.s32 %v9792, %v9794
  %v9796 = vrot.slane %v9780, %v9795
  %v9798 = vunpack.c.l.s4 1966171168
  %v9799 = vunpack.c.0.s8 %v9798
  %v9800 = vlaneseq
  %v9801 = vshrl.u32 %v9800, 7
  %v9802 = vsub.s32 %v9799, %v9801
  %v9803 = vrot.slane %v9787, %v9802
  %v9805 = vunpack.c.l.s4 1966171168
  %v9806 = vunpack.c.0.s8 %v9805
  %v9807 = vlaneseq
  %v9808 = vshrl.u32 %v9807, 7
  %v9809 = vsub.s32 %v9806, %v9808
  %v9810 = vrot.slane %v9788, %v9809
  %v9812 = vunpack.c.l.s4 1966171168
  %v9813 = vunpack.c.0.s8 %v9812
  %v9814 = vlaneseq
  %v9815 = vshrl.u32 %v9814, 7
  %v9816 = vsub.s32 %v9813, %v9815
  %v9817 = vrot.slane %v9789, %v9816
  %v9818 = vcombine.high %v9796, %v9796
  %v9819 = vcombine.high %v9803, %v9803
  %v9820 = vcombine.high %v9810, %v9810
  %v9821 = vcombine.high %v9817, %v9817
  %v9822 = vcombine.high %v9700, %v9700
  %v9824 = vunpack.c.l.s4 1966171168
  %v9825 = vunpack.c.0.s8 %v9824
  %v9826 = vlaneseq
  %v9827 = vshrl.u32 %v9826, 7
  %v9828 = vsub.s32 %v9825, %v9827
  %v9829 = vrot.slane %v9700, %v9828
  %v9831 = vunpack.c.l.s4 1966171168
  %v9832 = vunpack.c.0.s8 %v9831
  %v9833 = vlaneseq
  %v9834 = vshrl.u32 %v9833, 7
  %v9835 = vsub.s32 %v9832, %v9834
  %v9836 = vrot.slane %v9822, %v9835
  %v9837 = vcombine.high %v9829, %v9829
  %v9838 = vcombine.high %v9836, %v9836
  %v9840 = vunpack.c.l.s4 1966171168
  %v9841 = vunpack.c.0.s8 %v9840
  %v9842 = vlaneseq
  %v9843 = vshrl.u32 %v9842, 7
  %v9844 = vsub.s32 %v9841, %v9843
  %v9845 = vrot.slane %v9829, %v9844
  %v9847 = vunpack.c.l.s4 1966171168
  %v9848 = vunpack.c.0.s8 %v9847
  %v9849 = vlaneseq
  %v9850 = vshrl.u32 %v9849, 7
  %v9851 = vsub.s32 %v9848, %v9850
  %v9852 = vrot.slane %v9836, %v9851
  %v9854 = vunpack.c.l.s4 1966171168
  %v9855 = vunpack.c.0.s8 %v9854
  %v9856 = vlaneseq
  %v9857 = vshrl.u32 %v9856, 7
  %v9858 = vsub.s32 %v9855, %v9857
  %v9859 = vrot.slane %v9837, %v9858
  %v9861 = vunpack.c.l.s4 1966171168
  %v9862 = vunpack.c.0.s8 %v9861
  %v9863 = vlaneseq
  %v9864 = vshrl.u32 %v9863, 7
  %v9865 = vsub.s32 %v9862, %v9864
  %v9866 = vrot.slane %v9838, %v9865
  %v9867 = vcombine.high %v9845, %v9845
  %v9868 = vcombine.high %v9852, %v9852
  %v9869 = vcombine.high %v9859, %v9859
  %v9870 = vcombine.high %v9866, %v9866
  %v9872 = vunpack.c.l.s4 1966171168
  %v9873 = vunpack.c.0.s8 %v9872
  %v9874 = vlaneseq
  %v9875 = vshrl.u32 %v9874, 7
  %v9876 = vsub.s32 %v9873, %v9875
  %v9877 = vrot.slane %v9705, %v9876
  %v9879 = vunpack.c.l.s4 1966171168
  %v9880 = vunpack.c.0.s8 %v9879
  %v9881 = vlaneseq
  %v9882 = vshrl.u32 %v9881, 7
  %v9883 = vsub.s32 %v9880, %v9882
  %v9884 = vrot.slane %v9877, %v9883
  %v9885 = vcombine.high %v9754, %v9754
  %v9887 = vunpack.c.l.s4 1966171168
  %v9888 = vunpack.c.0.s8 %v9887
  %v9889 = vlaneseq
  %v9890 = vshrl.u32 %v9889, 7
  %v9891 = vsub.s32 %v9888, %v9890
  %v9892 = vrot.slane %v9754, %v9891
  %v9894 = vunpack.c.l.s4 1966171168
  %v9895 = vunpack.c.0.s8 %v9894
  %v9896 = vlaneseq
  %v9897 = vshrl.u32 %v9896, 7
  %v9898 = vsub.s32 %v9895, %v9897
  %v9899 = vrot.slane %v9885, %v9898
  %v9900 = vcombine.high %v9892, %v9892
  %v9901 = vcombine.high %v9899, %v9899
  %v9903 = vunpack.c.l.s4 1966171168
  %v9904 = vunpack.c.0.s8 %v9903
  %v9905 = vlaneseq
  %v9906 = vshrl.u32 %v9905, 7
  %v9907 = vsub.s32 %v9904, %v9906
  %v9908 = vrot.slane %v9892, %v9907
  %v9910 = vunpack.c.l.s4 1966171168
  %v9911 = vunpack.c.0.s8 %v9910
  %v9912 = vlaneseq
  %v9913 = vshrl.u32 %v9912, 7
  %v9914 = vsub.s32 %v9911, %v9913
  %v9915 = vrot.slane %v9899, %v9914
  %v9917 = vunpack.c.l.s4 1966171168
  %v9918 = vunpack.c.0.s8 %v9917
  %v9919 = vlaneseq
  %v9920 = vshrl.u32 %v9919, 7
  %v9921 = vsub.s32 %v9918, %v9920
  %v9922 = vrot.slane %v9900, %v9921
  %v9924 = vunpack.c.l.s4 1966171168
  %v9925 = vunpack.c.0.s8 %v9924
  %v9926 = vlaneseq
  %v9927 = vshrl.u32 %v9926, 7
  %v9928 = vsub.s32 %v9925, %v9927
  %v9929 = vrot.slane %v9901, %v9928
  %v9930 = vcombine.high %v9908, %v9908
  %v9931 = vcombine.high %v9915, %v9915
  %v9932 = vcombine.high %v9922, %v9922
  %v9933 = vcombine.high %v9929, %v9929
  %v9934 = vcombine.high %v9757, %v9757
  %v9936 = vunpack.c.l.s4 1966171168
  %v9937 = vunpack.c.0.s8 %v9936
  %v9938 = vlaneseq
  %v9939 = vshrl.u32 %v9938, 7
  %v9940 = vsub.s32 %v9937, %v9939
  %v9941 = vrot.slane %v9757, %v9940
  %v9943 = vunpack.c.l.s4 1966171168
  %v9944 = vunpack.c.0.s8 %v9943
  %v9945 = vlaneseq
  %v9946 = vshrl.u32 %v9945, 7
  %v9947 = vsub.s32 %v9944, %v9946
  %v9948 = vrot.slane %v9934, %v9947
  %v9949 = vcombine.high %v9941, %v9941
  %v9950 = vcombine.high %v9948, %v9948
  %v9952 = vunpack.c.l.s4 1966171168
  %v9953 = vunpack.c.0.s8 %v9952
  %v9954 = vlaneseq
  %v9955 = vshrl.u32 %v9954, 7
  %v9956 = vsub.s32 %v9953, %v9955
  %v9957 = vrot.slane %v9941, %v9956
  %v9959 = vunpack.c.l.s4 1966171168
  %v9960 = vunpack.c.0.s8 %v9959
  %v9961 = vlaneseq
  %v9962 = vshrl.u32 %v9961, 7
  %v9963 = vsub.s32 %v9960, %v9962
  %v9964 = vrot.slane %v9948, %v9963
  %v9966 = vunpack.c.l.s4 1966171168
  %v9967 = vunpack.c.0.s8 %v9966
  %v9968 = vlaneseq
  %v9969 = vshrl.u32 %v9968, 7
  %v9970 = vsub.s32 %v9967, %v9969
  %v9971 = vrot.slane %v9949, %v9970
  %v9973 = vunpack.c.l.s4 1966171168
  %v9974 = vunpack.c.0.s8 %v9973
  %v9975 = vlaneseq
  %v9976 = vshrl.u32 %v9975, 7
  %v9977 = vsub.s32 %v9974, %v9976
  %v9978 = vrot.slane %v9950, %v9977
  %v9979 = vcombine.high %v9957, %v9957
  %v9980 = vcombine.high %v9964, %v9964
  %v9981 = vcombine.high %v9971, %v9971
  %v9982 = vcombine.high %v9978, %v9978
  %v9984 = vunpack.c.l.s4 1966171168
  %v9985 = vunpack.c.0.s8 %v9984
  %v9986 = vlaneseq
  %v9987 = vshrl.u32 %v9986, 7
  %v9988 = vsub.s32 %v9985, %v9987
  %v9989 = vrot.slane %v9762, %v9988
  %v9991 = vunpack.c.l.s4 1966171168
  %v9992 = vunpack.c.0.s8 %v9991
  %v9993 = vlaneseq
  %v9994 = vshrl.u32 %v9993, 7
  %v9995 = vsub.s32 %v9992, %v9994
  %v9996 = vrot.slane %v9989, %v9995
  %v9997 = vcombine.low %v9796, %v9810
  %v9998 = vcombine.low %v9818, %v9820
  %v9999 = vcombine.low %v9803, %v9817
  %v10000 = vcombine.low %v9819, %v9821
  %v10002 = vunpack.c.l.s4 1966171168
  %v10003 = vunpack.c.0.s8 %v10002
  %v10004 = vlaneseq
  %v10005 = vshrl.u32 %v10004, 7
  %v10006 = vsub.s32 %v10003, %v10005
  %v10007 = vrot.slane %v9997, %v10006
  %v10009 = vunpack.c.l.s4 1966171168
  %v10010 = vunpack.c.0.s8 %v10009
  %v10011 = vlaneseq
  %v10012 = vshrl.u32 %v10011, 7
  %v10013 = vsub.s32 %v10010, %v10012
  %v10014 = vrot.slane %v9998, %v10013
  %v10016 = vunpack.c.l.s4 1966171168
  %v10017 = vunpack.c.0.s8 %v10016
  %v10018 = vlaneseq
  %v10019 = vshrl.u32 %v10018, 7
  %v10020 = vsub.s32 %v10017, %v10019
  %v10021 = vrot.slane %v9999, %v10020
  %v10023 = vunpack.c.l.s4 1966171168
  %v10024 = vunpack.c.0.s8 %v10023
  %v10025 = vlaneseq
  %v10026 = vshrl.u32 %v10025, 7
  %v10027 = vsub.s32 %v10024, %v10026
  %v10028 = vrot.slane %v10000, %v10027
  %v10029 = vcombine.low %v10007, %v10014
  %v10030 = vcombine.low %v10021, %v10028
  %v10032 = vunpack.c.l.s4 1966171168
  %v10033 = vunpack.c.0.s8 %v10032
  %v10034 = vlaneseq
  %v10035 = vshrl.u32 %v10034, 7
  %v10036 = vsub.s32 %v10033, %v10035
  %v10037 = vrot.slane %v10029, %v10036
  %v10039 = vunpack.c.l.s4 1966171168
  %v10040 = vunpack.c.0.s8 %v10039
  %v10041 = vlaneseq
  %v10042 = vshrl.u32 %v10041, 7
  %v10043 = vsub.s32 %v10040, %v10042
  %v10044 = vrot.slane %v10030, %v10043
  %v10045 = vcombine.low %v10037, %v10044
  %v10046 = vcombine.low %v9845, %v9859
  %v10047 = vcombine.low %v9867, %v9869
  %v10048 = vcombine.low %v9852, %v9866
  %v10049 = vcombine.low %v9868, %v9870
  %v10051 = vunpack.c.l.s4 1966171168
  %v10052 = vunpack.c.0.s8 %v10051
  %v10053 = vlaneseq
  %v10054 = vshrl.u32 %v10053, 7
  %v10055 = vsub.s32 %v10052, %v10054
  %v10056 = vrot.slane %v10046, %v10055
  %v10058 = vunpack.c.l.s4 1966171168
  %v10059 = vunpack.c.0.s8 %v10058
  %v10060 = vlaneseq
  %v10061 = vshrl.u32 %v10060, 7
  %v10062 = vsub.s32 %v10059, %v10061
  %v10063 = vrot.slane %v10047, %v10062
  %v10065 = vunpack.c.l.s4 1966171168
  %v10066 = vunpack.c.0.s8 %v10065
  %v10067 = vlaneseq
  %v10068 = vshrl.u32 %v10067, 7
  %v10069 = vsub.s32 %v10066, %v10068
  %v10070 = vrot.slane %v10048, %v10069
  %v10072 = vunpack.c.l.s4 1966171168
  %v10073 = vunpack.c.0.s8 %v10072
  %v10074 = vlaneseq
  %v10075 = vshrl.u32 %v10074, 7
  %v10076 = vsub.s32 %v10073, %v10075
  %v10077 = vrot.slane %v10049, %v10076
  %v10078 = vcombine.low %v10056, %v10063
  %v10079 = vcombine.low %v10070, %v10077
  %v10081 = vunpack.c.l.s4 1966171168
  %v10082 = vunpack.c.0.s8 %v10081
  %v10083 = vlaneseq
  %v10084 = vshrl.u32 %v10083, 7
  %v10085 = vsub.s32 %v10082, %v10084
  %v10086 = vrot.slane %v10078, %v10085
  %v10088 = vunpack.c.l.s4 1966171168
  %v10089 = vunpack.c.0.s8 %v10088
  %v10090 = vlaneseq
  %v10091 = vshrl.u32 %v10090, 7
  %v10092 = vsub.s32 %v10089, %v10091
  %v10093 = vrot.slane %v10079, %v10092
  %v10094 = vcombine.low %v10086, %v10093
  %v10095 = vcombine.low %v9884, %v9908
  %v10096 = vcombine.low %v9922, %v9930
  %v10097 = vcombine.low %v9932, %v9915
  %v10098 = vcombine.low %v9929, %v9931
  %v10100 = vunpack.c.l.s4 1966171168
  %v10101 = vunpack.c.0.s8 %v10100
  %v10102 = vlaneseq
  %v10103 = vshrl.u32 %v10102, 7
  %v10104 = vsub.s32 %v10101, %v10103
  %v10105 = vrot.slane %v10095, %v10104
  %v10107 = vunpack.c.l.s4 1966171168
  %v10108 = vunpack.c.0.s8 %v10107
  %v10109 = vlaneseq
  %v10110 = vshrl.u32 %v10109, 7
  %v10111 = vsub.s32 %v10108, %v10110
  %v10112 = vrot.slane %v10096, %v10111
  %v10114 = vunpack.c.l.s4 1966171168
  %v10115 = vunpack.c.0.s8 %v10114
  %v10116 = vlaneseq
  %v10117 = vshrl.u32 %v10116, 7
  %v10118 = vsub.s32 %v10115, %v10117
  %v10119 = vrot.slane %v10097, %v10118
  %v10121 = vunpack.c.l.s4 1966171168
  %v10122 = vunpack.c.0.s8 %v10121
  %v10123 = vlaneseq
  %v10124 = vshrl.u32 %v10123, 7
  %v10125 = vsub.s32 %v10122, %v10124
  %v10126 = vrot.slane %v10098, %v10125
  %v10127 = vcombine.low %v10105, %v10112
  %v10128 = vcombine.low %v10119, %v10126
  %v10130 = vunpack.c.l.s4 1966171168
  %v10131 = vunpack.c.0.s8 %v10130
  %v10132 = vlaneseq
  %v10133 = vshrl.u32 %v10132, 7
  %v10134 = vsub.s32 %v10131, %v10133
  %v10135 = vrot.slane %v10127, %v10134
  %v10137 = vunpack.c.l.s4 1966171168
  %v10138 = vunpack.c.0.s8 %v10137
  %v10139 = vlaneseq
  %v10140 = vshrl.u32 %v10139, 7
  %v10141 = vsub.s32 %v10138, %v10140
  %v10142 = vrot.slane %v10128, %v10141
  %v10143 = vcombine.low %v10135, %v10142
  %v10144 = vcombine.low %v9933, %v9957
  %v10145 = vcombine.low %v9971, %v9979
  %v10146 = vcombine.low %v9981, %v9964
  %v10147 = vcombine.low %v9978, %v9980
  %v10149 = vunpack.c.l.s4 1966171168
  %v10150 = vunpack.c.0.s8 %v10149
  %v10151 = vlaneseq
  %v10152 = vshrl.u32 %v10151, 7
  %v10153 = vsub.s32 %v10150, %v10152
  %v10154 = vrot.slane %v10144, %v10153
  %v10156 = vunpack.c.l.s4 1966171168
  %v10157 = vunpack.c.0.s8 %v10156
  %v10158 = vlaneseq
  %v10159 = vshrl.u32 %v10158, 7
  %v10160 = vsub.s32 %v10157, %v10159
  %v10161 = vrot.slane %v10145, %v10160
  %v10163 = vunpack.c.l.s4 1966171168
  %v10164 = vunpack.c.0.s8 %v10163
  %v10165 = vlaneseq
  %v10166 = vshrl.u32 %v10165, 7
  %v10167 = vsub.s32 %v10164, %v10166
  %v10168 = vrot.slane %v10146, %v10167
  %v10170 = vunpack.c.l.s4 1966171168
  %v10171 = vunpack.c.0.s8 %v10170
  %v10172 = vlaneseq
  %v10173 = vshrl.u32 %v10172, 7
  %v10174 = vsub.s32 %v10171, %v10173
  %v10175 = vrot.slane %v10147, %v10174
  %v10176 = vcombine.low %v10154, %v10161
  %v10177 = vcombine.low %v10168, %v10175
  %v10179 = vunpack.c.l.s4 1966171168
  %v10180 = vunpack.c.0.s8 %v10179
  %v10181 = vlaneseq
  %v10182 = vshrl.u32 %v10181, 7
  %v10183 = vsub.s32 %v10180, %v10182
  %v10184 = vrot.slane %v10176, %v10183
  %v10186 = vunpack.c.l.s4 1966171168
  %v10187 = vunpack.c.0.s8 %v10186
  %v10188 = vlaneseq
  %v10189 = vshrl.u32 %v10188, 7
  %v10190 = vsub.s32 %v10187, %v10189
  %v10191 = vrot.slane %v10177, %v10190
  %v10192 = vcombine.low %v10184, %v10191
  %v10193 = vcombine.low %v9982, %v9996
  %v10195 = vunpack.c.l.s4 1966171168
  %v10196 = vunpack.c.0.s8 %v10195
  %v10197 = vlaneseq
  %v10198 = vshrl.u32 %v10197, 7
  %v10199 = vsub.s32 %v10196, %v10198
  %v10200 = vrot.slane %v10193, %v10199
  %v10202 = vunpack.c.l.s4 1966171168
  %v10203 = vunpack.c.0.s8 %v10202
  %v10204 = vlaneseq
  %v10205 = vshrl.u32 %v10204, 7
  %v10206 = vsub.s32 %v10203, %v10205
  %v10207 = vrot.slane %v10200, %v10206
  %v10213 = vpack.c.bf16 %v10094, %v10045
  %v10214 = vpack.c.bf16 %v10192, %v10143
  %v10215 = vpack.c.bf16 %v10207, %v10207
  %s10216 = scalar_lea.vmem %s8, 12
  %v10217 = vld [vmem:[%s10216] sm:$0xf]
  %v10219 = vsel %vm1893, %v10213, 0
  %v10222 = vsel %vm1893, %v10214, 0
  %v10225 = vsel %vm1893, %v10215, 0
  %v10228 = vsel %vm5269, %v10217, 0
  %10230 = vmatprep.subr.bf16.mxu0 0
  %10231 = vmatpush1.bf16.msra.mxu0 %v10228
  %10232 = vmatprep.subr.bf16.mxu0 0
  %10233 = vmatpush1.bf16.msra.mxu0 0
  %10234 = vmatprep.subr.bf16.mxu0 0
  %10235 = vmatpush1.bf16.msra.mxu0 0
  %10236 = vmatprep.subr.bf16.mxu0 0
  %10237 = vmatpush1.bf16.msra.mxu0 0
  %10238 = vmatprep.subr.bf16.mxu0 0
  %10239 = vmatpush1.bf16.msra.mxu0 0
  %10240 = vmatprep.subr.bf16.mxu0 0
  %10241 = vmatpush1.bf16.msra.mxu0 0
  %10242 = vmatprep.subr.bf16.mxu0 0
  %10243 = vmatpush1.bf16.msra.mxu0 0
  %10244 = vmatprep.subr.bf16.mxu0 0
  %10245 = vmatpush1.bf16.msra.mxu0 0
  %10246 = vmatprep.subr.bf16.mxu0 0
  %10247 = vmatpush1.bf16.msra.mxu0 0
  %10248 = vmatprep.subr.bf16.mxu0 0
  %10249 = vmatpush1.bf16.msra.mxu0 0
  %10250 = vmatprep.subr.bf16.mxu0 0
  %10251 = vmatpush1.bf16.msra.mxu0 0
  %10252 = vmatprep.subr.bf16.mxu0 0
  %10253 = vmatpush1.bf16.msra.mxu0 0
  %10254 = vmatprep.subr.bf16.mxu0 0
  %10255 = vmatpush1.bf16.msra.mxu0 0
  %10256 = vmatprep.subr.bf16.mxu0 0
  %10257 = vmatpush1.bf16.msra.mxu0 0
  %10258 = vmatprep.subr.bf16.mxu0 0
  %10259 = vmatpush1.bf16.msra.mxu0 0
  %10260 = vmatprep.subr.bf16.mxu0 0
  %10261 = vmatpush1.bf16.msra.mxu0 0
  %10262 = vmatprep.mubr.bf16.mxu0 0
  %10263 = vmatmul.mubr.bf16.gmra.mrb[0].mxu0 %v10219
  %v10264 = vpop.f32.mrb[0].mxu0
  %v10265 = vadd.f32 0.0, %v10264
  %v10266 = vpop.f32.mrb[0].mxu0
  %v10267 = vpop.f32.mrb[0].mxu0
  %v10268 = vadd.f32 0.0, %v10267
  %v10269 = vpop.f32.mrb[0].mxu0
  %10270 = vmatprep.mubr.bf16.mxu0 0
  %10271 = vmatmul.mubr.bf16.gmra.mrb[0].mxu0 %v10222
  %v10272 = vpop.f32.mrb[0].mxu0
  %v10273 = vadd.f32 0.0, %v10272
  %v10274 = vpop.f32.mrb[0].mxu0
  %v10275 = vpop.f32.mrb[0].mxu0
  %v10276 = vadd.f32 0.0, %v10275
  %v10277 = vpop.f32.mrb[0].mxu0
  %10278 = vmatprep.mubr.bf16.mxu0 0
  %10279 = vmatmul.mubr.bf16.gmra.mrb[0].mxu0 %v10225
  %v10280 = vpop.f32.mrb[0].mxu0
  %v10281 = vadd.f32 0.0, %v10280
  %v10282 = vpop.f32.mrb[0].mxu0
  %v10283 = vpop.f32.mrb[0].mxu0
  %v10284 = vpop.f32.mrb[0].mxu0
  %10285 = vdwg.mxu0
  %v10286 = vadd.f32 %v7839, %v10265
  %v10287 = vadd.f32 %v7840, %v10268
  %v10288 = vadd.f32 %v7841, %v10273
  %v10289 = vadd.f32 %v7842, %v10276
  %v10290 = vadd.f32 %v7843, %v10281
  %v10291 = vld [vmem:[%s9] sm:$0x1]
  %v10293 = vlaneseq
  %v10294 = vshrl.u32 %v10293, 7
  %v10295 = vsub.s32 0, %v10294
  %v10296 = vrot.slane %v10291, %v10295
  %v10298 = vadd.f32 %v10286, %v10296
  %v10299 = vadd.f32 %v10287, %v10296
  %v10300 = vadd.f32 %v10288, %v10296
  %v10301 = vadd.f32 %v10289, %v10296
  %v10302 = vadd.f32 %v10290, %v10296
  %v10308 = vcombine.high %v10298, %v10298
  %v10310 = vunpack.c.l.s4 1966171168
  %v10311 = vunpack.c.0.s8 %v10310
  %v10312 = vlaneseq
  %v10313 = vshrl.u32 %v10312, 7
  %v10314 = vsub.s32 %v10311, %v10313
  %v10315 = vrot.slane %v10298, %v10314
  %v10317 = vunpack.c.l.s4 1966171168
  %v10318 = vunpack.c.0.s8 %v10317
  %v10319 = vlaneseq
  %v10320 = vshrl.u32 %v10319, 7
  %v10321 = vsub.s32 %v10318, %v10320
  %v10322 = vrot.slane %v10308, %v10321
  %v10323 = vcombine.high %v10315, %v10315
  %v10324 = vcombine.high %v10322, %v10322
  %v10326 = vunpack.c.l.s4 1966171168
  %v10327 = vunpack.c.0.s8 %v10326
  %v10328 = vlaneseq
  %v10329 = vshrl.u32 %v10328, 7
  %v10330 = vsub.s32 %v10327, %v10329
  %v10331 = vrot.slane %v10315, %v10330
  %v10333 = vunpack.c.l.s4 1966171168
  %v10334 = vunpack.c.0.s8 %v10333
  %v10335 = vlaneseq
  %v10336 = vshrl.u32 %v10335, 7
  %v10337 = vsub.s32 %v10334, %v10336
  %v10338 = vrot.slane %v10322, %v10337
  %v10340 = vunpack.c.l.s4 1966171168
  %v10341 = vunpack.c.0.s8 %v10340
  %v10342 = vlaneseq
  %v10343 = vshrl.u32 %v10342, 7
  %v10344 = vsub.s32 %v10341, %v10343
  %v10345 = vrot.slane %v10323, %v10344
  %v10347 = vunpack.c.l.s4 1966171168
  %v10348 = vunpack.c.0.s8 %v10347
  %v10349 = vlaneseq
  %v10350 = vshrl.u32 %v10349, 7
  %v10351 = vsub.s32 %v10348, %v10350
  %v10352 = vrot.slane %v10324, %v10351
  %v10353 = vcombine.high %v10331, %v10331
  %v10354 = vcombine.high %v10338, %v10338
  %v10355 = vcombine.high %v10345, %v10345
  %v10356 = vcombine.high %v10352, %v10352
  %v10357 = vcombine.high %v10299, %v10299
  %v10359 = vunpack.c.l.s4 1966171168
  %v10360 = vunpack.c.0.s8 %v10359
  %v10361 = vlaneseq
  %v10362 = vshrl.u32 %v10361, 7
  %v10363 = vsub.s32 %v10360, %v10362
  %v10364 = vrot.slane %v10299, %v10363
  %v10366 = vunpack.c.l.s4 1966171168
  %v10367 = vunpack.c.0.s8 %v10366
  %v10368 = vlaneseq
  %v10369 = vshrl.u32 %v10368, 7
  %v10370 = vsub.s32 %v10367, %v10369
  %v10371 = vrot.slane %v10357, %v10370
  %v10372 = vcombine.high %v10364, %v10364
  %v10373 = vcombine.high %v10371, %v10371
  %v10375 = vunpack.c.l.s4 1966171168
  %v10376 = vunpack.c.0.s8 %v10375
  %v10377 = vlaneseq
  %v10378 = vshrl.u32 %v10377, 7
  %v10379 = vsub.s32 %v10376, %v10378
  %v10380 = vrot.slane %v10364, %v10379
  %v10382 = vunpack.c.l.s4 1966171168
  %v10383 = vunpack.c.0.s8 %v10382
  %v10384 = vlaneseq
  %v10385 = vshrl.u32 %v10384, 7
  %v10386 = vsub.s32 %v10383, %v10385
  %v10387 = vrot.slane %v10371, %v10386
  %v10389 = vunpack.c.l.s4 1966171168
  %v10390 = vunpack.c.0.s8 %v10389
  %v10391 = vlaneseq
  %v10392 = vshrl.u32 %v10391, 7
  %v10393 = vsub.s32 %v10390, %v10392
  %v10394 = vrot.slane %v10372, %v10393
  %v10396 = vunpack.c.l.s4 1966171168
  %v10397 = vunpack.c.0.s8 %v10396
  %v10398 = vlaneseq
  %v10399 = vshrl.u32 %v10398, 7
  %v10400 = vsub.s32 %v10397, %v10399
  %v10401 = vrot.slane %v10373, %v10400
  %v10402 = vcombine.high %v10380, %v10380
  %v10403 = vcombine.high %v10387, %v10387
  %v10404 = vcombine.high %v10394, %v10394
  %v10405 = vcombine.high %v10401, %v10401
  %v10406 = vcombine.high %v10300, %v10300
  %v10408 = vunpack.c.l.s4 1966171168
  %v10409 = vunpack.c.0.s8 %v10408
  %v10410 = vlaneseq
  %v10411 = vshrl.u32 %v10410, 7
  %v10412 = vsub.s32 %v10409, %v10411
  %v10413 = vrot.slane %v10300, %v10412
  %v10415 = vunpack.c.l.s4 1966171168
  %v10416 = vunpack.c.0.s8 %v10415
  %v10417 = vlaneseq
  %v10418 = vshrl.u32 %v10417, 7
  %v10419 = vsub.s32 %v10416, %v10418
  %v10420 = vrot.slane %v10406, %v10419
  %v10421 = vcombine.high %v10413, %v10413
  %v10422 = vcombine.high %v10420, %v10420
  %v10424 = vunpack.c.l.s4 1966171168
  %v10425 = vunpack.c.0.s8 %v10424
  %v10426 = vlaneseq
  %v10427 = vshrl.u32 %v10426, 7
  %v10428 = vsub.s32 %v10425, %v10427
  %v10429 = vrot.slane %v10413, %v10428
  %v10431 = vunpack.c.l.s4 1966171168
  %v10432 = vunpack.c.0.s8 %v10431
  %v10433 = vlaneseq
  %v10434 = vshrl.u32 %v10433, 7
  %v10435 = vsub.s32 %v10432, %v10434
  %v10436 = vrot.slane %v10420, %v10435
  %v10438 = vunpack.c.l.s4 1966171168
  %v10439 = vunpack.c.0.s8 %v10438
  %v10440 = vlaneseq
  %v10441 = vshrl.u32 %v10440, 7
  %v10442 = vsub.s32 %v10439, %v10441
  %v10443 = vrot.slane %v10421, %v10442
  %v10445 = vunpack.c.l.s4 1966171168
  %v10446 = vunpack.c.0.s8 %v10445
  %v10447 = vlaneseq
  %v10448 = vshrl.u32 %v10447, 7
  %v10449 = vsub.s32 %v10446, %v10448
  %v10450 = vrot.slane %v10422, %v10449
  %v10451 = vcombine.high %v10429, %v10429
  %v10452 = vcombine.high %v10436, %v10436
  %v10453 = vcombine.high %v10443, %v10443
  %v10454 = vcombine.high %v10450, %v10450
  %v10455 = vcombine.high %v10301, %v10301
  %v10457 = vunpack.c.l.s4 1966171168
  %v10458 = vunpack.c.0.s8 %v10457
  %v10459 = vlaneseq
  %v10460 = vshrl.u32 %v10459, 7
  %v10461 = vsub.s32 %v10458, %v10460
  %v10462 = vrot.slane %v10301, %v10461
  %v10464 = vunpack.c.l.s4 1966171168
  %v10465 = vunpack.c.0.s8 %v10464
  %v10466 = vlaneseq
  %v10467 = vshrl.u32 %v10466, 7
  %v10468 = vsub.s32 %v10465, %v10467
  %v10469 = vrot.slane %v10455, %v10468
  %v10470 = vcombine.high %v10462, %v10462
  %v10471 = vcombine.high %v10469, %v10469
  %v10473 = vunpack.c.l.s4 1966171168
  %v10474 = vunpack.c.0.s8 %v10473
  %v10475 = vlaneseq
  %v10476 = vshrl.u32 %v10475, 7
  %v10477 = vsub.s32 %v10474, %v10476
  %v10478 = vrot.slane %v10462, %v10477
  %v10480 = vunpack.c.l.s4 1966171168
  %v10481 = vunpack.c.0.s8 %v10480
  %v10482 = vlaneseq
  %v10483 = vshrl.u32 %v10482, 7
  %v10484 = vsub.s32 %v10481, %v10483
  %v10485 = vrot.slane %v10469, %v10484
  %v10487 = vunpack.c.l.s4 1966171168
  %v10488 = vunpack.c.0.s8 %v10487
  %v10489 = vlaneseq
  %v10490 = vshrl.u32 %v10489, 7
  %v10491 = vsub.s32 %v10488, %v10490
  %v10492 = vrot.slane %v10470, %v10491
  %v10494 = vunpack.c.l.s4 1966171168
  %v10495 = vunpack.c.0.s8 %v10494
  %v10496 = vlaneseq
  %v10497 = vshrl.u32 %v10496, 7
  %v10498 = vsub.s32 %v10495, %v10497
  %v10499 = vrot.slane %v10471, %v10498
  %v10500 = vcombine.high %v10478, %v10478
  %v10501 = vcombine.high %v10485, %v10485
  %v10502 = vcombine.high %v10492, %v10492
  %v10503 = vcombine.high %v10499, %v10499
  %v10505 = vunpack.c.l.s4 1966171168
  %v10506 = vunpack.c.0.s8 %v10505
  %v10507 = vlaneseq
  %v10508 = vshrl.u32 %v10507, 7
  %v10509 = vsub.s32 %v10506, %v10508
  %v10510 = vrot.slane %v10302, %v10509
  %v10511 = vcombine.high %v10510, %v10510
  %v10513 = vunpack.c.l.s4 1966171168
  %v10514 = vunpack.c.0.s8 %v10513
  %v10515 = vlaneseq
  %v10516 = vshrl.u32 %v10515, 7
  %v10517 = vsub.s32 %v10514, %v10516
  %v10518 = vrot.slane %v10510, %v10517
  %v10520 = vunpack.c.l.s4 1966171168
  %v10521 = vunpack.c.0.s8 %v10520
  %v10522 = vlaneseq
  %v10523 = vshrl.u32 %v10522, 7
  %v10524 = vsub.s32 %v10521, %v10523
  %v10525 = vrot.slane %v10511, %v10524
  %v10526 = vcombine.low %v10331, %v10345
  %v10527 = vcombine.low %v10353, %v10355
  %v10528 = vcombine.low %v10338, %v10352
  %v10529 = vcombine.low %v10354, %v10356
  %v10531 = vunpack.c.l.s4 1966171168
  %v10532 = vunpack.c.0.s8 %v10531
  %v10533 = vlaneseq
  %v10534 = vshrl.u32 %v10533, 7
  %v10535 = vsub.s32 %v10532, %v10534
  %v10536 = vrot.slane %v10526, %v10535
  %v10538 = vunpack.c.l.s4 1966171168
  %v10539 = vunpack.c.0.s8 %v10538
  %v10540 = vlaneseq
  %v10541 = vshrl.u32 %v10540, 7
  %v10542 = vsub.s32 %v10539, %v10541
  %v10543 = vrot.slane %v10527, %v10542
  %v10545 = vunpack.c.l.s4 1966171168
  %v10546 = vunpack.c.0.s8 %v10545
  %v10547 = vlaneseq
  %v10548 = vshrl.u32 %v10547, 7
  %v10549 = vsub.s32 %v10546, %v10548
  %v10550 = vrot.slane %v10528, %v10549
  %v10552 = vunpack.c.l.s4 1966171168
  %v10553 = vunpack.c.0.s8 %v10552
  %v10554 = vlaneseq
  %v10555 = vshrl.u32 %v10554, 7
  %v10556 = vsub.s32 %v10553, %v10555
  %v10557 = vrot.slane %v10529, %v10556
  %v10558 = vcombine.low %v10536, %v10543
  %v10559 = vcombine.low %v10550, %v10557
  %v10561 = vunpack.c.l.s4 1966171168
  %v10562 = vunpack.c.0.s8 %v10561
  %v10563 = vlaneseq
  %v10564 = vshrl.u32 %v10563, 7
  %v10565 = vsub.s32 %v10562, %v10564
  %v10566 = vrot.slane %v10558, %v10565
  %v10568 = vunpack.c.l.s4 1966171168
  %v10569 = vunpack.c.0.s8 %v10568
  %v10570 = vlaneseq
  %v10571 = vshrl.u32 %v10570, 7
  %v10572 = vsub.s32 %v10569, %v10571
  %v10573 = vrot.slane %v10559, %v10572
  %v10574 = vcombine.low %v10566, %v10573
  %v10575 = vcombine.low %v10380, %v10394
  %v10576 = vcombine.low %v10402, %v10404
  %v10577 = vcombine.low %v10387, %v10401
  %v10578 = vcombine.low %v10403, %v10405
  %v10580 = vunpack.c.l.s4 1966171168
  %v10581 = vunpack.c.0.s8 %v10580
  %v10582 = vlaneseq
  %v10583 = vshrl.u32 %v10582, 7
  %v10584 = vsub.s32 %v10581, %v10583
  %v10585 = vrot.slane %v10575, %v10584
  %v10587 = vunpack.c.l.s4 1966171168
  %v10588 = vunpack.c.0.s8 %v10587
  %v10589 = vlaneseq
  %v10590 = vshrl.u32 %v10589, 7
  %v10591 = vsub.s32 %v10588, %v10590
  %v10592 = vrot.slane %v10576, %v10591
  %v10594 = vunpack.c.l.s4 1966171168
  %v10595 = vunpack.c.0.s8 %v10594
  %v10596 = vlaneseq
  %v10597 = vshrl.u32 %v10596, 7
  %v10598 = vsub.s32 %v10595, %v10597
  %v10599 = vrot.slane %v10577, %v10598
  %v10601 = vunpack.c.l.s4 1966171168
  %v10602 = vunpack.c.0.s8 %v10601
  %v10603 = vlaneseq
  %v10604 = vshrl.u32 %v10603, 7
  %v10605 = vsub.s32 %v10602, %v10604
  %v10606 = vrot.slane %v10578, %v10605
  %v10607 = vcombine.low %v10585, %v10592
  %v10608 = vcombine.low %v10599, %v10606
  %v10610 = vunpack.c.l.s4 1966171168
  %v10611 = vunpack.c.0.s8 %v10610
  %v10612 = vlaneseq
  %v10613 = vshrl.u32 %v10612, 7
  %v10614 = vsub.s32 %v10611, %v10613
  %v10615 = vrot.slane %v10607, %v10614
  %v10617 = vunpack.c.l.s4 1966171168
  %v10618 = vunpack.c.0.s8 %v10617
  %v10619 = vlaneseq
  %v10620 = vshrl.u32 %v10619, 7
  %v10621 = vsub.s32 %v10618, %v10620
  %v10622 = vrot.slane %v10608, %v10621
  %v10623 = vcombine.low %v10615, %v10622
  %v10625 = vunpack.c.l.s4 1966171168
  %v10626 = vunpack.c.0.s8 %v10625
  %v10627 = vlaneseq
  %v10628 = vshrl.u32 %v10627, 7
  %v10629 = vsub.s32 %v10626, %v10628
  %v10630 = vrot.slane %v10429, %v10629
  %v10632 = vunpack.c.l.s4 1966171168
  %v10633 = vunpack.c.0.s8 %v10632
  %v10634 = vlaneseq
  %v10635 = vshrl.u32 %v10634, 7
  %v10636 = vsub.s32 %v10633, %v10635
  %v10637 = vrot.slane %v10630, %v10636
  %v10638 = vcombine.low %v10443, %v10451
  %v10639 = vcombine.low %v10453, %v10436
  %v10640 = vcombine.low %v10450, %v10452
  %v10641 = vcombine.low %v10454, %v10478
  %v10643 = vunpack.c.l.s4 1966171168
  %v10644 = vunpack.c.0.s8 %v10643
  %v10645 = vlaneseq
  %v10646 = vshrl.u32 %v10645, 7
  %v10647 = vsub.s32 %v10644, %v10646
  %v10648 = vrot.slane %v10638, %v10647
  %v10650 = vunpack.c.l.s4 1966171168
  %v10651 = vunpack.c.0.s8 %v10650
  %v10652 = vlaneseq
  %v10653 = vshrl.u32 %v10652, 7
  %v10654 = vsub.s32 %v10651, %v10653
  %v10655 = vrot.slane %v10639, %v10654
  %v10657 = vunpack.c.l.s4 1966171168
  %v10658 = vunpack.c.0.s8 %v10657
  %v10659 = vlaneseq
  %v10660 = vshrl.u32 %v10659, 7
  %v10661 = vsub.s32 %v10658, %v10660
  %v10662 = vrot.slane %v10640, %v10661
  %v10664 = vunpack.c.l.s4 1966171168
  %v10665 = vunpack.c.0.s8 %v10664
  %v10666 = vlaneseq
  %v10667 = vshrl.u32 %v10666, 7
  %v10668 = vsub.s32 %v10665, %v10667
  %v10669 = vrot.slane %v10641, %v10668
  %v10670 = vcombine.low %v10648, %v10655
  %v10671 = vcombine.low %v10662, %v10669
  %v10673 = vunpack.c.l.s4 1966171168
  %v10674 = vunpack.c.0.s8 %v10673
  %v10675 = vlaneseq
  %v10676 = vshrl.u32 %v10675, 7
  %v10677 = vsub.s32 %v10674, %v10676
  %v10678 = vrot.slane %v10670, %v10677
  %v10680 = vunpack.c.l.s4 1966171168
  %v10681 = vunpack.c.0.s8 %v10680
  %v10682 = vlaneseq
  %v10683 = vshrl.u32 %v10682, 7
  %v10684 = vsub.s32 %v10681, %v10683
  %v10685 = vrot.slane %v10671, %v10684
  %v10686 = vcombine.low %v10678, %v10685
  %v10687 = vcombine.low %v10492, %v10500
  %v10688 = vcombine.low %v10502, %v10485
  %v10689 = vcombine.low %v10499, %v10501
  %v10690 = vcombine.low %v10503, %v10518
  %v10692 = vunpack.c.l.s4 1966171168
  %v10693 = vunpack.c.0.s8 %v10692
  %v10694 = vlaneseq
  %v10695 = vshrl.u32 %v10694, 7
  %v10696 = vsub.s32 %v10693, %v10695
  %v10697 = vrot.slane %v10687, %v10696
  %v10699 = vunpack.c.l.s4 1966171168
  %v10700 = vunpack.c.0.s8 %v10699
  %v10701 = vlaneseq
  %v10702 = vshrl.u32 %v10701, 7
  %v10703 = vsub.s32 %v10700, %v10702
  %v10704 = vrot.slane %v10688, %v10703
  %v10706 = vunpack.c.l.s4 1966171168
  %v10707 = vunpack.c.0.s8 %v10706
  %v10708 = vlaneseq
  %v10709 = vshrl.u32 %v10708, 7
  %v10710 = vsub.s32 %v10707, %v10709
  %v10711 = vrot.slane %v10689, %v10710
  %v10713 = vunpack.c.l.s4 1966171168
  %v10714 = vunpack.c.0.s8 %v10713
  %v10715 = vlaneseq
  %v10716 = vshrl.u32 %v10715, 7
  %v10717 = vsub.s32 %v10714, %v10716
  %v10718 = vrot.slane %v10690, %v10717
  %v10719 = vcombine.low %v10697, %v10704
  %v10720 = vcombine.low %v10711, %v10718
  %v10722 = vunpack.c.l.s4 1966171168
  %v10723 = vunpack.c.0.s8 %v10722
  %v10724 = vlaneseq
  %v10725 = vshrl.u32 %v10724, 7
  %v10726 = vsub.s32 %v10723, %v10725
  %v10727 = vrot.slane %v10719, %v10726
  %v10729 = vunpack.c.l.s4 1966171168
  %v10730 = vunpack.c.0.s8 %v10729
  %v10731 = vlaneseq
  %v10732 = vshrl.u32 %v10731, 7
  %v10733 = vsub.s32 %v10730, %v10732
  %v10734 = vrot.slane %v10720, %v10733
  %v10735 = vcombine.low %v10727, %v10734
  %v10737 = vunpack.c.l.s4 1966171168
  %v10738 = vunpack.c.0.s8 %v10737
  %v10739 = vlaneseq
  %v10740 = vshrl.u32 %v10739, 7
  %v10741 = vsub.s32 %v10738, %v10740
  %v10742 = vrot.slane %v10525, %v10741
  %v10744 = vunpack.c.l.s4 1966171168
  %v10745 = vunpack.c.0.s8 %v10744
  %v10746 = vlaneseq
  %v10747 = vshrl.u32 %v10746, 7
  %v10748 = vsub.s32 %v10745, %v10747
  %v10749 = vrot.slane %v10742, %v10748
  %v10756 = vadd.f32 %v60, %v10574
  %v10757 = vadd.f32 %v69, %v10623
  %v10758 = vadd.f32 %v66, %v10637
  %v10759 = vadd.f32 %v62, %v10686
  %v10760 = vadd.f32 %v70, %v10735
  %v10761 = vadd.f32 %v66, %v10749
  %v10762 = vld [vmem:[%s14] sm:$0xff]
  %v10763 = vld [vmem:[%s14 + $0x8] sm:$0xff]
  %v10764 = vld [vmem:[%s14 + $0x10] sm:$0x1]
  %v10765 = vld [vmem:[%s15] sm:$0xff]
  %v10766 = vld [vmem:[%s15 + $0x8] sm:$0xff]
  %v10767 = vld [vmem:[%s15 + $0x10] sm:$0x1]
  %v10768 = vsel %vm527, %v10756, 0.0
  %10769 = vadd.xlane.f32.xlu0 %v10768
  %v10770 = vpop.xlane.xlu0 %10769
  %v10771 = vsel %vm527, %v10757, 0.0
  %10772 = vadd.xlane.f32.xlu0 %v10771
  %v10773 = vpop.xlane.xlu0 %10772
  %vm10774 = vcmask 253952
  %v10775 = vsel %vm10774, %v10758, 0.0
  %10776 = vadd.xlane.f32.xlu0 %v10775
  %v10777 = vpop.xlane.xlu0 %10776
  %v10778 = vsel %vm527, %v10759, 0.0
  %10779 = vadd.xlane.f32.xlu0 %v10778
  %v10780 = vpop.xlane.xlu0 %10779
  %v10781 = vsel %vm527, %v10760, 0.0
  %10782 = vadd.xlane.f32.xlu0 %v10781
  %v10783 = vpop.xlane.xlu0 %10782
  %v10784 = vsel %vm10774, %v10761, 0.0
  %10785 = vadd.xlane.f32.xlu0 %v10784
  %v10786 = vpop.xlane.xlu0 %10785
  %v10787 = vrcp.pop 32.0
  %v10788 = vmul.f32 %v10770, %v10787
  %v10789 = vmul.f32 %v10773, %v10787
  %v10790 = vmul.f32 %v10777, %v10787
  %v10791 = vmul.f32 %v10780, %v10787
  %v10792 = vmul.f32 %v10783, %v10787
  %v10793 = vmul.f32 %v10786, %v10787
  %v10794 = vadd.f32 %v10788, %v10789
  %v10795 = vsel %vm68, %v10790, 0.0
  %v10796 = vadd.f32 %v10794, %v10795
  %v10797 = vrot.slane %v10796, 4
  %v10798 = vadd.f32 %v10796, %v10797
  %v10799 = vrot.slane %v10798, 2
  %v10800 = vadd.f32 %v10798, %v10799
  %v10801 = vrot.slane %v10800, 1
  %v10802 = vadd.f32 %v10800, %v10801
  %v10803 = vadd.f32 %v10791, %v10792
  %v10804 = vsel %vm68, %v10793, 0.0
  %v10805 = vadd.f32 %v10803, %v10804
  %v10806 = vrot.slane %v10805, 4
  %v10807 = vadd.f32 %v10805, %v10806
  %v10808 = vrot.slane %v10807, 2
  %v10809 = vadd.f32 %v10807, %v10808
  %v10810 = vrot.slane %v10809, 1
  %v10811 = vadd.f32 %v10809, %v10810
  %v10812 = vrcp.pop 17.0
  %v10813 = vmul.f32 %v10802, %v10812
  %v10814 = vmul.f32 %v10811, %v10812
  %v10815 = vsub.f32 %v10756, %v10813
  %v10816 = vsub.f32 %v10757, %v10813
  %v10817 = vsub.f32 %v10758, %v10813
  %v10818 = vsub.f32 %v10759, %v10814
  %v10819 = vsub.f32 %v10760, %v10814
  %v10820 = vsub.f32 %v10761, %v10814
  %v10821 = vmul.f32 %v10815, %v10815
  %v10822 = vmul.f32 %v10816, %v10816
  %v10823 = vmul.f32 %v10817, %v10817
  %v10824 = vmul.f32 %v10818, %v10818
  %v10825 = vmul.f32 %v10819, %v10819
  %v10826 = vmul.f32 %v10820, %v10820
  %v10827 = vsel %vm527, %v10821, 0.0
  %10828 = vadd.xlane.f32.xlu0 %v10827
  %v10829 = vpop.xlane.xlu0 %10828
  %v10830 = vsel %vm527, %v10822, 0.0
  %10831 = vadd.xlane.f32.xlu0 %v10830
  %v10832 = vpop.xlane.xlu0 %10831
  %v10833 = vsel %vm10774, %v10823, 0.0
  %10834 = vadd.xlane.f32.xlu0 %v10833
  %v10835 = vpop.xlane.xlu0 %10834
  %v10836 = vsel %vm527, %v10824, 0.0
  %10837 = vadd.xlane.f32.xlu0 %v10836
  %v10838 = vpop.xlane.xlu0 %10837
  %v10839 = vsel %vm527, %v10825, 0.0
  %10840 = vadd.xlane.f32.xlu0 %v10839
  %v10841 = vpop.xlane.xlu0 %10840
  %v10842 = vsel %vm10774, %v10826, 0.0
  %10843 = vadd.xlane.f32.xlu0 %v10842
  %v10844 = vpop.xlane.xlu0 %10843
  %v10845 = vmul.f32 %v10829, %v10787
  %v10846 = vmul.f32 %v10832, %v10787
  %v10847 = vmul.f32 %v10835, %v10787
  %v10848 = vmul.f32 %v10838, %v10787
  %v10849 = vmul.f32 %v10841, %v10787
  %v10850 = vmul.f32 %v10844, %v10787
  %v10851 = vadd.f32 %v10845, %v10846
  %v10852 = vsel %vm68, %v10847, 0.0
  %v10853 = vadd.f32 %v10851, %v10852
  %v10854 = vrot.slane %v10853, 4
  %v10855 = vadd.f32 %v10853, %v10854
  %v10856 = vrot.slane %v10855, 2
  %v10857 = vadd.f32 %v10855, %v10856
  %v10858 = vrot.slane %v10857, 1
  %v10859 = vadd.f32 %v10857, %v10858
  %v10860 = vadd.f32 %v10848, %v10849
  %v10861 = vsel %vm68, %v10850, 0.0
  %v10862 = vadd.f32 %v10860, %v10861
  %v10863 = vrot.slane %v10862, 4
  %v10864 = vadd.f32 %v10862, %v10863
  %v10865 = vrot.slane %v10864, 2
  %v10866 = vadd.f32 %v10864, %v10865
  %v10867 = vrot.slane %v10866, 1
  %v10868 = vadd.f32 %v10866, %v10867
  %v10869 = vmul.f32 %v10859, %v10812
  %v10870 = vmul.f32 %v10868, %v10812
  %v10871 = vadd.f32 %v10869, 1e-06
  %v10872 = vadd.f32 %v10870, 1e-06
  %v10873 = vrsqrt.pop %v10871
  %v10874 = vrsqrt.pop %v10872
  %v10875 = vmul.f32 %v10815, %v10873
  %v10876 = vmul.f32 %v10816, %v10873
  %v10877 = vmul.f32 %v10817, %v10873
  %v10878 = vmul.f32 %v10818, %v10874
  %v10879 = vmul.f32 %v10819, %v10874
  %v10880 = vmul.f32 %v10820, %v10874
  %v10881 = vmul.f32 %v10875, %v10762
  %v10882 = vmul.f32 %v10876, %v10763
  %v10883 = vmul.f32 %v10877, %v10764
  %v10884 = vmul.f32 %v10878, %v10762
  %v10885 = vmul.f32 %v10879, %v10763
  %v10886 = vmul.f32 %v10880, %v10764
  %v10887 = vadd.f32 %v10881, %v10765
  %v10888 = vadd.f32 %v10882, %v10766
  %v10889 = vadd.f32 %v10883, %v10767
  %v10890 = vadd.f32 %v10884, %v10765
  %v10891 = vadd.f32 %v10885, %v10766
  %v10892 = vadd.f32 %v10886, %v10767
  %v10899 = vcombine.high %v10887, %v10887
  %v10901 = vunpack.c.l.s4 1966171168
  %v10902 = vunpack.c.0.s8 %v10901
  %v10903 = vlaneseq
  %v10904 = vshrl.u32 %v10903, 7
  %v10905 = vsub.s32 %v10902, %v10904
  %v10906 = vrot.slane %v10887, %v10905
  %v10908 = vunpack.c.l.s4 1966171168
  %v10909 = vunpack.c.0.s8 %v10908
  %v10910 = vlaneseq
  %v10911 = vshrl.u32 %v10910, 7
  %v10912 = vsub.s32 %v10909, %v10911
  %v10913 = vrot.slane %v10899, %v10912
  %v10914 = vcombine.high %v10906, %v10906
  %v10915 = vcombine.high %v10913, %v10913
  %v10917 = vunpack.c.l.s4 1966171168
  %v10918 = vunpack.c.0.s8 %v10917
  %v10919 = vlaneseq
  %v10920 = vshrl.u32 %v10919, 7
  %v10921 = vsub.s32 %v10918, %v10920
  %v10922 = vrot.slane %v10906, %v10921
  %v10924 = vunpack.c.l.s4 1966171168
  %v10925 = vunpack.c.0.s8 %v10924
  %v10926 = vlaneseq
  %v10927 = vshrl.u32 %v10926, 7
  %v10928 = vsub.s32 %v10925, %v10927
  %v10929 = vrot.slane %v10913, %v10928
  %v10931 = vunpack.c.l.s4 1966171168
  %v10932 = vunpack.c.0.s8 %v10931
  %v10933 = vlaneseq
  %v10934 = vshrl.u32 %v10933, 7
  %v10935 = vsub.s32 %v10932, %v10934
  %v10936 = vrot.slane %v10914, %v10935
  %v10938 = vunpack.c.l.s4 1966171168
  %v10939 = vunpack.c.0.s8 %v10938
  %v10940 = vlaneseq
  %v10941 = vshrl.u32 %v10940, 7
  %v10942 = vsub.s32 %v10939, %v10941
  %v10943 = vrot.slane %v10915, %v10942
  %v10944 = vcombine.high %v10922, %v10922
  %v10945 = vcombine.high %v10929, %v10929
  %v10946 = vcombine.high %v10936, %v10936
  %v10947 = vcombine.high %v10943, %v10943
  %v10948 = vcombine.high %v10888, %v10888
  %v10950 = vunpack.c.l.s4 1966171168
  %v10951 = vunpack.c.0.s8 %v10950
  %v10952 = vlaneseq
  %v10953 = vshrl.u32 %v10952, 7
  %v10954 = vsub.s32 %v10951, %v10953
  %v10955 = vrot.slane %v10888, %v10954
  %v10957 = vunpack.c.l.s4 1966171168
  %v10958 = vunpack.c.0.s8 %v10957
  %v10959 = vlaneseq
  %v10960 = vshrl.u32 %v10959, 7
  %v10961 = vsub.s32 %v10958, %v10960
  %v10962 = vrot.slane %v10948, %v10961
  %v10963 = vcombine.high %v10955, %v10955
  %v10964 = vcombine.high %v10962, %v10962
  %v10966 = vunpack.c.l.s4 1966171168
  %v10967 = vunpack.c.0.s8 %v10966
  %v10968 = vlaneseq
  %v10969 = vshrl.u32 %v10968, 7
  %v10970 = vsub.s32 %v10967, %v10969
  %v10971 = vrot.slane %v10955, %v10970
  %v10973 = vunpack.c.l.s4 1966171168
  %v10974 = vunpack.c.0.s8 %v10973
  %v10975 = vlaneseq
  %v10976 = vshrl.u32 %v10975, 7
  %v10977 = vsub.s32 %v10974, %v10976
  %v10978 = vrot.slane %v10962, %v10977
  %v10980 = vunpack.c.l.s4 1966171168
  %v10981 = vunpack.c.0.s8 %v10980
  %v10982 = vlaneseq
  %v10983 = vshrl.u32 %v10982, 7
  %v10984 = vsub.s32 %v10981, %v10983
  %v10985 = vrot.slane %v10963, %v10984
  %v10987 = vunpack.c.l.s4 1966171168
  %v10988 = vunpack.c.0.s8 %v10987
  %v10989 = vlaneseq
  %v10990 = vshrl.u32 %v10989, 7
  %v10991 = vsub.s32 %v10988, %v10990
  %v10992 = vrot.slane %v10964, %v10991
  %v10993 = vcombine.high %v10971, %v10971
  %v10994 = vcombine.high %v10978, %v10978
  %v10995 = vcombine.high %v10985, %v10985
  %v10996 = vcombine.high %v10992, %v10992
  %v10998 = vunpack.c.l.s4 1966171168
  %v10999 = vunpack.c.0.s8 %v10998
  %v11000 = vlaneseq
  %v11001 = vshrl.u32 %v11000, 7
  %v11002 = vsub.s32 %v10999, %v11001
  %v11003 = vrot.slane %v10889, %v11002
  %v11005 = vunpack.c.l.s4 1966171168
  %v11006 = vunpack.c.0.s8 %v11005
  %v11007 = vlaneseq
  %v11008 = vshrl.u32 %v11007, 7
  %v11009 = vsub.s32 %v11006, %v11008
  %v11010 = vrot.slane %v11003, %v11009
  %v11011 = vcombine.high %v10890, %v10890
  %v11013 = vunpack.c.l.s4 1966171168
  %v11014 = vunpack.c.0.s8 %v11013
  %v11015 = vlaneseq
  %v11016 = vshrl.u32 %v11015, 7
  %v11017 = vsub.s32 %v11014, %v11016
  %v11018 = vrot.slane %v10890, %v11017
  %v11020 = vunpack.c.l.s4 1966171168
  %v11021 = vunpack.c.0.s8 %v11020
  %v11022 = vlaneseq
  %v11023 = vshrl.u32 %v11022, 7
  %v11024 = vsub.s32 %v11021, %v11023
  %v11025 = vrot.slane %v11011, %v11024
  %v11026 = vcombine.high %v11018, %v11018
  %v11027 = vcombine.high %v11025, %v11025
  %v11029 = vunpack.c.l.s4 1966171168
  %v11030 = vunpack.c.0.s8 %v11029
  %v11031 = vlaneseq
  %v11032 = vshrl.u32 %v11031, 7
  %v11033 = vsub.s32 %v11030, %v11032
  %v11034 = vrot.slane %v11018, %v11033
  %v11036 = vunpack.c.l.s4 1966171168
  %v11037 = vunpack.c.0.s8 %v11036
  %v11038 = vlaneseq
  %v11039 = vshrl.u32 %v11038, 7
  %v11040 = vsub.s32 %v11037, %v11039
  %v11041 = vrot.slane %v11025, %v11040
  %v11043 = vunpack.c.l.s4 1966171168
  %v11044 = vunpack.c.0.s8 %v11043
  %v11045 = vlaneseq
  %v11046 = vshrl.u32 %v11045, 7
  %v11047 = vsub.s32 %v11044, %v11046
  %v11048 = vrot.slane %v11026, %v11047
  %v11050 = vunpack.c.l.s4 1966171168
  %v11051 = vunpack.c.0.s8 %v11050
  %v11052 = vlaneseq
  %v11053 = vshrl.u32 %v11052, 7
  %v11054 = vsub.s32 %v11051, %v11053
  %v11055 = vrot.slane %v11027, %v11054
  %v11056 = vcombine.high %v11034, %v11034
  %v11057 = vcombine.high %v11041, %v11041
  %v11058 = vcombine.high %v11048, %v11048
  %v11059 = vcombine.high %v11055, %v11055
  %v11060 = vcombine.high %v10891, %v10891
  %v11062 = vunpack.c.l.s4 1966171168
  %v11063 = vunpack.c.0.s8 %v11062
  %v11064 = vlaneseq
  %v11065 = vshrl.u32 %v11064, 7
  %v11066 = vsub.s32 %v11063, %v11065
  %v11067 = vrot.slane %v10891, %v11066
  %v11069 = vunpack.c.l.s4 1966171168
  %v11070 = vunpack.c.0.s8 %v11069
  %v11071 = vlaneseq
  %v11072 = vshrl.u32 %v11071, 7
  %v11073 = vsub.s32 %v11070, %v11072
  %v11074 = vrot.slane %v11060, %v11073
  %v11075 = vcombine.high %v11067, %v11067
  %v11076 = vcombine.high %v11074, %v11074
  %v11078 = vunpack.c.l.s4 1966171168
  %v11079 = vunpack.c.0.s8 %v11078
  %v11080 = vlaneseq
  %v11081 = vshrl.u32 %v11080, 7
  %v11082 = vsub.s32 %v11079, %v11081
  %v11083 = vrot.slane %v11067, %v11082
  %v11085 = vunpack.c.l.s4 1966171168
  %v11086 = vunpack.c.0.s8 %v11085
  %v11087 = vlaneseq
  %v11088 = vshrl.u32 %v11087, 7
  %v11089 = vsub.s32 %v11086, %v11088
  %v11090 = vrot.slane %v11074, %v11089
  %v11092 = vunpack.c.l.s4 1966171168
  %v11093 = vunpack.c.0.s8 %v11092
  %v11094 = vlaneseq
  %v11095 = vshrl.u32 %v11094, 7
  %v11096 = vsub.s32 %v11093, %v11095
  %v11097 = vrot.slane %v11075, %v11096
  %v11099 = vunpack.c.l.s4 1966171168
  %v11100 = vunpack.c.0.s8 %v11099
  %v11101 = vlaneseq
  %v11102 = vshrl.u32 %v11101, 7
  %v11103 = vsub.s32 %v11100, %v11102
  %v11104 = vrot.slane %v11076, %v11103
  %v11105 = vcombine.high %v11083, %v11083
  %v11106 = vcombine.high %v11090, %v11090
  %v11107 = vcombine.high %v11097, %v11097
  %v11108 = vcombine.high %v11104, %v11104
  %v11110 = vunpack.c.l.s4 1966171168
  %v11111 = vunpack.c.0.s8 %v11110
  %v11112 = vlaneseq
  %v11113 = vshrl.u32 %v11112, 7
  %v11114 = vsub.s32 %v11111, %v11113
  %v11115 = vrot.slane %v10892, %v11114
  %v11117 = vunpack.c.l.s4 1966171168
  %v11118 = vunpack.c.0.s8 %v11117
  %v11119 = vlaneseq
  %v11120 = vshrl.u32 %v11119, 7
  %v11121 = vsub.s32 %v11118, %v11120
  %v11122 = vrot.slane %v11115, %v11121
  %v11123 = vcombine.low %v10922, %v10936
  %v11124 = vcombine.low %v10944, %v10946
  %v11125 = vcombine.low %v10929, %v10943
  %v11126 = vcombine.low %v10945, %v10947
  %v11128 = vunpack.c.l.s4 1966171168
  %v11129 = vunpack.c.0.s8 %v11128
  %v11130 = vlaneseq
  %v11131 = vshrl.u32 %v11130, 7
  %v11132 = vsub.s32 %v11129, %v11131
  %v11133 = vrot.slane %v11123, %v11132
  %v11135 = vunpack.c.l.s4 1966171168
  %v11136 = vunpack.c.0.s8 %v11135
  %v11137 = vlaneseq
  %v11138 = vshrl.u32 %v11137, 7
  %v11139 = vsub.s32 %v11136, %v11138
  %v11140 = vrot.slane %v11124, %v11139
  %v11142 = vunpack.c.l.s4 1966171168
  %v11143 = vunpack.c.0.s8 %v11142
  %v11144 = vlaneseq
  %v11145 = vshrl.u32 %v11144, 7
  %v11146 = vsub.s32 %v11143, %v11145
  %v11147 = vrot.slane %v11125, %v11146
  %v11149 = vunpack.c.l.s4 1966171168
  %v11150 = vunpack.c.0.s8 %v11149
  %v11151 = vlaneseq
  %v11152 = vshrl.u32 %v11151, 7
  %v11153 = vsub.s32 %v11150, %v11152
  %v11154 = vrot.slane %v11126, %v11153
  %v11155 = vcombine.low %v11133, %v11140
  %v11156 = vcombine.low %v11147, %v11154
  %v11158 = vunpack.c.l.s4 1966171168
  %v11159 = vunpack.c.0.s8 %v11158
  %v11160 = vlaneseq
  %v11161 = vshrl.u32 %v11160, 7
  %v11162 = vsub.s32 %v11159, %v11161
  %v11163 = vrot.slane %v11155, %v11162
  %v11165 = vunpack.c.l.s4 1966171168
  %v11166 = vunpack.c.0.s8 %v11165
  %v11167 = vlaneseq
  %v11168 = vshrl.u32 %v11167, 7
  %v11169 = vsub.s32 %v11166, %v11168
  %v11170 = vrot.slane %v11156, %v11169
  %v11171 = vcombine.low %v11163, %v11170
  %v11172 = vcombine.low %v10971, %v10985
  %v11173 = vcombine.low %v10993, %v10995
  %v11174 = vcombine.low %v10978, %v10992
  %v11175 = vcombine.low %v10994, %v10996
  %v11177 = vunpack.c.l.s4 1966171168
  %v11178 = vunpack.c.0.s8 %v11177
  %v11179 = vlaneseq
  %v11180 = vshrl.u32 %v11179, 7
  %v11181 = vsub.s32 %v11178, %v11180
  %v11182 = vrot.slane %v11172, %v11181
  %v11184 = vunpack.c.l.s4 1966171168
  %v11185 = vunpack.c.0.s8 %v11184
  %v11186 = vlaneseq
  %v11187 = vshrl.u32 %v11186, 7
  %v11188 = vsub.s32 %v11185, %v11187
  %v11189 = vrot.slane %v11173, %v11188
  %v11191 = vunpack.c.l.s4 1966171168
  %v11192 = vunpack.c.0.s8 %v11191
  %v11193 = vlaneseq
  %v11194 = vshrl.u32 %v11193, 7
  %v11195 = vsub.s32 %v11192, %v11194
  %v11196 = vrot.slane %v11174, %v11195
  %v11198 = vunpack.c.l.s4 1966171168
  %v11199 = vunpack.c.0.s8 %v11198
  %v11200 = vlaneseq
  %v11201 = vshrl.u32 %v11200, 7
  %v11202 = vsub.s32 %v11199, %v11201
  %v11203 = vrot.slane %v11175, %v11202
  %v11204 = vcombine.low %v11182, %v11189
  %v11205 = vcombine.low %v11196, %v11203
  %v11207 = vunpack.c.l.s4 1966171168
  %v11208 = vunpack.c.0.s8 %v11207
  %v11209 = vlaneseq
  %v11210 = vshrl.u32 %v11209, 7
  %v11211 = vsub.s32 %v11208, %v11210
  %v11212 = vrot.slane %v11204, %v11211
  %v11214 = vunpack.c.l.s4 1966171168
  %v11215 = vunpack.c.0.s8 %v11214
  %v11216 = vlaneseq
  %v11217 = vshrl.u32 %v11216, 7
  %v11218 = vsub.s32 %v11215, %v11217
  %v11219 = vrot.slane %v11205, %v11218
  %v11220 = vcombine.low %v11212, %v11219
  %v11221 = vcombine.low %v11010, %v11034
  %v11222 = vcombine.low %v11048, %v11056
  %v11223 = vcombine.low %v11058, %v11041
  %v11224 = vcombine.low %v11055, %v11057
  %v11226 = vunpack.c.l.s4 1966171168
  %v11227 = vunpack.c.0.s8 %v11226
  %v11228 = vlaneseq
  %v11229 = vshrl.u32 %v11228, 7
  %v11230 = vsub.s32 %v11227, %v11229
  %v11231 = vrot.slane %v11221, %v11230
  %v11233 = vunpack.c.l.s4 1966171168
  %v11234 = vunpack.c.0.s8 %v11233
  %v11235 = vlaneseq
  %v11236 = vshrl.u32 %v11235, 7
  %v11237 = vsub.s32 %v11234, %v11236
  %v11238 = vrot.slane %v11222, %v11237
  %v11240 = vunpack.c.l.s4 1966171168
  %v11241 = vunpack.c.0.s8 %v11240
  %v11242 = vlaneseq
  %v11243 = vshrl.u32 %v11242, 7
  %v11244 = vsub.s32 %v11241, %v11243
  %v11245 = vrot.slane %v11223, %v11244
  %v11247 = vunpack.c.l.s4 1966171168
  %v11248 = vunpack.c.0.s8 %v11247
  %v11249 = vlaneseq
  %v11250 = vshrl.u32 %v11249, 7
  %v11251 = vsub.s32 %v11248, %v11250
  %v11252 = vrot.slane %v11224, %v11251
  %v11253 = vcombine.low %v11231, %v11238
  %v11254 = vcombine.low %v11245, %v11252
  %v11256 = vunpack.c.l.s4 1966171168
  %v11257 = vunpack.c.0.s8 %v11256
  %v11258 = vlaneseq
  %v11259 = vshrl.u32 %v11258, 7
  %v11260 = vsub.s32 %v11257, %v11259
  %v11261 = vrot.slane %v11253, %v11260
  %v11263 = vunpack.c.l.s4 1966171168
  %v11264 = vunpack.c.0.s8 %v11263
  %v11265 = vlaneseq
  %v11266 = vshrl.u32 %v11265, 7
  %v11267 = vsub.s32 %v11264, %v11266
  %v11268 = vrot.slane %v11254, %v11267
  %v11269 = vcombine.low %v11261, %v11268
  %v11270 = vcombine.low %v11059, %v11083
  %v11271 = vcombine.low %v11097, %v11105
  %v11272 = vcombine.low %v11107, %v11090
  %v11273 = vcombine.low %v11104, %v11106
  %v11275 = vunpack.c.l.s4 1966171168
  %v11276 = vunpack.c.0.s8 %v11275
  %v11277 = vlaneseq
  %v11278 = vshrl.u32 %v11277, 7
  %v11279 = vsub.s32 %v11276, %v11278
  %v11280 = vrot.slane %v11270, %v11279
  %v11282 = vunpack.c.l.s4 1966171168
  %v11283 = vunpack.c.0.s8 %v11282
  %v11284 = vlaneseq
  %v11285 = vshrl.u32 %v11284, 7
  %v11286 = vsub.s32 %v11283, %v11285
  %v11287 = vrot.slane %v11271, %v11286
  %v11289 = vunpack.c.l.s4 1966171168
  %v11290 = vunpack.c.0.s8 %v11289
  %v11291 = vlaneseq
  %v11292 = vshrl.u32 %v11291, 7
  %v11293 = vsub.s32 %v11290, %v11292
  %v11294 = vrot.slane %v11272, %v11293
  %v11296 = vunpack.c.l.s4 1966171168
  %v11297 = vunpack.c.0.s8 %v11296
  %v11298 = vlaneseq
  %v11299 = vshrl.u32 %v11298, 7
  %v11300 = vsub.s32 %v11297, %v11299
  %v11301 = vrot.slane %v11273, %v11300
  %v11302 = vcombine.low %v11280, %v11287
  %v11303 = vcombine.low %v11294, %v11301
  %v11305 = vunpack.c.l.s4 1966171168
  %v11306 = vunpack.c.0.s8 %v11305
  %v11307 = vlaneseq
  %v11308 = vshrl.u32 %v11307, 7
  %v11309 = vsub.s32 %v11306, %v11308
  %v11310 = vrot.slane %v11302, %v11309
  %v11312 = vunpack.c.l.s4 1966171168
  %v11313 = vunpack.c.0.s8 %v11312
  %v11314 = vlaneseq
  %v11315 = vshrl.u32 %v11314, 7
  %v11316 = vsub.s32 %v11313, %v11315
  %v11317 = vrot.slane %v11303, %v11316
  %v11318 = vcombine.low %v11310, %v11317
  %v11319 = vcombine.low %v11108, %v11122
  %v11321 = vunpack.c.l.s4 1966171168
  %v11322 = vunpack.c.0.s8 %v11321
  %v11323 = vlaneseq
  %v11324 = vshrl.u32 %v11323, 7
  %v11325 = vsub.s32 %v11322, %v11324
  %v11326 = vrot.slane %v11319, %v11325
  %v11328 = vunpack.c.l.s4 1966171168
  %v11329 = vunpack.c.0.s8 %v11328
  %v11330 = vlaneseq
  %v11331 = vshrl.u32 %v11330, 7
  %v11332 = vsub.s32 %v11329, %v11331
  %v11333 = vrot.slane %v11326, %v11332
  %v11339 = vpack.c.bf16 %v11220, %v11171
  %v11340 = vpack.c.bf16 %v11318, %v11269
  %v11341 = vpack.c.bf16 %v11333, %v11333
  %v11342 = vld [vmem:[%s10] sm:$0xf]
  %v11343 = vld [vmem:[%s10 + $0x4] sm:$0xf]
  %v11344 = vld [vmem:[%s10 + $0x8] sm:$0xf]
  %v11345 = vld [vmem:[%s10 + $0xc] sm:$0xf]
  %v11346 = vld [vmem:[%s11] sm:$0x1]
  %v11348 = vlaneseq
  %v11349 = vshrl.u32 %v11348, 7
  %v11350 = vsub.s32 0, %v11349
  %v11351 = vrot.slane %v11346, %v11350
  %v11357 = vunpack.c.l.b16 %v11342
  %v11358 = vunpack.c.l.b16 %v11343
  %v11359 = vunpack.c.l.b16 %v11344
  %v11360 = vunpack.c.l.b16 %v11345
  %v11361 = vpack.c.b16 %v11358, %v11357
  %v11362 = vpack.c.b16 %v11360, %v11359
  %v11366 = vsel %vm527, %v11339, 0
  %v11369 = vsel %vm527, %v11340, 0
  %v11372 = vsel %vm527, %v11341, 0
  %11374 = vmatprep.subr.bf16.mxu0 0
  %11375 = vmatpush1.bf16.msra.mxu0 %v11361
  %11376 = vmatprep.subr.bf16.mxu0 0
  %11377 = vmatpush1.bf16.msra.mxu0 %v11362
  %11378 = vmatprep.subr.bf16.mxu0 0
  %11379 = vmatpush1.bf16.msra.mxu0 0
  %11380 = vmatprep.subr.bf16.mxu0 0
  %11381 = vmatpush1.bf16.msra.mxu0 0
  %11382 = vmatprep.subr.bf16.mxu0 0
  %11383 = vmatpush1.bf16.msra.mxu0 0
  %11384 = vmatprep.subr.bf16.mxu0 0
  %11385 = vmatpush1.bf16.msra.mxu0 0
  %11386 = vmatprep.subr.bf16.mxu0 0
  %11387 = vmatpush1.bf16.msra.mxu0 0
  %11388 = vmatprep.subr.bf16.mxu0 0
  %11389 = vmatpush1.bf16.msra.mxu0 0
  %11390 = vmatprep.subr.bf16.mxu0 0
  %11391 = vmatpush1.bf16.msra.mxu0 0
  %11392 = vmatprep.subr.bf16.mxu0 0
  %11393 = vmatpush1.bf16.msra.mxu0 0
  %11394 = vmatprep.subr.bf16.mxu0 0
  %11395 = vmatpush1.bf16.msra.mxu0 0
  %11396 = vmatprep.subr.bf16.mxu0 0
  %11397 = vmatpush1.bf16.msra.mxu0 0
  %11398 = vmatprep.subr.bf16.mxu0 0
  %11399 = vmatpush1.bf16.msra.mxu0 0
  %11400 = vmatprep.subr.bf16.mxu0 0
  %11401 = vmatpush1.bf16.msra.mxu0 0
  %11402 = vmatprep.subr.bf16.mxu0 0
  %11403 = vmatpush1.bf16.msra.mxu0 0
  %11404 = vmatprep.subr.bf16.mxu0 0
  %11405 = vmatpush1.bf16.msra.mxu0 0
  %11406 = vmatprep.mubr.bf16.mxu0 0
  %11407 = vmatmul.mubr.bf16.gmra.mrb[0].mxu0 %v11366
  %v11408 = vpop.f32.mrb[0].mxu0
  %v11409 = vadd.f32 %v11351, %v11408
  %v11410 = vpop.f32.mrb[0].mxu0
  %v11411 = vpop.f32.mrb[0].mxu0
  %v11412 = vadd.f32 %v11351, %v11411
  %v11413 = vpop.f32.mrb[0].mxu0
  %11414 = vmatprep.mubr.bf16.mxu0 0
  %11415 = vmatmul.mubr.bf16.gmra.mrb[0].mxu0 %v11369
  %v11416 = vpop.f32.mrb[0].mxu0
  %v11417 = vadd.f32 %v11351, %v11416
  %v11418 = vpop.f32.mrb[0].mxu0
  %v11419 = vpop.f32.mrb[0].mxu0
  %v11420 = vadd.f32 %v11351, %v11419
  %v11421 = vpop.f32.mrb[0].mxu0
  %11422 = vmatprep.mubr.bf16.mxu0 0
  %11423 = vmatmul.mubr.bf16.gmra.mrb[0].mxu0 %v11372
  %v11424 = vpop.f32.mrb[0].mxu0
  %v11425 = vadd.f32 %v11351, %v11424
  %v11426 = vpop.f32.mrb[0].mxu0
  %v11427 = vpop.f32.mrb[0].mxu0
  %v11428 = vpop.f32.mrb[0].mxu0
  %11429 = vdwg.mxu0
  %v11430 = vmul.f32 %v11409, 0.5
  %v11431 = vmul.f32 %v11412, 0.5
  %v11432 = vmul.f32 %v11417, 0.5
  %v11433 = vmul.f32 %v11420, 0.5
  %v11434 = vmul.f32 %v11425, 0.5
  %v11435 = vmul.f32 %v11409, 0.70710677
  %v11436 = vmul.f32 %v11412, 0.70710677
  %v11437 = vmul.f32 %v11417, 0.70710677
  %v11438 = vmul.f32 %v11420, 0.70710677
  %v11439 = vmul.f32 %v11425, 0.70710677
  %v11440 = verf.f32.pop %v11435
  %v11441 = verf.f32.pop %v11436
  %v11442 = verf.f32.pop %v11437
  %v11443 = verf.f32.pop %v11438
  %v11444 = verf.f32.pop %v11439
  %v11445 = vadd.f32 %v11440, 1.0
  %v11446 = vadd.f32 %v11441, 1.0
  %v11447 = vadd.f32 %v11442, 1.0
  %v11448 = vadd.f32 %v11443, 1.0
  %v11449 = vadd.f32 %v11444, 1.0
  %v11450 = vmul.f32 %v11430, %v11445
  %v11451 = vmul.f32 %v11431, %v11446
  %v11452 = vmul.f32 %v11432, %v11447
  %v11453 = vmul.f32 %v11433, %v11448
  %v11454 = vmul.f32 %v11434, %v11449
  %v11455 = vpack.c.bf16 %v11451, %v11450
  %v11456 = vpack.c.bf16 %v11453, %v11452
  %v11457 = vpack.c.bf16 %v11454, %v11454
  %v11458 = vld [vmem:[%s12] sm:$0xf]
  %v11459 = vld [vmem:[%s12 + $0x4] sm:$0xf]
  %v11460 = vld [vmem:[%s12 + $0x8] sm:$0xf]
  %v11461 = vld [vmem:[%s12 + $0xc] sm:$0xf]
  %v11462 = vld [vmem:[%s12 + $0x10] sm:$0xf]
  %v11463 = vld [vmem:[%s12 + $0x14] sm:$0xf]
  %v11464 = vld [vmem:[%s12 + $0x18] sm:$0xf]
  %v11465 = vld [vmem:[%s12 + $0x1c] sm:$0xf]
  %v11466 = vld [vmem:[%s13] sm:$0x1]
  %v11468 = vlaneseq
  %v11469 = vshrl.u32 %v11468, 7
  %v11470 = vsub.s32 0, %v11469
  %v11471 = vrot.slane %v11466, %v11470
  %v11481 = vunpack.c.l.b16 %v11458
  %v11482 = vunpack.c.l.b16 %v11459
  %v11483 = vunpack.c.l.b16 %v11460
  %v11484 = vunpack.c.l.b16 %v11461
  %v11485 = vunpack.c.l.b16 %v11462
  %v11486 = vunpack.c.l.b16 %v11463
  %v11487 = vunpack.c.l.b16 %v11464
  %v11488 = vunpack.c.l.b16 %v11465
  %v11489 = vpack.c.b16 %v11482, %v11481
  %v11490 = vpack.c.b16 %v11484, %v11483
  %v11491 = vpack.c.b16 %v11486, %v11485
  %v11492 = vpack.c.b16 %v11488, %v11487
  %vm11497 = vcmask 523264
  %v11499 = vsel %vm11497, %v11455, 0
  %v11502 = vsel %vm11497, %v11456, 0
  %v11505 = vsel %vm11497, %v11457, 0
  %11507 = vmatprep.subr.bf16.mxu0 0
  %11508 = vmatpush1.bf16.msra.mxu0 %v11489
  %11509 = vmatprep.subr.bf16.mxu0 0
  %11510 = vmatpush1.bf16.msra.mxu0 %v11490
  %11511 = vmatprep.subr.bf16.mxu0 0
  %11512 = vmatpush1.bf16.msra.mxu0 %v11491
  %11513 = vmatprep.subr.bf16.mxu0 0
  %11514 = vmatpush1.bf16.msra.mxu0 %v11492
  %11515 = vmatprep.subr.bf16.mxu0 0
  %11516 = vmatpush1.bf16.msra.mxu0 0
  %11517 = vmatprep.subr.bf16.mxu0 0
  %11518 = vmatpush1.bf16.msra.mxu0 0
  %11519 = vmatprep.subr.bf16.mxu0 0
  %11520 = vmatpush1.bf16.msra.mxu0 0
  %11521 = vmatprep.subr.bf16.mxu0 0
  %11522 = vmatpush1.bf16.msra.mxu0 0
  %11523 = vmatprep.subr.bf16.mxu0 0
  %11524 = vmatpush1.bf16.msra.mxu0 0
  %11525 = vmatprep.subr.bf16.mxu0 0
  %11526 = vmatpush1.bf16.msra.mxu0 0
  %11527 = vmatprep.subr.bf16.mxu0 0
  %11528 = vmatpush1.bf16.msra.mxu0 0
  %11529 = vmatprep.subr.bf16.mxu0 0
  %11530 = vmatpush1.bf16.msra.mxu0 0
  %11531 = vmatprep.subr.bf16.mxu0 0
  %11532 = vmatpush1.bf16.msra.mxu0 0
  %11533 = vmatprep.subr.bf16.mxu0 0
  %11534 = vmatpush1.bf16.msra.mxu0 0
  %11535 = vmatprep.subr.bf16.mxu0 0
  %11536 = vmatpush1.bf16.msra.mxu0 0
  %11537 = vmatprep.subr.bf16.mxu0 0
  %11538 = vmatpush1.bf16.msra.mxu0 0
  %11539 = vmatprep.mubr.bf16.mxu0 0
  %11540 = vmatmul.mubr.bf16.gmra.mrb[0].mxu0 %v11499
  %v11541 = vpop.f32.mrb[0].mxu0
  %v11542 = vadd.f32 %v11471, %v11541
  %v11543 = vpop.f32.mrb[0].mxu0
  %v11544 = vpop.f32.mrb[0].mxu0
  %v11545 = vadd.f32 %v11471, %v11544
  %v11546 = vpop.f32.mrb[0].mxu0
  %11547 = vmatprep.mubr.bf16.mxu0 0
  %11548 = vmatmul.mubr.bf16.gmra.mrb[0].mxu0 %v11502
  %v11549 = vpop.f32.mrb[0].mxu0
  %v11550 = vadd.f32 %v11471, %v11549
  %v11551 = vpop.f32.mrb[0].mxu0
  %v11552 = vpop.f32.mrb[0].mxu0
  %v11553 = vadd.f32 %v11471, %v11552
  %v11554 = vpop.f32.mrb[0].mxu0
  %11555 = vmatprep.mubr.bf16.mxu0 0
  %11556 = vmatmul.mubr.bf16.gmra.mrb[0].mxu0 %v11505
  %v11557 = vpop.f32.mrb[0].mxu0
  %v11558 = vadd.f32 %v11471, %v11557
  %v11559 = vpop.f32.mrb[0].mxu0
  %v11560 = vpop.f32.mrb[0].mxu0
  %v11561 = vpop.f32.mrb[0].mxu0
  %11562 = vdwg.mxu0
  %v11568 = vcombine.high %v11542, %v11542
  %v11570 = vunpack.c.l.s4 1966171168
  %v11571 = vunpack.c.0.s8 %v11570
  %v11572 = vlaneseq
  %v11573 = vshrl.u32 %v11572, 7
  %v11574 = vsub.s32 %v11571, %v11573
  %v11575 = vrot.slane %v11542, %v11574
  %v11577 = vunpack.c.l.s4 1966171168
  %v11578 = vunpack.c.0.s8 %v11577
  %v11579 = vlaneseq
  %v11580 = vshrl.u32 %v11579, 7
  %v11581 = vsub.s32 %v11578, %v11580
  %v11582 = vrot.slane %v11568, %v11581
  %v11583 = vcombine.high %v11575, %v11575
  %v11584 = vcombine.high %v11582, %v11582
  %v11586 = vunpack.c.l.s4 1966171168
  %v11587 = vunpack.c.0.s8 %v11586
  %v11588 = vlaneseq
  %v11589 = vshrl.u32 %v11588, 7
  %v11590 = vsub.s32 %v11587, %v11589
  %v11591 = vrot.slane %v11575, %v11590
  %v11593 = vunpack.c.l.s4 1966171168
  %v11594 = vunpack.c.0.s8 %v11593
  %v11595 = vlaneseq
  %v11596 = vshrl.u32 %v11595, 7
  %v11597 = vsub.s32 %v11594, %v11596
  %v11598 = vrot.slane %v11582, %v11597
  %v11600 = vunpack.c.l.s4 1966171168
  %v11601 = vunpack.c.0.s8 %v11600
  %v11602 = vlaneseq
  %v11603 = vshrl.u32 %v11602, 7
  %v11604 = vsub.s32 %v11601, %v11603
  %v11605 = vrot.slane %v11583, %v11604
  %v11607 = vunpack.c.l.s4 1966171168
  %v11608 = vunpack.c.0.s8 %v11607
  %v11609 = vlaneseq
  %v11610 = vshrl.u32 %v11609, 7
  %v11611 = vsub.s32 %v11608, %v11610
  %v11612 = vrot.slane %v11584, %v11611
  %v11613 = vcombine.high %v11591, %v11591
  %v11614 = vcombine.high %v11598, %v11598
  %v11615 = vcombine.high %v11605, %v11605
  %v11616 = vcombine.high %v11612, %v11612
  %v11617 = vcombine.high %v11545, %v11545
  %v11619 = vunpack.c.l.s4 1966171168
  %v11620 = vunpack.c.0.s8 %v11619
  %v11621 = vlaneseq
  %v11622 = vshrl.u32 %v11621, 7
  %v11623 = vsub.s32 %v11620, %v11622
  %v11624 = vrot.slane %v11545, %v11623
  %v11626 = vunpack.c.l.s4 1966171168
  %v11627 = vunpack.c.0.s8 %v11626
  %v11628 = vlaneseq
  %v11629 = vshrl.u32 %v11628, 7
  %v11630 = vsub.s32 %v11627, %v11629
  %v11631 = vrot.slane %v11617, %v11630
  %v11632 = vcombine.high %v11624, %v11624
  %v11633 = vcombine.high %v11631, %v11631
  %v11635 = vunpack.c.l.s4 1966171168
  %v11636 = vunpack.c.0.s8 %v11635
  %v11637 = vlaneseq
  %v11638 = vshrl.u32 %v11637, 7
  %v11639 = vsub.s32 %v11636, %v11638
  %v11640 = vrot.slane %v11624, %v11639
  %v11642 = vunpack.c.l.s4 1966171168
  %v11643 = vunpack.c.0.s8 %v11642
  %v11644 = vlaneseq
  %v11645 = vshrl.u32 %v11644, 7
  %v11646 = vsub.s32 %v11643, %v11645
  %v11647 = vrot.slane %v11631, %v11646
  %v11649 = vunpack.c.l.s4 1966171168
  %v11650 = vunpack.c.0.s8 %v11649
  %v11651 = vlaneseq
  %v11652 = vshrl.u32 %v11651, 7
  %v11653 = vsub.s32 %v11650, %v11652
  %v11654 = vrot.slane %v11632, %v11653
  %v11656 = vunpack.c.l.s4 1966171168
  %v11657 = vunpack.c.0.s8 %v11656
  %v11658 = vlaneseq
  %v11659 = vshrl.u32 %v11658, 7
  %v11660 = vsub.s32 %v11657, %v11659
  %v11661 = vrot.slane %v11633, %v11660
  %v11662 = vcombine.high %v11640, %v11640
  %v11663 = vcombine.high %v11647, %v11647
  %v11664 = vcombine.high %v11654, %v11654
  %v11665 = vcombine.high %v11661, %v11661
  %v11666 = vcombine.high %v11550, %v11550
  %v11668 = vunpack.c.l.s4 1966171168
  %v11669 = vunpack.c.0.s8 %v11668
  %v11670 = vlaneseq
  %v11671 = vshrl.u32 %v11670, 7
  %v11672 = vsub.s32 %v11669, %v11671
  %v11673 = vrot.slane %v11550, %v11672
  %v11675 = vunpack.c.l.s4 1966171168
  %v11676 = vunpack.c.0.s8 %v11675
  %v11677 = vlaneseq
  %v11678 = vshrl.u32 %v11677, 7
  %v11679 = vsub.s32 %v11676, %v11678
  %v11680 = vrot.slane %v11666, %v11679
  %v11681 = vcombine.high %v11673, %v11673
  %v11682 = vcombine.high %v11680, %v11680
  %v11684 = vunpack.c.l.s4 1966171168
  %v11685 = vunpack.c.0.s8 %v11684
  %v11686 = vlaneseq
  %v11687 = vshrl.u32 %v11686, 7
  %v11688 = vsub.s32 %v11685, %v11687
  %v11689 = vrot.slane %v11673, %v11688
  %v11691 = vunpack.c.l.s4 1966171168
  %v11692 = vunpack.c.0.s8 %v11691
  %v11693 = vlaneseq
  %v11694 = vshrl.u32 %v11693, 7
  %v11695 = vsub.s32 %v11692, %v11694
  %v11696 = vrot.slane %v11680, %v11695
  %v11698 = vunpack.c.l.s4 1966171168
  %v11699 = vunpack.c.0.s8 %v11698
  %v11700 = vlaneseq
  %v11701 = vshrl.u32 %v11700, 7
  %v11702 = vsub.s32 %v11699, %v11701
  %v11703 = vrot.slane %v11681, %v11702
  %v11705 = vunpack.c.l.s4 1966171168
  %v11706 = vunpack.c.0.s8 %v11705
  %v11707 = vlaneseq
  %v11708 = vshrl.u32 %v11707, 7
  %v11709 = vsub.s32 %v11706, %v11708
  %v11710 = vrot.slane %v11682, %v11709
  %v11711 = vcombine.high %v11689, %v11689
  %v11712 = vcombine.high %v11696, %v11696
  %v11713 = vcombine.high %v11703, %v11703
  %v11714 = vcombine.high %v11710, %v11710
  %v11715 = vcombine.high %v11553, %v11553
  %v11717 = vunpack.c.l.s4 1966171168
  %v11718 = vunpack.c.0.s8 %v11717
  %v11719 = vlaneseq
  %v11720 = vshrl.u32 %v11719, 7
  %v11721 = vsub.s32 %v11718, %v11720
  %v11722 = vrot.slane %v11553, %v11721
  %v11724 = vunpack.c.l.s4 1966171168
  %v11725 = vunpack.c.0.s8 %v11724
  %v11726 = vlaneseq
  %v11727 = vshrl.u32 %v11726, 7
  %v11728 = vsub.s32 %v11725, %v11727
  %v11729 = vrot.slane %v11715, %v11728
  %v11730 = vcombine.high %v11722, %v11722
  %v11731 = vcombine.high %v11729, %v11729
  %v11733 = vunpack.c.l.s4 1966171168
  %v11734 = vunpack.c.0.s8 %v11733
  %v11735 = vlaneseq
  %v11736 = vshrl.u32 %v11735, 7
  %v11737 = vsub.s32 %v11734, %v11736
  %v11738 = vrot.slane %v11722, %v11737
  %v11740 = vunpack.c.l.s4 1966171168
  %v11741 = vunpack.c.0.s8 %v11740
  %v11742 = vlaneseq
  %v11743 = vshrl.u32 %v11742, 7
  %v11744 = vsub.s32 %v11741, %v11743
  %v11745 = vrot.slane %v11729, %v11744
  %v11747 = vunpack.c.l.s4 1966171168
  %v11748 = vunpack.c.0.s8 %v11747
  %v11749 = vlaneseq
  %v11750 = vshrl.u32 %v11749, 7
  %v11751 = vsub.s32 %v11748, %v11750
  %v11752 = vrot.slane %v11730, %v11751
  %v11754 = vunpack.c.l.s4 1966171168
  %v11755 = vunpack.c.0.s8 %v11754
  %v11756 = vlaneseq
  %v11757 = vshrl.u32 %v11756, 7
  %v11758 = vsub.s32 %v11755, %v11757
  %v11759 = vrot.slane %v11731, %v11758
  %v11760 = vcombine.high %v11738, %v11738
  %v11761 = vcombine.high %v11745, %v11745
  %v11762 = vcombine.high %v11752, %v11752
  %v11763 = vcombine.high %v11759, %v11759
  %v11765 = vunpack.c.l.s4 1966171168
  %v11766 = vunpack.c.0.s8 %v11765
  %v11767 = vlaneseq
  %v11768 = vshrl.u32 %v11767, 7
  %v11769 = vsub.s32 %v11766, %v11768
  %v11770 = vrot.slane %v11558, %v11769
  %v11771 = vcombine.high %v11770, %v11770
  %v11773 = vunpack.c.l.s4 1966171168
  %v11774 = vunpack.c.0.s8 %v11773
  %v11775 = vlaneseq
  %v11776 = vshrl.u32 %v11775, 7
  %v11777 = vsub.s32 %v11774, %v11776
  %v11778 = vrot.slane %v11770, %v11777
  %v11780 = vunpack.c.l.s4 1966171168
  %v11781 = vunpack.c.0.s8 %v11780
  %v11782 = vlaneseq
  %v11783 = vshrl.u32 %v11782, 7
  %v11784 = vsub.s32 %v11781, %v11783
  %v11785 = vrot.slane %v11771, %v11784
  %v11786 = vcombine.low %v11591, %v11605
  %v11787 = vcombine.low %v11613, %v11615
  %v11788 = vcombine.low %v11598, %v11612
  %v11789 = vcombine.low %v11614, %v11616
  %v11791 = vunpack.c.l.s4 1966171168
  %v11792 = vunpack.c.0.s8 %v11791
  %v11793 = vlaneseq
  %v11794 = vshrl.u32 %v11793, 7
  %v11795 = vsub.s32 %v11792, %v11794
  %v11796 = vrot.slane %v11786, %v11795
  %v11798 = vunpack.c.l.s4 1966171168
  %v11799 = vunpack.c.0.s8 %v11798
  %v11800 = vlaneseq
  %v11801 = vshrl.u32 %v11800, 7
  %v11802 = vsub.s32 %v11799, %v11801
  %v11803 = vrot.slane %v11787, %v11802
  %v11805 = vunpack.c.l.s4 1966171168
  %v11806 = vunpack.c.0.s8 %v11805
  %v11807 = vlaneseq
  %v11808 = vshrl.u32 %v11807, 7
  %v11809 = vsub.s32 %v11806, %v11808
  %v11810 = vrot.slane %v11788, %v11809
  %v11812 = vunpack.c.l.s4 1966171168
  %v11813 = vunpack.c.0.s8 %v11812
  %v11814 = vlaneseq
  %v11815 = vshrl.u32 %v11814, 7
  %v11816 = vsub.s32 %v11813, %v11815
  %v11817 = vrot.slane %v11789, %v11816
  %v11818 = vcombine.low %v11796, %v11803
  %v11819 = vcombine.low %v11810, %v11817
  %v11821 = vunpack.c.l.s4 1966171168
  %v11822 = vunpack.c.0.s8 %v11821
  %v11823 = vlaneseq
  %v11824 = vshrl.u32 %v11823, 7
  %v11825 = vsub.s32 %v11822, %v11824
  %v11826 = vrot.slane %v11818, %v11825
  %v11828 = vunpack.c.l.s4 1966171168
  %v11829 = vunpack.c.0.s8 %v11828
  %v11830 = vlaneseq
  %v11831 = vshrl.u32 %v11830, 7
  %v11832 = vsub.s32 %v11829, %v11831
  %v11833 = vrot.slane %v11819, %v11832
  %v11834 = vcombine.low %v11826, %v11833
  %v11835 = vcombine.low %v11640, %v11654
  %v11836 = vcombine.low %v11662, %v11664
  %v11837 = vcombine.low %v11647, %v11661
  %v11838 = vcombine.low %v11663, %v11665
  %v11840 = vunpack.c.l.s4 1966171168
  %v11841 = vunpack.c.0.s8 %v11840
  %v11842 = vlaneseq
  %v11843 = vshrl.u32 %v11842, 7
  %v11844 = vsub.s32 %v11841, %v11843
  %v11845 = vrot.slane %v11835, %v11844
  %v11847 = vunpack.c.l.s4 1966171168
  %v11848 = vunpack.c.0.s8 %v11847
  %v11849 = vlaneseq
  %v11850 = vshrl.u32 %v11849, 7
  %v11851 = vsub.s32 %v11848, %v11850
  %v11852 = vrot.slane %v11836, %v11851
  %v11854 = vunpack.c.l.s4 1966171168
  %v11855 = vunpack.c.0.s8 %v11854
  %v11856 = vlaneseq
  %v11857 = vshrl.u32 %v11856, 7
  %v11858 = vsub.s32 %v11855, %v11857
  %v11859 = vrot.slane %v11837, %v11858
  %v11861 = vunpack.c.l.s4 1966171168
  %v11862 = vunpack.c.0.s8 %v11861
  %v11863 = vlaneseq
  %v11864 = vshrl.u32 %v11863, 7
  %v11865 = vsub.s32 %v11862, %v11864
  %v11866 = vrot.slane %v11838, %v11865
  %v11867 = vcombine.low %v11845, %v11852
  %v11868 = vcombine.low %v11859, %v11866
  %v11870 = vunpack.c.l.s4 1966171168
  %v11871 = vunpack.c.0.s8 %v11870
  %v11872 = vlaneseq
  %v11873 = vshrl.u32 %v11872, 7
  %v11874 = vsub.s32 %v11871, %v11873
  %v11875 = vrot.slane %v11867, %v11874
  %v11877 = vunpack.c.l.s4 1966171168
  %v11878 = vunpack.c.0.s8 %v11877
  %v11879 = vlaneseq
  %v11880 = vshrl.u32 %v11879, 7
  %v11881 = vsub.s32 %v11878, %v11880
  %v11882 = vrot.slane %v11868, %v11881
  %v11883 = vcombine.low %v11875, %v11882
  %v11885 = vunpack.c.l.s4 1966171168
  %v11886 = vunpack.c.0.s8 %v11885
  %v11887 = vlaneseq
  %v11888 = vshrl.u32 %v11887, 7
  %v11889 = vsub.s32 %v11886, %v11888
  %v11890 = vrot.slane %v11689, %v11889
  %v11892 = vunpack.c.l.s4 1966171168
  %v11893 = vunpack.c.0.s8 %v11892
  %v11894 = vlaneseq
  %v11895 = vshrl.u32 %v11894, 7
  %v11896 = vsub.s32 %v11893, %v11895
  %v11897 = vrot.slane %v11890, %v11896
  %v11898 = vcombine.low %v11703, %v11711
  %v11899 = vcombine.low %v11713, %v11696
  %v11900 = vcombine.low %v11710, %v11712
  %v11901 = vcombine.low %v11714, %v11738
  %v11903 = vunpack.c.l.s4 1966171168
  %v11904 = vunpack.c.0.s8 %v11903
  %v11905 = vlaneseq
  %v11906 = vshrl.u32 %v11905, 7
  %v11907 = vsub.s32 %v11904, %v11906
  %v11908 = vrot.slane %v11898, %v11907
  %v11910 = vunpack.c.l.s4 1966171168
  %v11911 = vunpack.c.0.s8 %v11910
  %v11912 = vlaneseq
  %v11913 = vshrl.u32 %v11912, 7
  %v11914 = vsub.s32 %v11911, %v11913
  %v11915 = vrot.slane %v11899, %v11914
  %v11917 = vunpack.c.l.s4 1966171168
  %v11918 = vunpack.c.0.s8 %v11917
  %v11919 = vlaneseq
  %v11920 = vshrl.u32 %v11919, 7
  %v11921 = vsub.s32 %v11918, %v11920
  %v11922 = vrot.slane %v11900, %v11921
  %v11924 = vunpack.c.l.s4 1966171168
  %v11925 = vunpack.c.0.s8 %v11924
  %v11926 = vlaneseq
  %v11927 = vshrl.u32 %v11926, 7
  %v11928 = vsub.s32 %v11925, %v11927
  %v11929 = vrot.slane %v11901, %v11928
  %v11930 = vcombine.low %v11908, %v11915
  %v11931 = vcombine.low %v11922, %v11929
  %v11933 = vunpack.c.l.s4 1966171168
  %v11934 = vunpack.c.0.s8 %v11933
  %v11935 = vlaneseq
  %v11936 = vshrl.u32 %v11935, 7
  %v11937 = vsub.s32 %v11934, %v11936
  %v11938 = vrot.slane %v11930, %v11937
  %v11940 = vunpack.c.l.s4 1966171168
  %v11941 = vunpack.c.0.s8 %v11940
  %v11942 = vlaneseq
  %v11943 = vshrl.u32 %v11942, 7
  %v11944 = vsub.s32 %v11941, %v11943
  %v11945 = vrot.slane %v11931, %v11944
  %v11946 = vcombine.low %v11938, %v11945
  %v11947 = vcombine.low %v11752, %v11760
  %v11948 = vcombine.low %v11762, %v11745
  %v11949 = vcombine.low %v11759, %v11761
  %v11950 = vcombine.low %v11763, %v11778
  %v11952 = vunpack.c.l.s4 1966171168
  %v11953 = vunpack.c.0.s8 %v11952
  %v11954 = vlaneseq
  %v11955 = vshrl.u32 %v11954, 7
  %v11956 = vsub.s32 %v11953, %v11955
  %v11957 = vrot.slane %v11947, %v11956
  %v11959 = vunpack.c.l.s4 1966171168
  %v11960 = vunpack.c.0.s8 %v11959
  %v11961 = vlaneseq
  %v11962 = vshrl.u32 %v11961, 7
  %v11963 = vsub.s32 %v11960, %v11962
  %v11964 = vrot.slane %v11948, %v11963
  %v11966 = vunpack.c.l.s4 1966171168
  %v11967 = vunpack.c.0.s8 %v11966
  %v11968 = vlaneseq
  %v11969 = vshrl.u32 %v11968, 7
  %v11970 = vsub.s32 %v11967, %v11969
  %v11971 = vrot.slane %v11949, %v11970
  %v11973 = vunpack.c.l.s4 1966171168
  %v11974 = vunpack.c.0.s8 %v11973
  %v11975 = vlaneseq
  %v11976 = vshrl.u32 %v11975, 7
  %v11977 = vsub.s32 %v11974, %v11976
  %v11978 = vrot.slane %v11950, %v11977
  %v11979 = vcombine.low %v11957, %v11964
  %v11980 = vcombine.low %v11971, %v11978
  %v11982 = vunpack.c.l.s4 1966171168
  %v11983 = vunpack.c.0.s8 %v11982
  %v11984 = vlaneseq
  %v11985 = vshrl.u32 %v11984, 7
  %v11986 = vsub.s32 %v11983, %v11985
  %v11987 = vrot.slane %v11979, %v11986
  %v11989 = vunpack.c.l.s4 1966171168
  %v11990 = vunpack.c.0.s8 %v11989
  %v11991 = vlaneseq
  %v11992 = vshrl.u32 %v11991, 7
  %v11993 = vsub.s32 %v11990, %v11992
  %v11994 = vrot.slane %v11980, %v11993
  %v11995 = vcombine.low %v11987, %v11994
  %v11997 = vunpack.c.l.s4 1966171168
  %v11998 = vunpack.c.0.s8 %v11997
  %v11999 = vlaneseq
  %v12000 = vshrl.u32 %v11999, 7
  %v12001 = vsub.s32 %v11998, %v12000
  %v12002 = vrot.slane %v11785, %v12001
  %v12004 = vunpack.c.l.s4 1966171168
  %v12005 = vunpack.c.0.s8 %v12004
  %v12006 = vlaneseq
  %v12007 = vshrl.u32 %v12006, 7
  %v12008 = vsub.s32 %v12005, %v12007
  %v12009 = vrot.slane %v12002, %v12008
  %v12016 = vadd.f32 %v10887, %v11834
  %v12017 = vadd.f32 %v10888, %v11883
  %v12018 = vadd.f32 %v10889, %v11897
  %v12019 = vadd.f32 %v10890, %v11946
  %v12020 = vadd.f32 %v10891, %v11995
  %v12021 = vadd.f32 %v10892, %v12009
  %v12022 = vld [vmem:[%s16] sm:$0xff]
  %v12023 = vld [vmem:[%s16 + $0x8] sm:$0xff]
  %v12024 = vld [vmem:[%s17] sm:$0xff]
  %v12025 = vld [vmem:[%s17 + $0x8] sm:$0xff]
  %v12026 = vsel %vm527, %v12016, 0.0
  %12027 = vadd.xlane.f32.xlu0 %v12026
  %v12028 = vpop.xlane.xlu0 %12027
  %v12029 = vsel %vm527, %v12017, 0.0
  %12030 = vadd.xlane.f32.xlu0 %v12029
  %v12031 = vpop.xlane.xlu0 %12030
  %v12032 = vsel %vm10774, %v12018, 0.0
  %12033 = vadd.xlane.f32.xlu0 %v12032
  %v12034 = vpop.xlane.xlu0 %12033
  %v12035 = vsel %vm527, %v12019, 0.0
  %12036 = vadd.xlane.f32.xlu0 %v12035
  %v12037 = vpop.xlane.xlu0 %12036
  %v12038 = vsel %vm527, %v12020, 0.0
  %12039 = vadd.xlane.f32.xlu0 %v12038
  %v12040 = vpop.xlane.xlu0 %12039
  %v12041 = vsel %vm10774, %v12021, 0.0
  %12042 = vadd.xlane.f32.xlu0 %v12041
  %v12043 = vpop.xlane.xlu0 %12042
  %v12044 = vmul.f32 %v12028, %v10787
  %v12045 = vmul.f32 %v12031, %v10787
  %v12046 = vmul.f32 %v12034, %v10787
  %v12047 = vmul.f32 %v12037, %v10787
  %v12048 = vmul.f32 %v12040, %v10787
  %v12049 = vmul.f32 %v12043, %v10787
  %v12050 = vadd.f32 %v12044, %v12045
  %v12051 = vsel %vm68, %v12046, 0.0
  %v12052 = vadd.f32 %v12050, %v12051
  %v12053 = vrot.slane %v12052, 4
  %v12054 = vadd.f32 %v12052, %v12053
  %v12055 = vrot.slane %v12054, 2
  %v12056 = vadd.f32 %v12054, %v12055
  %v12057 = vrot.slane %v12056, 1
  %v12058 = vadd.f32 %v12056, %v12057
  %v12059 = vadd.f32 %v12047, %v12048
  %v12060 = vsel %vm68, %v12049, 0.0
  %v12061 = vadd.f32 %v12059, %v12060
  %v12062 = vrot.slane %v12061, 4
  %v12063 = vadd.f32 %v12061, %v12062
  %v12064 = vrot.slane %v12063, 2
  %v12065 = vadd.f32 %v12063, %v12064
  %v12066 = vrot.slane %v12065, 1
  %v12067 = vadd.f32 %v12065, %v12066
  %v12068 = vmul.f32 %v12058, %v10812
  %v12069 = vmul.f32 %v12067, %v10812
  %v12070 = vsub.f32 %v12016, %v12068
  %v12071 = vsub.f32 %v12017, %v12068
  %v12072 = vsub.f32 %v12018, %v12068
  %v12073 = vsub.f32 %v12019, %v12069
  %v12074 = vsub.f32 %v12020, %v12069
  %v12075 = vsub.f32 %v12021, %v12069
  %v12076 = vmul.f32 %v12070, %v12070
  %v12077 = vmul.f32 %v12071, %v12071
  %v12078 = vmul.f32 %v12072, %v12072
  %v12079 = vmul.f32 %v12073, %v12073
  %v12080 = vmul.f32 %v12074, %v12074
  %v12081 = vmul.f32 %v12075, %v12075
  %v12082 = vsel %vm527, %v12076, 0.0
  %12083 = vadd.xlane.f32.xlu0 %v12082
  %v12084 = vpop.xlane.xlu0 %12083
  %v12085 = vsel %vm527, %v12077, 0.0
  %12086 = vadd.xlane.f32.xlu0 %v12085
  %v12087 = vpop.xlane.xlu0 %12086
  %v12088 = vsel %vm10774, %v12078, 0.0
  %12089 = vadd.xlane.f32.xlu0 %v12088
  %v12090 = vpop.xlane.xlu0 %12089
  %v12091 = vsel %vm527, %v12079, 0.0
  %12092 = vadd.xlane.f32.xlu0 %v12091
  %v12093 = vpop.xlane.xlu0 %12092
  %v12094 = vsel %vm527, %v12080, 0.0
  %12095 = vadd.xlane.f32.xlu0 %v12094
  %v12096 = vpop.xlane.xlu0 %12095
  %v12097 = vsel %vm10774, %v12081, 0.0
  %12098 = vadd.xlane.f32.xlu0 %v12097
  %v12099 = vpop.xlane.xlu0 %12098
  %v12100 = vmul.f32 %v12084, %v10787
  %v12101 = vmul.f32 %v12087, %v10787
  %v12102 = vmul.f32 %v12090, %v10787
  %v12103 = vmul.f32 %v12093, %v10787
  %v12104 = vmul.f32 %v12096, %v10787
  %v12105 = vmul.f32 %v12099, %v10787
  %v12106 = vadd.f32 %v12100, %v12101
  %v12107 = vsel %vm68, %v12102, 0.0
  %v12108 = vadd.f32 %v12106, %v12107
  %v12109 = vrot.slane %v12108, 4
  %v12110 = vadd.f32 %v12108, %v12109
  %v12111 = vrot.slane %v12110, 2
  %v12112 = vadd.f32 %v12110, %v12111
  %v12113 = vrot.slane %v12112, 1
  %v12114 = vadd.f32 %v12112, %v12113
  %v12115 = vadd.f32 %v12103, %v12104
  %v12116 = vsel %vm68, %v12105, 0.0
  %v12117 = vadd.f32 %v12115, %v12116
  %v12118 = vrot.slane %v12117, 4
  %v12119 = vadd.f32 %v12117, %v12118
  %v12120 = vrot.slane %v12119, 2
  %v12121 = vadd.f32 %v12119, %v12120
  %v12122 = vrot.slane %v12121, 1
  %v12123 = vadd.f32 %v12121, %v12122
  %v12124 = vmul.f32 %v12114, %v10812
  %v12125 = vmul.f32 %v12123, %v10812
  %v12126 = vadd.f32 %v12124, 1e-06
  %v12127 = vadd.f32 %v12125, 1e-06
  %v12128 = vrsqrt.pop %v12126
  %v12129 = vrsqrt.pop %v12127
  %v12130 = vmul.f32 %v12070, %v12128
  %v12131 = vmul.f32 %v12071, %v12128
  %v12132 = vmul.f32 %v12073, %v12129
  %v12133 = vmul.f32 %v12074, %v12129
  %v12134 = vmul.f32 %v12130, %v12022
  %v12135 = vmul.f32 %v12131, %v12023
  %v12136 = vmul.f32 %v12132, %v12022
  %v12137 = vmul.f32 %v12133, %v12023
  %v12138 = vadd.f32 %v12134, %v12024
  %v12139 = vadd.f32 %v12135, %v12025
  %v12140 = vadd.f32 %v12136, %v12024
  %v12141 = vadd.f32 %v12137, %v12025
  %12142 = vst.msk [vmem:[%s18] sm:$0xff] %vm527, %v12138
  %12143 = vst.msk [vmem:[%s18 + $0x8] sm:$0x1] %vm10774, %v12139
  %12144 = vst.msk [vmem:[%s18 + $0x10] sm:$0xff] %vm527, %v12140
  %12145 = vst.msk [vmem:[%s18 + $0x18] sm:$0x1] %vm10774, %v12141
  // Predicated region
  $region74: #{tpu_custom_call.1} parent=0 // pred_check
    _
  $region75: #{tpu_custom_call.1} parent=0 // pred_check_branch
    %12147 = sbr.rel (0) target = $region77
  $region76: #{tpu_custom_call.1} parent=0 // pred_region
    _
  $region77: #{tpu_custom_call.1} parent=0 // pred_fallthru
    _
  // Predicated region
  $region78: #{tpu_custom_call.1} parent=0 // pred_check
    _
  $region79: #{tpu_custom_call.1} parent=0 // pred_check_branch
    %12149 = sbr.rel (0) target = $region81
  $region80: #{tpu_custom_call.1} parent=0 // pred_region
    _
  $region81: #{tpu_custom_call.1} parent=0 // pred_fallthru
    _

</llo_original>
